<compile_context>
chip_gen: v7x
topology: tpu7x:2x2x1
jax: 0.10.0
libtpu: 0.0.40
codegen_flags: <defaults>
</compile_context>

<pallas_src>
import functools
import math

import jax
import jax.numpy as jnp
from jax.experimental import pallas as pl
from jax.experimental.pallas import tpu as pltpu


# ----------------------------------------------------------------------------
# Model hyper-parameters (small, wav2vec2-shaped synthetic stand-in)
# ----------------------------------------------------------------------------
CONV_CFG = [          # (out_channels, kernel, stride)
    (32, 10, 5),
    (32, 4, 2),
]
HIDDEN = 32
NUM_HEADS = 4
DH = HIDDEN // NUM_HEADS
FFN = 64
H_PAD = 128           # lane-dense padded channel width
LN_EPS = 1e-5
VMEM_LIMIT = 32 * 1024 * 1024

K1, S1 = CONV_CFG[0][1], CONV_CFG[0][2]
K2, S2 = CONV_CFG[1][1], CONV_CFG[1][2]
GROUP = S1 * S2       # combined stride = audio samples per input group row
# The fused even/odd conv formulation below is specialized to this geometry.
assert K1 == GROUP and K2 == 2 * S2


def _round8(n):
    return ((n + 7) // 8) * 8


# ----------------------------------------------------------------------------
# Static blob layouts (row offsets into the packed weight / bias blobs)
# ----------------------------------------------------------------------------
def _build_w_layout():
    off, cur = {}, 0

    def alloc(name, rows):
        nonlocal cur
        off[name] = cur
        cur += _round8(rows)

    alloc("w1f", K1)                     # conv1 full kernel   [10 ,128]
    alloc("w1a", K1)                     # conv1 half-shift A  [10 ,128]
    alloc("w1b", K1)                     # conv1 half-shift B  [10 ,128]
    for j in range(K2):
        alloc(f"w2_{j}", H_PAD)          # conv2 tap j         [128,128]
    alloc("wproj", H_PAD)                # post-extract proj   [128,128]
    for n in ("wq", "wk", "wv", "wo"):
        for h in range(NUM_HEADS):
            alloc(f"{n}{h}", H_PAD)      # per-head attn       [128,128]
    alloc("wff1", H_PAD)                 # FFN up              [128,128]
    alloc("wff2", H_PAD)                 # FFN down            [128,128]
    off["_rows"] = cur
    return off


W_LAYOUT = _build_w_layout()
W_ROWS = W_LAYOUT["_rows"]

_B_NAMES = (["b1", "b2", "lnf_g", "lnf_b", "bproj"]
            + [f"bq{h}" for h in range(NUM_HEADS)]
            + [f"bk{h}" for h in range(NUM_HEADS)]
            + [f"bv{h}" for h in range(NUM_HEADS)]
            + ["bo", "ln1_g", "ln1_b", "bff1", "bff2", "ln2_g", "ln2_b"])
B_LAYOUT = {n: i for i, n in enumerate(_B_NAMES)}
B_ROWS = _round8(len(_B_NAMES))


# ----------------------------------------------------------------------------
# In-kernel math helpers (operate on values, not refs)
# ----------------------------------------------------------------------------
def _gelu(x):
    # tanh-approx GELU; GELU(0) == 0 so zero-padded channels stay zero.
    return 0.5 * x * (1.0 + jnp.tanh(0.7978845608028654 * (x + 0.044715 * x * x * x)))


def _layernorm_masked(x, g, b, cmask, real_n, eps):
    """LayerNorm over first `real_n` channels of a zero-padded [T, H_PAD] value.

    Two-pass variance; padded channels are masked out of the variance sum and
    stay exactly zero on output because gamma/beta are zero-padded.
    """
    inv_n = 1.0 / real_n
    mean = jnp.sum(x, axis=-1, keepdims=True) * inv_n
    xc = x - mean
    var = jnp.sum(jnp.where(cmask, xc * xc, 0.0), axis=-1, keepdims=True) * inv_n
    return xc * jax.lax.rsqrt(var + eps) * g + b


# ----------------------------------------------------------------------------
# Fused kernel: conv1 + conv2 + feature-LN + proj + MHSA + FFN + LNs
# ----------------------------------------------------------------------------
def _fused_kernel(g_ref, w_ref, b_ref, o_ref, *, t2_real, nt):
    t2p = o_ref.shape[1]

    def w(name, rows=H_PAD):
        off = W_LAYOUT[name]
        return w_ref[off:off + rows, :]

    def bias(name):
        r = B_LAYOUT[name]
        return b_ref[r:r + 1, :]

    def mm(x_bf16, wname, rows=H_PAD):
        return jnp.dot(x_bf16, w(wname, rows), preferred_element_type=jnp.float32)

    # ---- conv layer 1: even/odd output rows via combined-stride grouping ----
    g = g_ref[0]                                    # [nr, GROUP] f32
    g0 = g[0:nt].astype(jnp.bfloat16)
    g1 = g[1:nt + 1].astype(jnp.bfloat16)
    b1 = bias("b1")
    h_even = _gelu(mm(g0, "w1f", K1) + b1)          # h1[2t]   -> [nt, 128]
    h_odd = _gelu(mm(g0, "w1a", K1) + mm(g1, "w1b", K1) + b1)   # h1[2t+1]

    # ---- conv layer 2: stride-2 taps are shifted slices of even/odd series ----
    h = (mm(h_even[0:t2p].astype(jnp.bfloat16), "w2_0")
         + mm(h_odd[0:t2p].astype(jnp.bfloat16), "w2_1")
         + mm(h_even[1:t2p + 1].astype(jnp.bfloat16), "w2_2")
         + mm(h_odd[1:t2p + 1].astype(jnp.bfloat16), "w2_3"))
    h = _gelu(h + bias("b2"))                       # [t2p, 128]

    # masks, built once
    cmask = jax.lax.broadcasted_iota(jnp.int32, (t2p, H_PAD), 1) < HIDDEN
    kbias = jnp.where(
        jax.lax.broadcasted_iota(jnp.int32, (t2p, t2p), 1) < t2_real,
        0.0, -1e30).astype(jnp.float32)

    # ---- feature LayerNorm + post-extract projection ----
    h = _layernorm_masked(h, bias("lnf_g"), bias("lnf_b"), cmask, HIDDEN, LN_EPS)
    h = mm(h.astype(jnp.bfloat16), "wproj") + bias("bproj")

    # ---- MHSA: per-head pre-sliced weights, no value lane slicing / concat ----
    hb = h.astype(jnp.bfloat16)
    attn = jnp.zeros((t2p, H_PAD), jnp.float32)
    for hh in range(NUM_HEADS):
        q = mm(hb, f"wq{hh}") + bias(f"bq{hh}")     # scale folded into wq/bq
        k = mm(hb, f"wk{hh}") + bias(f"bk{hh}")
        v = mm(hb, f"wv{hh}") + bias(f"bv{hh}")
        s = jax.lax.dot_general(q.astype(jnp.bfloat16), k.astype(jnp.bfloat16),
                                (((1,), (1,)), ((), ())),
                                preferred_element_type=jnp.float32) + kbias
        m = jnp.max(s, axis=-1, keepdims=True)
        p = jnp.exp(s - m)
        p = p * pl.reciprocal(jnp.sum(p, axis=-1, keepdims=True), approx=True)
        o = jnp.dot(p.astype(jnp.bfloat16), v.astype(jnp.bfloat16),
                    preferred_element_type=jnp.float32)
        attn = attn + mm(o.astype(jnp.bfloat16), f"wo{hh}")
    attn = attn + bias("bo")

    # ---- residual + LN1, FFN (padded to 128 lanes), residual + LN2 ----
    x1 = _layernorm_masked(h + attn, bias("ln1_g"), bias("ln1_b"), cmask, HIDDEN, LN_EPS)
    ff = _gelu(mm(x1.astype(jnp.bfloat16), "wff1") + bias("bff1"))
    ff = mm(ff.astype(jnp.bfloat16), "wff2") + bias("bff2")
    out = _layernorm_masked(x1 + ff, bias("ln2_g"), bias("ln2_b"), cmask, HIDDEN, LN_EPS)
    o_ref[0] = out.astype(o_ref.dtype)


# ----------------------------------------------------------------------------
# Parameters: deterministic synthetic weights + one-time blob packing
# ----------------------------------------------------------------------------
def init_params(key):
    def nrm(key, shape, scale=0.02):
        return (scale * jax.random.normal(key, shape)).astype(jnp.float32)

    keys = jax.random.split(key, 16)
    p = {}
    c_in = 1
    for li, (c_out, k, _s) in enumerate(CONV_CFG):
        p[f"w_c{li}"] = nrm(keys[li], (k * c_in, c_out))
        p[f"b_c{li}"] = jnp.zeros((c_out,), jnp.float32)
        c_in = c_out
    p["ln_fe_g"] = jnp.ones((c_in,), jnp.float32)
    p["ln_fe_b"] = jnp.zeros((c_in,), jnp.float32)
    p["w_proj"] = nrm(keys[2], (c_in, HIDDEN))
    p["b_proj"] = jnp.zeros((HIDDEN,), jnp.float32)
    for name, ki in (("q", 3), ("k", 4), ("v", 5), ("o", 6)):
        p[f"w_{name}"] = nrm(keys[ki], (HIDDEN, HIDDEN))
        p[f"b_{name}"] = jnp.zeros((HIDDEN,), jnp.float32)
    p["ln1_g"] = jnp.ones((HIDDEN,), jnp.float32)
    p["ln1_b"] = jnp.zeros((HIDDEN,), jnp.float32)
    p["w_ff1"] = nrm(keys[7], (HIDDEN, FFN))
    p["b_ff1"] = jnp.zeros((FFN,), jnp.float32)
    p["w_ff2"] = nrm(keys[8], (FFN, HIDDEN))
    p["b_ff2"] = jnp.zeros((HIDDEN,), jnp.float32)
    p["ln2_g"] = jnp.ones((HIDDEN,), jnp.float32)
    p["ln2_b"] = jnp.zeros((HIDDEN,), jnp.float32)
    return p


def prepare_params(p):
    """Pack all weights into one bf16 blob and one f32 bias/LN blob."""
    c1out = CONV_CFG[0][0]
    c2out = CONV_CFG[1][0]
    scale = 1.0 / math.sqrt(DH)

    wb = jnp.zeros((W_ROWS, H_PAD), jnp.float32)

    def put(blob, name, arr):
        r, c = arr.shape
        off = W_LAYOUT[name]
        return blob.at[off:off + r, :c].set(arr.astype(jnp.float32))

    # conv1: full kernel + the two half-shifted kernels for odd output rows
    w1 = p["w_c0"]                                         # [K1, c1out]
    half = K1 // 2
    w1a = jnp.zeros((K1, c1out), jnp.float32).at[half:, :].set(w1[:half])
    w1b = jnp.zeros((K1, c1out), jnp.float32).at[:half, :].set(w1[half:])
    wb = put(wb, "w1f", w1)
    wb = put(wb, "w1a", w1a)
    wb = put(wb, "w1b", w1b)

    # conv2: one [c_in, c_out] chunk per kernel tap
    w2 = p["w_c1"].reshape(K2, c1out, c2out)
    for j in range(K2):
        wb = put(wb, f"w2_{j}", w2[j])

    wb = put(wb, "wproj", p["w_proj"])

    # per-head attention weights; softmax scale folded into Wq / bq
    for h in range(NUM_HEADS):
        sl = slice(h * DH, (h + 1) * DH)
        wb = put(wb, f"wq{h}", p["w_q"][:, sl] * scale)
        wb = put(wb, f"wk{h}", p["w_k"][:, sl])
        wb = put(wb, f"wv{h}", p["w_v"][:, sl])
        wb = put(wb, f"wo{h}", p["w_o"][sl, :])

    wb = put(wb, "wff1", p["w_ff1"])
    wb = put(wb, "wff2", p["w_ff2"])

    bb = jnp.zeros((B_ROWS, H_PAD), jnp.float32)

    def putb(blob, name, vec):
        return blob.at[B_LAYOUT[name], :vec.shape[0]].set(vec.astype(jnp.float32))

    bb = putb(bb, "b1", p["b_c0"])
    bb = putb(bb, "b2", p["b_c1"])
    bb = putb(bb, "lnf_g", p["ln_fe_g"])
    bb = putb(bb, "lnf_b", p["ln_fe_b"])
    bb = putb(bb, "bproj", p["b_proj"])
    for h in range(NUM_HEADS):
        sl = slice(h * DH, (h + 1) * DH)
        bb = putb(bb, f"bq{h}", p["b_q"][sl] * scale)
        bb = putb(bb, f"bk{h}", p["b_k"][sl])
        bb = putb(bb, f"bv{h}", p["b_v"][sl])
    bb = putb(bb, "bo", p["b_o"])
    bb = putb(bb, "ln1_g", p["ln1_g"])
    bb = putb(bb, "ln1_b", p["ln1_b"])
    bb = putb(bb, "bff1", p["b_ff1"])
    bb = putb(bb, "bff2", p["b_ff2"])
    bb = putb(bb, "ln2_g", p["ln2_g"])
    bb = putb(bb, "ln2_b", p["ln2_b"])

    return {"wblob": wb.astype(jnp.bfloat16), "bblob": bb}


# ----------------------------------------------------------------------------
# Forward pass
# ----------------------------------------------------------------------------
@jax.jit
def encoder_forward(pp, audio):
    """audio: [B, L] float32 -> last_hidden_state [B, T, HIDDEN]."""
    B, L = audio.shape
    t1 = (L - K1) // S1 + 1
    t2 = (t1 - K2) // S2 + 1
    t2p = _round8(t2)             # padded output sequence length
    nt = _round8(t2p + 1)         # rows of the even/odd conv1 series
    nr = _round8(nt + 1)          # audio group rows fed to the kernel
    lp = nr * GROUP
    ncopy = min(L, lp)

    audio_p = jnp.zeros((B, lp), jnp.float32).at[:, :ncopy].set(
        audio[:, :ncopy].astype(jnp.float32))
    groups = audio_p.reshape(B, nr, GROUP)           # free reshape, no data copy

    kernel = functools.partial(_fused_kernel, t2_real=t2, nt=nt)
    out_p = pl.pallas_call(
        kernel,
        out_shape=jax.ShapeDtypeStruct((B, t2p, H_PAD), jnp.float32),
        grid=(B,),
        in_specs=[
            pl.BlockSpec((1, nr, GROUP), lambda i: (i, 0, 0)),
            pl.BlockSpec((W_ROWS, H_PAD), lambda i: (0, 0)),
            pl.BlockSpec((B_ROWS, H_PAD), lambda i: (0, 0)),
        ],
        out_specs=pl.BlockSpec((1, t2p, H_PAD), lambda i: (i, 0, 0)),
        compiler_params=pltpu.CompilerParams(
            dimension_semantics=("parallel",),
            vmem_limit_bytes=VMEM_LIMIT),
    )(groups, pp["wblob"], pp["bblob"])

    # Slice off padded time rows and padded channels (tiny XLA copy, kept on purpose).
    return out_p[:, :t2, :HIDDEN]


def s3prl_forward(params, audio, squeeze_out=True):
    # Shape handling exactly as in the PyTorch module.
    if audio.ndim == 1:
        audio = audio[None, :]
    elif audio.ndim == 3:
        assert audio.shape[1] == 1
        audio = audio[:, 0, :]
    out = encoder_forward(params, audio)  # ['last_hidden_state']
    if out.shape[0] == 1 and squeeze_out:
        return out[0]
    return out


if __name__ == "__main__":
    key = jax.random.PRNGKey(0)
    pkey, akey = jax.random.split(key)
    params = prepare_params(init_params(pkey))

    # Small synthetic waveform batch: B=2, L=800 samples.
    audio = jax.random.normal(akey, (2, 800), dtype=jnp.float32)

    out = s3prl_forward(params, audio)            # [2, T, 32]
    out = jax.block_until_ready(out)
    assert out.ndim == 3 and out.shape[0] == 2 and out.shape[2] == HIDDEN
    assert bool(jnp.all(jnp.isfinite(out)))

    # Exercise the batch==1 squeeze path (1-D audio input) as in the module.
    out1 = s3prl_forward(params, audio[0])        # squeezed -> [T, 32]
    out1 = jax.block_until_ready(out1)
    assert out1.ndim == 2 and out1.shape[1] == HIDDEN

    print("KERNEL_OK")
</pallas_src>

<mosaic_0001>
module attributes {stable_mosaic.version = 11 : i64} {
  func.func @_fused_kernel(%arg0: i32, %arg1: memref<1x96x10xf32, #tpu.memory_space<vmem>>, %arg2: memref<2992x128xbf16, #tpu.memory_space<vmem>>, %arg3: memref<24x128xf32, #tpu.memory_space<vmem>>, %arg4: memref<1x80x128xf32, #tpu.memory_space<vmem>>) attributes {dimension_semantics = [#tpu.dimension_semantics<parallel>], iteration_bounds = array<i64: 2>, scalar_prefetch = 0 : i64, scratch_operands = 0 : i64, tpu.core_type = #tpu.core_type<tc>, window_params = [{transform_indices = @transform_0, window_bounds = array<i64: 1, 96, 10>}, {pipeline_mode = #tpu.pipeline_mode<synchronous>, transform_indices = @transform_1, window_bounds = array<i64: 2992, 128>}, {pipeline_mode = #tpu.pipeline_mode<synchronous>, transform_indices = @transform_2, window_bounds = array<i64: 24, 128>}, {transform_indices = @transform_3, window_bounds = array<i64: 1, 80, 128>}]} {
    %c0 = arith.constant 0 : index
    %c0_0 = arith.constant 0 : index
    %c0_1 = arith.constant 0 : index
    %0 = vector.load %arg1[%c0, %c0_0, %c0_1] : memref<1x96x10xf32, #tpu.memory_space<vmem>>, vector<1x96x10xf32>
    %1 = vector.shape_cast %0 : vector<1x96x10xf32> to vector<96x10xf32>
    %2 = vector.extract_strided_slice %1 {offsets = [0, 0], sizes = [88, 10], strides = [1, 1]} : vector<96x10xf32> to vector<88x10xf32>
    %3 = arith.truncf %2 : vector<88x10xf32> to vector<88x10xbf16>
    %4 = vector.extract_strided_slice %1 {offsets = [1, 0], sizes = [88, 10], strides = [1, 1]} : vector<96x10xf32> to vector<88x10xf32>
    %5 = arith.truncf %4 : vector<88x10xf32> to vector<88x10xbf16>
    %c0_2 = arith.constant 0 : index
    %c0_3 = arith.constant 0 : index
    %6 = vector.load %arg3[%c0_2, %c0_3] : memref<24x128xf32, #tpu.memory_space<vmem>>, vector<1x128xf32>
    %c0_4 = arith.constant 0 : index
    %c0_5 = arith.constant 0 : index
    %7 = vector.load %arg2[%c0_4, %c0_5] : memref<2992x128xbf16, #tpu.memory_space<vmem>>, vector<10x128xbf16>
    %cst = arith.constant dense<0.000000e+00> : vector<88x128xf32>
    %8 = tpu.matmul %3, %7, %cst {dimension_numbers = #tpu.dot_dimension_numbers<[1], [0], [0], [1], [0, 0, 1, 1], [], []>} : vector<88x10xbf16>, vector<10x128xbf16>, vector<88x128xf32> -> vector<88x128xf32>
    %9 = vector.broadcast %6 : vector<1x128xf32> to vector<88x128xf32>
    %10 = arith.addf %8, %9 : vector<88x128xf32>
    %cst_6 = arith.constant 5.000000e-01 : f32
    %11 = vector.broadcast %cst_6 : f32 to vector<88x128xf32>
    %12 = arith.mulf %11, %10 : vector<88x128xf32>
    %cst_7 = arith.constant 4.471500e-02 : f32
    %13 = vector.broadcast %cst_7 : f32 to vector<88x128xf32>
    %14 = arith.mulf %13, %10 : vector<88x128xf32>
    %15 = arith.mulf %14, %10 : vector<88x128xf32>
    %16 = arith.mulf %15, %10 : vector<88x128xf32>
    %17 = arith.addf %10, %16 : vector<88x128xf32>
    %cst_8 = arith.constant 0.797884583 : f32
    %18 = vector.broadcast %cst_8 : f32 to vector<88x128xf32>
    %19 = arith.mulf %18, %17 : vector<88x128xf32>
    %20 = math.tanh %19 : vector<88x128xf32>
    %cst_9 = arith.constant 1.000000e+00 : f32
    %21 = vector.broadcast %cst_9 : f32 to vector<88x128xf32>
    %22 = arith.addf %21, %20 : vector<88x128xf32>
    %23 = arith.mulf %12, %22 : vector<88x128xf32>
    %c16 = arith.constant 16 : index
    %c0_10 = arith.constant 0 : index
    %24 = vector.load %arg2[%c16, %c0_10] : memref<2992x128xbf16, #tpu.memory_space<vmem>>, vector<10x128xbf16>
    %cst_11 = arith.constant dense<0.000000e+00> : vector<88x128xf32>
    %25 = tpu.matmul %3, %24, %cst_11 {dimension_numbers = #tpu.dot_dimension_numbers<[1], [0], [0], [1], [0, 0, 1, 1], [], []>} : vector<88x10xbf16>, vector<10x128xbf16>, vector<88x128xf32> -> vector<88x128xf32>
    %c32 = arith.constant 32 : index
    %c0_12 = arith.constant 0 : index
    %26 = vector.load %arg2[%c32, %c0_12] : memref<2992x128xbf16, #tpu.memory_space<vmem>>, vector<10x128xbf16>
    %cst_13 = arith.constant dense<0.000000e+00> : vector<88x128xf32>
    %27 = tpu.matmul %5, %26, %cst_13 {dimension_numbers = #tpu.dot_dimension_numbers<[1], [0], [0], [1], [0, 0, 1, 1], [], []>} : vector<88x10xbf16>, vector<10x128xbf16>, vector<88x128xf32> -> vector<88x128xf32>
    %28 = arith.addf %25, %27 : vector<88x128xf32>
    %29 = vector.broadcast %6 : vector<1x128xf32> to vector<88x128xf32>
    %30 = arith.addf %28, %29 : vector<88x128xf32>
    %cst_14 = arith.constant 5.000000e-01 : f32
    %31 = vector.broadcast %cst_14 : f32 to vector<88x128xf32>
    %32 = arith.mulf %31, %30 : vector<88x128xf32>
    %cst_15 = arith.constant 4.471500e-02 : f32
    %33 = vector.broadcast %cst_15 : f32 to vector<88x128xf32>
    %34 = arith.mulf %33, %30 : vector<88x128xf32>
    %35 = arith.mulf %34, %30 : vector<88x128xf32>
    %36 = arith.mulf %35, %30 : vector<88x128xf32>
    %37 = arith.addf %30, %36 : vector<88x128xf32>
    %cst_16 = arith.constant 0.797884583 : f32
    %38 = vector.broadcast %cst_16 : f32 to vector<88x128xf32>
    %39 = arith.mulf %38, %37 : vector<88x128xf32>
    %40 = math.tanh %39 : vector<88x128xf32>
    %cst_17 = arith.constant 1.000000e+00 : f32
    %41 = vector.broadcast %cst_17 : f32 to vector<88x128xf32>
    %42 = arith.addf %41, %40 : vector<88x128xf32>
    %43 = arith.mulf %32, %42 : vector<88x128xf32>
    %44 = vector.extract_strided_slice %23 {offsets = [0, 0], sizes = [80, 128], strides = [1, 1]} : vector<88x128xf32> to vector<80x128xf32>
    %45 = arith.truncf %44 : vector<80x128xf32> to vector<80x128xbf16>
    %c48 = arith.constant 48 : index
    %c0_18 = arith.constant 0 : index
    %46 = vector.load %arg2[%c48, %c0_18] : memref<2992x128xbf16, #tpu.memory_space<vmem>>, vector<128x128xbf16>
    %cst_19 = arith.constant dense<0.000000e+00> : vector<80x128xf32>
    %47 = tpu.matmul %45, %46, %cst_19 {dimension_numbers = #tpu.dot_dimension_numbers<[1], [0], [0], [1], [0, 0, 1, 1], [], []>} : vector<80x128xbf16>, vector<128x128xbf16>, vector<80x128xf32> -> vector<80x128xf32>
    %48 = vector.extract_strided_slice %43 {offsets = [0, 0], sizes = [80, 128], strides = [1, 1]} : vector<88x128xf32> to vector<80x128xf32>
    %49 = arith.truncf %48 : vector<80x128xf32> to vector<80x128xbf16>
    %c176 = arith.constant 176 : index
    %c0_20 = arith.constant 0 : index
    %50 = vector.load %arg2[%c176, %c0_20] : memref<2992x128xbf16, #tpu.memory_space<vmem>>, vector<128x128xbf16>
    %cst_21 = arith.constant dense<0.000000e+00> : vector<80x128xf32>
    %51 = tpu.matmul %49, %50, %cst_21 {dimension_numbers = #tpu.dot_dimension_numbers<[1], [0], [0], [1], [0, 0, 1, 1], [], []>} : vector<80x128xbf16>, vector<128x128xbf16>, vector<80x128xf32> -> vector<80x128xf32>
    %52 = arith.addf %47, %51 : vector<80x128xf32>
    %53 = vector.extract_strided_slice %23 {offsets = [1, 0], sizes = [80, 128], strides = [1, 1]} : vector<88x128xf32> to vector<80x128xf32>
    %54 = arith.truncf %53 : vector<80x128xf32> to vector<80x128xbf16>
    %c304 = arith.constant 304 : index
    %c0_22 = arith.constant 0 : index
    %55 = vector.load %arg2[%c304, %c0_22] : memref<2992x128xbf16, #tpu.memory_space<vmem>>, vector<128x128xbf16>
    %cst_23 = arith.constant dense<0.000000e+00> : vector<80x128xf32>
    %56 = tpu.matmul %54, %55, %cst_23 {dimension_numbers = #tpu.dot_dimension_numbers<[1], [0], [0], [1], [0, 0, 1, 1], [], []>} : vector<80x128xbf16>, vector<128x128xbf16>, vector<80x128xf32> -> vector<80x128xf32>
    %57 = arith.addf %52, %56 : vector<80x128xf32>
    %58 = vector.extract_strided_slice %43 {offsets = [1, 0], sizes = [80, 128], strides = [1, 1]} : vector<88x128xf32> to vector<80x128xf32>
    %59 = arith.truncf %58 : vector<80x128xf32> to vector<80x128xbf16>
    %c432 = arith.constant 432 : index
    %c0_24 = arith.constant 0 : index
    %60 = vector.load %arg2[%c432, %c0_24] : memref<2992x128xbf16, #tpu.memory_space<vmem>>, vector<128x128xbf16>
    %cst_25 = arith.constant dense<0.000000e+00> : vector<80x128xf32>
    %61 = tpu.matmul %59, %60, %cst_25 {dimension_numbers = #tpu.dot_dimension_numbers<[1], [0], [0], [1], [0, 0, 1, 1], [], []>} : vector<80x128xbf16>, vector<128x128xbf16>, vector<80x128xf32> -> vector<80x128xf32>
    %62 = arith.addf %57, %61 : vector<80x128xf32>
    %c1 = arith.constant 1 : index
    %c0_26 = arith.constant 0 : index
    %63 = vector.load %arg3[%c1, %c0_26] : memref<24x128xf32, #tpu.memory_space<vmem>>, vector<1x128xf32>
    %64 = vector.broadcast %63 : vector<1x128xf32> to vector<80x128xf32>
    %65 = arith.addf %62, %64 : vector<80x128xf32>
    %cst_27 = arith.constant 5.000000e-01 : f32
    %66 = vector.broadcast %cst_27 : f32 to vector<80x128xf32>
    %67 = arith.mulf %66, %65 : vector<80x128xf32>
    %cst_28 = arith.constant 4.471500e-02 : f32
    %68 = vector.broadcast %cst_28 : f32 to vector<80x128xf32>
    %69 = arith.mulf %68, %65 : vector<80x128xf32>
    %70 = arith.mulf %69, %65 : vector<80x128xf32>
    %71 = arith.mulf %70, %65 : vector<80x128xf32>
    %72 = arith.addf %65, %71 : vector<80x128xf32>
    %cst_29 = arith.constant 0.797884583 : f32
    %73 = vector.broadcast %cst_29 : f32 to vector<80x128xf32>
    %74 = arith.mulf %73, %72 : vector<80x128xf32>
    %75 = math.tanh %74 : vector<80x128xf32>
    %cst_30 = arith.constant 1.000000e+00 : f32
    %76 = vector.broadcast %cst_30 : f32 to vector<80x128xf32>
    %77 = arith.addf %76, %75 : vector<80x128xf32>
    %78 = arith.mulf %67, %77 : vector<80x128xf32>
    %79 = tpu.iota {dimensions = array<i32: 1>} : vector<80x128xi32>
    %c32_i32 = arith.constant 32 : i32
    %80 = vector.broadcast %c32_i32 : i32 to vector<80x128xi32>
    %81 = arith.cmpi slt, %79, %80 : vector<80x128xi32>
    %82 = tpu.iota {dimensions = array<i32: 1>} : vector<80x80xi32>
    %c78_i32 = arith.constant 78 : i32
    %83 = vector.broadcast %c78_i32 : i32 to vector<80x80xi32>
    %84 = arith.cmpi slt, %82, %83 : vector<80x80xi32>
    %cst_31 = arith.constant 0.000000e+00 : f32
    %cst_32 = arith.constant -1.000000e+30 : f32
    %85 = vector.broadcast %cst_31 : f32 to vector<80x80xf32>
    %86 = vector.broadcast %cst_32 : f32 to vector<80x80xf32>
    %87 = arith.select %84, %85, %86 : vector<80x80xi1>, vector<80x80xf32>
    %c2 = arith.constant 2 : index
    %c0_33 = arith.constant 0 : index
    %88 = vector.load %arg3[%c2, %c0_33] : memref<24x128xf32, #tpu.memory_space<vmem>>, vector<1x128xf32>
    %c3 = arith.constant 3 : index
    %c0_34 = arith.constant 0 : index
    %89 = vector.load %arg3[%c3, %c0_34] : memref<24x128xf32, #tpu.memory_space<vmem>>, vector<1x128xf32>
    %cst_35 = arith.constant dense<0.000000e+00> : vector<80xf32>
    %90 = vector.multi_reduction <add>, %78, %cst_35 [1] : vector<80x128xf32> to vector<80xf32>
    %91 = vector.shape_cast %90 : vector<80xf32> to vector<80x1xf32>
    %cst_36 = arith.constant 3.125000e-02 : f32
    %92 = vector.broadcast %cst_36 : f32 to vector<80x1xf32>
    %93 = arith.mulf %91, %92 : vector<80x1xf32>
    %94 = vector.broadcast %93 : vector<80x1xf32> to vector<80x128xf32>
    %95 = arith.subf %78, %94 : vector<80x128xf32>
    %96 = arith.mulf %95, %95 : vector<80x128xf32>
    %cst_37 = arith.constant 0.000000e+00 : f32
    %97 = vector.broadcast %cst_37 : f32 to vector<80x128xf32>
    %98 = arith.select %81, %96, %97 : vector<80x128xi1>, vector<80x128xf32>
    %cst_38 = arith.constant dense<0.000000e+00> : vector<80xf32>
    %99 = vector.multi_reduction <add>, %98, %cst_38 [1] : vector<80x128xf32> to vector<80xf32>
    %100 = vector.shape_cast %99 : vector<80xf32> to vector<80x1xf32>
    %cst_39 = arith.constant 3.125000e-02 : f32
    %101 = vector.broadcast %cst_39 : f32 to vector<80x1xf32>
    %102 = arith.mulf %100, %101 : vector<80x1xf32>
    %cst_40 = arith.constant 9.99999974E-6 : f32
    %103 = vector.broadcast %cst_40 : f32 to vector<80x1xf32>
    %104 = arith.addf %102, %103 : vector<80x1xf32>
    %105 = math.rsqrt %104 : vector<80x1xf32>
    %106 = vector.broadcast %105 : vector<80x1xf32> to vector<80x128xf32>
    %107 = arith.mulf %95, %106 : vector<80x128xf32>
    %108 = vector.broadcast %88 : vector<1x128xf32> to vector<80x128xf32>
    %109 = arith.mulf %107, %108 : vector<80x128xf32>
    %110 = vector.broadcast %89 : vector<1x128xf32> to vector<80x128xf32>
    %111 = arith.addf %109, %110 : vector<80x128xf32>
    %112 = arith.truncf %111 : vector<80x128xf32> to vector<80x128xbf16>
    %c560 = arith.constant 560 : index
    %c0_41 = arith.constant 0 : index
    %113 = vector.load %arg2[%c560, %c0_41] : memref<2992x128xbf16, #tpu.memory_space<vmem>>, vector<128x128xbf16>
    %cst_42 = arith.constant dense<0.000000e+00> : vector<80x128xf32>
    %114 = tpu.matmul %112, %113, %cst_42 {dimension_numbers = #tpu.dot_dimension_numbers<[1], [0], [0], [1], [0, 0, 1, 1], [], []>} : vector<80x128xbf16>, vector<128x128xbf16>, vector<80x128xf32> -> vector<80x128xf32>
    %c4 = arith.constant 4 : index
    %c0_43 = arith.constant 0 : index
    %115 = vector.load %arg3[%c4, %c0_43] : memref<24x128xf32, #tpu.memory_space<vmem>>, vector<1x128xf32>
    %116 = vector.broadcast %115 : vector<1x128xf32> to vector<80x128xf32>
    %117 = arith.addf %114, %116 : vector<80x128xf32>
    %118 = arith.truncf %117 : vector<80x128xf32> to vector<80x128xbf16>
    %cst_44 = arith.constant 0.000000e+00 : f32
    %119 = vector.broadcast %cst_44 : f32 to vector<80x128xf32>
    %c688 = arith.constant 688 : index
    %c0_45 = arith.constant 0 : index
    %120 = vector.load %arg2[%c688, %c0_45] : memref<2992x128xbf16, #tpu.memory_space<vmem>>, vector<128x128xbf16>
    %cst_46 = arith.constant dense<0.000000e+00> : vector<80x128xf32>
    %121 = tpu.matmul %118, %120, %cst_46 {dimension_numbers = #tpu.dot_dimension_numbers<[1], [0], [0], [1], [0, 0, 1, 1], [], []>} : vector<80x128xbf16>, vector<128x128xbf16>, vector<80x128xf32> -> vector<80x128xf32>
    %c5 = arith.constant 5 : index
    %c0_47 = arith.constant 0 : index
    %122 = vector.load %arg3[%c5, %c0_47] : memref<24x128xf32, #tpu.memory_space<vmem>>, vector<1x128xf32>
    %123 = vector.broadcast %122 : vector<1x128xf32> to vector<80x128xf32>
    %124 = arith.addf %121, %123 : vector<80x128xf32>
    %c1200 = arith.constant 1200 : index
    %c0_48 = arith.constant 0 : index
    %125 = vector.load %arg2[%c1200, %c0_48] : memref<2992x128xbf16, #tpu.memory_space<vmem>>, vector<128x128xbf16>
    %cst_49 = arith.constant dense<0.000000e+00> : vector<80x128xf32>
    %126 = tpu.matmul %118, %125, %cst_49 {dimension_numbers = #tpu.dot_dimension_numbers<[1], [0], [0], [1], [0, 0, 1, 1], [], []>} : vector<80x128xbf16>, vector<128x128xbf16>, vector<80x128xf32> -> vector<80x128xf32>
    %c9 = arith.constant 9 : index
    %c0_50 = arith.constant 0 : index
    %127 = vector.load %arg3[%c9, %c0_50] : memref<24x128xf32, #tpu.memory_space<vmem>>, vector<1x128xf32>
    %128 = vector.broadcast %127 : vector<1x128xf32> to vector<80x128xf32>
    %129 = arith.addf %126, %128 : vector<80x128xf32>
    %c1712 = arith.constant 1712 : index
    %c0_51 = arith.constant 0 : index
    %130 = vector.load %arg2[%c1712, %c0_51] : memref<2992x128xbf16, #tpu.memory_space<vmem>>, vector<128x128xbf16>
    %cst_52 = arith.constant dense<0.000000e+00> : vector<80x128xf32>
    %131 = tpu.matmul %118, %130, %cst_52 {dimension_numbers = #tpu.dot_dimension_numbers<[1], [0], [0], [1], [0, 0, 1, 1], [], []>} : vector<80x128xbf16>, vector<128x128xbf16>, vector<80x128xf32> -> vector<80x128xf32>
    %c13 = arith.constant 13 : index
    %c0_53 = arith.constant 0 : index
    %132 = vector.load %arg3[%c13, %c0_53] : memref<24x128xf32, #tpu.memory_space<vmem>>, vector<1x128xf32>
    %133 = vector.broadcast %132 : vector<1x128xf32> to vector<80x128xf32>
    %134 = arith.addf %131, %133 : vector<80x128xf32>
    %135 = arith.truncf %124 : vector<80x128xf32> to vector<80x128xbf16>
    %136 = arith.truncf %129 : vector<80x128xf32> to vector<80x128xbf16>
    %cst_54 = arith.constant dense<0.000000e+00> : vector<80x80xf32>
    %137 = tpu.matmul %135, %136, %cst_54 {dimension_numbers = #tpu.dot_dimension_numbers<[1], [1], [0], [0], [0, 0, 1, 0], [], []>} : vector<80x128xbf16>, vector<80x128xbf16>, vector<80x80xf32> -> vector<80x80xf32>
    %138 = arith.addf %137, %87 : vector<80x80xf32>
    %cst_55 = arith.constant dense<0xFF800000> : vector<80xf32>
    %139 = vector.multi_reduction <maximumf>, %138, %cst_55 [1] : vector<80x80xf32> to vector<80xf32>
    %140 = vector.shape_cast %139 : vector<80xf32> to vector<80x1xf32>
    %141 = vector.broadcast %140 : vector<80x1xf32> to vector<80x80xf32>
    %142 = arith.subf %138, %141 : vector<80x80xf32>
    %143 = math.exp %142 : vector<80x80xf32>
    %cst_56 = arith.constant dense<0.000000e+00> : vector<80xf32>
    %144 = vector.multi_reduction <add>, %143, %cst_56 [1] : vector<80x80xf32> to vector<80xf32>
    %145 = vector.shape_cast %144 : vector<80xf32> to vector<80x1xf32>
    %146 = tpu.reciprocal %145 {approx = true} : vector<80x1xf32> -> vector<80x1xf32>
    %147 = vector.broadcast %146 : vector<80x1xf32> to vector<80x80xf32>
    %148 = arith.mulf %143, %147 : vector<80x80xf32>
    %149 = arith.truncf %148 : vector<80x80xf32> to vector<80x80xbf16>
    %150 = arith.truncf %134 : vector<80x128xf32> to vector<80x128xbf16>
    %cst_57 = arith.constant dense<0.000000e+00> : vector<80x128xf32>
    %151 = tpu.matmul %149, %150, %cst_57 {dimension_numbers = #tpu.dot_dimension_numbers<[1], [0], [0], [1], [0, 0, 1, 1], [], []>} : vector<80x80xbf16>, vector<80x128xbf16>, vector<80x128xf32> -> vector<80x128xf32>
    %152 = arith.truncf %151 : vector<80x128xf32> to vector<80x128xbf16>
    %c2224 = arith.constant 2224 : index
    %c0_58 = arith.constant 0 : index
    %153 = vector.load %arg2[%c2224, %c0_58] : memref<2992x128xbf16, #tpu.memory_space<vmem>>, vector<128x128xbf16>
    %cst_59 = arith.constant dense<0.000000e+00> : vector<80x128xf32>
    %154 = tpu.matmul %152, %153, %cst_59 {dimension_numbers = #tpu.dot_dimension_numbers<[1], [0], [0], [1], [0, 0, 1, 1], [], []>} : vector<80x128xbf16>, vector<128x128xbf16>, vector<80x128xf32> -> vector<80x128xf32>
    %155 = arith.addf %119, %154 : vector<80x128xf32>
    %c816 = arith.constant 816 : index
    %c0_60 = arith.constant 0 : index
    %156 = vector.load %arg2[%c816, %c0_60] : memref<2992x128xbf16, #tpu.memory_space<vmem>>, vector<128x128xbf16>
    %cst_61 = arith.constant dense<0.000000e+00> : vector<80x128xf32>
    %157 = tpu.matmul %118, %156, %cst_61 {dimension_numbers = #tpu.dot_dimension_numbers<[1], [0], [0], [1], [0, 0, 1, 1], [], []>} : vector<80x128xbf16>, vector<128x128xbf16>, vector<80x128xf32> -> vector<80x128xf32>
    %c6 = arith.constant 6 : index
    %c0_62 = arith.constant 0 : index
    %158 = vector.load %arg3[%c6, %c0_62] : memref<24x128xf32, #tpu.memory_space<vmem>>, vector<1x128xf32>
    %159 = vector.broadcast %158 : vector<1x128xf32> to vector<80x128xf32>
    %160 = arith.addf %157, %159 : vector<80x128xf32>
    %c1328 = arith.constant 1328 : index
    %c0_63 = arith.constant 0 : index
    %161 = vector.load %arg2[%c1328, %c0_63] : memref<2992x128xbf16, #tpu.memory_space<vmem>>, vector<128x128xbf16>
    %cst_64 = arith.constant dense<0.000000e+00> : vector<80x128xf32>
    %162 = tpu.matmul %118, %161, %cst_64 {dimension_numbers = #tpu.dot_dimension_numbers<[1], [0], [0], [1], [0, 0, 1, 1], [], []>} : vector<80x128xbf16>, vector<128x128xbf16>, vector<80x128xf32> -> vector<80x128xf32>
    %c10 = arith.constant 10 : index
    %c0_65 = arith.constant 0 : index
    %163 = vector.load %arg3[%c10, %c0_65] : memref<24x128xf32, #tpu.memory_space<vmem>>, vector<1x128xf32>
    %164 = vector.broadcast %163 : vector<1x128xf32> to vector<80x128xf32>
    %165 = arith.addf %162, %164 : vector<80x128xf32>
    %c1840 = arith.constant 1840 : index
    %c0_66 = arith.constant 0 : index
    %166 = vector.load %arg2[%c1840, %c0_66] : memref<2992x128xbf16, #tpu.memory_space<vmem>>, vector<128x128xbf16>
    %cst_67 = arith.constant dense<0.000000e+00> : vector<80x128xf32>
    %167 = tpu.matmul %118, %166, %cst_67 {dimension_numbers = #tpu.dot_dimension_numbers<[1], [0], [0], [1], [0, 0, 1, 1], [], []>} : vector<80x128xbf16>, vector<128x128xbf16>, vector<80x128xf32> -> vector<80x128xf32>
    %c14 = arith.constant 14 : index
    %c0_68 = arith.constant 0 : index
    %168 = vector.load %arg3[%c14, %c0_68] : memref<24x128xf32, #tpu.memory_space<vmem>>, vector<1x128xf32>
    %169 = vector.broadcast %168 : vector<1x128xf32> to vector<80x128xf32>
    %170 = arith.addf %167, %169 : vector<80x128xf32>
    %171 = arith.truncf %160 : vector<80x128xf32> to vector<80x128xbf16>
    %172 = arith.truncf %165 : vector<80x128xf32> to vector<80x128xbf16>
    %cst_69 = arith.constant dense<0.000000e+00> : vector<80x80xf32>
    %173 = tpu.matmul %171, %172, %cst_69 {dimension_numbers = #tpu.dot_dimension_numbers<[1], [1], [0], [0], [0, 0, 1, 0], [], []>} : vector<80x128xbf16>, vector<80x128xbf16>, vector<80x80xf32> -> vector<80x80xf32>
    %174 = arith.addf %173, %87 : vector<80x80xf32>
    %cst_70 = arith.constant dense<0xFF800000> : vector<80xf32>
    %175 = vector.multi_reduction <maximumf>, %174, %cst_70 [1] : vector<80x80xf32> to vector<80xf32>
    %176 = vector.shape_cast %175 : vector<80xf32> to vector<80x1xf32>
    %177 = vector.broadcast %176 : vector<80x1xf32> to vector<80x80xf32>
    %178 = arith.subf %174, %177 : vector<80x80xf32>
    %179 = math.exp %178 : vector<80x80xf32>
    %cst_71 = arith.constant dense<0.000000e+00> : vector<80xf32>
    %180 = vector.multi_reduction <add>, %179, %cst_71 [1] : vector<80x80xf32> to vector<80xf32>
    %181 = vector.shape_cast %180 : vector<80xf32> to vector<80x1xf32>
    %182 = tpu.reciprocal %181 {approx = true} : vector<80x1xf32> -> vector<80x1xf32>
    %183 = vector.broadcast %182 : vector<80x1xf32> to vector<80x80xf32>
    %184 = arith.mulf %179, %183 : vector<80x80xf32>
    %185 = arith.truncf %184 : vector<80x80xf32> to vector<80x80xbf16>
    %186 = arith.truncf %170 : vector<80x128xf32> to vector<80x128xbf16>
    %cst_72 = arith.constant dense<0.000000e+00> : vector<80x128xf32>
    %187 = tpu.matmul %185, %186, %cst_72 {dimension_numbers = #tpu.dot_dimension_numbers<[1], [0], [0], [1], [0, 0, 1, 1], [], []>} : vector<80x80xbf16>, vector<80x128xbf16>, vector<80x128xf32> -> vector<80x128xf32>
    %188 = arith.truncf %187 : vector<80x128xf32> to vector<80x128xbf16>
    %c2352 = arith.constant 2352 : index
    %c0_73 = arith.constant 0 : index
    %189 = vector.load %arg2[%c2352, %c0_73] : memref<2992x128xbf16, #tpu.memory_space<vmem>>, vector<128x128xbf16>
    %cst_74 = arith.constant dense<0.000000e+00> : vector<80x128xf32>
    %190 = tpu.matmul %188, %189, %cst_74 {dimension_numbers = #tpu.dot_dimension_numbers<[1], [0], [0], [1], [0, 0, 1, 1], [], []>} : vector<80x128xbf16>, vector<128x128xbf16>, vector<80x128xf32> -> vector<80x128xf32>
    %191 = arith.addf %155, %190 : vector<80x128xf32>
    %c944 = arith.constant 944 : index
    %c0_75 = arith.constant 0 : index
    %192 = vector.load %arg2[%c944, %c0_75] : memref<2992x128xbf16, #tpu.memory_space<vmem>>, vector<128x128xbf16>
    %cst_76 = arith.constant dense<0.000000e+00> : vector<80x128xf32>
    %193 = tpu.matmul %118, %192, %cst_76 {dimension_numbers = #tpu.dot_dimension_numbers<[1], [0], [0], [1], [0, 0, 1, 1], [], []>} : vector<80x128xbf16>, vector<128x128xbf16>, vector<80x128xf32> -> vector<80x128xf32>
    %c7 = arith.constant 7 : index
    %c0_77 = arith.constant 0 : index
    %194 = vector.load %arg3[%c7, %c0_77] : memref<24x128xf32, #tpu.memory_space<vmem>>, vector<1x128xf32>
    %195 = vector.broadcast %194 : vector<1x128xf32> to vector<80x128xf32>
    %196 = arith.addf %193, %195 : vector<80x128xf32>
    %c1456 = arith.constant 1456 : index
    %c0_78 = arith.constant 0 : index
    %197 = vector.load %arg2[%c1456, %c0_78] : memref<2992x128xbf16, #tpu.memory_space<vmem>>, vector<128x128xbf16>
    %cst_79 = arith.constant dense<0.000000e+00> : vector<80x128xf32>
    %198 = tpu.matmul %118, %197, %cst_79 {dimension_numbers = #tpu.dot_dimension_numbers<[1], [0], [0], [1], [0, 0, 1, 1], [], []>} : vector<80x128xbf16>, vector<128x128xbf16>, vector<80x128xf32> -> vector<80x128xf32>
    %c11 = arith.constant 11 : index
    %c0_80 = arith.constant 0 : index
    %199 = vector.load %arg3[%c11, %c0_80] : memref<24x128xf32, #tpu.memory_space<vmem>>, vector<1x128xf32>
    %200 = vector.broadcast %199 : vector<1x128xf32> to vector<80x128xf32>
    %201 = arith.addf %198, %200 : vector<80x128xf32>
    %c1968 = arith.constant 1968 : index
    %c0_81 = arith.constant 0 : index
    %202 = vector.load %arg2[%c1968, %c0_81] : memref<2992x128xbf16, #tpu.memory_space<vmem>>, vector<128x128xbf16>
    %cst_82 = arith.constant dense<0.000000e+00> : vector<80x128xf32>
    %203 = tpu.matmul %118, %202, %cst_82 {dimension_numbers = #tpu.dot_dimension_numbers<[1], [0], [0], [1], [0, 0, 1, 1], [], []>} : vector<80x128xbf16>, vector<128x128xbf16>, vector<80x128xf32> -> vector<80x128xf32>
    %c15 = arith.constant 15 : index
    %c0_83 = arith.constant 0 : index
    %204 = vector.load %arg3[%c15, %c0_83] : memref<24x128xf32, #tpu.memory_space<vmem>>, vector<1x128xf32>
    %205 = vector.broadcast %204 : vector<1x128xf32> to vector<80x128xf32>
    %206 = arith.addf %203, %205 : vector<80x128xf32>
    %207 = arith.truncf %196 : vector<80x128xf32> to vector<80x128xbf16>
    %208 = arith.truncf %201 : vector<80x128xf32> to vector<80x128xbf16>
    %cst_84 = arith.constant dense<0.000000e+00> : vector<80x80xf32>
    %209 = tpu.matmul %207, %208, %cst_84 {dimension_numbers = #tpu.dot_dimension_numbers<[1], [1], [0], [0], [0, 0, 1, 0], [], []>} : vector<80x128xbf16>, vector<80x128xbf16>, vector<80x80xf32> -> vector<80x80xf32>
    %210 = arith.addf %209, %87 : vector<80x80xf32>
    %cst_85 = arith.constant dense<0xFF800000> : vector<80xf32>
    %211 = vector.multi_reduction <maximumf>, %210, %cst_85 [1] : vector<80x80xf32> to vector<80xf32>
    %212 = vector.shape_cast %211 : vector<80xf32> to vector<80x1xf32>
    %213 = vector.broadcast %212 : vector<80x1xf32> to vector<80x80xf32>
    %214 = arith.subf %210, %213 : vector<80x80xf32>
    %215 = math.exp %214 : vector<80x80xf32>
    %cst_86 = arith.constant dense<0.000000e+00> : vector<80xf32>
    %216 = vector.multi_reduction <add>, %215, %cst_86 [1] : vector<80x80xf32> to vector<80xf32>
    %217 = vector.shape_cast %216 : vector<80xf32> to vector<80x1xf32>
    %218 = tpu.reciprocal %217 {approx = true} : vector<80x1xf32> -> vector<80x1xf32>
    %219 = vector.broadcast %218 : vector<80x1xf32> to vector<80x80xf32>
    %220 = arith.mulf %215, %219 : vector<80x80xf32>
    %221 = arith.truncf %220 : vector<80x80xf32> to vector<80x80xbf16>
    %222 = arith.truncf %206 : vector<80x128xf32> to vector<80x128xbf16>
    %cst_87 = arith.constant dense<0.000000e+00> : vector<80x128xf32>
    %223 = tpu.matmul %221, %222, %cst_87 {dimension_numbers = #tpu.dot_dimension_numbers<[1], [0], [0], [1], [0, 0, 1, 1], [], []>} : vector<80x80xbf16>, vector<80x128xbf16>, vector<80x128xf32> -> vector<80x128xf32>
    %224 = arith.truncf %223 : vector<80x128xf32> to vector<80x128xbf16>
    %c2480 = arith.constant 2480 : index
    %c0_88 = arith.constant 0 : index
    %225 = vector.load %arg2[%c2480, %c0_88] : memref<2992x128xbf16, #tpu.memory_space<vmem>>, vector<128x128xbf16>
    %cst_89 = arith.constant dense<0.000000e+00> : vector<80x128xf32>
    %226 = tpu.matmul %224, %225, %cst_89 {dimension_numbers = #tpu.dot_dimension_numbers<[1], [0], [0], [1], [0, 0, 1, 1], [], []>} : vector<80x128xbf16>, vector<128x128xbf16>, vector<80x128xf32> -> vector<80x128xf32>
    %227 = arith.addf %191, %226 : vector<80x128xf32>
    %c1072 = arith.constant 1072 : index
    %c0_90 = arith.constant 0 : index
    %228 = vector.load %arg2[%c1072, %c0_90] : memref<2992x128xbf16, #tpu.memory_space<vmem>>, vector<128x128xbf16>
    %cst_91 = arith.constant dense<0.000000e+00> : vector<80x128xf32>
    %229 = tpu.matmul %118, %228, %cst_91 {dimension_numbers = #tpu.dot_dimension_numbers<[1], [0], [0], [1], [0, 0, 1, 1], [], []>} : vector<80x128xbf16>, vector<128x128xbf16>, vector<80x128xf32> -> vector<80x128xf32>
    %c8 = arith.constant 8 : index
    %c0_92 = arith.constant 0 : index
    %230 = vector.load %arg3[%c8, %c0_92] : memref<24x128xf32, #tpu.memory_space<vmem>>, vector<1x128xf32>
    %231 = vector.broadcast %230 : vector<1x128xf32> to vector<80x128xf32>
    %232 = arith.addf %229, %231 : vector<80x128xf32>
    %c1584 = arith.constant 1584 : index
    %c0_93 = arith.constant 0 : index
    %233 = vector.load %arg2[%c1584, %c0_93] : memref<2992x128xbf16, #tpu.memory_space<vmem>>, vector<128x128xbf16>
    %cst_94 = arith.constant dense<0.000000e+00> : vector<80x128xf32>
    %234 = tpu.matmul %118, %233, %cst_94 {dimension_numbers = #tpu.dot_dimension_numbers<[1], [0], [0], [1], [0, 0, 1, 1], [], []>} : vector<80x128xbf16>, vector<128x128xbf16>, vector<80x128xf32> -> vector<80x128xf32>
    %c12 = arith.constant 12 : index
    %c0_95 = arith.constant 0 : index
    %235 = vector.load %arg3[%c12, %c0_95] : memref<24x128xf32, #tpu.memory_space<vmem>>, vector<1x128xf32>
    %236 = vector.broadcast %235 : vector<1x128xf32> to vector<80x128xf32>
    %237 = arith.addf %234, %236 : vector<80x128xf32>
    %c2096 = arith.constant 2096 : index
    %c0_96 = arith.constant 0 : index
    %238 = vector.load %arg2[%c2096, %c0_96] : memref<2992x128xbf16, #tpu.memory_space<vmem>>, vector<128x128xbf16>
    %cst_97 = arith.constant dense<0.000000e+00> : vector<80x128xf32>
    %239 = tpu.matmul %118, %238, %cst_97 {dimension_numbers = #tpu.dot_dimension_numbers<[1], [0], [0], [1], [0, 0, 1, 1], [], []>} : vector<80x128xbf16>, vector<128x128xbf16>, vector<80x128xf32> -> vector<80x128xf32>
    %c16_98 = arith.constant 16 : index
    %c0_99 = arith.constant 0 : index
    %240 = vector.load %arg3[%c16_98, %c0_99] : memref<24x128xf32, #tpu.memory_space<vmem>>, vector<1x128xf32>
    %241 = vector.broadcast %240 : vector<1x128xf32> to vector<80x128xf32>
    %242 = arith.addf %239, %241 : vector<80x128xf32>
    %243 = arith.truncf %232 : vector<80x128xf32> to vector<80x128xbf16>
    %244 = arith.truncf %237 : vector<80x128xf32> to vector<80x128xbf16>
    %cst_100 = arith.constant dense<0.000000e+00> : vector<80x80xf32>
    %245 = tpu.matmul %243, %244, %cst_100 {dimension_numbers = #tpu.dot_dimension_numbers<[1], [1], [0], [0], [0, 0, 1, 0], [], []>} : vector<80x128xbf16>, vector<80x128xbf16>, vector<80x80xf32> -> vector<80x80xf32>
    %246 = arith.addf %245, %87 : vector<80x80xf32>
    %cst_101 = arith.constant dense<0xFF800000> : vector<80xf32>
    %247 = vector.multi_reduction <maximumf>, %246, %cst_101 [1] : vector<80x80xf32> to vector<80xf32>
    %248 = vector.shape_cast %247 : vector<80xf32> to vector<80x1xf32>
    %249 = vector.broadcast %248 : vector<80x1xf32> to vector<80x80xf32>
    %250 = arith.subf %246, %249 : vector<80x80xf32>
    %251 = math.exp %250 : vector<80x80xf32>
    %cst_102 = arith.constant dense<0.000000e+00> : vector<80xf32>
    %252 = vector.multi_reduction <add>, %251, %cst_102 [1] : vector<80x80xf32> to vector<80xf32>
    %253 = vector.shape_cast %252 : vector<80xf32> to vector<80x1xf32>
    %254 = tpu.reciprocal %253 {approx = true} : vector<80x1xf32> -> vector<80x1xf32>
    %255 = vector.broadcast %254 : vector<80x1xf32> to vector<80x80xf32>
    %256 = arith.mulf %251, %255 : vector<80x80xf32>
    %257 = arith.truncf %256 : vector<80x80xf32> to vector<80x80xbf16>
    %258 = arith.truncf %242 : vector<80x128xf32> to vector<80x128xbf16>
    %cst_103 = arith.constant dense<0.000000e+00> : vector<80x128xf32>
    %259 = tpu.matmul %257, %258, %cst_103 {dimension_numbers = #tpu.dot_dimension_numbers<[1], [0], [0], [1], [0, 0, 1, 1], [], []>} : vector<80x80xbf16>, vector<80x128xbf16>, vector<80x128xf32> -> vector<80x128xf32>
    %260 = arith.truncf %259 : vector<80x128xf32> to vector<80x128xbf16>
    %c2608 = arith.constant 2608 : index
    %c0_104 = arith.constant 0 : index
    %261 = vector.load %arg2[%c2608, %c0_104] : memref<2992x128xbf16, #tpu.memory_space<vmem>>, vector<128x128xbf16>
    %cst_105 = arith.constant dense<0.000000e+00> : vector<80x128xf32>
    %262 = tpu.matmul %260, %261, %cst_105 {dimension_numbers = #tpu.dot_dimension_numbers<[1], [0], [0], [1], [0, 0, 1, 1], [], []>} : vector<80x128xbf16>, vector<128x128xbf16>, vector<80x128xf32> -> vector<80x128xf32>
    %263 = arith.addf %227, %262 : vector<80x128xf32>
    %c17 = arith.constant 17 : index
    %c0_106 = arith.constant 0 : index
    %264 = vector.load %arg3[%c17, %c0_106] : memref<24x128xf32, #tpu.memory_space<vmem>>, vector<1x128xf32>
    %265 = vector.broadcast %264 : vector<1x128xf32> to vector<80x128xf32>
    %266 = arith.addf %263, %265 : vector<80x128xf32>
    %267 = arith.addf %117, %266 : vector<80x128xf32>
    %c18 = arith.constant 18 : index
    %c0_107 = arith.constant 0 : index
    %268 = vector.load %arg3[%c18, %c0_107] : memref<24x128xf32, #tpu.memory_space<vmem>>, vector<1x128xf32>
    %c19 = arith.constant 19 : index
    %c0_108 = arith.constant 0 : index
    %269 = vector.load %arg3[%c19, %c0_108] : memref<24x128xf32, #tpu.memory_space<vmem>>, vector<1x128xf32>
    %cst_109 = arith.constant dense<0.000000e+00> : vector<80xf32>
    %270 = vector.multi_reduction <add>, %267, %cst_109 [1] : vector<80x128xf32> to vector<80xf32>
    %271 = vector.shape_cast %270 : vector<80xf32> to vector<80x1xf32>
    %cst_110 = arith.constant 3.125000e-02 : f32
    %272 = vector.broadcast %cst_110 : f32 to vector<80x1xf32>
    %273 = arith.mulf %271, %272 : vector<80x1xf32>
    %274 = vector.broadcast %273 : vector<80x1xf32> to vector<80x128xf32>
    %275 = arith.subf %267, %274 : vector<80x128xf32>
    %276 = arith.mulf %275, %275 : vector<80x128xf32>
    %cst_111 = arith.constant 0.000000e+00 : f32
    %277 = vector.broadcast %cst_111 : f32 to vector<80x128xf32>
    %278 = arith.select %81, %276, %277 : vector<80x128xi1>, vector<80x128xf32>
    %cst_112 = arith.constant dense<0.000000e+00> : vector<80xf32>
    %279 = vector.multi_reduction <add>, %278, %cst_112 [1] : vector<80x128xf32> to vector<80xf32>
    %280 = vector.shape_cast %279 : vector<80xf32> to vector<80x1xf32>
    %cst_113 = arith.constant 3.125000e-02 : f32
    %281 = vector.broadcast %cst_113 : f32 to vector<80x1xf32>
    %282 = arith.mulf %280, %281 : vector<80x1xf32>
    %cst_114 = arith.constant 9.99999974E-6 : f32
    %283 = vector.broadcast %cst_114 : f32 to vector<80x1xf32>
    %284 = arith.addf %282, %283 : vector<80x1xf32>
    %285 = math.rsqrt %284 : vector<80x1xf32>
    %286 = vector.broadcast %285 : vector<80x1xf32> to vector<80x128xf32>
    %287 = arith.mulf %275, %286 : vector<80x128xf32>
    %288 = vector.broadcast %268 : vector<1x128xf32> to vector<80x128xf32>
    %289 = arith.mulf %287, %288 : vector<80x128xf32>
    %290 = vector.broadcast %269 : vector<1x128xf32> to vector<80x128xf32>
    %291 = arith.addf %289, %290 : vector<80x128xf32>
    %292 = arith.truncf %291 : vector<80x128xf32> to vector<80x128xbf16>
    %c2736 = arith.constant 2736 : index
    %c0_115 = arith.constant 0 : index
    %293 = vector.load %arg2[%c2736, %c0_115] : memref<2992x128xbf16, #tpu.memory_space<vmem>>, vector<128x128xbf16>
    %cst_116 = arith.constant dense<0.000000e+00> : vector<80x128xf32>
    %294 = tpu.matmul %292, %293, %cst_116 {dimension_numbers = #tpu.dot_dimension_numbers<[1], [0], [0], [1], [0, 0, 1, 1], [], []>} : vector<80x128xbf16>, vector<128x128xbf16>, vector<80x128xf32> -> vector<80x128xf32>
    %c20 = arith.constant 20 : index
    %c0_117 = arith.constant 0 : index
    %295 = vector.load %arg3[%c20, %c0_117] : memref<24x128xf32, #tpu.memory_space<vmem>>, vector<1x128xf32>
    %296 = vector.broadcast %295 : vector<1x128xf32> to vector<80x128xf32>
    %297 = arith.addf %294, %296 : vector<80x128xf32>
    %cst_118 = arith.constant 5.000000e-01 : f32
    %298 = vector.broadcast %cst_118 : f32 to vector<80x128xf32>
    %299 = arith.mulf %298, %297 : vector<80x128xf32>
    %cst_119 = arith.constant 4.471500e-02 : f32
    %300 = vector.broadcast %cst_119 : f32 to vector<80x128xf32>
    %301 = arith.mulf %300, %297 : vector<80x128xf32>
    %302 = arith.mulf %301, %297 : vector<80x128xf32>
    %303 = arith.mulf %302, %297 : vector<80x128xf32>
    %304 = arith.addf %297, %303 : vector<80x128xf32>
    %cst_120 = arith.constant 0.797884583 : f32
    %305 = vector.broadcast %cst_120 : f32 to vector<80x128xf32>
    %306 = arith.mulf %305, %304 : vector<80x128xf32>
    %307 = math.tanh %306 : vector<80x128xf32>
    %cst_121 = arith.constant 1.000000e+00 : f32
    %308 = vector.broadcast %cst_121 : f32 to vector<80x128xf32>
    %309 = arith.addf %308, %307 : vector<80x128xf32>
    %310 = arith.mulf %299, %309 : vector<80x128xf32>
    %311 = arith.truncf %310 : vector<80x128xf32> to vector<80x128xbf16>
    %c2864 = arith.constant 2864 : index
    %c0_122 = arith.constant 0 : index
    %312 = vector.load %arg2[%c2864, %c0_122] : memref<2992x128xbf16, #tpu.memory_space<vmem>>, vector<128x128xbf16>
    %cst_123 = arith.constant dense<0.000000e+00> : vector<80x128xf32>
    %313 = tpu.matmul %311, %312, %cst_123 {dimension_numbers = #tpu.dot_dimension_numbers<[1], [0], [0], [1], [0, 0, 1, 1], [], []>} : vector<80x128xbf16>, vector<128x128xbf16>, vector<80x128xf32> -> vector<80x128xf32>
    %c21 = arith.constant 21 : index
    %c0_124 = arith.constant 0 : index
    %314 = vector.load %arg3[%c21, %c0_124] : memref<24x128xf32, #tpu.memory_space<vmem>>, vector<1x128xf32>
    %315 = vector.broadcast %314 : vector<1x128xf32> to vector<80x128xf32>
    %316 = arith.addf %313, %315 : vector<80x128xf32>
    %317 = arith.addf %291, %316 : vector<80x128xf32>
    %c22 = arith.constant 22 : index
    %c0_125 = arith.constant 0 : index
    %318 = vector.load %arg3[%c22, %c0_125] : memref<24x128xf32, #tpu.memory_space<vmem>>, vector<1x128xf32>
    %c23 = arith.constant 23 : index
    %c0_126 = arith.constant 0 : index
    %319 = vector.load %arg3[%c23, %c0_126] : memref<24x128xf32, #tpu.memory_space<vmem>>, vector<1x128xf32>
    %cst_127 = arith.constant dense<0.000000e+00> : vector<80xf32>
    %320 = vector.multi_reduction <add>, %317, %cst_127 [1] : vector<80x128xf32> to vector<80xf32>
    %321 = vector.shape_cast %320 : vector<80xf32> to vector<80x1xf32>
    %cst_128 = arith.constant 3.125000e-02 : f32
    %322 = vector.broadcast %cst_128 : f32 to vector<80x1xf32>
    %323 = arith.mulf %321, %322 : vector<80x1xf32>
    %324 = vector.broadcast %323 : vector<80x1xf32> to vector<80x128xf32>
    %325 = arith.subf %317, %324 : vector<80x128xf32>
    %326 = arith.mulf %325, %325 : vector<80x128xf32>
    %cst_129 = arith.constant 0.000000e+00 : f32
    %327 = vector.broadcast %cst_129 : f32 to vector<80x128xf32>
    %328 = arith.select %81, %326, %327 : vector<80x128xi1>, vector<80x128xf32>
    %cst_130 = arith.constant dense<0.000000e+00> : vector<80xf32>
    %329 = vector.multi_reduction <add>, %328, %cst_130 [1] : vector<80x128xf32> to vector<80xf32>
    %330 = vector.shape_cast %329 : vector<80xf32> to vector<80x1xf32>
    %cst_131 = arith.constant 3.125000e-02 : f32
    %331 = vector.broadcast %cst_131 : f32 to vector<80x1xf32>
    %332 = arith.mulf %330, %331 : vector<80x1xf32>
    %cst_132 = arith.constant 9.99999974E-6 : f32
    %333 = vector.broadcast %cst_132 : f32 to vector<80x1xf32>
    %334 = arith.addf %332, %333 : vector<80x1xf32>
    %335 = math.rsqrt %334 : vector<80x1xf32>
    %336 = vector.broadcast %335 : vector<80x1xf32> to vector<80x128xf32>
    %337 = arith.mulf %325, %336 : vector<80x128xf32>
    %338 = vector.broadcast %318 : vector<1x128xf32> to vector<80x128xf32>
    %339 = arith.mulf %337, %338 : vector<80x128xf32>
    %340 = vector.broadcast %319 : vector<1x128xf32> to vector<80x128xf32>
    %341 = arith.addf %339, %340 : vector<80x128xf32>
    %c0_133 = arith.constant 0 : index
    %c0_134 = arith.constant 0 : index
    %c0_135 = arith.constant 0 : index
    %342 = vector.load %arg4[%c0_133, %c0_134, %c0_135] : memref<1x80x128xf32, #tpu.memory_space<vmem>>, vector<1x80x128xf32>
    %343 = vector.shape_cast %342 : vector<1x80x128xf32> to vector<80x128xf32>
    %344 = vector.shape_cast %341 : vector<80x128xf32> to vector<1x80x128xf32>
    tpu.vector_store %arg4[%c0_133, %c0_134, %c0_135], %344 {strides = array<i32>} : memref<1x80x128xf32, #tpu.memory_space<vmem>>, vector<1x80x128xf32>,
    return
  }
  func.func @transform_0(%arg0: i32) -> (i32, i32, i32) {
    %c0_i32 = arith.constant 0 : i32
    %c0_i32_0 = arith.constant 0 : i32
    %c0_i32_1 = arith.constant 0 : i32
    return %arg0, %c0_i32, %c0_i32_0 : i32, i32, i32
  }
  func.func @transform_1(%arg0: i32) -> (i32, i32) {
    %c0_i32 = arith.constant 0 : i32
    %c0_i32_0 = arith.constant 0 : i32
    %c0_i32_1 = arith.constant 0 : i32
    return %c0_i32, %c0_i32_0 : i32, i32
  }
  func.func @transform_2(%arg0: i32) -> (i32, i32) {
    %c0_i32 = arith.constant 0 : i32
    %c0_i32_0 = arith.constant 0 : i32
    %c0_i32_1 = arith.constant 0 : i32
    return %c0_i32, %c0_i32_0 : i32, i32
  }
  func.func @transform_3(%arg0: i32) -> (i32, i32, i32) {
    %c0_i32 = arith.constant 0 : i32
    %c0_i32_0 = arith.constant 0 : i32
    %c0_i32_1 = arith.constant 0 : i32
    return %arg0, %c0_i32, %c0_i32_0 : i32, i32, i32
  }
}

</mosaic_0001>

<llo_original>
// kernel: encoder_forward.1
$region0: #{encoder_forward.1}
  #allocation0 [shape = 'u32[]', space=smem, size = 0x4, offset = 0x4, fixed_abs, tag = 'smem constant byte address 0x4 - core index']
  #allocation1 [shape = 'u32[144,128]{1,0:T(1,128)}', space=vmem, size = 0x12000, scoped, tag = 'internal scratch']
  %s0 = inlined_call_operand.vmem [shape: f32[2,96,10], index: 0, kind: input, shape index: {}]
  %s1 = inlined_call_operand.hbm [shape: bf16[2992,128], index: 1, kind: input, shape index: {}]
  %s2 = inlined_call_operand.vmem [shape: f32[24,128], index: 2, kind: input, shape index: {}]
  %s3 = inlined_call_operand.vmem [shape: f32[2,80,128], index: 3, kind: output, shape index: {}]
  %s4 = sld [smem:[#allocation0]]
  $region49: #{encoder_forward.1} parent=0
    _
  %s6 = ssub.s32 1, %s4
  %s7 = scalar_select 0, %s6, %s4
  $region1: #{encoder_forward.1} parent=0
    #allocation2 [shape = 'u8[765952]{0}', space=vmem, size = 0xbb000, scoped, tag = 'input window, operand 1, single buffered']
    #allocation3 [shape = 's32[2]{0}', space=sflag, size = 0x8, scoped, tag = 'scoped memory for encoder_forward.1']
    %8 = vsyncpa [#allocation3], 0
    loop: start=0, step=1, limit=4
    $region2: #{encoder_forward.1} parent=1 // loop_pre_header
      _
    $region3: #{encoder_forward.1} parent=1 // loop_header
      %s10 = sphi 0, %s14
      %p11 = scmp.ge.s32.totalorder %s10, 4
      %s20 = sphi 0, %s22
      %s23 = sphi 0, %s20
      %s24 = sphi 0, %s23
      %s40 = sphi 0, %s24
      %s44 = sphi 0, %s44
      %s46 = sphi 0, %s44
      %s47 = sphi 0, %s46
      %s61 = sphi 0, %s47
      %s65 = sphi 0, %s65
      %s67 = sphi 0, %s65
      %s68 = sphi 0, %s67
      %s82 = sphi 0, %s68
      %s88 = sphi 0, %s90
      %s91 = sphi 0, %s88
      %s92 = sphi 0, %s91
      %s108 = sphi 0, %s92
    $region4: #{encoder_forward.1} parent=1 // loop_header_branch
      %13 = sbr.rel (%p11) target = $region8
    $region5: #{encoder_forward.1} parent=1 // loop_body
      %s15 = ssub.s32 %s10, 1
      %s16 = ssub.s32 %s10, 2
      %s17 = sadd.s32 %s10, 1
      %s18 = ssub.s32 %s10, %s17
      %p19 = scmp.eq.s32.totalorder %s18, 0
      %s21 = sadd.s32 %s20, 1
      %s22 = scalar_select %p19, %s20, %s21
      %p25 = pneg %p19
      %p26 = scmp.eq.s32.totalorder %s10, 1
      %p27 = por %p25, %p26
      %p28 = scmp.ne.s32.totalorder %s20, %s23
      %p29 = scmp.eq.s32.totalorder %s10, 0
      %p30 = por %p28, %p29
      %p31 = scmp.ne.s32.totalorder %s20, %s23
      %p32 = scmp.eq.s32.totalorder %s15, 1
      %p33 = por %p31, %p32
      %p34 = scmp.ne.s32.totalorder %s23, %s24
      %p35 = scmp.eq.s32.totalorder %s15, 0
      %p36 = por %p34, %p35
      %p37 = scmp.ne.s32.totalorder %s23, %s24
      %p38 = scmp.eq.s32.totalorder %s16, 1
      %p39 = por %p37, %p38
      %p41 = scmp.ne.s32.totalorder %s24, %s40
      %p42 = scmp.eq.s32.totalorder %s16, 0
      %p43 = por %p41, %p42
      %s45 = sadd.s32 %s44, 1
      %p48 = scmp.eq.s32.totalorder %s10, 1
      %p49 = scmp.ne.s32.totalorder %s44, %s46
      %p50 = scmp.eq.s32.totalorder %s10, 0
      %p51 = por %p49, %p50
      %p52 = scmp.ne.s32.totalorder %s44, %s46
      %p53 = scmp.eq.s32.totalorder %s15, 1
      %p54 = por %p52, %p53
      %p55 = scmp.ne.s32.totalorder %s46, %s47
      %p56 = scmp.eq.s32.totalorder %s15, 0
      %p57 = por %p55, %p56
      %p58 = scmp.ne.s32.totalorder %s46, %s47
      %p59 = scmp.eq.s32.totalorder %s16, 1
      %p60 = por %p58, %p59
      %p62 = scmp.ne.s32.totalorder %s47, %s61
      %p63 = scmp.eq.s32.totalorder %s16, 0
      %p64 = por %p62, %p63
      %s66 = sadd.s32 %s65, 1
      %p69 = scmp.eq.s32.totalorder %s10, 1
      %p70 = scmp.ne.s32.totalorder %s65, %s67
      %p71 = scmp.eq.s32.totalorder %s10, 0
      %p72 = por %p70, %p71
      %p73 = scmp.ne.s32.totalorder %s65, %s67
      %p74 = scmp.eq.s32.totalorder %s15, 1
      %p75 = por %p73, %p74
      %p76 = scmp.ne.s32.totalorder %s67, %s68
      %p77 = scmp.eq.s32.totalorder %s15, 0
      %p78 = por %p76, %p77
      %p79 = scmp.ne.s32.totalorder %s67, %s68
      %p80 = scmp.eq.s32.totalorder %s16, 1
      %p81 = por %p79, %p80
      %p83 = scmp.ne.s32.totalorder %s68, %s82
      %p84 = scmp.eq.s32.totalorder %s16, 0
      %p85 = por %p83, %p84
      %s86 = ssub.s32 %s10, %s17
      %p87 = scmp.eq.s32.totalorder %s86, 0
      %s89 = sadd.s32 %s88, 1
      %s90 = scalar_select %p87, %s88, %s89
      %p93 = pneg %p87
      %p94 = scmp.eq.s32.totalorder %s10, 1
      %p95 = por %p93, %p94
      %p96 = scmp.ne.s32.totalorder %s88, %s91
      %p97 = scmp.eq.s32.totalorder %s10, 0
      %p98 = por %p96, %p97
      %p99 = scmp.ne.s32.totalorder %s88, %s91
      %p100 = scmp.eq.s32.totalorder %s15, 1
      %p101 = por %p99, %p100
      %p102 = scmp.ne.s32.totalorder %s91, %s92
      %p103 = scmp.eq.s32.totalorder %s15, 0
      %p104 = por %p102, %p103
      %p105 = scmp.ne.s32.totalorder %s91, %s92
      %p106 = scmp.eq.s32.totalorder %s16, 1
      %p107 = por %p105, %p106
      %p109 = scmp.ne.s32.totalorder %s92, %s108
      %p110 = scmp.eq.s32.totalorder %s16, 0
      %p111 = por %p109, %p110
      %p112 = scmp.le.s32.totalorder 1, %s10
      %p113 = scmp.lt.s32.totalorder %s10, 3
      %p114 = pnand %p112, %p113
      %p115 = pneg %p114
      // Predicated region
      $region9: #{encoder_forward.1} parent=5 // pred_check
        _
      $region10: #{encoder_forward.1} parent=5 // pred_check_branch
        %117 = sbr.rel (%p114) target = $region12
      $region11: #{encoder_forward.1} parent=5 // pred_region
        %s118 = ssub.s32 %s10, 1
        // Predicated region
        $region13: #{encoder_forward.1} parent=11 // pred_check
          %p119 = pneg %p57
        $region14: #{encoder_forward.1} parent=11 // pred_check_branch
          %121 = sbr.rel (%p119) target = $region16
        $region15: #{encoder_forward.1} parent=11 // pred_region
          %s123 = ssub.s32 23936, 23936
          %124 = vsyncadd [#allocation3], %s123
          %s125 = sshll.u32 [#allocation2], 4
          %s126 = int_to_ptr.vmem [resolvable:$true] %s125
          %131 = dma.hbm_to_vmem [thread:$0]  %s1, 23936, %s126, [#allocation3], 64, 64, 4
        $region16: #{encoder_forward.1} parent=11 // pred_fallthru
          _
        // Predicated region
        $region17: #{encoder_forward.1} parent=11 // pred_check
          %p132 = pneg %p78
        $region18: #{encoder_forward.1} parent=11 // pred_check_branch
          %134 = sbr.rel (%p132) target = $region20
        $region19: #{encoder_forward.1} parent=11 // pred_region
          _
        $region20: #{encoder_forward.1} parent=11 // pred_fallthru
          _
      $region12: #{encoder_forward.1} parent=5 // pred_fallthru
        _
      %p135 = scmp.lt.s32.totalorder %s10, 2
      // Predicated region
      $region21: #{encoder_forward.1} parent=5 // pred_check
        %p136 = pneg %p135
      $region22: #{encoder_forward.1} parent=5 // pred_check_branch
        %138 = sbr.rel (%p136) target = $region24
      $region23: #{encoder_forward.1} parent=5 // pred_region
        // Predicated region
        $region25: #{encoder_forward.1} parent=23 // pred_check
          %p139 = pneg %p30
        $region26: #{encoder_forward.1} parent=23 // pred_check_branch
          %141 = sbr.rel (%p139) target = $region28
        $region27: #{encoder_forward.1} parent=23 // pred_region
          %p142 = scmp.lt.s32.totalorder %s10, 1
          %s143 = scalar_select %p142, %s10, 1
          %s144 = smul.addr %s143, 12
          %s145 = smul.addr %s144, 8
          %s146 = scalar_lea.vmem %s0, %s145
        $region28: #{encoder_forward.1} parent=23 // pred_fallthru
          _
      $region24: #{encoder_forward.1} parent=5 // pred_fallthru
        _
      %p147 = scmp.le.s32.totalorder 1, %s10
      %p148 = scmp.lt.s32.totalorder %s10, 3
      %p149 = pnand %p147, %p148
      %p150 = pneg %p149
      // Predicated region
      $region29: #{encoder_forward.1} parent=5 // pred_check
        _
      $region30: #{encoder_forward.1} parent=5 // pred_check_branch
        %152 = sbr.rel (%p149) target = $region32
      $region31: #{encoder_forward.1} parent=5 // pred_region
        %s153 = ssub.s32 %s10, 1
        // Predicated region
        $region33: #{encoder_forward.1} parent=31 // pred_check
          %p154 = pneg %p57
        $region34: #{encoder_forward.1} parent=31 // pred_check_branch
          %156 = sbr.rel (%p154) target = $region36
        $region35: #{encoder_forward.1} parent=31 // pred_region
          %157 = dma.done [#allocation3], 23936
        $region36: #{encoder_forward.1} parent=31 // pred_fallthru
          _
        %p158 = scmp.lt.s32.totalorder %s15, 1
        %s159 = scalar_select %p158, %s15, 1
        %s160 = smul.addr %s159, 12
        %s161 = smul.addr %s160, 8
        %s162 = scalar_lea.vmem %s0, %s161
        %p163 = pneg %p36
        %p164 = pneg %p33
        %p165 = pneg %p57
        %p166 = pneg %p54
        %p167 = pneg %p78
        %p168 = pneg %p75
        %p169 = pneg %p104
        %p170 = pneg %p101
        %p171 = scmp.lt.s32.totalorder %s15, 1
        %s172 = scalar_select %p171, %s15, 1
        %s173 = smul.addr %s172, 10
        %s174 = smul.addr %s173, 8
        %s175 = scalar_lea.vmem %s3, %s174
        %p176 = scmp.lt.s32.totalorder %s15, 1
        %s177 = scalar_select %p176, %s15, 1
        %s178 = smul.addr %s177, 12
        %s179 = smul.addr %s178, 8
        %s180 = scalar_lea.vmem %s0, %s179
        %p181 = scmp.lt.s32.totalorder %s15, 1
        %s182 = scalar_select %p181, %s15, 1
        %s183 = smul.addr %s182, 10
        %s184 = smul.addr %s183, 8
        %s185 = scalar_lea.vmem %s3, %s184
        %v187 = vld [vmem:[%s180] sm:$0xff]
        %v188 = vld [vmem:[%s180 + $0x8] sm:$0xff]
        %v189 = vld [vmem:[%s180 + $0x10] sm:$0xff]
        %v190 = vld [vmem:[%s180 + $0x18] sm:$0xff]
        %v191 = vld [vmem:[%s180 + $0x20] sm:$0xff]
        %v192 = vld [vmem:[%s180 + $0x28] sm:$0xff]
        %v193 = vld [vmem:[%s180 + $0x30] sm:$0xff]
        %v194 = vld [vmem:[%s180 + $0x38] sm:$0xff]
        %v195 = vld [vmem:[%s180 + $0x40] sm:$0xff]
        %v196 = vld [vmem:[%s180 + $0x48] sm:$0xff]
        %v197 = vld [vmem:[%s180 + $0x50] sm:$0xff]
        %v198 = vld [vmem:[%s180 + $0x58] sm:$0xff]
        %v199 = vpack.c.bf16 %v188, %v187
        %v200 = vpack.c.bf16 %v190, %v189
        %v201 = vpack.c.bf16 %v192, %v191
        %v202 = vpack.c.bf16 %v194, %v193
        %v203 = vpack.c.bf16 %v196, %v195
        %v204 = vpack.c.bf16 %v197, %v197
        %v205 = vpack.c.bf16 %v198, %v197
        %v206 = vld [vmem:[%s2] sm:$0x1]
        %v207 = vld [vmem:[#allocation2] sm:$0xf]
        %v208 = vld [vmem:[#allocation2 + $0x4] sm:$0x1]
        %v209 = vlaneseq
        %v210 = vshrl.u32 %v209, 7
        %v211 = vsub.s32 0, %v210
        %v212 = vrot.slane %v206, %v211
        %v215 = vunpack.c.l.b16 %v207
        %v216 = vunpack.c.l.b16 %v208
        %v217 = vpack.c.b16 %v216, %v215
        %vm218 = vcmask 80896
        %v220 = vsel %vm218, %v199, 0
        %v223 = vsel %vm218, %v200, 0
        %v226 = vsel %vm218, %v201, 0
        %v229 = vsel %vm218, %v202, 0
        %v232 = vsel %vm218, %v203, 0
        %v235 = vsel %vm218, %v204, 0
        %vm237 = vcmask 1044480
        %v239 = vsel %vm237, %v217, 0
        %241 = vmatprep.subr.bf16.mxu0 0
        %242 = vmatpush1.bf16.msra.mxu0 %v239
        %243 = vmatprep.subr.bf16.mxu0 0
        %244 = vmatpush1.bf16.msra.mxu0 0
        %245 = vmatprep.subr.bf16.mxu0 0
        %246 = vmatpush1.bf16.msra.mxu0 0
        %247 = vmatprep.subr.bf16.mxu0 0
        %248 = vmatpush1.bf16.msra.mxu0 0
        %249 = vmatprep.subr.bf16.mxu0 0
        %250 = vmatpush1.bf16.msra.mxu0 0
        %251 = vmatprep.subr.bf16.mxu0 0
        %252 = vmatpush1.bf16.msra.mxu0 0
        %253 = vmatprep.subr.bf16.mxu0 0
        %254 = vmatpush1.bf16.msra.mxu0 0
        %255 = vmatprep.subr.bf16.mxu0 0
        %256 = vmatpush1.bf16.msra.mxu0 0
        %257 = vmatprep.subr.bf16.mxu0 0
        %258 = vmatpush1.bf16.msra.mxu0 0
        %259 = vmatprep.subr.bf16.mxu0 0
        %260 = vmatpush1.bf16.msra.mxu0 0
        %261 = vmatprep.subr.bf16.mxu0 0
        %262 = vmatpush1.bf16.msra.mxu0 0
        %263 = vmatprep.subr.bf16.mxu0 0
        %264 = vmatpush1.bf16.msra.mxu0 0
        %265 = vmatprep.subr.bf16.mxu0 0
        %266 = vmatpush1.bf16.msra.mxu0 0
        %267 = vmatprep.subr.bf16.mxu0 0
        %268 = vmatpush1.bf16.msra.mxu0 0
        %269 = vmatprep.subr.bf16.mxu0 0
        %270 = vmatpush1.bf16.msra.mxu0 0
        %271 = vmatprep.subr.bf16.mxu0 0
        %272 = vmatpush1.bf16.msra.mxu0 0
        %273 = vmatprep.mubr.bf16.mxu0 0
        %274 = vmatmul.mubr.bf16.gmra.mrb[0].mxu0 %v220
        %v275 = vpop.f32.mrb[0].mxu0
        %v276 = vadd.f32 %v212, %v275
        %v277 = vpop.f32.mrb[0].mxu0
        %v278 = vpop.f32.mrb[0].mxu0
        %v279 = vadd.f32 %v212, %v278
        %v280 = vpop.f32.mrb[0].mxu0
        %281 = vmatprep.mubr.bf16.mxu0 0
        %282 = vmatmul.mubr.bf16.gmra.mrb[0].mxu0 %v223
        %v283 = vpop.f32.mrb[0].mxu0
        %v284 = vadd.f32 %v212, %v283
        %v285 = vpop.f32.mrb[0].mxu0
        %v286 = vpop.f32.mrb[0].mxu0
        %v287 = vadd.f32 %v212, %v286
        %v288 = vpop.f32.mrb[0].mxu0
        %289 = vmatprep.mubr.bf16.mxu0 0
        %290 = vmatmul.mubr.bf16.gmra.mrb[0].mxu0 %v226
        %v291 = vpop.f32.mrb[0].mxu0
        %v292 = vadd.f32 %v212, %v291
        %v293 = vpop.f32.mrb[0].mxu0
        %v294 = vpop.f32.mrb[0].mxu0
        %v295 = vadd.f32 %v212, %v294
        %v296 = vpop.f32.mrb[0].mxu0
        %297 = vmatprep.mubr.bf16.mxu0 0
        %298 = vmatmul.mubr.bf16.gmra.mrb[0].mxu0 %v229
        %v299 = vpop.f32.mrb[0].mxu0
        %v300 = vadd.f32 %v212, %v299
        %v301 = vpop.f32.mrb[0].mxu0
        %v302 = vpop.f32.mrb[0].mxu0
        %v303 = vadd.f32 %v212, %v302
        %v304 = vpop.f32.mrb[0].mxu0
        %305 = vmatprep.mubr.bf16.mxu0 0
        %306 = vmatmul.mubr.bf16.gmra.mrb[0].mxu0 %v232
        %v307 = vpop.f32.mrb[0].mxu0
        %v308 = vadd.f32 %v212, %v307
        %v309 = vpop.f32.mrb[0].mxu0
        %v310 = vpop.f32.mrb[0].mxu0
        %v311 = vadd.f32 %v212, %v310
        %v312 = vpop.f32.mrb[0].mxu0
        %313 = vmatprep.mubr.bf16.mxu0 0
        %314 = vmatmul.mubr.bf16.gmra.mrb[0].mxu0 %v235
        %v315 = vpop.f32.mrb[0].mxu0
        %v316 = vadd.f32 %v212, %v315
        %v317 = vpop.f32.mrb[0].mxu0
        %v318 = vpop.f32.mrb[0].mxu0
        %v319 = vpop.f32.mrb[0].mxu0
        %320 = vdwg.mxu0
        %v321 = vmul.f32 %v276, 0.5
        %v322 = vmul.f32 %v279, 0.5
        %v323 = vmul.f32 %v284, 0.5
        %v324 = vmul.f32 %v287, 0.5
        %v325 = vmul.f32 %v292, 0.5
        %v326 = vmul.f32 %v295, 0.5
        %v327 = vmul.f32 %v300, 0.5
        %v328 = vmul.f32 %v303, 0.5
        %v329 = vmul.f32 %v308, 0.5
        %v330 = vmul.f32 %v311, 0.5
        %v331 = vmul.f32 %v316, 0.5
        %v332 = vmul.f32 %v276, 0.044715
        %v333 = vmul.f32 %v279, 0.044715
        %v334 = vmul.f32 %v284, 0.044715
        %v335 = vmul.f32 %v287, 0.044715
        %v336 = vmul.f32 %v292, 0.044715
        %v337 = vmul.f32 %v295, 0.044715
        %v338 = vmul.f32 %v300, 0.044715
        %v339 = vmul.f32 %v303, 0.044715
        %v340 = vmul.f32 %v308, 0.044715
        %v341 = vmul.f32 %v311, 0.044715
        %v342 = vmul.f32 %v316, 0.044715
        %v343 = vmul.f32 %v332, %v276
        %v344 = vmul.f32 %v333, %v279
        %v345 = vmul.f32 %v334, %v284
        %v346 = vmul.f32 %v335, %v287
        %v347 = vmul.f32 %v336, %v292
        %v348 = vmul.f32 %v337, %v295
        %v349 = vmul.f32 %v338, %v300
        %v350 = vmul.f32 %v339, %v303
        %v351 = vmul.f32 %v340, %v308
        %v352 = vmul.f32 %v341, %v311
        %v353 = vmul.f32 %v342, %v316
        %v354 = vmul.f32 %v343, %v276
        %v355 = vmul.f32 %v344, %v279
        %v356 = vmul.f32 %v345, %v284
        %v357 = vmul.f32 %v346, %v287
        %v358 = vmul.f32 %v347, %v292
        %v359 = vmul.f32 %v348, %v295
        %v360 = vmul.f32 %v349, %v300
        %v361 = vmul.f32 %v350, %v303
        %v362 = vmul.f32 %v351, %v308
        %v363 = vmul.f32 %v352, %v311
        %v364 = vmul.f32 %v353, %v316
        %v365 = vadd.f32 %v276, %v354
        %v366 = vadd.f32 %v279, %v355
        %v367 = vadd.f32 %v284, %v356
        %v368 = vadd.f32 %v287, %v357
        %v369 = vadd.f32 %v292, %v358
        %v370 = vadd.f32 %v295, %v359
        %v371 = vadd.f32 %v300, %v360
        %v372 = vadd.f32 %v303, %v361
        %v373 = vadd.f32 %v308, %v362
        %v374 = vadd.f32 %v311, %v363
        %v375 = vadd.f32 %v316, %v364
        %v376 = vmul.f32 %v365, 0.7978846
        %v377 = vmul.f32 %v366, 0.7978846
        %v378 = vmul.f32 %v367, 0.7978846
        %v379 = vmul.f32 %v368, 0.7978846
        %v380 = vmul.f32 %v369, 0.7978846
        %v381 = vmul.f32 %v370, 0.7978846
        %v382 = vmul.f32 %v371, 0.7978846
        %v383 = vmul.f32 %v372, 0.7978846
        %v384 = vmul.f32 %v373, 0.7978846
        %v385 = vmul.f32 %v374, 0.7978846
        %v386 = vmul.f32 %v375, 0.7978846
        %v387 = vtanh.pop %v376
        %v388 = vtanh.pop %v377
        %v389 = vtanh.pop %v378
        %v390 = vtanh.pop %v379
        %v391 = vtanh.pop %v380
        %v392 = vtanh.pop %v381
        %v393 = vtanh.pop %v382
        %v394 = vtanh.pop %v383
        %v395 = vtanh.pop %v384
        %v396 = vtanh.pop %v385
        %v397 = vtanh.pop %v386
        %v398 = vadd.f32 %v387, 1.0
        %v399 = vadd.f32 %v388, 1.0
        %v400 = vadd.f32 %v389, 1.0
        %v401 = vadd.f32 %v390, 1.0
        %v402 = vadd.f32 %v391, 1.0
        %v403 = vadd.f32 %v392, 1.0
        %v404 = vadd.f32 %v393, 1.0
        %v405 = vadd.f32 %v394, 1.0
        %v406 = vadd.f32 %v395, 1.0
        %v407 = vadd.f32 %v396, 1.0
        %v408 = vadd.f32 %v397, 1.0
        %v409 = vmul.f32 %v321, %v398
        %v410 = vmul.f32 %v322, %v399
        %v411 = vmul.f32 %v323, %v400
        %v412 = vmul.f32 %v324, %v401
        %v413 = vmul.f32 %v325, %v402
        %v414 = vmul.f32 %v326, %v403
        %v415 = vmul.f32 %v327, %v404
        %v416 = vmul.f32 %v328, %v405
        %v417 = vmul.f32 %v329, %v406
        %v418 = vmul.f32 %v330, %v407
        %v419 = vmul.f32 %v331, %v408
        %v420 = vld [vmem:[#allocation2 + $0x8] sm:$0xf]
        %v421 = vld [vmem:[#allocation2 + $0xc] sm:$0x1]
        %v422 = vld [vmem:[#allocation2 + $0x10] sm:$0xf]
        %v423 = vld [vmem:[#allocation2 + $0x14] sm:$0x1]
        %vm424 = vsmask.f32 7424
        %v425 = vshrl.u32 %v199, 16
        %v427 = vshll.u32 %v199, 16
        %v429 = vrot.slane %v427, 1
        %v430 = vor.u32 %v425, %v429
        %v431 = vshll.u32 %v200, 16
        %v433 = vrot.slane %v431, 1
        %v434 = vsel %vm424, %v430, %v433
        %v435 = vshrl.u32 %v200, 16
        %v437 = vor.u32 %v435, %v433
        %v438 = vshll.u32 %v201, 16
        %v440 = vrot.slane %v438, 1
        %v441 = vsel %vm424, %v437, %v440
        %v442 = vshrl.u32 %v201, 16
        %v444 = vor.u32 %v442, %v440
        %v445 = vshll.u32 %v202, 16
        %v447 = vrot.slane %v445, 1
        %v448 = vsel %vm424, %v444, %v447
        %v449 = vshrl.u32 %v202, 16
        %v451 = vor.u32 %v449, %v447
        %v452 = vshll.u32 %v203, 16
        %v454 = vrot.slane %v452, 1
        %v455 = vsel %vm424, %v451, %v454
        %v456 = vshrl.u32 %v203, 16
        %v458 = vor.u32 %v456, %v454
        %v460 = vshll.u32 %v205, 16
        %v462 = vrot.slane %v460, 1
        %v463 = vsel %vm424, %v458, %v462
        %v464 = vshrl.u32 %v205, 16
        %v466 = vor.u32 %v464, %v462
        %v469 = vunpack.c.l.b16 %v422
        %v470 = vunpack.c.l.b16 %v423
        %v471 = vpack.c.b16 %v470, %v469
        %v473 = vsel %vm218, %v434, 0
        %v476 = vsel %vm218, %v441, 0
        %v479 = vsel %vm218, %v448, 0
        %v482 = vsel %vm218, %v455, 0
        %v485 = vsel %vm218, %v463, 0
        %v488 = vsel %vm218, %v466, 0
        %v491 = vsel %vm237, %v471, 0
        %493 = vmatprep.subr.bf16.mxu0 0
        %494 = vmatpush1.bf16.msra.mxu0 %v491
        %495 = vmatprep.subr.bf16.mxu0 0
        %496 = vmatpush1.bf16.msra.mxu0 0
        %497 = vmatprep.subr.bf16.mxu0 0
        %498 = vmatpush1.bf16.msra.mxu0 0
        %499 = vmatprep.subr.bf16.mxu0 0
        %500 = vmatpush1.bf16.msra.mxu0 0
        %501 = vmatprep.subr.bf16.mxu0 0
        %502 = vmatpush1.bf16.msra.mxu0 0
        %503 = vmatprep.subr.bf16.mxu0 0
        %504 = vmatpush1.bf16.msra.mxu0 0
        %505 = vmatprep.subr.bf16.mxu0 0
        %506 = vmatpush1.bf16.msra.mxu0 0
        %507 = vmatprep.subr.bf16.mxu0 0
        %508 = vmatpush1.bf16.msra.mxu0 0
        %509 = vmatprep.subr.bf16.mxu0 0
        %510 = vmatpush1.bf16.msra.mxu0 0
        %511 = vmatprep.subr.bf16.mxu0 0
        %512 = vmatpush1.bf16.msra.mxu0 0
        %513 = vmatprep.subr.bf16.mxu0 0
        %514 = vmatpush1.bf16.msra.mxu0 0
        %515 = vmatprep.subr.bf16.mxu0 0
        %516 = vmatpush1.bf16.msra.mxu0 0
        %517 = vmatprep.subr.bf16.mxu0 0
        %518 = vmatpush1.bf16.msra.mxu0 0
        %519 = vmatprep.subr.bf16.mxu0 0
        %520 = vmatpush1.bf16.msra.mxu0 0
        %521 = vmatprep.subr.bf16.mxu0 0
        %522 = vmatpush1.bf16.msra.mxu0 0
        %523 = vmatprep.subr.bf16.mxu0 0
        %524 = vmatpush1.bf16.msra.mxu0 0
        %525 = vmatprep.mubr.bf16.mxu0 0
        %526 = vmatmul.mubr.bf16.gmra.mrb[0].mxu0 %v473
        %v527 = vpop.f32.mrb[0].mxu0
        %v528 = vadd.f32 0.0, %v527
        %v529 = vpop.f32.mrb[0].mxu0
        %v530 = vpop.f32.mrb[0].mxu0
        %v531 = vadd.f32 0.0, %v530
        %v532 = vpop.f32.mrb[0].mxu0
        %533 = vmatprep.mubr.bf16.mxu0 0
        %534 = vmatmul.mubr.bf16.gmra.mrb[0].mxu0 %v476
        %v535 = vpop.f32.mrb[0].mxu0
        %v536 = vadd.f32 0.0, %v535
        %v537 = vpop.f32.mrb[0].mxu0
        %v538 = vpop.f32.mrb[0].mxu0
        %v539 = vadd.f32 0.0, %v538
        %v540 = vpop.f32.mrb[0].mxu0
        %541 = vmatprep.mubr.bf16.mxu0 0
        %542 = vmatmul.mubr.bf16.gmra.mrb[0].mxu0 %v479
        %v543 = vpop.f32.mrb[0].mxu0
        %v544 = vadd.f32 0.0, %v543
        %v545 = vpop.f32.mrb[0].mxu0
        %v546 = vpop.f32.mrb[0].mxu0
        %v547 = vadd.f32 0.0, %v546
        %v548 = vpop.f32.mrb[0].mxu0
        %549 = vmatprep.mubr.bf16.mxu0 0
        %550 = vmatmul.mubr.bf16.gmra.mrb[0].mxu0 %v482
        %v551 = vpop.f32.mrb[0].mxu0
        %v552 = vadd.f32 0.0, %v551
        %v553 = vpop.f32.mrb[0].mxu0
        %v554 = vpop.f32.mrb[0].mxu0
        %v555 = vadd.f32 0.0, %v554
        %v556 = vpop.f32.mrb[0].mxu0
        %557 = vmatprep.mubr.bf16.mxu0 0
        %558 = vmatmul.mubr.bf16.gmra.mrb[0].mxu0 %v485
        %v559 = vpop.f32.mrb[0].mxu0
        %v560 = vadd.f32 0.0, %v559
        %v561 = vpop.f32.mrb[0].mxu0
        %v562 = vpop.f32.mrb[0].mxu0
        %v563 = vadd.f32 0.0, %v562
        %v564 = vpop.f32.mrb[0].mxu0
        %565 = vmatprep.mubr.bf16.mxu0 0
        %566 = vmatmul.mubr.bf16.gmra.mrb[0].mxu0 %v488
        %v567 = vpop.f32.mrb[0].mxu0
        %v568 = vadd.f32 0.0, %v567
        %v569 = vpop.f32.mrb[0].mxu0
        %v570 = vpop.f32.mrb[0].mxu0
        %v571 = vpop.f32.mrb[0].mxu0
        %572 = vdwg.mxu0
        %v575 = vunpack.c.l.b16 %v420
        %v576 = vunpack.c.l.b16 %v421
        %v577 = vpack.c.b16 %v576, %v575
        %v579 = vsel %vm237, %v577, 0
        %581 = vmatprep.subr.bf16.mxu0 0
        %582 = vmatpush1.bf16.msra.mxu0 %v579
        %583 = vmatprep.subr.bf16.mxu0 0
        %584 = vmatpush1.bf16.msra.mxu0 0
        %585 = vmatprep.subr.bf16.mxu0 0
        %586 = vmatpush1.bf16.msra.mxu0 0
        %587 = vmatprep.subr.bf16.mxu0 0
        %588 = vmatpush1.bf16.msra.mxu0 0
        %589 = vmatprep.subr.bf16.mxu0 0
        %590 = vmatpush1.bf16.msra.mxu0 0
        %591 = vmatprep.subr.bf16.mxu0 0
        %592 = vmatpush1.bf16.msra.mxu0 0
        %593 = vmatprep.subr.bf16.mxu0 0
        %594 = vmatpush1.bf16.msra.mxu0 0
        %595 = vmatprep.subr.bf16.mxu0 0
        %596 = vmatpush1.bf16.msra.mxu0 0
        %597 = vmatprep.subr.bf16.mxu0 0
        %598 = vmatpush1.bf16.msra.mxu0 0
        %599 = vmatprep.subr.bf16.mxu0 0
        %600 = vmatpush1.bf16.msra.mxu0 0
        %601 = vmatprep.subr.bf16.mxu0 0
        %602 = vmatpush1.bf16.msra.mxu0 0
        %603 = vmatprep.subr.bf16.mxu0 0
        %604 = vmatpush1.bf16.msra.mxu0 0
        %605 = vmatprep.subr.bf16.mxu0 0
        %606 = vmatpush1.bf16.msra.mxu0 0
        %607 = vmatprep.subr.bf16.mxu0 0
        %608 = vmatpush1.bf16.msra.mxu0 0
        %609 = vmatprep.subr.bf16.mxu0 0
        %610 = vmatpush1.bf16.msra.mxu0 0
        %611 = vmatprep.subr.bf16.mxu0 0
        %612 = vmatpush1.bf16.msra.mxu0 0
        %613 = vmatprep.mubr.bf16.mxu0 0
        %614 = vmatmul.mubr.bf16.gmra.mrb[0].mxu0 %v220
        %v615 = vpop.f32.mrb[0].mxu0
        %v616 = vadd.f32 %v528, %v615
        %v617 = vpop.f32.mrb[0].mxu0
        %v618 = vpop.f32.mrb[0].mxu0
        %v619 = vadd.f32 %v531, %v618
        %v620 = vpop.f32.mrb[0].mxu0
        %621 = vmatprep.mubr.bf16.mxu0 0
        %622 = vmatmul.mubr.bf16.gmra.mrb[0].mxu0 %v223
        %v623 = vpop.f32.mrb[0].mxu0
        %v624 = vadd.f32 %v536, %v623
        %v625 = vpop.f32.mrb[0].mxu0
        %v626 = vpop.f32.mrb[0].mxu0
        %v627 = vadd.f32 %v539, %v626
        %v628 = vpop.f32.mrb[0].mxu0
        %629 = vmatprep.mubr.bf16.mxu0 0
        %630 = vmatmul.mubr.bf16.gmra.mrb[0].mxu0 %v226
        %v631 = vpop.f32.mrb[0].mxu0
        %v632 = vadd.f32 %v544, %v631
        %v633 = vpop.f32.mrb[0].mxu0
        %v634 = vpop.f32.mrb[0].mxu0
        %v635 = vadd.f32 %v547, %v634
        %v636 = vpop.f32.mrb[0].mxu0
        %637 = vmatprep.mubr.bf16.mxu0 0
        %638 = vmatmul.mubr.bf16.gmra.mrb[0].mxu0 %v229
        %v639 = vpop.f32.mrb[0].mxu0
        %v640 = vadd.f32 %v552, %v639
        %v641 = vpop.f32.mrb[0].mxu0
        %v642 = vpop.f32.mrb[0].mxu0
        %v643 = vadd.f32 %v555, %v642
        %v644 = vpop.f32.mrb[0].mxu0
        %645 = vmatprep.mubr.bf16.mxu0 0
        %646 = vmatmul.mubr.bf16.gmra.mrb[0].mxu0 %v232
        %v647 = vpop.f32.mrb[0].mxu0
        %v648 = vadd.f32 %v560, %v647
        %v649 = vpop.f32.mrb[0].mxu0
        %v650 = vpop.f32.mrb[0].mxu0
        %v651 = vadd.f32 %v563, %v650
        %v652 = vpop.f32.mrb[0].mxu0
        %653 = vmatprep.mubr.bf16.mxu0 0
        %654 = vmatmul.mubr.bf16.gmra.mrb[0].mxu0 %v235
        %v655 = vpop.f32.mrb[0].mxu0
        %v656 = vadd.f32 %v568, %v655
        %v657 = vpop.f32.mrb[0].mxu0
        %v658 = vpop.f32.mrb[0].mxu0
        %v659 = vpop.f32.mrb[0].mxu0
        %660 = vdwg.mxu0
        %v661 = vadd.f32 %v616, %v212
        %v662 = vadd.f32 %v619, %v212
        %v663 = vadd.f32 %v624, %v212
        %v664 = vadd.f32 %v627, %v212
        %v665 = vadd.f32 %v632, %v212
        %v666 = vadd.f32 %v635, %v212
        %v667 = vadd.f32 %v640, %v212
        %v668 = vadd.f32 %v643, %v212
        %v669 = vadd.f32 %v648, %v212
        %v670 = vadd.f32 %v651, %v212
        %v671 = vadd.f32 %v656, %v212
        %v672 = vmul.f32 %v661, 0.5
        %v673 = vmul.f32 %v662, 0.5
        %v674 = vmul.f32 %v663, 0.5
        %v675 = vmul.f32 %v664, 0.5
        %v676 = vmul.f32 %v665, 0.5
        %v677 = vmul.f32 %v666, 0.5
        %v678 = vmul.f32 %v667, 0.5
        %v679 = vmul.f32 %v668, 0.5
        %v680 = vmul.f32 %v669, 0.5
        %v681 = vmul.f32 %v670, 0.5
        %v682 = vmul.f32 %v671, 0.5
        %v683 = vmul.f32 %v661, 0.044715
        %v684 = vmul.f32 %v662, 0.044715
        %v685 = vmul.f32 %v663, 0.044715
        %v686 = vmul.f32 %v664, 0.044715
        %v687 = vmul.f32 %v665, 0.044715
        %v688 = vmul.f32 %v666, 0.044715
        %v689 = vmul.f32 %v667, 0.044715
        %v690 = vmul.f32 %v668, 0.044715
        %v691 = vmul.f32 %v669, 0.044715
        %v692 = vmul.f32 %v670, 0.044715
        %v693 = vmul.f32 %v671, 0.044715
        %v694 = vmul.f32 %v683, %v661
        %v695 = vmul.f32 %v684, %v662
        %v696 = vmul.f32 %v685, %v663
        %v697 = vmul.f32 %v686, %v664
        %v698 = vmul.f32 %v687, %v665
        %v699 = vmul.f32 %v688, %v666
        %v700 = vmul.f32 %v689, %v667
        %v701 = vmul.f32 %v690, %v668
        %v702 = vmul.f32 %v691, %v669
        %v703 = vmul.f32 %v692, %v670
        %v704 = vmul.f32 %v693, %v671
        %v705 = vmul.f32 %v694, %v661
        %v706 = vmul.f32 %v695, %v662
        %v707 = vmul.f32 %v696, %v663
        %v708 = vmul.f32 %v697, %v664
        %v709 = vmul.f32 %v698, %v665
        %v710 = vmul.f32 %v699, %v666
        %v711 = vmul.f32 %v700, %v667
        %v712 = vmul.f32 %v701, %v668
        %v713 = vmul.f32 %v702, %v669
        %v714 = vmul.f32 %v703, %v670
        %v715 = vmul.f32 %v704, %v671
        %v716 = vadd.f32 %v661, %v705
        %v717 = vadd.f32 %v662, %v706
        %v718 = vadd.f32 %v663, %v707
        %v719 = vadd.f32 %v664, %v708
        %v720 = vadd.f32 %v665, %v709
        %v721 = vadd.f32 %v666, %v710
        %v722 = vadd.f32 %v667, %v711
        %v723 = vadd.f32 %v668, %v712
        %v724 = vadd.f32 %v669, %v713
        %v725 = vadd.f32 %v670, %v714
        %v726 = vadd.f32 %v671, %v715
        %v727 = vmul.f32 %v716, 0.7978846
        %v728 = vmul.f32 %v717, 0.7978846
        %v729 = vmul.f32 %v718, 0.7978846
        %v730 = vmul.f32 %v719, 0.7978846
        %v731 = vmul.f32 %v720, 0.7978846
        %v732 = vmul.f32 %v721, 0.7978846
        %v733 = vmul.f32 %v722, 0.7978846
        %v734 = vmul.f32 %v723, 0.7978846
        %v735 = vmul.f32 %v724, 0.7978846
        %v736 = vmul.f32 %v725, 0.7978846
        %v737 = vmul.f32 %v726, 0.7978846
        %v738 = vtanh.pop %v727
        %v739 = vtanh.pop %v728
        %v740 = vtanh.pop %v729
        %v741 = vtanh.pop %v730
        %v742 = vtanh.pop %v731
        %v743 = vtanh.pop %v732
        %v744 = vtanh.pop %v733
        %v745 = vtanh.pop %v734
        %v746 = vtanh.pop %v735
        %v747 = vtanh.pop %v736
        %v748 = vtanh.pop %v737
        %v749 = vadd.f32 %v738, 1.0
        %v750 = vadd.f32 %v739, 1.0
        %v751 = vadd.f32 %v740, 1.0
        %v752 = vadd.f32 %v741, 1.0
        %v753 = vadd.f32 %v742, 1.0
        %v754 = vadd.f32 %v743, 1.0
        %v755 = vadd.f32 %v744, 1.0
        %v756 = vadd.f32 %v745, 1.0
        %v757 = vadd.f32 %v746, 1.0
        %v758 = vadd.f32 %v747, 1.0
        %v759 = vadd.f32 %v748, 1.0
        %v760 = vmul.f32 %v672, %v749
        %v761 = vmul.f32 %v673, %v750
        %v762 = vmul.f32 %v674, %v751
        %v763 = vmul.f32 %v675, %v752
        %v764 = vmul.f32 %v676, %v753
        %v765 = vmul.f32 %v677, %v754
        %v766 = vmul.f32 %v678, %v755
        %v767 = vmul.f32 %v679, %v756
        %v768 = vmul.f32 %v680, %v757
        %v769 = vmul.f32 %v681, %v758
        %v770 = vmul.f32 %v682, %v759
        %v771 = vpack.c.bf16 %v410, %v409
        %v772 = vpack.c.bf16 %v412, %v411
        %v773 = vpack.c.bf16 %v414, %v413
        %v774 = vpack.c.bf16 %v416, %v415
        %v775 = vpack.c.bf16 %v418, %v417
        %v776 = vld [vmem:[#allocation2 + $0x18] sm:$0xf]
        %v777 = vld [vmem:[#allocation2 + $0x1c] sm:$0xf]
        %v778 = vld [vmem:[#allocation2 + $0x20] sm:$0xf]
        %v779 = vld [vmem:[#allocation2 + $0x24] sm:$0xf]
        %v780 = vld [vmem:[#allocation2 + $0x28] sm:$0xf]
        %v781 = vld [vmem:[#allocation2 + $0x2c] sm:$0xf]
        %v782 = vld [vmem:[#allocation2 + $0x30] sm:$0xf]
        %v783 = vld [vmem:[#allocation2 + $0x34] sm:$0xf]
        %v784 = vld [vmem:[#allocation2 + $0x38] sm:$0xf]
        %v785 = vld [vmem:[#allocation2 + $0x3c] sm:$0xf]
        %v786 = vld [vmem:[#allocation2 + $0x40] sm:$0xf]
        %v787 = vld [vmem:[#allocation2 + $0x44] sm:$0xf]
        %v788 = vld [vmem:[#allocation2 + $0x48] sm:$0xf]
        %v789 = vld [vmem:[#allocation2 + $0x4c] sm:$0xf]
        %v790 = vld [vmem:[#allocation2 + $0x50] sm:$0xf]
        %v791 = vld [vmem:[#allocation2 + $0x54] sm:$0xf]
        %v792 = vpack.c.bf16 %v761, %v760
        %v793 = vpack.c.bf16 %v763, %v762
        %v794 = vpack.c.bf16 %v765, %v764
        %v795 = vpack.c.bf16 %v767, %v766
        %v796 = vpack.c.bf16 %v769, %v768
        %v797 = vld [vmem:[#allocation2 + $0x58] sm:$0xf]
        %v798 = vld [vmem:[#allocation2 + $0x5c] sm:$0xf]
        %v799 = vld [vmem:[#allocation2 + $0x60] sm:$0xf]
        %v800 = vld [vmem:[#allocation2 + $0x64] sm:$0xf]
        %v801 = vld [vmem:[#allocation2 + $0x68] sm:$0xf]
        %v802 = vld [vmem:[#allocation2 + $0x6c] sm:$0xf]
        %v803 = vld [vmem:[#allocation2 + $0x70] sm:$0xf]
        %v804 = vld [vmem:[#allocation2 + $0x74] sm:$0xf]
        %v805 = vld [vmem:[#allocation2 + $0x78] sm:$0xf]
        %v806 = vld [vmem:[#allocation2 + $0x7c] sm:$0xf]
        %v807 = vld [vmem:[#allocation2 + $0x80] sm:$0xf]
        %v808 = vld [vmem:[#allocation2 + $0x84] sm:$0xf]
        %v809 = vld [vmem:[#allocation2 + $0x88] sm:$0xf]
        %v810 = vld [vmem:[#allocation2 + $0x8c] sm:$0xf]
        %v811 = vld [vmem:[#allocation2 + $0x90] sm:$0xf]
        %v812 = vld [vmem:[#allocation2 + $0x94] sm:$0xf]
        %v829 = vunpack.c.l.b16 %v797
        %v830 = vunpack.c.l.b16 %v798
        %v831 = vunpack.c.l.b16 %v799
        %v832 = vunpack.c.l.b16 %v800
        %v833 = vunpack.c.l.b16 %v801
        %v834 = vunpack.c.l.b16 %v802
        %v835 = vunpack.c.l.b16 %v803
        %v836 = vunpack.c.l.b16 %v804
        %v837 = vunpack.c.l.b16 %v805
        %v838 = vunpack.c.l.b16 %v806
        %v839 = vunpack.c.l.b16 %v807
        %v840 = vunpack.c.l.b16 %v808
        %v841 = vunpack.c.l.b16 %v809
        %v842 = vunpack.c.l.b16 %v810
        %v843 = vunpack.c.l.b16 %v811
        %v844 = vunpack.c.l.b16 %v812
        %v845 = vpack.c.b16 %v830, %v829
        %v846 = vpack.c.b16 %v832, %v831
        %v847 = vpack.c.b16 %v834, %v833
        %v848 = vpack.c.b16 %v836, %v835
        %v849 = vpack.c.b16 %v838, %v837
        %v850 = vpack.c.b16 %v840, %v839
        %v851 = vpack.c.b16 %v842, %v841
        %v852 = vpack.c.b16 %v844, %v843
        %861 = vmatprep.subr.bf16.mxu0 0
        %862 = vmatpush1.bf16.msra.mxu0 %v845
        %863 = vmatprep.subr.bf16.mxu0 0
        %864 = vmatpush1.bf16.msra.mxu0 %v846
        %865 = vmatprep.subr.bf16.mxu0 0
        %866 = vmatpush1.bf16.msra.mxu0 %v847
        %867 = vmatprep.subr.bf16.mxu0 0
        %868 = vmatpush1.bf16.msra.mxu0 %v848
        %869 = vmatprep.subr.bf16.mxu0 0
        %870 = vmatpush1.bf16.msra.mxu0 %v849
        %871 = vmatprep.subr.bf16.mxu0 0
        %872 = vmatpush1.bf16.msra.mxu0 %v850
        %873 = vmatprep.subr.bf16.mxu0 0
        %874 = vmatpush1.bf16.msra.mxu0 %v851
        %875 = vmatprep.subr.bf16.mxu0 0
        %876 = vmatpush1.bf16.msra.mxu0 %v852
        %877 = vmatprep.subr.bf16.mxu0 0
        %878 = vmatpush1.bf16.msra.mxu0 0
        %879 = vmatprep.subr.bf16.mxu0 0
        %880 = vmatpush1.bf16.msra.mxu0 0
        %881 = vmatprep.subr.bf16.mxu0 0
        %882 = vmatpush1.bf16.msra.mxu0 0
        %883 = vmatprep.subr.bf16.mxu0 0
        %884 = vmatpush1.bf16.msra.mxu0 0
        %885 = vmatprep.subr.bf16.mxu0 0
        %886 = vmatpush1.bf16.msra.mxu0 0
        %887 = vmatprep.subr.bf16.mxu0 0
        %888 = vmatpush1.bf16.msra.mxu0 0
        %889 = vmatprep.subr.bf16.mxu0 0
        %890 = vmatpush1.bf16.msra.mxu0 0
        %891 = vmatprep.subr.bf16.mxu0 0
        %892 = vmatpush1.bf16.msra.mxu0 0
        %893 = vmatprep.mubr.bf16.mxu0 0
        %894 = vmatmul.mubr.bf16.gmra.mrb[0].mxu0 %v792
        %v895 = vpop.f32.mrb[0].mxu0
        %v896 = vadd.f32 0.0, %v895
        %v897 = vpop.f32.mrb[0].mxu0
        %v898 = vpop.f32.mrb[0].mxu0
        %v899 = vadd.f32 0.0, %v898
        %v900 = vpop.f32.mrb[0].mxu0
        %901 = vmatprep.mubr.bf16.mxu0 0
        %902 = vmatmul.mubr.bf16.gmra.mrb[0].mxu0 %v793
        %v903 = vpop.f32.mrb[0].mxu0
        %v904 = vadd.f32 0.0, %v903
        %v905 = vpop.f32.mrb[0].mxu0
        %v906 = vpop.f32.mrb[0].mxu0
        %v907 = vadd.f32 0.0, %v906
        %v908 = vpop.f32.mrb[0].mxu0
        %909 = vmatprep.mubr.bf16.mxu0 0
        %910 = vmatmul.mubr.bf16.gmra.mrb[0].mxu0 %v794
        %v911 = vpop.f32.mrb[0].mxu0
        %v912 = vadd.f32 0.0, %v911
        %v913 = vpop.f32.mrb[0].mxu0
        %v914 = vpop.f32.mrb[0].mxu0
        %v915 = vadd.f32 0.0, %v914
        %v916 = vpop.f32.mrb[0].mxu0
        %917 = vmatprep.mubr.bf16.mxu0 0
        %918 = vmatmul.mubr.bf16.gmra.mrb[0].mxu0 %v795
        %v919 = vpop.f32.mrb[0].mxu0
        %v920 = vadd.f32 0.0, %v919
        %v921 = vpop.f32.mrb[0].mxu0
        %v922 = vpop.f32.mrb[0].mxu0
        %v923 = vadd.f32 0.0, %v922
        %v924 = vpop.f32.mrb[0].mxu0
        %925 = vmatprep.mubr.bf16.mxu0 0
        %926 = vmatmul.mubr.bf16.gmra.mrb[0].mxu0 %v796
        %v927 = vpop.f32.mrb[0].mxu0
        %v928 = vadd.f32 0.0, %v927
        %v929 = vpop.f32.mrb[0].mxu0
        %v930 = vpop.f32.mrb[0].mxu0
        %v931 = vadd.f32 0.0, %v930
        %v932 = vpop.f32.mrb[0].mxu0
        %933 = vdwg.mxu0
        %v950 = vunpack.c.l.b16 %v776
        %v951 = vunpack.c.l.b16 %v777
        %v952 = vunpack.c.l.b16 %v778
        %v953 = vunpack.c.l.b16 %v779
        %v954 = vunpack.c.l.b16 %v780
        %v955 = vunpack.c.l.b16 %v781
        %v956 = vunpack.c.l.b16 %v782
        %v957 = vunpack.c.l.b16 %v783
        %v958 = vunpack.c.l.b16 %v784
        %v959 = vunpack.c.l.b16 %v785
        %v960 = vunpack.c.l.b16 %v786
        %v961 = vunpack.c.l.b16 %v787
        %v962 = vunpack.c.l.b16 %v788
        %v963 = vunpack.c.l.b16 %v789
        %v964 = vunpack.c.l.b16 %v790
        %v965 = vunpack.c.l.b16 %v791
        %v966 = vpack.c.b16 %v951, %v950
        %v967 = vpack.c.b16 %v953, %v952
        %v968 = vpack.c.b16 %v955, %v954
        %v969 = vpack.c.b16 %v957, %v956
        %v970 = vpack.c.b16 %v959, %v958
        %v971 = vpack.c.b16 %v961, %v960
        %v972 = vpack.c.b16 %v963, %v962
        %v973 = vpack.c.b16 %v965, %v964
        %982 = vmatprep.subr.bf16.mxu0 0
        %983 = vmatpush1.bf16.msra.mxu0 %v966
        %984 = vmatprep.subr.bf16.mxu0 0
        %985 = vmatpush1.bf16.msra.mxu0 %v967
        %986 = vmatprep.subr.bf16.mxu0 0
        %987 = vmatpush1.bf16.msra.mxu0 %v968
        %988 = vmatprep.subr.bf16.mxu0 0
        %989 = vmatpush1.bf16.msra.mxu0 %v969
        %990 = vmatprep.subr.bf16.mxu0 0
        %991 = vmatpush1.bf16.msra.mxu0 %v970
        %992 = vmatprep.subr.bf16.mxu0 0
        %993 = vmatpush1.bf16.msra.mxu0 %v971
        %994 = vmatprep.subr.bf16.mxu0 0
        %995 = vmatpush1.bf16.msra.mxu0 %v972
        %996 = vmatprep.subr.bf16.mxu0 0
        %997 = vmatpush1.bf16.msra.mxu0 %v973
        %998 = vmatprep.subr.bf16.mxu0 0
        %999 = vmatpush1.bf16.msra.mxu0 0
        %1000 = vmatprep.subr.bf16.mxu0 0
        %1001 = vmatpush1.bf16.msra.mxu0 0
        %1002 = vmatprep.subr.bf16.mxu0 0
        %1003 = vmatpush1.bf16.msra.mxu0 0
        %1004 = vmatprep.subr.bf16.mxu0 0
        %1005 = vmatpush1.bf16.msra.mxu0 0
        %1006 = vmatprep.subr.bf16.mxu0 0
        %1007 = vmatpush1.bf16.msra.mxu0 0
        %1008 = vmatprep.subr.bf16.mxu0 0
        %1009 = vmatpush1.bf16.msra.mxu0 0
        %1010 = vmatprep.subr.bf16.mxu0 0
        %1011 = vmatpush1.bf16.msra.mxu0 0
        %1012 = vmatprep.subr.bf16.mxu0 0
        %1013 = vmatpush1.bf16.msra.mxu0 0
        %1014 = vmatprep.mubr.bf16.mxu0 0
        %1015 = vmatmul.mubr.bf16.gmra.mrb[0].mxu0 %v771
        %v1016 = vpop.f32.mrb[0].mxu0
        %v1017 = vadd.f32 %v896, %v1016
        %v1018 = vpop.f32.mrb[0].mxu0
        %v1019 = vpop.f32.mrb[0].mxu0
        %v1020 = vadd.f32 %v899, %v1019
        %v1021 = vpop.f32.mrb[0].mxu0
        %1022 = vmatprep.mubr.bf16.mxu0 0
        %1023 = vmatmul.mubr.bf16.gmra.mrb[0].mxu0 %v772
        %v1024 = vpop.f32.mrb[0].mxu0
        %v1025 = vadd.f32 %v904, %v1024
        %v1026 = vpop.f32.mrb[0].mxu0
        %v1027 = vpop.f32.mrb[0].mxu0
        %v1028 = vadd.f32 %v907, %v1027
        %v1029 = vpop.f32.mrb[0].mxu0
        %1030 = vmatprep.mubr.bf16.mxu0 0
        %1031 = vmatmul.mubr.bf16.gmra.mrb[0].mxu0 %v773
        %v1032 = vpop.f32.mrb[0].mxu0
        %v1033 = vadd.f32 %v912, %v1032
        %v1034 = vpop.f32.mrb[0].mxu0
        %v1035 = vpop.f32.mrb[0].mxu0
        %v1036 = vadd.f32 %v915, %v1035
        %v1037 = vpop.f32.mrb[0].mxu0
        %1038 = vmatprep.mubr.bf16.mxu0 0
        %1039 = vmatmul.mubr.bf16.gmra.mrb[0].mxu0 %v774
        %v1040 = vpop.f32.mrb[0].mxu0
        %v1041 = vadd.f32 %v920, %v1040
        %v1042 = vpop.f32.mrb[0].mxu0
        %v1043 = vpop.f32.mrb[0].mxu0
        %v1044 = vadd.f32 %v923, %v1043
        %v1045 = vpop.f32.mrb[0].mxu0
        %1046 = vmatprep.mubr.bf16.mxu0 0
        %1047 = vmatmul.mubr.bf16.gmra.mrb[0].mxu0 %v775
        %v1048 = vpop.f32.mrb[0].mxu0
        %v1049 = vadd.f32 %v928, %v1048
        %v1050 = vpop.f32.mrb[0].mxu0
        %v1051 = vpop.f32.mrb[0].mxu0
        %v1052 = vadd.f32 %v931, %v1051
        %v1053 = vpop.f32.mrb[0].mxu0
        %1054 = vdwg.mxu0
        %v1055 = vpack.c.bf16 %v419, %v419
        %v1056 = vld [vmem:[#allocation2 + $0x98] sm:$0xf]
        %v1057 = vld [vmem:[#allocation2 + $0x9c] sm:$0xf]
        %v1058 = vld [vmem:[#allocation2 + $0xa0] sm:$0xf]
        %v1059 = vld [vmem:[#allocation2 + $0xa4] sm:$0xf]
        %v1060 = vld [vmem:[#allocation2 + $0xa8] sm:$0xf]
        %v1061 = vld [vmem:[#allocation2 + $0xac] sm:$0xf]
        %v1062 = vld [vmem:[#allocation2 + $0xb0] sm:$0xf]
        %v1063 = vld [vmem:[#allocation2 + $0xb4] sm:$0xf]
        %v1064 = vld [vmem:[#allocation2 + $0xb8] sm:$0xf]
        %v1065 = vld [vmem:[#allocation2 + $0xbc] sm:$0xf]
        %v1066 = vld [vmem:[#allocation2 + $0xc0] sm:$0xf]
        %v1067 = vld [vmem:[#allocation2 + $0xc4] sm:$0xf]
        %v1068 = vld [vmem:[#allocation2 + $0xc8] sm:$0xf]
        %v1069 = vld [vmem:[#allocation2 + $0xcc] sm:$0xf]
        %v1070 = vld [vmem:[#allocation2 + $0xd0] sm:$0xf]
        %v1071 = vld [vmem:[#allocation2 + $0xd4] sm:$0xf]
        %v1073 = vshrl.u32 %v771, 16
        %v1075 = vshll.u32 %v771, 16
        %v1077 = vrot.slane %v1075, 1
        %v1078 = vor.u32 %v1073, %v1077
        %v1080 = vshll.u32 %v772, 16
        %v1082 = vrot.slane %v1080, 1
        %v1083 = vsel %vm424, %v1078, %v1082
        %v1084 = vshrl.u32 %v772, 16
        %v1086 = vor.u32 %v1084, %v1082
        %v1088 = vshll.u32 %v773, 16
        %v1090 = vrot.slane %v1088, 1
        %v1091 = vsel %vm424, %v1086, %v1090
        %v1092 = vshrl.u32 %v773, 16
        %v1094 = vor.u32 %v1092, %v1090
        %v1096 = vshll.u32 %v774, 16
        %v1098 = vrot.slane %v1096, 1
        %v1099 = vsel %vm424, %v1094, %v1098
        %v1100 = vshrl.u32 %v774, 16
        %v1102 = vor.u32 %v1100, %v1098
        %v1104 = vshll.u32 %v775, 16
        %v1106 = vrot.slane %v1104, 1
        %v1107 = vsel %vm424, %v1102, %v1106
        %v1108 = vshrl.u32 %v775, 16
        %v1110 = vor.u32 %v1108, %v1106
        %v1112 = vshll.u32 %v1055, 16
        %v1114 = vrot.slane %v1112, 1
        %v1115 = vsel %vm424, %v1110, %v1114
        %v1137 = vunpack.c.l.b16 %v1056
        %v1138 = vunpack.c.l.b16 %v1057
        %v1139 = vunpack.c.l.b16 %v1058
        %v1140 = vunpack.c.l.b16 %v1059
        %v1141 = vunpack.c.l.b16 %v1060
        %v1142 = vunpack.c.l.b16 %v1061
        %v1143 = vunpack.c.l.b16 %v1062
        %v1144 = vunpack.c.l.b16 %v1063
        %v1145 = vunpack.c.l.b16 %v1064
        %v1146 = vunpack.c.l.b16 %v1065
        %v1147 = vunpack.c.l.b16 %v1066
        %v1148 = vunpack.c.l.b16 %v1067
        %v1149 = vunpack.c.l.b16 %v1068
        %v1150 = vunpack.c.l.b16 %v1069
        %v1151 = vunpack.c.l.b16 %v1070
        %v1152 = vunpack.c.l.b16 %v1071
        %v1153 = vpack.c.b16 %v1138, %v1137
        %v1154 = vpack.c.b16 %v1140, %v1139
        %v1155 = vpack.c.b16 %v1142, %v1141
        %v1156 = vpack.c.b16 %v1144, %v1143
        %v1157 = vpack.c.b16 %v1146, %v1145
        %v1158 = vpack.c.b16 %v1148, %v1147
        %v1159 = vpack.c.b16 %v1150, %v1149
        %v1160 = vpack.c.b16 %v1152, %v1151
        %1169 = vmatprep.subr.bf16.mxu0 0
        %1170 = vmatpush1.bf16.msra.mxu0 %v1153
        %1171 = vmatprep.subr.bf16.mxu0 0
        %1172 = vmatpush1.bf16.msra.mxu0 %v1154
        %1173 = vmatprep.subr.bf16.mxu0 0
        %1174 = vmatpush1.bf16.msra.mxu0 %v1155
        %1175 = vmatprep.subr.bf16.mxu0 0
        %1176 = vmatpush1.bf16.msra.mxu0 %v1156
        %1177 = vmatprep.subr.bf16.mxu0 0
        %1178 = vmatpush1.bf16.msra.mxu0 %v1157
        %1179 = vmatprep.subr.bf16.mxu0 0
        %1180 = vmatpush1.bf16.msra.mxu0 %v1158
        %1181 = vmatprep.subr.bf16.mxu0 0
        %1182 = vmatpush1.bf16.msra.mxu0 %v1159
        %1183 = vmatprep.subr.bf16.mxu0 0
        %1184 = vmatpush1.bf16.msra.mxu0 %v1160
        %1185 = vmatprep.subr.bf16.mxu0 0
        %1186 = vmatpush1.bf16.msra.mxu0 0
        %1187 = vmatprep.subr.bf16.mxu0 0
        %1188 = vmatpush1.bf16.msra.mxu0 0
        %1189 = vmatprep.subr.bf16.mxu0 0
        %1190 = vmatpush1.bf16.msra.mxu0 0
        %1191 = vmatprep.subr.bf16.mxu0 0
        %1192 = vmatpush1.bf16.msra.mxu0 0
        %1193 = vmatprep.subr.bf16.mxu0 0
        %1194 = vmatpush1.bf16.msra.mxu0 0
        %1195 = vmatprep.subr.bf16.mxu0 0
        %1196 = vmatpush1.bf16.msra.mxu0 0
        %1197 = vmatprep.subr.bf16.mxu0 0
        %1198 = vmatpush1.bf16.msra.mxu0 0
        %1199 = vmatprep.subr.bf16.mxu0 0
        %1200 = vmatpush1.bf16.msra.mxu0 0
        %1201 = vmatprep.mubr.bf16.mxu0 0
        %1202 = vmatmul.mubr.bf16.gmra.mrb[0].mxu0 %v1083
        %v1203 = vpop.f32.mrb[0].mxu0
        %v1204 = vadd.f32 0.0, %v1203
        %v1205 = vpop.f32.mrb[0].mxu0
        %v1206 = vpop.f32.mrb[0].mxu0
        %v1207 = vadd.f32 0.0, %v1206
        %v1208 = vpop.f32.mrb[0].mxu0
        %1209 = vmatprep.mubr.bf16.mxu0 0
        %1210 = vmatmul.mubr.bf16.gmra.mrb[0].mxu0 %v1091
        %v1211 = vpop.f32.mrb[0].mxu0
        %v1212 = vadd.f32 0.0, %v1211
        %v1213 = vpop.f32.mrb[0].mxu0
        %v1214 = vpop.f32.mrb[0].mxu0
        %v1215 = vadd.f32 0.0, %v1214
        %v1216 = vpop.f32.mrb[0].mxu0
        %1217 = vmatprep.mubr.bf16.mxu0 0
        %1218 = vmatmul.mubr.bf16.gmra.mrb[0].mxu0 %v1099
        %v1219 = vpop.f32.mrb[0].mxu0
        %v1220 = vadd.f32 0.0, %v1219
        %v1221 = vpop.f32.mrb[0].mxu0
        %v1222 = vpop.f32.mrb[0].mxu0
        %v1223 = vadd.f32 0.0, %v1222
        %v1224 = vpop.f32.mrb[0].mxu0
        %1225 = vmatprep.mubr.bf16.mxu0 0
        %1226 = vmatmul.mubr.bf16.gmra.mrb[0].mxu0 %v1107
        %v1227 = vpop.f32.mrb[0].mxu0
        %v1228 = vadd.f32 0.0, %v1227
        %v1229 = vpop.f32.mrb[0].mxu0
        %v1230 = vpop.f32.mrb[0].mxu0
        %v1231 = vadd.f32 0.0, %v1230
        %v1232 = vpop.f32.mrb[0].mxu0
        %1233 = vmatprep.mubr.bf16.mxu0 0
        %1234 = vmatmul.mubr.bf16.gmra.mrb[0].mxu0 %v1115
        %v1235 = vpop.f32.mrb[0].mxu0
        %v1236 = vadd.f32 0.0, %v1235
        %v1237 = vpop.f32.mrb[0].mxu0
        %v1238 = vpop.f32.mrb[0].mxu0
        %v1239 = vadd.f32 0.0, %v1238
        %v1240 = vpop.f32.mrb[0].mxu0
        %1241 = vdwg.mxu0
        %v1242 = vadd.f32 %v1017, %v1204
        %v1243 = vadd.f32 %v1020, %v1207
        %v1244 = vadd.f32 %v1025, %v1212
        %v1245 = vadd.f32 %v1028, %v1215
        %v1246 = vadd.f32 %v1033, %v1220
        %v1247 = vadd.f32 %v1036, %v1223
        %v1248 = vadd.f32 %v1041, %v1228
        %v1249 = vadd.f32 %v1044, %v1231
        %v1250 = vadd.f32 %v1049, %v1236
        %v1251 = vadd.f32 %v1052, %v1239
        %v1252 = vpack.c.bf16 %v770, %v770
        %v1253 = vld [vmem:[#allocation2 + $0xd8] sm:$0xf]
        %v1254 = vld [vmem:[#allocation2 + $0xdc] sm:$0xf]
        %v1255 = vld [vmem:[#allocation2 + $0xe0] sm:$0xf]
        %v1256 = vld [vmem:[#allocation2 + $0xe4] sm:$0xf]
        %v1257 = vld [vmem:[#allocation2 + $0xe8] sm:$0xf]
        %v1258 = vld [vmem:[#allocation2 + $0xec] sm:$0xf]
        %v1259 = vld [vmem:[#allocation2 + $0xf0] sm:$0xf]
        %v1260 = vld [vmem:[#allocation2 + $0xf4] sm:$0xf]
        %v1261 = vld [vmem:[#allocation2 + $0xf8] sm:$0xf]
        %v1262 = vld [vmem:[#allocation2 + $0xfc] sm:$0xf]
        %v1263 = vld [vmem:[#allocation2 + $0x100] sm:$0xf]
        %v1264 = vld [vmem:[#allocation2 + $0x104] sm:$0xf]
        %v1265 = vld [vmem:[#allocation2 + $0x108] sm:$0xf]
        %v1266 = vld [vmem:[#allocation2 + $0x10c] sm:$0xf]
        %v1267 = vld [vmem:[#allocation2 + $0x110] sm:$0xf]
        %v1268 = vld [vmem:[#allocation2 + $0x114] sm:$0xf]
        %v1270 = vshrl.u32 %v792, 16
        %v1272 = vshll.u32 %v792, 16
        %v1274 = vrot.slane %v1272, 1
        %v1275 = vor.u32 %v1270, %v1274
        %v1277 = vshll.u32 %v793, 16
        %v1279 = vrot.slane %v1277, 1
        %v1280 = vsel %vm424, %v1275, %v1279
        %v1281 = vshrl.u32 %v793, 16
        %v1283 = vor.u32 %v1281, %v1279
        %v1285 = vshll.u32 %v794, 16
        %v1287 = vrot.slane %v1285, 1
        %v1288 = vsel %vm424, %v1283, %v1287
        %v1289 = vshrl.u32 %v794, 16
        %v1291 = vor.u32 %v1289, %v1287
        %v1293 = vshll.u32 %v795, 16
        %v1295 = vrot.slane %v1293, 1
        %v1296 = vsel %vm424, %v1291, %v1295
        %v1297 = vshrl.u32 %v795, 16
        %v1299 = vor.u32 %v1297, %v1295
        %v1301 = vshll.u32 %v796, 16
        %v1303 = vrot.slane %v1301, 1
        %v1304 = vsel %vm424, %v1299, %v1303
        %v1305 = vshrl.u32 %v796, 16
        %v1307 = vor.u32 %v1305, %v1303
        %v1309 = vshll.u32 %v1252, 16
        %v1311 = vrot.slane %v1309, 1
        %v1312 = vsel %vm424, %v1307, %v1311
        %v1334 = vunpack.c.l.b16 %v1253
        %v1335 = vunpack.c.l.b16 %v1254
        %v1336 = vunpack.c.l.b16 %v1255
        %v1337 = vunpack.c.l.b16 %v1256
        %v1338 = vunpack.c.l.b16 %v1257
        %v1339 = vunpack.c.l.b16 %v1258
        %v1340 = vunpack.c.l.b16 %v1259
        %v1341 = vunpack.c.l.b16 %v1260
        %v1342 = vunpack.c.l.b16 %v1261
        %v1343 = vunpack.c.l.b16 %v1262
        %v1344 = vunpack.c.l.b16 %v1263
        %v1345 = vunpack.c.l.b16 %v1264
        %v1346 = vunpack.c.l.b16 %v1265
        %v1347 = vunpack.c.l.b16 %v1266
        %v1348 = vunpack.c.l.b16 %v1267
        %v1349 = vunpack.c.l.b16 %v1268
        %v1350 = vpack.c.b16 %v1335, %v1334
        %v1351 = vpack.c.b16 %v1337, %v1336
        %v1352 = vpack.c.b16 %v1339, %v1338
        %v1353 = vpack.c.b16 %v1341, %v1340
        %v1354 = vpack.c.b16 %v1343, %v1342
        %v1355 = vpack.c.b16 %v1345, %v1344
        %v1356 = vpack.c.b16 %v1347, %v1346
        %v1357 = vpack.c.b16 %v1349, %v1348
        %1366 = vmatprep.subr.bf16.mxu0 0
        %1367 = vmatpush1.bf16.msra.mxu0 %v1350
        %1368 = vmatprep.subr.bf16.mxu0 0
        %1369 = vmatpush1.bf16.msra.mxu0 %v1351
        %1370 = vmatprep.subr.bf16.mxu0 0
        %1371 = vmatpush1.bf16.msra.mxu0 %v1352
        %1372 = vmatprep.subr.bf16.mxu0 0
        %1373 = vmatpush1.bf16.msra.mxu0 %v1353
        %1374 = vmatprep.subr.bf16.mxu0 0
        %1375 = vmatpush1.bf16.msra.mxu0 %v1354
        %1376 = vmatprep.subr.bf16.mxu0 0
        %1377 = vmatpush1.bf16.msra.mxu0 %v1355
        %1378 = vmatprep.subr.bf16.mxu0 0
        %1379 = vmatpush1.bf16.msra.mxu0 %v1356
        %1380 = vmatprep.subr.bf16.mxu0 0
        %1381 = vmatpush1.bf16.msra.mxu0 %v1357
        %1382 = vmatprep.subr.bf16.mxu0 0
        %1383 = vmatpush1.bf16.msra.mxu0 0
        %1384 = vmatprep.subr.bf16.mxu0 0
        %1385 = vmatpush1.bf16.msra.mxu0 0
        %1386 = vmatprep.subr.bf16.mxu0 0
        %1387 = vmatpush1.bf16.msra.mxu0 0
        %1388 = vmatprep.subr.bf16.mxu0 0
        %1389 = vmatpush1.bf16.msra.mxu0 0
        %1390 = vmatprep.subr.bf16.mxu0 0
        %1391 = vmatpush1.bf16.msra.mxu0 0
        %1392 = vmatprep.subr.bf16.mxu0 0
        %1393 = vmatpush1.bf16.msra.mxu0 0
        %1394 = vmatprep.subr.bf16.mxu0 0
        %1395 = vmatpush1.bf16.msra.mxu0 0
        %1396 = vmatprep.subr.bf16.mxu0 0
        %1397 = vmatpush1.bf16.msra.mxu0 0
        %1398 = vmatprep.mubr.bf16.mxu0 0
        %1399 = vmatmul.mubr.bf16.gmra.mrb[0].mxu0 %v1280
        %v1400 = vpop.f32.mrb[0].mxu0
        %v1401 = vadd.f32 0.0, %v1400
        %v1402 = vpop.f32.mrb[0].mxu0
        %v1403 = vpop.f32.mrb[0].mxu0
        %v1404 = vadd.f32 0.0, %v1403
        %v1405 = vpop.f32.mrb[0].mxu0
        %1406 = vmatprep.mubr.bf16.mxu0 0
        %1407 = vmatmul.mubr.bf16.gmra.mrb[0].mxu0 %v1288
        %v1408 = vpop.f32.mrb[0].mxu0
        %v1409 = vadd.f32 0.0, %v1408
        %v1410 = vpop.f32.mrb[0].mxu0
        %v1411 = vpop.f32.mrb[0].mxu0
        %v1412 = vadd.f32 0.0, %v1411
        %v1413 = vpop.f32.mrb[0].mxu0
        %1414 = vmatprep.mubr.bf16.mxu0 0
        %1415 = vmatmul.mubr.bf16.gmra.mrb[0].mxu0 %v1296
        %v1416 = vpop.f32.mrb[0].mxu0
        %v1417 = vadd.f32 0.0, %v1416
        %v1418 = vpop.f32.mrb[0].mxu0
        %v1419 = vpop.f32.mrb[0].mxu0
        %v1420 = vadd.f32 0.0, %v1419
        %v1421 = vpop.f32.mrb[0].mxu0
        %1422 = vmatprep.mubr.bf16.mxu0 0
        %1423 = vmatmul.mubr.bf16.gmra.mrb[0].mxu0 %v1304
        %v1424 = vpop.f32.mrb[0].mxu0
        %v1425 = vadd.f32 0.0, %v1424
        %v1426 = vpop.f32.mrb[0].mxu0
        %v1427 = vpop.f32.mrb[0].mxu0
        %v1428 = vadd.f32 0.0, %v1427
        %v1429 = vpop.f32.mrb[0].mxu0
        %1430 = vmatprep.mubr.bf16.mxu0 0
        %1431 = vmatmul.mubr.bf16.gmra.mrb[0].mxu0 %v1312
        %v1432 = vpop.f32.mrb[0].mxu0
        %v1433 = vadd.f32 0.0, %v1432
        %v1434 = vpop.f32.mrb[0].mxu0
        %v1435 = vpop.f32.mrb[0].mxu0
        %v1436 = vadd.f32 0.0, %v1435
        %v1437 = vpop.f32.mrb[0].mxu0
        %1438 = vdwg.mxu0
        %v1439 = vadd.f32 %v1242, %v1401
        %v1440 = vadd.f32 %v1243, %v1404
        %v1441 = vadd.f32 %v1244, %v1409
        %v1442 = vadd.f32 %v1245, %v1412
        %v1443 = vadd.f32 %v1246, %v1417
        %v1444 = vadd.f32 %v1247, %v1420
        %v1445 = vadd.f32 %v1248, %v1425
        %v1446 = vadd.f32 %v1249, %v1428
        %v1447 = vadd.f32 %v1250, %v1433
        %v1448 = vadd.f32 %v1251, %v1436
        %v1449 = vld [vmem:[%s2 + $0x1] sm:$0x1]
        %v1450 = vlaneseq
        %v1451 = vshrl.u32 %v1450, 7
        %v1452 = vsub.s32 0, %v1451
        %v1453 = vrot.slane %v1449, %v1452
        %v1454 = vadd.f32 %v1439, %v1453
        %v1455 = vadd.f32 %v1440, %v1453
        %v1456 = vadd.f32 %v1441, %v1453
        %v1457 = vadd.f32 %v1442, %v1453
        %v1458 = vadd.f32 %v1443, %v1453
        %v1459 = vadd.f32 %v1444, %v1453
        %v1460 = vadd.f32 %v1445, %v1453
        %v1461 = vadd.f32 %v1446, %v1453
        %v1462 = vadd.f32 %v1447, %v1453
        %v1463 = vadd.f32 %v1448, %v1453
        %v1464 = vmul.f32 %v1454, 0.5
        %v1465 = vmul.f32 %v1455, 0.5
        %v1466 = vmul.f32 %v1456, 0.5
        %v1467 = vmul.f32 %v1457, 0.5
        %v1468 = vmul.f32 %v1458, 0.5
        %v1469 = vmul.f32 %v1459, 0.5
        %v1470 = vmul.f32 %v1460, 0.5
        %v1471 = vmul.f32 %v1461, 0.5
        %v1472 = vmul.f32 %v1462, 0.5
        %v1473 = vmul.f32 %v1463, 0.5
        %v1474 = vmul.f32 %v1454, 0.044715
        %v1475 = vmul.f32 %v1455, 0.044715
        %v1476 = vmul.f32 %v1456, 0.044715
        %v1477 = vmul.f32 %v1457, 0.044715
        %v1478 = vmul.f32 %v1458, 0.044715
        %v1479 = vmul.f32 %v1459, 0.044715
        %v1480 = vmul.f32 %v1460, 0.044715
        %v1481 = vmul.f32 %v1461, 0.044715
        %v1482 = vmul.f32 %v1462, 0.044715
        %v1483 = vmul.f32 %v1463, 0.044715
        %v1484 = vmul.f32 %v1474, %v1454
        %v1485 = vmul.f32 %v1475, %v1455
        %v1486 = vmul.f32 %v1476, %v1456
        %v1487 = vmul.f32 %v1477, %v1457
        %v1488 = vmul.f32 %v1478, %v1458
        %v1489 = vmul.f32 %v1479, %v1459
        %v1490 = vmul.f32 %v1480, %v1460
        %v1491 = vmul.f32 %v1481, %v1461
        %v1492 = vmul.f32 %v1482, %v1462
        %v1493 = vmul.f32 %v1483, %v1463
        %v1494 = vmul.f32 %v1484, %v1454
        %v1495 = vmul.f32 %v1485, %v1455
        %v1496 = vmul.f32 %v1486, %v1456
        %v1497 = vmul.f32 %v1487, %v1457
        %v1498 = vmul.f32 %v1488, %v1458
        %v1499 = vmul.f32 %v1489, %v1459
        %v1500 = vmul.f32 %v1490, %v1460
        %v1501 = vmul.f32 %v1491, %v1461
        %v1502 = vmul.f32 %v1492, %v1462
        %v1503 = vmul.f32 %v1493, %v1463
        %v1504 = vadd.f32 %v1454, %v1494
        %v1505 = vadd.f32 %v1455, %v1495
        %v1506 = vadd.f32 %v1456, %v1496
        %v1507 = vadd.f32 %v1457, %v1497
        %v1508 = vadd.f32 %v1458, %v1498
        %v1509 = vadd.f32 %v1459, %v1499
        %v1510 = vadd.f32 %v1460, %v1500
        %v1511 = vadd.f32 %v1461, %v1501
        %v1512 = vadd.f32 %v1462, %v1502
        %v1513 = vadd.f32 %v1463, %v1503
        %v1514 = vmul.f32 %v1504, 0.7978846
        %v1515 = vmul.f32 %v1505, 0.7978846
        %v1516 = vmul.f32 %v1506, 0.7978846
        %v1517 = vmul.f32 %v1507, 0.7978846
        %v1518 = vmul.f32 %v1508, 0.7978846
        %v1519 = vmul.f32 %v1509, 0.7978846
        %v1520 = vmul.f32 %v1510, 0.7978846
        %v1521 = vmul.f32 %v1511, 0.7978846
        %v1522 = vmul.f32 %v1512, 0.7978846
        %v1523 = vmul.f32 %v1513, 0.7978846
        %v1524 = vtanh.pop %v1514
        %v1525 = vtanh.pop %v1515
        %v1526 = vtanh.pop %v1516
        %v1527 = vtanh.pop %v1517
        %v1528 = vtanh.pop %v1518
        %v1529 = vtanh.pop %v1519
        %v1530 = vtanh.pop %v1520
        %v1531 = vtanh.pop %v1521
        %v1532 = vtanh.pop %v1522
        %v1533 = vtanh.pop %v1523
        %v1534 = vadd.f32 %v1524, 1.0
        %v1535 = vadd.f32 %v1525, 1.0
        %v1536 = vadd.f32 %v1526, 1.0
        %v1537 = vadd.f32 %v1527, 1.0
        %v1538 = vadd.f32 %v1528, 1.0
        %v1539 = vadd.f32 %v1529, 1.0
        %v1540 = vadd.f32 %v1530, 1.0
        %v1541 = vadd.f32 %v1531, 1.0
        %v1542 = vadd.f32 %v1532, 1.0
        %v1543 = vadd.f32 %v1533, 1.0
        %v1544 = vmul.f32 %v1464, %v1534
        %v1545 = vmul.f32 %v1465, %v1535
        %v1546 = vmul.f32 %v1466, %v1536
        %v1547 = vmul.f32 %v1467, %v1537
        %v1548 = vmul.f32 %v1468, %v1538
        %v1549 = vmul.f32 %v1469, %v1539
        %v1550 = vmul.f32 %v1470, %v1540
        %v1551 = vmul.f32 %v1471, %v1541
        %v1552 = vmul.f32 %v1472, %v1542
        %v1553 = vmul.f32 %v1473, %v1543
        %v1554 = vlaneseq
        %v1555 = vand.u32 %v1554, 127
        %vm1556 = vcmp.lt.s32.totalorder %v1555, 32
        %vm1557 = vcmp.lt.s32.totalorder %v1555, 78
        %v1558 = vsel %vm1557, 0.0, -1e+30
        %v1559 = vld [vmem:[%s2 + $0x2] sm:$0x1]
        %v1560 = vld [vmem:[%s2 + $0x3] sm:$0x1]
        %1561 = vadd.xlane.f32.xlu0 %v1544
        %v1562 = vpop.xlane.xlu0 %1561
        %1563 = vadd.xlane.f32.xlu0 %v1545
        %v1564 = vpop.xlane.xlu0 %1563
        %1565 = vadd.xlane.f32.xlu0 %v1546
        %v1566 = vpop.xlane.xlu0 %1565
        %1567 = vadd.xlane.f32.xlu0 %v1547
        %v1568 = vpop.xlane.xlu0 %1567
        %1569 = vadd.xlane.f32.xlu0 %v1548
        %v1570 = vpop.xlane.xlu0 %1569
        %1571 = vadd.xlane.f32.xlu0 %v1549
        %v1572 = vpop.xlane.xlu0 %1571
        %1573 = vadd.xlane.f32.xlu0 %v1550
        %v1574 = vpop.xlane.xlu0 %1573
        %1575 = vadd.xlane.f32.xlu0 %v1551
        %v1576 = vpop.xlane.xlu0 %1575
        %1577 = vadd.xlane.f32.xlu0 %v1552
        %v1578 = vpop.xlane.xlu0 %1577
        %1579 = vadd.xlane.f32.xlu0 %v1553
        %v1580 = vpop.xlane.xlu0 %1579
        %v1581 = vmul.f32 %v1562, 0.03125
        %v1582 = vmul.f32 %v1564, 0.03125
        %v1583 = vmul.f32 %v1566, 0.03125
        %v1584 = vmul.f32 %v1568, 0.03125
        %v1585 = vmul.f32 %v1570, 0.03125
        %v1586 = vmul.f32 %v1572, 0.03125
        %v1587 = vmul.f32 %v1574, 0.03125
        %v1588 = vmul.f32 %v1576, 0.03125
        %v1589 = vmul.f32 %v1578, 0.03125
        %v1590 = vmul.f32 %v1580, 0.03125
        %v1591 = vsub.f32 %v1544, %v1581
        %v1592 = vsub.f32 %v1545, %v1582
        %v1593 = vsub.f32 %v1546, %v1583
        %v1594 = vsub.f32 %v1547, %v1584
        %v1595 = vsub.f32 %v1548, %v1585
        %v1596 = vsub.f32 %v1549, %v1586
        %v1597 = vsub.f32 %v1550, %v1587
        %v1598 = vsub.f32 %v1551, %v1588
        %v1599 = vsub.f32 %v1552, %v1589
        %v1600 = vsub.f32 %v1553, %v1590
        %v1601 = vmul.f32 %v1591, %v1591
        %v1602 = vmul.f32 %v1592, %v1592
        %v1603 = vmul.f32 %v1593, %v1593
        %v1604 = vmul.f32 %v1594, %v1594
        %v1605 = vmul.f32 %v1595, %v1595
        %v1606 = vmul.f32 %v1596, %v1596
        %v1607 = vmul.f32 %v1597, %v1597
        %v1608 = vmul.f32 %v1598, %v1598
        %v1609 = vmul.f32 %v1599, %v1599
        %v1610 = vmul.f32 %v1600, %v1600
        %v1611 = vsel %vm1556, %v1601, 0.0
        %v1612 = vsel %vm1556, %v1602, 0.0
        %v1613 = vsel %vm1556, %v1603, 0.0
        %v1614 = vsel %vm1556, %v1604, 0.0
        %v1615 = vsel %vm1556, %v1605, 0.0
        %v1616 = vsel %vm1556, %v1606, 0.0
        %v1617 = vsel %vm1556, %v1607, 0.0
        %v1618 = vsel %vm1556, %v1608, 0.0
        %v1619 = vsel %vm1556, %v1609, 0.0
        %v1620 = vsel %vm1556, %v1610, 0.0
        %1621 = vadd.xlane.f32.xlu0 %v1611
        %v1622 = vpop.xlane.xlu0 %1621
        %1623 = vadd.xlane.f32.xlu0 %v1612
        %v1624 = vpop.xlane.xlu0 %1623
        %1625 = vadd.xlane.f32.xlu0 %v1613
        %v1626 = vpop.xlane.xlu0 %1625
        %1627 = vadd.xlane.f32.xlu0 %v1614
        %v1628 = vpop.xlane.xlu0 %1627
        %1629 = vadd.xlane.f32.xlu0 %v1615
        %v1630 = vpop.xlane.xlu0 %1629
        %1631 = vadd.xlane.f32.xlu0 %v1616
        %v1632 = vpop.xlane.xlu0 %1631
        %1633 = vadd.xlane.f32.xlu0 %v1617
        %v1634 = vpop.xlane.xlu0 %1633
        %1635 = vadd.xlane.f32.xlu0 %v1618
        %v1636 = vpop.xlane.xlu0 %1635
        %1637 = vadd.xlane.f32.xlu0 %v1619
        %v1638 = vpop.xlane.xlu0 %1637
        %1639 = vadd.xlane.f32.xlu0 %v1620
        %v1640 = vpop.xlane.xlu0 %1639
        %v1641 = vmul.f32 %v1622, 0.03125
        %v1642 = vmul.f32 %v1624, 0.03125
        %v1643 = vmul.f32 %v1626, 0.03125
        %v1644 = vmul.f32 %v1628, 0.03125
        %v1645 = vmul.f32 %v1630, 0.03125
        %v1646 = vmul.f32 %v1632, 0.03125
        %v1647 = vmul.f32 %v1634, 0.03125
        %v1648 = vmul.f32 %v1636, 0.03125
        %v1649 = vmul.f32 %v1638, 0.03125
        %v1650 = vmul.f32 %v1640, 0.03125
        %v1651 = vadd.f32 %v1641, 1e-05
        %v1652 = vadd.f32 %v1642, 1e-05
        %v1653 = vadd.f32 %v1643, 1e-05
        %v1654 = vadd.f32 %v1644, 1e-05
        %v1655 = vadd.f32 %v1645, 1e-05
        %v1656 = vadd.f32 %v1646, 1e-05
        %v1657 = vadd.f32 %v1647, 1e-05
        %v1658 = vadd.f32 %v1648, 1e-05
        %v1659 = vadd.f32 %v1649, 1e-05
        %v1660 = vadd.f32 %v1650, 1e-05
        %v1661 = vrsqrt.pop %v1651
        %v1662 = vrsqrt.pop %v1652
        %v1663 = vrsqrt.pop %v1653
        %v1664 = vrsqrt.pop %v1654
        %v1665 = vrsqrt.pop %v1655
        %v1666 = vrsqrt.pop %v1656
        %v1667 = vrsqrt.pop %v1657
        %v1668 = vrsqrt.pop %v1658
        %v1669 = vrsqrt.pop %v1659
        %v1670 = vrsqrt.pop %v1660
        %v1671 = vmul.f32 %v1591, %v1661
        %v1672 = vmul.f32 %v1592, %v1662
        %v1673 = vmul.f32 %v1593, %v1663
        %v1674 = vmul.f32 %v1594, %v1664
        %v1675 = vmul.f32 %v1595, %v1665
        %v1676 = vmul.f32 %v1596, %v1666
        %v1677 = vmul.f32 %v1597, %v1667
        %v1678 = vmul.f32 %v1598, %v1668
        %v1679 = vmul.f32 %v1599, %v1669
        %v1680 = vmul.f32 %v1600, %v1670
        %v1681 = vlaneseq
        %v1682 = vshrl.u32 %v1681, 7
        %v1683 = vsub.s32 0, %v1682
        %v1684 = vrot.slane %v1559, %v1683
        %v1685 = vmul.f32 %v1671, %v1684
        %v1686 = vmul.f32 %v1672, %v1684
        %v1687 = vmul.f32 %v1673, %v1684
        %v1688 = vmul.f32 %v1674, %v1684
        %v1689 = vmul.f32 %v1675, %v1684
        %v1690 = vmul.f32 %v1676, %v1684
        %v1691 = vmul.f32 %v1677, %v1684
        %v1692 = vmul.f32 %v1678, %v1684
        %v1693 = vmul.f32 %v1679, %v1684
        %v1694 = vmul.f32 %v1680, %v1684
        %v1695 = vlaneseq
        %v1696 = vshrl.u32 %v1695, 7
        %v1697 = vsub.s32 0, %v1696
        %v1698 = vrot.slane %v1560, %v1697
        %v1699 = vadd.f32 %v1685, %v1698
        %v1700 = vadd.f32 %v1686, %v1698
        %v1701 = vadd.f32 %v1687, %v1698
        %v1702 = vadd.f32 %v1688, %v1698
        %v1703 = vadd.f32 %v1689, %v1698
        %v1704 = vadd.f32 %v1690, %v1698
        %v1705 = vadd.f32 %v1691, %v1698
        %v1706 = vadd.f32 %v1692, %v1698
        %v1707 = vadd.f32 %v1693, %v1698
        %v1708 = vadd.f32 %v1694, %v1698
        %v1709 = vpack.c.bf16 %v1700, %v1699
        %v1710 = vpack.c.bf16 %v1702, %v1701
        %v1711 = vpack.c.bf16 %v1704, %v1703
        %v1712 = vpack.c.bf16 %v1706, %v1705
        %v1713 = vpack.c.bf16 %v1708, %v1707
        %v1714 = vld [vmem:[#allocation2 + $0x118] sm:$0xf]
        %v1715 = vld [vmem:[#allocation2 + $0x11c] sm:$0xf]
        %v1716 = vld [vmem:[#allocation2 + $0x120] sm:$0xf]
        %v1717 = vld [vmem:[#allocation2 + $0x124] sm:$0xf]
        %v1718 = vld [vmem:[#allocation2 + $0x128] sm:$0xf]
        %v1719 = vld [vmem:[#allocation2 + $0x12c] sm:$0xf]
        %v1720 = vld [vmem:[#allocation2 + $0x130] sm:$0xf]
        %v1721 = vld [vmem:[#allocation2 + $0x134] sm:$0xf]
        %v1722 = vld [vmem:[#allocation2 + $0x138] sm:$0xf]
        %v1723 = vld [vmem:[#allocation2 + $0x13c] sm:$0xf]
        %v1724 = vld [vmem:[#allocation2 + $0x140] sm:$0xf]
        %v1725 = vld [vmem:[#allocation2 + $0x144] sm:$0xf]
        %v1726 = vld [vmem:[#allocation2 + $0x148] sm:$0xf]
        %v1727 = vld [vmem:[#allocation2 + $0x14c] sm:$0xf]
        %v1728 = vld [vmem:[#allocation2 + $0x150] sm:$0xf]
        %v1729 = vld [vmem:[#allocation2 + $0x154] sm:$0xf]
        %v1730 = vld [vmem:[%s2 + $0x4] sm:$0x1]
        %v1731 = vlaneseq
        %v1732 = vshrl.u32 %v1731, 7
        %v1733 = vsub.s32 0, %v1732
        %v1734 = vrot.slane %v1730, %v1733
        %v1751 = vunpack.c.l.b16 %v1714
        %v1752 = vunpack.c.l.b16 %v1715
        %v1753 = vunpack.c.l.b16 %v1716
        %v1754 = vunpack.c.l.b16 %v1717
        %v1755 = vunpack.c.l.b16 %v1718
        %v1756 = vunpack.c.l.b16 %v1719
        %v1757 = vunpack.c.l.b16 %v1720
        %v1758 = vunpack.c.l.b16 %v1721
        %v1759 = vunpack.c.l.b16 %v1722
        %v1760 = vunpack.c.l.b16 %v1723
        %v1761 = vunpack.c.l.b16 %v1724
        %v1762 = vunpack.c.l.b16 %v1725
        %v1763 = vunpack.c.l.b16 %v1726
        %v1764 = vunpack.c.l.b16 %v1727
        %v1765 = vunpack.c.l.b16 %v1728
        %v1766 = vunpack.c.l.b16 %v1729
        %v1767 = vpack.c.b16 %v1752, %v1751
        %v1768 = vpack.c.b16 %v1754, %v1753
        %v1769 = vpack.c.b16 %v1756, %v1755
        %v1770 = vpack.c.b16 %v1758, %v1757
        %v1771 = vpack.c.b16 %v1760, %v1759
        %v1772 = vpack.c.b16 %v1762, %v1761
        %v1773 = vpack.c.b16 %v1764, %v1763
        %v1774 = vpack.c.b16 %v1766, %v1765
        %1783 = vmatprep.subr.bf16.mxu0 0
        %1784 = vmatpush1.bf16.msra.mxu0 %v1767
        %1785 = vmatprep.subr.bf16.mxu0 0
        %1786 = vmatpush1.bf16.msra.mxu0 %v1768
        %1787 = vmatprep.subr.bf16.mxu0 0
        %1788 = vmatpush1.bf16.msra.mxu0 %v1769
        %1789 = vmatprep.subr.bf16.mxu0 0
        %1790 = vmatpush1.bf16.msra.mxu0 %v1770
        %1791 = vmatprep.subr.bf16.mxu0 0
        %1792 = vmatpush1.bf16.msra.mxu0 %v1771
        %1793 = vmatprep.subr.bf16.mxu0 0
        %1794 = vmatpush1.bf16.msra.mxu0 %v1772
        %1795 = vmatprep.subr.bf16.mxu0 0
        %1796 = vmatpush1.bf16.msra.mxu0 %v1773
        %1797 = vmatprep.subr.bf16.mxu0 0
        %1798 = vmatpush1.bf16.msra.mxu0 %v1774
        %1799 = vmatprep.subr.bf16.mxu0 0
        %1800 = vmatpush1.bf16.msra.mxu0 0
        %1801 = vmatprep.subr.bf16.mxu0 0
        %1802 = vmatpush1.bf16.msra.mxu0 0
        %1803 = vmatprep.subr.bf16.mxu0 0
        %1804 = vmatpush1.bf16.msra.mxu0 0
        %1805 = vmatprep.subr.bf16.mxu0 0
        %1806 = vmatpush1.bf16.msra.mxu0 0
        %1807 = vmatprep.subr.bf16.mxu0 0
        %1808 = vmatpush1.bf16.msra.mxu0 0
        %1809 = vmatprep.subr.bf16.mxu0 0
        %1810 = vmatpush1.bf16.msra.mxu0 0
        %1811 = vmatprep.subr.bf16.mxu0 0
        %1812 = vmatpush1.bf16.msra.mxu0 0
        %1813 = vmatprep.subr.bf16.mxu0 0
        %1814 = vmatpush1.bf16.msra.mxu0 0
        %1815 = vmatprep.mubr.bf16.mxu0 0
        %1816 = vmatmul.mubr.bf16.gmra.mrb[0].mxu0 %v1709
        %v1817 = vpop.f32.mrb[0].mxu0
        %v1818 = vadd.f32 %v1734, %v1817
        %v1819 = vpop.f32.mrb[0].mxu0
        %v1820 = vpop.f32.mrb[0].mxu0
        %v1821 = vadd.f32 %v1734, %v1820
        %v1822 = vpop.f32.mrb[0].mxu0
        %1823 = vmatprep.mubr.bf16.mxu0 0
        %1824 = vmatmul.mubr.bf16.gmra.mrb[0].mxu0 %v1710
        %v1825 = vpop.f32.mrb[0].mxu0
        %v1826 = vadd.f32 %v1734, %v1825
        %v1827 = vpop.f32.mrb[0].mxu0
        %v1828 = vpop.f32.mrb[0].mxu0
        %v1829 = vadd.f32 %v1734, %v1828
        %v1830 = vpop.f32.mrb[0].mxu0
        %1831 = vmatprep.mubr.bf16.mxu0 0
        %1832 = vmatmul.mubr.bf16.gmra.mrb[0].mxu0 %v1711
        %v1833 = vpop.f32.mrb[0].mxu0
        %v1834 = vadd.f32 %v1734, %v1833
        %v1835 = vpop.f32.mrb[0].mxu0
        %v1836 = vpop.f32.mrb[0].mxu0
        %v1837 = vadd.f32 %v1734, %v1836
        %v1838 = vpop.f32.mrb[0].mxu0
        %1839 = vmatprep.mubr.bf16.mxu0 0
        %1840 = vmatmul.mubr.bf16.gmra.mrb[0].mxu0 %v1712
        %v1841 = vpop.f32.mrb[0].mxu0
        %v1842 = vadd.f32 %v1734, %v1841
        %v1843 = vpop.f32.mrb[0].mxu0
        %v1844 = vpop.f32.mrb[0].mxu0
        %v1845 = vadd.f32 %v1734, %v1844
        %v1846 = vpop.f32.mrb[0].mxu0
        %1847 = vmatprep.mubr.bf16.mxu0 0
        %1848 = vmatmul.mubr.bf16.gmra.mrb[0].mxu0 %v1713
        %v1849 = vpop.f32.mrb[0].mxu0
        %v1850 = vadd.f32 %v1734, %v1849
        %v1851 = vpop.f32.mrb[0].mxu0
        %v1852 = vpop.f32.mrb[0].mxu0
        %v1853 = vadd.f32 %v1734, %v1852
        %v1854 = vpop.f32.mrb[0].mxu0
        %1855 = vdwg.mxu0
        %v1856 = vpack.c.bf16 %v1821, %v1818
        %v1857 = vpack.c.bf16 %v1829, %v1826
        %v1858 = vpack.c.bf16 %v1837, %v1834
        %v1859 = vpack.c.bf16 %v1845, %v1842
        %v1860 = vpack.c.bf16 %v1853, %v1850
        %v1861 = vld [vmem:[#allocation2 + $0x158] sm:$0xf]
        %v1862 = vld [vmem:[#allocation2 + $0x15c] sm:$0xf]
        %v1863 = vld [vmem:[#allocation2 + $0x160] sm:$0xf]
        %v1864 = vld [vmem:[#allocation2 + $0x164] sm:$0xf]
        %v1865 = vld [vmem:[#allocation2 + $0x168] sm:$0xf]
        %v1866 = vld [vmem:[#allocation2 + $0x16c] sm:$0xf]
        %v1867 = vld [vmem:[#allocation2 + $0x170] sm:$0xf]
        %v1868 = vld [vmem:[#allocation2 + $0x174] sm:$0xf]
        %v1869 = vld [vmem:[#allocation2 + $0x178] sm:$0xf]
        %v1870 = vld [vmem:[#allocation2 + $0x17c] sm:$0xf]
        %v1871 = vld [vmem:[#allocation2 + $0x180] sm:$0xf]
        %v1872 = vld [vmem:[#allocation2 + $0x184] sm:$0xf]
        %v1873 = vld [vmem:[#allocation2 + $0x188] sm:$0xf]
        %v1874 = vld [vmem:[#allocation2 + $0x18c] sm:$0xf]
        %v1875 = vld [vmem:[#allocation2 + $0x190] sm:$0xf]
        %v1876 = vld [vmem:[#allocation2 + $0x194] sm:$0xf]
        %v1877 = vld [vmem:[%s2 + $0x5] sm:$0x1]
        %v1878 = vlaneseq
        %v1879 = vshrl.u32 %v1878, 7
        %v1880 = vsub.s32 0, %v1879
        %v1881 = vrot.slane %v1877, %v1880
        %v1898 = vunpack.c.l.b16 %v1861
        %v1899 = vunpack.c.l.b16 %v1862
        %v1900 = vunpack.c.l.b16 %v1863
        %v1901 = vunpack.c.l.b16 %v1864
        %v1902 = vunpack.c.l.b16 %v1865
        %v1903 = vunpack.c.l.b16 %v1866
        %v1904 = vunpack.c.l.b16 %v1867
        %v1905 = vunpack.c.l.b16 %v1868
        %v1906 = vunpack.c.l.b16 %v1869
        %v1907 = vunpack.c.l.b16 %v1870
        %v1908 = vunpack.c.l.b16 %v1871
        %v1909 = vunpack.c.l.b16 %v1872
        %v1910 = vunpack.c.l.b16 %v1873
        %v1911 = vunpack.c.l.b16 %v1874
        %v1912 = vunpack.c.l.b16 %v1875
        %v1913 = vunpack.c.l.b16 %v1876
        %v1914 = vpack.c.b16 %v1899, %v1898
        %v1915 = vpack.c.b16 %v1901, %v1900
        %v1916 = vpack.c.b16 %v1903, %v1902
        %v1917 = vpack.c.b16 %v1905, %v1904
        %v1918 = vpack.c.b16 %v1907, %v1906
        %v1919 = vpack.c.b16 %v1909, %v1908
        %v1920 = vpack.c.b16 %v1911, %v1910
        %v1921 = vpack.c.b16 %v1913, %v1912
        %1930 = vmatprep.subr.bf16.mxu0 0
        %1931 = vmatpush1.bf16.msra.mxu0 %v1914
        %1932 = vmatprep.subr.bf16.mxu0 0
        %1933 = vmatpush1.bf16.msra.mxu0 %v1915
        %1934 = vmatprep.subr.bf16.mxu0 0
        %1935 = vmatpush1.bf16.msra.mxu0 %v1916
        %1936 = vmatprep.subr.bf16.mxu0 0
        %1937 = vmatpush1.bf16.msra.mxu0 %v1917
        %1938 = vmatprep.subr.bf16.mxu0 0
        %1939 = vmatpush1.bf16.msra.mxu0 %v1918
        %1940 = vmatprep.subr.bf16.mxu0 0
        %1941 = vmatpush1.bf16.msra.mxu0 %v1919
        %1942 = vmatprep.subr.bf16.mxu0 0
        %1943 = vmatpush1.bf16.msra.mxu0 %v1920
        %1944 = vmatprep.subr.bf16.mxu0 0
        %1945 = vmatpush1.bf16.msra.mxu0 %v1921
        %1946 = vmatprep.subr.bf16.mxu0 0
        %1947 = vmatpush1.bf16.msra.mxu0 0
        %1948 = vmatprep.subr.bf16.mxu0 0
        %1949 = vmatpush1.bf16.msra.mxu0 0
        %1950 = vmatprep.subr.bf16.mxu0 0
        %1951 = vmatpush1.bf16.msra.mxu0 0
        %1952 = vmatprep.subr.bf16.mxu0 0
        %1953 = vmatpush1.bf16.msra.mxu0 0
        %1954 = vmatprep.subr.bf16.mxu0 0
        %1955 = vmatpush1.bf16.msra.mxu0 0
        %1956 = vmatprep.subr.bf16.mxu0 0
        %1957 = vmatpush1.bf16.msra.mxu0 0
        %1958 = vmatprep.subr.bf16.mxu0 0
        %1959 = vmatpush1.bf16.msra.mxu0 0
        %1960 = vmatprep.subr.bf16.mxu0 0
        %1961 = vmatpush1.bf16.msra.mxu0 0
        %1962 = vmatprep.mubr.bf16.mxu0 0
        %1963 = vmatmul.mubr.bf16.gmra.mrb[0].mxu0 %v1856
        %v1964 = vpop.f32.mrb[0].mxu0
        %v1965 = vadd.f32 %v1881, %v1964
        %v1966 = vpop.f32.mrb[0].mxu0
        %v1967 = vpop.f32.mrb[0].mxu0
        %v1968 = vadd.f32 %v1881, %v1967
        %v1969 = vpop.f32.mrb[0].mxu0
        %1970 = vmatprep.mubr.bf16.mxu0 0
        %1971 = vmatmul.mubr.bf16.gmra.mrb[0].mxu0 %v1857
        %v1972 = vpop.f32.mrb[0].mxu0
        %v1973 = vadd.f32 %v1881, %v1972
        %v1974 = vpop.f32.mrb[0].mxu0
        %v1975 = vpop.f32.mrb[0].mxu0
        %v1976 = vadd.f32 %v1881, %v1975
        %v1977 = vpop.f32.mrb[0].mxu0
        %1978 = vmatprep.mubr.bf16.mxu0 0
        %1979 = vmatmul.mubr.bf16.gmra.mrb[0].mxu0 %v1858
        %v1980 = vpop.f32.mrb[0].mxu0
        %v1981 = vadd.f32 %v1881, %v1980
        %v1982 = vpop.f32.mrb[0].mxu0
        %v1983 = vpop.f32.mrb[0].mxu0
        %v1984 = vadd.f32 %v1881, %v1983
        %v1985 = vpop.f32.mrb[0].mxu0
        %1986 = vmatprep.mubr.bf16.mxu0 0
        %1987 = vmatmul.mubr.bf16.gmra.mrb[0].mxu0 %v1859
        %v1988 = vpop.f32.mrb[0].mxu0
        %v1989 = vadd.f32 %v1881, %v1988
        %v1990 = vpop.f32.mrb[0].mxu0
        %v1991 = vpop.f32.mrb[0].mxu0
        %v1992 = vadd.f32 %v1881, %v1991
        %v1993 = vpop.f32.mrb[0].mxu0
        %1994 = vmatprep.mubr.bf16.mxu0 0
        %1995 = vmatmul.mubr.bf16.gmra.mrb[0].mxu0 %v1860
        %v1996 = vpop.f32.mrb[0].mxu0
        %v1997 = vadd.f32 %v1881, %v1996
        %v1998 = vpop.f32.mrb[0].mxu0
        %v1999 = vpop.f32.mrb[0].mxu0
        %v2000 = vadd.f32 %v1881, %v1999
        %v2001 = vpop.f32.mrb[0].mxu0
        %2002 = vdwg.mxu0
        %v2003 = vld [vmem:[#allocation2 + $0x258] sm:$0xf]
        %v2004 = vld [vmem:[#allocation2 + $0x25c] sm:$0xf]
        %v2005 = vld [vmem:[#allocation2 + $0x260] sm:$0xf]
        %v2006 = vld [vmem:[#allocation2 + $0x264] sm:$0xf]
        %v2007 = vld [vmem:[#allocation2 + $0x268] sm:$0xf]
        %v2008 = vld [vmem:[#allocation2 + $0x26c] sm:$0xf]
        %v2009 = vld [vmem:[#allocation2 + $0x270] sm:$0xf]
        %v2010 = vld [vmem:[#allocation2 + $0x274] sm:$0xf]
        %v2011 = vld [vmem:[#allocation2 + $0x278] sm:$0xf]
        %v2012 = vld [vmem:[#allocation2 + $0x27c] sm:$0xf]
        %v2013 = vld [vmem:[#allocation2 + $0x280] sm:$0xf]
        %v2014 = vld [vmem:[#allocation2 + $0x284] sm:$0xf]
        %v2015 = vld [vmem:[#allocation2 + $0x288] sm:$0xf]
        %v2016 = vld [vmem:[#allocation2 + $0x28c] sm:$0xf]
        %v2017 = vld [vmem:[#allocation2 + $0x290] sm:$0xf]
        %v2018 = vld [vmem:[#allocation2 + $0x294] sm:$0xf]
        %v2019 = vld [vmem:[%s2 + $0x9] sm:$0x1]
        %v2020 = vlaneseq
        %v2021 = vshrl.u32 %v2020, 7
        %v2022 = vsub.s32 0, %v2021
        %v2023 = vrot.slane %v2019, %v2022
        %v2040 = vunpack.c.l.b16 %v2003
        %v2041 = vunpack.c.l.b16 %v2004
        %v2042 = vunpack.c.l.b16 %v2005
        %v2043 = vunpack.c.l.b16 %v2006
        %v2044 = vunpack.c.l.b16 %v2007
        %v2045 = vunpack.c.l.b16 %v2008
        %v2046 = vunpack.c.l.b16 %v2009
        %v2047 = vunpack.c.l.b16 %v2010
        %v2048 = vunpack.c.l.b16 %v2011
        %v2049 = vunpack.c.l.b16 %v2012
        %v2050 = vunpack.c.l.b16 %v2013
        %v2051 = vunpack.c.l.b16 %v2014
        %v2052 = vunpack.c.l.b16 %v2015
        %v2053 = vunpack.c.l.b16 %v2016
        %v2054 = vunpack.c.l.b16 %v2017
        %v2055 = vunpack.c.l.b16 %v2018
        %v2056 = vpack.c.b16 %v2041, %v2040
        %v2057 = vpack.c.b16 %v2043, %v2042
        %v2058 = vpack.c.b16 %v2045, %v2044
        %v2059 = vpack.c.b16 %v2047, %v2046
        %v2060 = vpack.c.b16 %v2049, %v2048
        %v2061 = vpack.c.b16 %v2051, %v2050
        %v2062 = vpack.c.b16 %v2053, %v2052
        %v2063 = vpack.c.b16 %v2055, %v2054
        %2072 = vmatprep.subr.bf16.mxu0 0
        %2073 = vmatpush1.bf16.msra.mxu0 %v2056
        %2074 = vmatprep.subr.bf16.mxu0 0
        %2075 = vmatpush1.bf16.msra.mxu0 %v2057
        %2076 = vmatprep.subr.bf16.mxu0 0
        %2077 = vmatpush1.bf16.msra.mxu0 %v2058
        %2078 = vmatprep.subr.bf16.mxu0 0
        %2079 = vmatpush1.bf16.msra.mxu0 %v2059
        %2080 = vmatprep.subr.bf16.mxu0 0
        %2081 = vmatpush1.bf16.msra.mxu0 %v2060
        %2082 = vmatprep.subr.bf16.mxu0 0
        %2083 = vmatpush1.bf16.msra.mxu0 %v2061
        %2084 = vmatprep.subr.bf16.mxu0 0
        %2085 = vmatpush1.bf16.msra.mxu0 %v2062
        %2086 = vmatprep.subr.bf16.mxu0 0
        %2087 = vmatpush1.bf16.msra.mxu0 %v2063
        %2088 = vmatprep.subr.bf16.mxu0 0
        %2089 = vmatpush1.bf16.msra.mxu0 0
        %2090 = vmatprep.subr.bf16.mxu0 0
        %2091 = vmatpush1.bf16.msra.mxu0 0
        %2092 = vmatprep.subr.bf16.mxu0 0
        %2093 = vmatpush1.bf16.msra.mxu0 0
        %2094 = vmatprep.subr.bf16.mxu0 0
        %2095 = vmatpush1.bf16.msra.mxu0 0
        %2096 = vmatprep.subr.bf16.mxu0 0
        %2097 = vmatpush1.bf16.msra.mxu0 0
        %2098 = vmatprep.subr.bf16.mxu0 0
        %2099 = vmatpush1.bf16.msra.mxu0 0
        %2100 = vmatprep.subr.bf16.mxu0 0
        %2101 = vmatpush1.bf16.msra.mxu0 0
        %2102 = vmatprep.subr.bf16.mxu0 0
        %2103 = vmatpush1.bf16.msra.mxu0 0
        %2104 = vmatprep.mubr.bf16.mxu0 0
        %2105 = vmatmul.mubr.bf16.gmra.mrb[0].mxu0 %v1856
        %v2106 = vpop.f32.mrb[0].mxu0
        %v2107 = vadd.f32 %v2023, %v2106
        %v2108 = vpop.f32.mrb[0].mxu0
        %v2109 = vpop.f32.mrb[0].mxu0
        %v2110 = vadd.f32 %v2023, %v2109
        %v2111 = vpop.f32.mrb[0].mxu0
        %2112 = vmatprep.mubr.bf16.mxu0 0
        %2113 = vmatmul.mubr.bf16.gmra.mrb[0].mxu0 %v1857
        %v2114 = vpop.f32.mrb[0].mxu0
        %v2115 = vadd.f32 %v2023, %v2114
        %v2116 = vpop.f32.mrb[0].mxu0
        %v2117 = vpop.f32.mrb[0].mxu0
        %v2118 = vadd.f32 %v2023, %v2117
        %v2119 = vpop.f32.mrb[0].mxu0
        %2120 = vmatprep.mubr.bf16.mxu0 0
        %2121 = vmatmul.mubr.bf16.gmra.mrb[0].mxu0 %v1858
        %v2122 = vpop.f32.mrb[0].mxu0
        %v2123 = vadd.f32 %v2023, %v2122
        %v2124 = vpop.f32.mrb[0].mxu0
        %v2125 = vpop.f32.mrb[0].mxu0
        %v2126 = vadd.f32 %v2023, %v2125
        %v2127 = vpop.f32.mrb[0].mxu0
        %2128 = vmatprep.mubr.bf16.mxu0 0
        %2129 = vmatmul.mubr.bf16.gmra.mrb[0].mxu0 %v1859
        %v2130 = vpop.f32.mrb[0].mxu0
        %v2131 = vadd.f32 %v2023, %v2130
        %v2132 = vpop.f32.mrb[0].mxu0
        %v2133 = vpop.f32.mrb[0].mxu0
        %v2134 = vadd.f32 %v2023, %v2133
        %v2135 = vpop.f32.mrb[0].mxu0
        %2136 = vmatprep.mubr.bf16.mxu0 0
        %2137 = vmatmul.mubr.bf16.gmra.mrb[0].mxu0 %v1860
        %v2138 = vpop.f32.mrb[0].mxu0
        %v2139 = vadd.f32 %v2023, %v2138
        %v2140 = vpop.f32.mrb[0].mxu0
        %v2141 = vpop.f32.mrb[0].mxu0
        %v2142 = vadd.f32 %v2023, %v2141
        %v2143 = vpop.f32.mrb[0].mxu0
        %2144 = vdwg.mxu0
        %v2145 = vld [vmem:[#allocation2 + $0x358] sm:$0xf]
        %v2146 = vld [vmem:[#allocation2 + $0x35c] sm:$0xf]
        %v2147 = vld [vmem:[#allocation2 + $0x360] sm:$0xf]
        %v2148 = vld [vmem:[#allocation2 + $0x364] sm:$0xf]
        %v2149 = vld [vmem:[#allocation2 + $0x368] sm:$0xf]
        %v2150 = vld [vmem:[#allocation2 + $0x36c] sm:$0xf]
        %v2151 = vld [vmem:[#allocation2 + $0x370] sm:$0xf]
        %v2152 = vld [vmem:[#allocation2 + $0x374] sm:$0xf]
        %v2153 = vld [vmem:[#allocation2 + $0x378] sm:$0xf]
        %v2154 = vld [vmem:[#allocation2 + $0x37c] sm:$0xf]
        %v2155 = vld [vmem:[#allocation2 + $0x380] sm:$0xf]
        %v2156 = vld [vmem:[#allocation2 + $0x384] sm:$0xf]
        %v2157 = vld [vmem:[#allocation2 + $0x388] sm:$0xf]
        %v2158 = vld [vmem:[#allocation2 + $0x38c] sm:$0xf]
        %v2159 = vld [vmem:[#allocation2 + $0x390] sm:$0xf]
        %v2160 = vld [vmem:[#allocation2 + $0x394] sm:$0xf]
        %v2161 = vld [vmem:[%s2 + $0xd] sm:$0x1]
        %v2162 = vlaneseq
        %v2163 = vshrl.u32 %v2162, 7
        %v2164 = vsub.s32 0, %v2163
        %v2165 = vrot.slane %v2161, %v2164
        %v2182 = vunpack.c.l.b16 %v2145
        %v2183 = vunpack.c.l.b16 %v2146
        %v2184 = vunpack.c.l.b16 %v2147
        %v2185 = vunpack.c.l.b16 %v2148
        %v2186 = vunpack.c.l.b16 %v2149
        %v2187 = vunpack.c.l.b16 %v2150
        %v2188 = vunpack.c.l.b16 %v2151
        %v2189 = vunpack.c.l.b16 %v2152
        %v2190 = vunpack.c.l.b16 %v2153
        %v2191 = vunpack.c.l.b16 %v2154
        %v2192 = vunpack.c.l.b16 %v2155
        %v2193 = vunpack.c.l.b16 %v2156
        %v2194 = vunpack.c.l.b16 %v2157
        %v2195 = vunpack.c.l.b16 %v2158
        %v2196 = vunpack.c.l.b16 %v2159
        %v2197 = vunpack.c.l.b16 %v2160
        %v2198 = vpack.c.b16 %v2183, %v2182
        %v2199 = vpack.c.b16 %v2185, %v2184
        %v2200 = vpack.c.b16 %v2187, %v2186
        %v2201 = vpack.c.b16 %v2189, %v2188
        %v2202 = vpack.c.b16 %v2191, %v2190
        %v2203 = vpack.c.b16 %v2193, %v2192
        %v2204 = vpack.c.b16 %v2195, %v2194
        %v2205 = vpack.c.b16 %v2197, %v2196
        %2214 = vmatprep.subr.bf16.mxu0 0
        %2215 = vmatpush1.bf16.msra.mxu0 %v2198
        %2216 = vmatprep.subr.bf16.mxu0 0
        %2217 = vmatpush1.bf16.msra.mxu0 %v2199
        %2218 = vmatprep.subr.bf16.mxu0 0
        %2219 = vmatpush1.bf16.msra.mxu0 %v2200
        %2220 = vmatprep.subr.bf16.mxu0 0
        %2221 = vmatpush1.bf16.msra.mxu0 %v2201
        %2222 = vmatprep.subr.bf16.mxu0 0
        %2223 = vmatpush1.bf16.msra.mxu0 %v2202
        %2224 = vmatprep.subr.bf16.mxu0 0
        %2225 = vmatpush1.bf16.msra.mxu0 %v2203
        %2226 = vmatprep.subr.bf16.mxu0 0
        %2227 = vmatpush1.bf16.msra.mxu0 %v2204
        %2228 = vmatprep.subr.bf16.mxu0 0
        %2229 = vmatpush1.bf16.msra.mxu0 %v2205
        %2230 = vmatprep.subr.bf16.mxu0 0
        %2231 = vmatpush1.bf16.msra.mxu0 0
        %2232 = vmatprep.subr.bf16.mxu0 0
        %2233 = vmatpush1.bf16.msra.mxu0 0
        %2234 = vmatprep.subr.bf16.mxu0 0
        %2235 = vmatpush1.bf16.msra.mxu0 0
        %2236 = vmatprep.subr.bf16.mxu0 0
        %2237 = vmatpush1.bf16.msra.mxu0 0
        %2238 = vmatprep.subr.bf16.mxu0 0
        %2239 = vmatpush1.bf16.msra.mxu0 0
        %2240 = vmatprep.subr.bf16.mxu0 0
        %2241 = vmatpush1.bf16.msra.mxu0 0
        %2242 = vmatprep.subr.bf16.mxu0 0
        %2243 = vmatpush1.bf16.msra.mxu0 0
        %2244 = vmatprep.subr.bf16.mxu0 0
        %2245 = vmatpush1.bf16.msra.mxu0 0
        %2246 = vmatprep.mubr.bf16.mxu0 0
        %2247 = vmatmul.mubr.bf16.gmra.mrb[0].mxu0 %v1856
        %v2248 = vpop.f32.mrb[0].mxu0
        %v2249 = vadd.f32 %v2165, %v2248
        %v2250 = vpop.f32.mrb[0].mxu0
        %v2251 = vpop.f32.mrb[0].mxu0
        %v2252 = vadd.f32 %v2165, %v2251
        %v2253 = vpop.f32.mrb[0].mxu0
        %2254 = vmatprep.mubr.bf16.mxu0 0
        %2255 = vmatmul.mubr.bf16.gmra.mrb[0].mxu0 %v1857
        %v2256 = vpop.f32.mrb[0].mxu0
        %v2257 = vadd.f32 %v2165, %v2256
        %v2258 = vpop.f32.mrb[0].mxu0
        %v2259 = vpop.f32.mrb[0].mxu0
        %v2260 = vadd.f32 %v2165, %v2259
        %v2261 = vpop.f32.mrb[0].mxu0
        %2262 = vmatprep.mubr.bf16.mxu0 0
        %2263 = vmatmul.mubr.bf16.gmra.mrb[0].mxu0 %v1858
        %v2264 = vpop.f32.mrb[0].mxu0
        %v2265 = vadd.f32 %v2165, %v2264
        %v2266 = vpop.f32.mrb[0].mxu0
        %v2267 = vpop.f32.mrb[0].mxu0
        %v2268 = vadd.f32 %v2165, %v2267
        %v2269 = vpop.f32.mrb[0].mxu0
        %2270 = vmatprep.mubr.bf16.mxu0 0
        %2271 = vmatmul.mubr.bf16.gmra.mrb[0].mxu0 %v1859
        %v2272 = vpop.f32.mrb[0].mxu0
        %v2273 = vadd.f32 %v2165, %v2272
        %v2274 = vpop.f32.mrb[0].mxu0
        %v2275 = vpop.f32.mrb[0].mxu0
        %v2276 = vadd.f32 %v2165, %v2275
        %v2277 = vpop.f32.mrb[0].mxu0
        %2278 = vmatprep.mubr.bf16.mxu0 0
        %2279 = vmatmul.mubr.bf16.gmra.mrb[0].mxu0 %v1860
        %v2280 = vpop.f32.mrb[0].mxu0
        %v2281 = vadd.f32 %v2165, %v2280
        %v2282 = vpop.f32.mrb[0].mxu0
        %v2283 = vpop.f32.mrb[0].mxu0
        %v2284 = vadd.f32 %v2165, %v2283
        %v2285 = vpop.f32.mrb[0].mxu0
        %2286 = vdwg.mxu0
        %v2287 = vpack.c.bf16 %v1968, %v1965
        %v2288 = vpack.c.bf16 %v1976, %v1973
        %v2289 = vpack.c.bf16 %v1984, %v1981
        %v2290 = vpack.c.bf16 %v1992, %v1989
        %v2291 = vpack.c.bf16 %v2000, %v1997
        %v2292 = vpack.c.bf16 %v2110, %v2107
        %v2293 = vpack.c.bf16 %v2118, %v2115
        %v2294 = vpack.c.bf16 %v2126, %v2123
        %v2295 = vpack.c.bf16 %v2134, %v2131
        %v2296 = vpack.c.bf16 %v2142, %v2139
        %2297 = vmatprep.subr.bf16.mxu0 0
        %2298 = vmatpush1.bf16.xpose.msra.mxu0 %v2292
        %2299 = vmatprep.subr.bf16.mxu0 0
        %2300 = vmatpush1.bf16.xpose.msra.mxu0 %v2293
        %2301 = vmatprep.subr.bf16.mxu0 0
        %2302 = vmatpush1.bf16.xpose.msra.mxu0 %v2294
        %2303 = vmatprep.subr.bf16.mxu0 0
        %2304 = vmatpush1.bf16.xpose.msra.mxu0 %v2295
        %2305 = vmatprep.subr.bf16.mxu0 0
        %2306 = vmatpush1.bf16.xpose.msra.mxu0 %v2296
        %2307 = vmatprep.subr.bf16.mxu0 0
        %2308 = vmatpush1.bf16.xpose.msra.mxu0 0
        %2309 = vmatprep.subr.bf16.mxu0 0
        %2310 = vmatpush1.bf16.xpose.msra.mxu0 0
        %2311 = vmatprep.subr.bf16.mxu0 0
        %2312 = vmatpush1.bf16.xpose.msra.mxu0 0
        %2313 = vmatprep.subr.bf16.mxu0 0
        %2314 = vmatpush1.bf16.xpose.msra.mxu0 0
        %2315 = vmatprep.subr.bf16.mxu0 0
        %2316 = vmatpush1.bf16.xpose.msra.mxu0 0
        %2317 = vmatprep.subr.bf16.mxu0 0
        %2318 = vmatpush1.bf16.xpose.msra.mxu0 0
        %2319 = vmatprep.subr.bf16.mxu0 0
        %2320 = vmatpush1.bf16.xpose.msra.mxu0 0
        %2321 = vmatprep.subr.bf16.mxu0 0
        %2322 = vmatpush1.bf16.xpose.msra.mxu0 0
        %2323 = vmatprep.subr.bf16.mxu0 0
        %2324 = vmatpush1.bf16.xpose.msra.mxu0 0
        %2325 = vmatprep.subr.bf16.mxu0 0
        %2326 = vmatpush1.bf16.xpose.msra.mxu0 0
        %2327 = vmatprep.subr.bf16.mxu0 0
        %2328 = vmatpush1.bf16.xpose.msra.mxu0 0
        %2329 = vmatprep.mubr.bf16.mxu0 0
        %2330 = vmatmul.mubr.bf16.gmra.mrb[0].mxu0 %v2287
        %v2331 = vpop.f32.mrb[0].mxu0
        %v2332 = vadd.f32 %v1558, %v2331
        %v2333 = vpop.f32.mrb[0].mxu0
        %v2334 = vpop.f32.mrb[0].mxu0
        %v2335 = vadd.f32 %v1558, %v2334
        %v2336 = vpop.f32.mrb[0].mxu0
        %2337 = vmatprep.mubr.bf16.mxu0 0
        %2338 = vmatmul.mubr.bf16.gmra.mrb[0].mxu0 %v2288
        %v2339 = vpop.f32.mrb[0].mxu0
        %v2340 = vadd.f32 %v1558, %v2339
        %v2341 = vpop.f32.mrb[0].mxu0
        %v2342 = vpop.f32.mrb[0].mxu0
        %v2343 = vadd.f32 %v1558, %v2342
        %v2344 = vpop.f32.mrb[0].mxu0
        %2345 = vmatprep.mubr.bf16.mxu0 0
        %2346 = vmatmul.mubr.bf16.gmra.mrb[0].mxu0 %v2289
        %v2347 = vpop.f32.mrb[0].mxu0
        %v2348 = vadd.f32 %v1558, %v2347
        %v2349 = vpop.f32.mrb[0].mxu0
        %v2350 = vpop.f32.mrb[0].mxu0
        %v2351 = vadd.f32 %v1558, %v2350
        %v2352 = vpop.f32.mrb[0].mxu0
        %2353 = vmatprep.mubr.bf16.mxu0 0
        %2354 = vmatmul.mubr.bf16.gmra.mrb[0].mxu0 %v2290
        %v2355 = vpop.f32.mrb[0].mxu0
        %v2356 = vadd.f32 %v1558, %v2355
        %v2357 = vpop.f32.mrb[0].mxu0
        %v2358 = vpop.f32.mrb[0].mxu0
        %v2359 = vadd.f32 %v1558, %v2358
        %v2360 = vpop.f32.mrb[0].mxu0
        %2361 = vmatprep.mubr.bf16.mxu0 0
        %2362 = vmatmul.mubr.bf16.gmra.mrb[0].mxu0 %v2291
        %v2363 = vpop.f32.mrb[0].mxu0
        %v2364 = vadd.f32 %v1558, %v2363
        %v2365 = vpop.f32.mrb[0].mxu0
        %v2366 = vpop.f32.mrb[0].mxu0
        %v2367 = vadd.f32 %v1558, %v2366
        %v2368 = vpop.f32.mrb[0].mxu0
        %2369 = vdwg.mxu0
        %vm2370 = vcmask 654336
        %v2371 = vsel %vm2370, %v2332, -inf
        %2372 = vmax.xlane.f32.xlu0 %v2371
        %v2373 = vpop.xlane.xlu0 %2372
        %v2374 = vsel %vm2370, %v2335, -inf
        %2375 = vmax.xlane.f32.xlu0 %v2374
        %v2376 = vpop.xlane.xlu0 %2375
        %v2377 = vsel %vm2370, %v2340, -inf
        %2378 = vmax.xlane.f32.xlu0 %v2377
        %v2379 = vpop.xlane.xlu0 %2378
        %v2380 = vsel %vm2370, %v2343, -inf
        %2381 = vmax.xlane.f32.xlu0 %v2380
        %v2382 = vpop.xlane.xlu0 %2381
        %v2383 = vsel %vm2370, %v2348, -inf
        %2384 = vmax.xlane.f32.xlu0 %v2383
        %v2385 = vpop.xlane.xlu0 %2384
        %v2386 = vsel %vm2370, %v2351, -inf
        %2387 = vmax.xlane.f32.xlu0 %v2386
        %v2388 = vpop.xlane.xlu0 %2387
        %v2389 = vsel %vm2370, %v2356, -inf
        %2390 = vmax.xlane.f32.xlu0 %v2389
        %v2391 = vpop.xlane.xlu0 %2390
        %v2392 = vsel %vm2370, %v2359, -inf
        %2393 = vmax.xlane.f32.xlu0 %v2392
        %v2394 = vpop.xlane.xlu0 %2393
        %v2395 = vsel %vm2370, %v2364, -inf
        %2396 = vmax.xlane.f32.xlu0 %v2395
        %v2397 = vpop.xlane.xlu0 %2396
        %v2398 = vsel %vm2370, %v2367, -inf
        %2399 = vmax.xlane.f32.xlu0 %v2398
        %v2400 = vpop.xlane.xlu0 %2399
        %v2401 = vsub.f32 %v2332, %v2373
        %v2402 = vsub.f32 %v2335, %v2376
        %v2403 = vsub.f32 %v2340, %v2379
        %v2404 = vsub.f32 %v2343, %v2382
        %v2405 = vsub.f32 %v2348, %v2385
        %v2406 = vsub.f32 %v2351, %v2388
        %v2407 = vsub.f32 %v2356, %v2391
        %v2408 = vsub.f32 %v2359, %v2394
        %v2409 = vsub.f32 %v2364, %v2397
        %v2410 = vsub.f32 %v2367, %v2400
        %v2411 = vmul.f32 %v2401, 1.442695
        %v2412 = vpow.pop %v2411
        %v2413 = vmul.f32 %v2402, 1.442695
        %v2414 = vpow.pop %v2413
        %v2415 = vmul.f32 %v2403, 1.442695
        %v2416 = vpow.pop %v2415
        %v2417 = vmul.f32 %v2404, 1.442695
        %v2418 = vpow.pop %v2417
        %v2419 = vmul.f32 %v2405, 1.442695
        %v2420 = vpow.pop %v2419
        %v2421 = vmul.f32 %v2406, 1.442695
        %v2422 = vpow.pop %v2421
        %v2423 = vmul.f32 %v2407, 1.442695
        %v2424 = vpow.pop %v2423
        %v2425 = vmul.f32 %v2408, 1.442695
        %v2426 = vpow.pop %v2425
        %v2427 = vmul.f32 %v2409, 1.442695
        %v2428 = vpow.pop %v2427
        %v2429 = vmul.f32 %v2410, 1.442695
        %v2430 = vpow.pop %v2429
        %v2431 = vsel %vm2370, %v2412, 0.0
        %2432 = vadd.xlane.f32.xlu0 %v2431
        %v2433 = vpop.xlane.xlu0 %2432
        %v2434 = vsel %vm2370, %v2414, 0.0
        %2435 = vadd.xlane.f32.xlu0 %v2434
        %v2436 = vpop.xlane.xlu0 %2435
        %v2437 = vsel %vm2370, %v2416, 0.0
        %2438 = vadd.xlane.f32.xlu0 %v2437
        %v2439 = vpop.xlane.xlu0 %2438
        %v2440 = vsel %vm2370, %v2418, 0.0
        %2441 = vadd.xlane.f32.xlu0 %v2440
        %v2442 = vpop.xlane.xlu0 %2441
        %v2443 = vsel %vm2370, %v2420, 0.0
        %2444 = vadd.xlane.f32.xlu0 %v2443
        %v2445 = vpop.xlane.xlu0 %2444
        %v2446 = vsel %vm2370, %v2422, 0.0
        %2447 = vadd.xlane.f32.xlu0 %v2446
        %v2448 = vpop.xlane.xlu0 %2447
        %v2449 = vsel %vm2370, %v2424, 0.0
        %2450 = vadd.xlane.f32.xlu0 %v2449
        %v2451 = vpop.xlane.xlu0 %2450
        %v2452 = vsel %vm2370, %v2426, 0.0
        %2453 = vadd.xlane.f32.xlu0 %v2452
        %v2454 = vpop.xlane.xlu0 %2453
        %v2455 = vsel %vm2370, %v2428, 0.0
        %2456 = vadd.xlane.f32.xlu0 %v2455
        %v2457 = vpop.xlane.xlu0 %2456
        %v2458 = vsel %vm2370, %v2430, 0.0
        %2459 = vadd.xlane.f32.xlu0 %v2458
        %v2460 = vpop.xlane.xlu0 %2459
        %v2461 = vrcp.pop %v2433
        %v2462 = vrcp.pop %v2436
        %v2463 = vrcp.pop %v2439
        %v2464 = vrcp.pop %v2442
        %v2465 = vrcp.pop %v2445
        %v2466 = vrcp.pop %v2448
        %v2467 = vrcp.pop %v2451
        %v2468 = vrcp.pop %v2454
        %v2469 = vrcp.pop %v2457
        %v2470 = vrcp.pop %v2460
        %v2471 = vmul.f32 %v2412, %v2461
        %v2472 = vmul.f32 %v2414, %v2462
        %v2473 = vmul.f32 %v2416, %v2463
        %v2474 = vmul.f32 %v2418, %v2464
        %v2475 = vmul.f32 %v2420, %v2465
        %v2476 = vmul.f32 %v2422, %v2466
        %v2477 = vmul.f32 %v2424, %v2467
        %v2478 = vmul.f32 %v2426, %v2468
        %v2479 = vmul.f32 %v2428, %v2469
        %v2480 = vmul.f32 %v2430, %v2470
        %v2481 = vpack.c.bf16 %v2472, %v2471
        %v2482 = vpack.c.bf16 %v2474, %v2473
        %v2483 = vpack.c.bf16 %v2476, %v2475
        %v2484 = vpack.c.bf16 %v2478, %v2477
        %v2485 = vpack.c.bf16 %v2480, %v2479
        %v2486 = vpack.c.bf16 %v2252, %v2249
        %v2487 = vpack.c.bf16 %v2260, %v2257
        %v2488 = vpack.c.bf16 %v2268, %v2265
        %v2489 = vpack.c.bf16 %v2276, %v2273
        %v2490 = vpack.c.bf16 %v2284, %v2281
        %v2492 = vsel %vm2370, %v2481, 0
        %v2495 = vsel %vm2370, %v2482, 0
        %v2498 = vsel %vm2370, %v2483, 0
        %v2501 = vsel %vm2370, %v2484, 0
        %v2504 = vsel %vm2370, %v2485, 0
        %2506 = vmatprep.subr.bf16.mxu0 0
        %2507 = vmatpush1.bf16.msra.mxu0 %v2486
        %2508 = vmatprep.subr.bf16.mxu0 0
        %2509 = vmatpush1.bf16.msra.mxu0 %v2487
        %2510 = vmatprep.subr.bf16.mxu0 0
        %2511 = vmatpush1.bf16.msra.mxu0 %v2488
        %2512 = vmatprep.subr.bf16.mxu0 0
        %2513 = vmatpush1.bf16.msra.mxu0 %v2489
        %2514 = vmatprep.subr.bf16.mxu0 0
        %2515 = vmatpush1.bf16.msra.mxu0 %v2490
        %2516 = vmatprep.subr.bf16.mxu0 0
        %2517 = vmatpush1.bf16.msra.mxu0 0
        %2518 = vmatprep.subr.bf16.mxu0 0
        %2519 = vmatpush1.bf16.msra.mxu0 0
        %2520 = vmatprep.subr.bf16.mxu0 0
        %2521 = vmatpush1.bf16.msra.mxu0 0
        %2522 = vmatprep.subr.bf16.mxu0 0
        %2523 = vmatpush1.bf16.msra.mxu0 0
        %2524 = vmatprep.subr.bf16.mxu0 0
        %2525 = vmatpush1.bf16.msra.mxu0 0
        %2526 = vmatprep.subr.bf16.mxu0 0
        %2527 = vmatpush1.bf16.msra.mxu0 0
        %2528 = vmatprep.subr.bf16.mxu0 0
        %2529 = vmatpush1.bf16.msra.mxu0 0
        %2530 = vmatprep.subr.bf16.mxu0 0
        %2531 = vmatpush1.bf16.msra.mxu0 0
        %2532 = vmatprep.subr.bf16.mxu0 0
        %2533 = vmatpush1.bf16.msra.mxu0 0
        %2534 = vmatprep.subr.bf16.mxu0 0
        %2535 = vmatpush1.bf16.msra.mxu0 0
        %2536 = vmatprep.subr.bf16.mxu0 0
        %2537 = vmatpush1.bf16.msra.mxu0 0
        %2538 = vmatprep.mubr.bf16.mxu0 0
        %2539 = vmatmul.mubr.bf16.gmra.mrb[0].mxu0 %v2492
        %v2540 = vpop.f32.mrb[0].mxu0
        %v2541 = vadd.f32 0.0, %v2540
        %v2542 = vpop.f32.mrb[0].mxu0
        %v2543 = vpop.f32.mrb[0].mxu0
        %v2544 = vadd.f32 0.0, %v2543
        %v2545 = vpop.f32.mrb[0].mxu0
        %2546 = vmatprep.mubr.bf16.mxu0 0
        %2547 = vmatmul.mubr.bf16.gmra.mrb[0].mxu0 %v2495
        %v2548 = vpop.f32.mrb[0].mxu0
        %v2549 = vadd.f32 0.0, %v2548
        %v2550 = vpop.f32.mrb[0].mxu0
        %v2551 = vpop.f32.mrb[0].mxu0
        %v2552 = vadd.f32 0.0, %v2551
        %v2553 = vpop.f32.mrb[0].mxu0
        %2554 = vmatprep.mubr.bf16.mxu0 0
        %2555 = vmatmul.mubr.bf16.gmra.mrb[0].mxu0 %v2498
        %v2556 = vpop.f32.mrb[0].mxu0
        %v2557 = vadd.f32 0.0, %v2556
        %v2558 = vpop.f32.mrb[0].mxu0
        %v2559 = vpop.f32.mrb[0].mxu0
        %v2560 = vadd.f32 0.0, %v2559
        %v2561 = vpop.f32.mrb[0].mxu0
        %2562 = vmatprep.mubr.bf16.mxu0 0
        %2563 = vmatmul.mubr.bf16.gmra.mrb[0].mxu0 %v2501
        %v2564 = vpop.f32.mrb[0].mxu0
        %v2565 = vadd.f32 0.0, %v2564
        %v2566 = vpop.f32.mrb[0].mxu0
        %v2567 = vpop.f32.mrb[0].mxu0
        %v2568 = vadd.f32 0.0, %v2567
        %v2569 = vpop.f32.mrb[0].mxu0
        %2570 = vmatprep.mubr.bf16.mxu0 0
        %2571 = vmatmul.mubr.bf16.gmra.mrb[0].mxu0 %v2504
        %v2572 = vpop.f32.mrb[0].mxu0
        %v2573 = vadd.f32 0.0, %v2572
        %v2574 = vpop.f32.mrb[0].mxu0
        %v2575 = vpop.f32.mrb[0].mxu0
        %v2576 = vadd.f32 0.0, %v2575
        %v2577 = vpop.f32.mrb[0].mxu0
        %2578 = vdwg.mxu0
        %v2579 = vpack.c.bf16 %v2544, %v2541
        %v2580 = vpack.c.bf16 %v2552, %v2549
        %v2581 = vpack.c.bf16 %v2560, %v2557
        %v2582 = vpack.c.bf16 %v2568, %v2565
        %v2583 = vpack.c.bf16 %v2576, %v2573
        %v2584 = vld [vmem:[#allocation2 + $0x458] sm:$0xf]
        %v2585 = vld [vmem:[#allocation2 + $0x45c] sm:$0xf]
        %v2586 = vld [vmem:[#allocation2 + $0x460] sm:$0xf]
        %v2587 = vld [vmem:[#allocation2 + $0x464] sm:$0xf]
        %v2588 = vld [vmem:[#allocation2 + $0x468] sm:$0xf]
        %v2589 = vld [vmem:[#allocation2 + $0x46c] sm:$0xf]
        %v2590 = vld [vmem:[#allocation2 + $0x470] sm:$0xf]
        %v2591 = vld [vmem:[#allocation2 + $0x474] sm:$0xf]
        %v2592 = vld [vmem:[#allocation2 + $0x478] sm:$0xf]
        %v2593 = vld [vmem:[#allocation2 + $0x47c] sm:$0xf]
        %v2594 = vld [vmem:[#allocation2 + $0x480] sm:$0xf]
        %v2595 = vld [vmem:[#allocation2 + $0x484] sm:$0xf]
        %v2596 = vld [vmem:[#allocation2 + $0x488] sm:$0xf]
        %v2597 = vld [vmem:[#allocation2 + $0x48c] sm:$0xf]
        %v2598 = vld [vmem:[#allocation2 + $0x490] sm:$0xf]
        %v2599 = vld [vmem:[#allocation2 + $0x494] sm:$0xf]
        %v2600 = vld [vmem:[#allocation2 + $0x198] sm:$0xf]
        %v2601 = vld [vmem:[#allocation2 + $0x19c] sm:$0xf]
        %v2602 = vld [vmem:[#allocation2 + $0x1a0] sm:$0xf]
        %v2603 = vld [vmem:[#allocation2 + $0x1a4] sm:$0xf]
        %v2604 = vld [vmem:[#allocation2 + $0x1a8] sm:$0xf]
        %v2605 = vld [vmem:[#allocation2 + $0x1ac] sm:$0xf]
        %v2606 = vld [vmem:[#allocation2 + $0x1b0] sm:$0xf]
        %v2607 = vld [vmem:[#allocation2 + $0x1b4] sm:$0xf]
        %v2608 = vld [vmem:[#allocation2 + $0x1b8] sm:$0xf]
        %v2609 = vld [vmem:[#allocation2 + $0x1bc] sm:$0xf]
        %v2610 = vld [vmem:[#allocation2 + $0x1c0] sm:$0xf]
        %v2611 = vld [vmem:[#allocation2 + $0x1c4] sm:$0xf]
        %v2612 = vld [vmem:[#allocation2 + $0x1c8] sm:$0xf]
        %v2613 = vld [vmem:[#allocation2 + $0x1cc] sm:$0xf]
        %v2614 = vld [vmem:[#allocation2 + $0x1d0] sm:$0xf]
        %v2615 = vld [vmem:[#allocation2 + $0x1d4] sm:$0xf]
        %v2616 = vld [vmem:[%s2 + $0x6] sm:$0x1]
        %v2617 = vlaneseq
        %v2618 = vshrl.u32 %v2617, 7
        %v2619 = vsub.s32 0, %v2618
        %v2620 = vrot.slane %v2616, %v2619
        %v2637 = vunpack.c.l.b16 %v2600
        %v2638 = vunpack.c.l.b16 %v2601
        %v2639 = vunpack.c.l.b16 %v2602
        %v2640 = vunpack.c.l.b16 %v2603
        %v2641 = vunpack.c.l.b16 %v2604
        %v2642 = vunpack.c.l.b16 %v2605
        %v2643 = vunpack.c.l.b16 %v2606
        %v2644 = vunpack.c.l.b16 %v2607
        %v2645 = vunpack.c.l.b16 %v2608
        %v2646 = vunpack.c.l.b16 %v2609
        %v2647 = vunpack.c.l.b16 %v2610
        %v2648 = vunpack.c.l.b16 %v2611
        %v2649 = vunpack.c.l.b16 %v2612
        %v2650 = vunpack.c.l.b16 %v2613
        %v2651 = vunpack.c.l.b16 %v2614
        %v2652 = vunpack.c.l.b16 %v2615
        %v2653 = vpack.c.b16 %v2638, %v2637
        %v2654 = vpack.c.b16 %v2640, %v2639
        %v2655 = vpack.c.b16 %v2642, %v2641
        %v2656 = vpack.c.b16 %v2644, %v2643
        %v2657 = vpack.c.b16 %v2646, %v2645
        %v2658 = vpack.c.b16 %v2648, %v2647
        %v2659 = vpack.c.b16 %v2650, %v2649
        %v2660 = vpack.c.b16 %v2652, %v2651
        %2669 = vmatprep.subr.bf16.mxu0 0
        %2670 = vmatpush1.bf16.msra.mxu0 %v2653
        %2671 = vmatprep.subr.bf16.mxu0 0
        %2672 = vmatpush1.bf16.msra.mxu0 %v2654
        %2673 = vmatprep.subr.bf16.mxu0 0
        %2674 = vmatpush1.bf16.msra.mxu0 %v2655
        %2675 = vmatprep.subr.bf16.mxu0 0
        %2676 = vmatpush1.bf16.msra.mxu0 %v2656
        %2677 = vmatprep.subr.bf16.mxu0 0
        %2678 = vmatpush1.bf16.msra.mxu0 %v2657
        %2679 = vmatprep.subr.bf16.mxu0 0
        %2680 = vmatpush1.bf16.msra.mxu0 %v2658
        %2681 = vmatprep.subr.bf16.mxu0 0
        %2682 = vmatpush1.bf16.msra.mxu0 %v2659
        %2683 = vmatprep.subr.bf16.mxu0 0
        %2684 = vmatpush1.bf16.msra.mxu0 %v2660
        %2685 = vmatprep.subr.bf16.mxu0 0
        %2686 = vmatpush1.bf16.msra.mxu0 0
        %2687 = vmatprep.subr.bf16.mxu0 0
        %2688 = vmatpush1.bf16.msra.mxu0 0
        %2689 = vmatprep.subr.bf16.mxu0 0
        %2690 = vmatpush1.bf16.msra.mxu0 0
        %2691 = vmatprep.subr.bf16.mxu0 0
        %2692 = vmatpush1.bf16.msra.mxu0 0
        %2693 = vmatprep.subr.bf16.mxu0 0
        %2694 = vmatpush1.bf16.msra.mxu0 0
        %2695 = vmatprep.subr.bf16.mxu0 0
        %2696 = vmatpush1.bf16.msra.mxu0 0
        %2697 = vmatprep.subr.bf16.mxu0 0
        %2698 = vmatpush1.bf16.msra.mxu0 0
        %2699 = vmatprep.subr.bf16.mxu0 0
        %2700 = vmatpush1.bf16.msra.mxu0 0
        %2701 = vmatprep.mubr.bf16.mxu0 0
        %2702 = vmatmul.mubr.bf16.gmra.mrb[0].mxu0 %v1856
        %v2703 = vpop.f32.mrb[0].mxu0
        %v2704 = vadd.f32 %v2620, %v2703
        %v2705 = vpop.f32.mrb[0].mxu0
        %v2706 = vpop.f32.mrb[0].mxu0
        %v2707 = vadd.f32 %v2620, %v2706
        %v2708 = vpop.f32.mrb[0].mxu0
        %2709 = vmatprep.mubr.bf16.mxu0 0
        %2710 = vmatmul.mubr.bf16.gmra.mrb[0].mxu0 %v1857
        %v2711 = vpop.f32.mrb[0].mxu0
        %v2712 = vadd.f32 %v2620, %v2711
        %v2713 = vpop.f32.mrb[0].mxu0
        %v2714 = vpop.f32.mrb[0].mxu0
        %v2715 = vadd.f32 %v2620, %v2714
        %v2716 = vpop.f32.mrb[0].mxu0
        %2717 = vmatprep.mubr.bf16.mxu0 0
        %2718 = vmatmul.mubr.bf16.gmra.mrb[0].mxu0 %v1858
        %v2719 = vpop.f32.mrb[0].mxu0
        %v2720 = vadd.f32 %v2620, %v2719
        %v2721 = vpop.f32.mrb[0].mxu0
        %v2722 = vpop.f32.mrb[0].mxu0
        %v2723 = vadd.f32 %v2620, %v2722
        %v2724 = vpop.f32.mrb[0].mxu0
        %2725 = vmatprep.mubr.bf16.mxu0 0
        %2726 = vmatmul.mubr.bf16.gmra.mrb[0].mxu0 %v1859
        %v2727 = vpop.f32.mrb[0].mxu0
        %v2728 = vadd.f32 %v2620, %v2727
        %v2729 = vpop.f32.mrb[0].mxu0
        %v2730 = vpop.f32.mrb[0].mxu0
        %v2731 = vadd.f32 %v2620, %v2730
        %v2732 = vpop.f32.mrb[0].mxu0
        %2733 = vmatprep.mubr.bf16.mxu0 0
        %2734 = vmatmul.mubr.bf16.gmra.mrb[0].mxu0 %v1860
        %v2735 = vpop.f32.mrb[0].mxu0
        %v2736 = vadd.f32 %v2620, %v2735
        %v2737 = vpop.f32.mrb[0].mxu0
        %v2738 = vpop.f32.mrb[0].mxu0
        %v2739 = vadd.f32 %v2620, %v2738
        %v2740 = vpop.f32.mrb[0].mxu0
        %2741 = vdwg.mxu0
        %v2742 = vld [vmem:[#allocation2 + $0x298] sm:$0xf]
        %v2743 = vld [vmem:[#allocation2 + $0x29c] sm:$0xf]
        %v2744 = vld [vmem:[#allocation2 + $0x2a0] sm:$0xf]
        %v2745 = vld [vmem:[#allocation2 + $0x2a4] sm:$0xf]
        %v2746 = vld [vmem:[#allocation2 + $0x2a8] sm:$0xf]
        %v2747 = vld [vmem:[#allocation2 + $0x2ac] sm:$0xf]
        %v2748 = vld [vmem:[#allocation2 + $0x2b0] sm:$0xf]
        %v2749 = vld [vmem:[#allocation2 + $0x2b4] sm:$0xf]
        %v2750 = vld [vmem:[#allocation2 + $0x2b8] sm:$0xf]
        %v2751 = vld [vmem:[#allocation2 + $0x2bc] sm:$0xf]
        %v2752 = vld [vmem:[#allocation2 + $0x2c0] sm:$0xf]
        %v2753 = vld [vmem:[#allocation2 + $0x2c4] sm:$0xf]
        %v2754 = vld [vmem:[#allocation2 + $0x2c8] sm:$0xf]
        %v2755 = vld [vmem:[#allocation2 + $0x2cc] sm:$0xf]
        %v2756 = vld [vmem:[#allocation2 + $0x2d0] sm:$0xf]
        %v2757 = vld [vmem:[#allocation2 + $0x2d4] sm:$0xf]
        %v2758 = vld [vmem:[%s2 + $0xa] sm:$0x1]
        %v2759 = vlaneseq
        %v2760 = vshrl.u32 %v2759, 7
        %v2761 = vsub.s32 0, %v2760
        %v2762 = vrot.slane %v2758, %v2761
        %v2779 = vunpack.c.l.b16 %v2742
        %v2780 = vunpack.c.l.b16 %v2743
        %v2781 = vunpack.c.l.b16 %v2744
        %v2782 = vunpack.c.l.b16 %v2745
        %v2783 = vunpack.c.l.b16 %v2746
        %v2784 = vunpack.c.l.b16 %v2747
        %v2785 = vunpack.c.l.b16 %v2748
        %v2786 = vunpack.c.l.b16 %v2749
        %v2787 = vunpack.c.l.b16 %v2750
        %v2788 = vunpack.c.l.b16 %v2751
        %v2789 = vunpack.c.l.b16 %v2752
        %v2790 = vunpack.c.l.b16 %v2753
        %v2791 = vunpack.c.l.b16 %v2754
        %v2792 = vunpack.c.l.b16 %v2755
        %v2793 = vunpack.c.l.b16 %v2756
        %v2794 = vunpack.c.l.b16 %v2757
        %v2795 = vpack.c.b16 %v2780, %v2779
        %v2796 = vpack.c.b16 %v2782, %v2781
        %v2797 = vpack.c.b16 %v2784, %v2783
        %v2798 = vpack.c.b16 %v2786, %v2785
        %v2799 = vpack.c.b16 %v2788, %v2787
        %v2800 = vpack.c.b16 %v2790, %v2789
        %v2801 = vpack.c.b16 %v2792, %v2791
        %v2802 = vpack.c.b16 %v2794, %v2793
        %2811 = vmatprep.subr.bf16.mxu0 0
        %2812 = vmatpush1.bf16.msra.mxu0 %v2795
        %2813 = vmatprep.subr.bf16.mxu0 0
        %2814 = vmatpush1.bf16.msra.mxu0 %v2796
        %2815 = vmatprep.subr.bf16.mxu0 0
        %2816 = vmatpush1.bf16.msra.mxu0 %v2797
        %2817 = vmatprep.subr.bf16.mxu0 0
        %2818 = vmatpush1.bf16.msra.mxu0 %v2798
        %2819 = vmatprep.subr.bf16.mxu0 0
        %2820 = vmatpush1.bf16.msra.mxu0 %v2799
        %2821 = vmatprep.subr.bf16.mxu0 0
        %2822 = vmatpush1.bf16.msra.mxu0 %v2800
        %2823 = vmatprep.subr.bf16.mxu0 0
        %2824 = vmatpush1.bf16.msra.mxu0 %v2801
        %2825 = vmatprep.subr.bf16.mxu0 0
        %2826 = vmatpush1.bf16.msra.mxu0 %v2802
        %2827 = vmatprep.subr.bf16.mxu0 0
        %2828 = vmatpush1.bf16.msra.mxu0 0
        %2829 = vmatprep.subr.bf16.mxu0 0
        %2830 = vmatpush1.bf16.msra.mxu0 0
        %2831 = vmatprep.subr.bf16.mxu0 0
        %2832 = vmatpush1.bf16.msra.mxu0 0
        %2833 = vmatprep.subr.bf16.mxu0 0
        %2834 = vmatpush1.bf16.msra.mxu0 0
        %2835 = vmatprep.subr.bf16.mxu0 0
        %2836 = vmatpush1.bf16.msra.mxu0 0
        %2837 = vmatprep.subr.bf16.mxu0 0
        %2838 = vmatpush1.bf16.msra.mxu0 0
        %2839 = vmatprep.subr.bf16.mxu0 0
        %2840 = vmatpush1.bf16.msra.mxu0 0
        %2841 = vmatprep.subr.bf16.mxu0 0
        %2842 = vmatpush1.bf16.msra.mxu0 0
        %2843 = vmatprep.mubr.bf16.mxu0 0
        %2844 = vmatmul.mubr.bf16.gmra.mrb[0].mxu0 %v1856
        %v2845 = vpop.f32.mrb[0].mxu0
        %v2846 = vadd.f32 %v2762, %v2845
        %v2847 = vpop.f32.mrb[0].mxu0
        %v2848 = vpop.f32.mrb[0].mxu0
        %v2849 = vadd.f32 %v2762, %v2848
        %v2850 = vpop.f32.mrb[0].mxu0
        %2851 = vmatprep.mubr.bf16.mxu0 0
        %2852 = vmatmul.mubr.bf16.gmra.mrb[0].mxu0 %v1857
        %v2853 = vpop.f32.mrb[0].mxu0
        %v2854 = vadd.f32 %v2762, %v2853
        %v2855 = vpop.f32.mrb[0].mxu0
        %v2856 = vpop.f32.mrb[0].mxu0
        %v2857 = vadd.f32 %v2762, %v2856
        %v2858 = vpop.f32.mrb[0].mxu0
        %2859 = vmatprep.mubr.bf16.mxu0 0
        %2860 = vmatmul.mubr.bf16.gmra.mrb[0].mxu0 %v1858
        %v2861 = vpop.f32.mrb[0].mxu0
        %v2862 = vadd.f32 %v2762, %v2861
        %v2863 = vpop.f32.mrb[0].mxu0
        %v2864 = vpop.f32.mrb[0].mxu0
        %v2865 = vadd.f32 %v2762, %v2864
        %v2866 = vpop.f32.mrb[0].mxu0
        %2867 = vmatprep.mubr.bf16.mxu0 0
        %2868 = vmatmul.mubr.bf16.gmra.mrb[0].mxu0 %v1859
        %v2869 = vpop.f32.mrb[0].mxu0
        %v2870 = vadd.f32 %v2762, %v2869
        %v2871 = vpop.f32.mrb[0].mxu0
        %v2872 = vpop.f32.mrb[0].mxu0
        %v2873 = vadd.f32 %v2762, %v2872
        %v2874 = vpop.f32.mrb[0].mxu0
        %2875 = vmatprep.mubr.bf16.mxu0 0
        %2876 = vmatmul.mubr.bf16.gmra.mrb[0].mxu0 %v1860
        %v2877 = vpop.f32.mrb[0].mxu0
        %v2878 = vadd.f32 %v2762, %v2877
        %v2879 = vpop.f32.mrb[0].mxu0
        %v2880 = vpop.f32.mrb[0].mxu0
        %v2881 = vadd.f32 %v2762, %v2880
        %v2882 = vpop.f32.mrb[0].mxu0
        %2883 = vdwg.mxu0
        %v2884 = vld [vmem:[#allocation2 + $0x398] sm:$0xf]
        %v2885 = vld [vmem:[#allocation2 + $0x39c] sm:$0xf]
        %v2886 = vld [vmem:[#allocation2 + $0x3a0] sm:$0xf]
        %v2887 = vld [vmem:[#allocation2 + $0x3a4] sm:$0xf]
        %v2888 = vld [vmem:[#allocation2 + $0x3a8] sm:$0xf]
        %v2889 = vld [vmem:[#allocation2 + $0x3ac] sm:$0xf]
        %v2890 = vld [vmem:[#allocation2 + $0x3b0] sm:$0xf]
        %v2891 = vld [vmem:[#allocation2 + $0x3b4] sm:$0xf]
        %v2892 = vld [vmem:[#allocation2 + $0x3b8] sm:$0xf]
        %v2893 = vld [vmem:[#allocation2 + $0x3bc] sm:$0xf]
        %v2894 = vld [vmem:[#allocation2 + $0x3c0] sm:$0xf]
        %v2895 = vld [vmem:[#allocation2 + $0x3c4] sm:$0xf]
        %v2896 = vld [vmem:[#allocation2 + $0x3c8] sm:$0xf]
        %v2897 = vld [vmem:[#allocation2 + $0x3cc] sm:$0xf]
        %v2898 = vld [vmem:[#allocation2 + $0x3d0] sm:$0xf]
        %v2899 = vld [vmem:[#allocation2 + $0x3d4] sm:$0xf]
        %v2900 = vld [vmem:[%s2 + $0xe] sm:$0x1]
        %v2901 = vlaneseq
        %v2902 = vshrl.u32 %v2901, 7
        %v2903 = vsub.s32 0, %v2902
        %v2904 = vrot.slane %v2900, %v2903
        %v2921 = vunpack.c.l.b16 %v2884
        %v2922 = vunpack.c.l.b16 %v2885
        %v2923 = vunpack.c.l.b16 %v2886
        %v2924 = vunpack.c.l.b16 %v2887
        %v2925 = vunpack.c.l.b16 %v2888
        %v2926 = vunpack.c.l.b16 %v2889
        %v2927 = vunpack.c.l.b16 %v2890
        %v2928 = vunpack.c.l.b16 %v2891
        %v2929 = vunpack.c.l.b16 %v2892
        %v2930 = vunpack.c.l.b16 %v2893
        %v2931 = vunpack.c.l.b16 %v2894
        %v2932 = vunpack.c.l.b16 %v2895
        %v2933 = vunpack.c.l.b16 %v2896
        %v2934 = vunpack.c.l.b16 %v2897
        %v2935 = vunpack.c.l.b16 %v2898
        %v2936 = vunpack.c.l.b16 %v2899
        %v2937 = vpack.c.b16 %v2922, %v2921
        %v2938 = vpack.c.b16 %v2924, %v2923
        %v2939 = vpack.c.b16 %v2926, %v2925
        %v2940 = vpack.c.b16 %v2928, %v2927
        %v2941 = vpack.c.b16 %v2930, %v2929
        %v2942 = vpack.c.b16 %v2932, %v2931
        %v2943 = vpack.c.b16 %v2934, %v2933
        %v2944 = vpack.c.b16 %v2936, %v2935
        %2953 = vmatprep.subr.bf16.mxu0 0
        %2954 = vmatpush1.bf16.msra.mxu0 %v2937
        %2955 = vmatprep.subr.bf16.mxu0 0
        %2956 = vmatpush1.bf16.msra.mxu0 %v2938
        %2957 = vmatprep.subr.bf16.mxu0 0
        %2958 = vmatpush1.bf16.msra.mxu0 %v2939
        %2959 = vmatprep.subr.bf16.mxu0 0
        %2960 = vmatpush1.bf16.msra.mxu0 %v2940
        %2961 = vmatprep.subr.bf16.mxu0 0
        %2962 = vmatpush1.bf16.msra.mxu0 %v2941
        %2963 = vmatprep.subr.bf16.mxu0 0
        %2964 = vmatpush1.bf16.msra.mxu0 %v2942
        %2965 = vmatprep.subr.bf16.mxu0 0
        %2966 = vmatpush1.bf16.msra.mxu0 %v2943
        %2967 = vmatprep.subr.bf16.mxu0 0
        %2968 = vmatpush1.bf16.msra.mxu0 %v2944
        %2969 = vmatprep.subr.bf16.mxu0 0
        %2970 = vmatpush1.bf16.msra.mxu0 0
        %2971 = vmatprep.subr.bf16.mxu0 0
        %2972 = vmatpush1.bf16.msra.mxu0 0
        %2973 = vmatprep.subr.bf16.mxu0 0
        %2974 = vmatpush1.bf16.msra.mxu0 0
        %2975 = vmatprep.subr.bf16.mxu0 0
        %2976 = vmatpush1.bf16.msra.mxu0 0
        %2977 = vmatprep.subr.bf16.mxu0 0
        %2978 = vmatpush1.bf16.msra.mxu0 0
        %2979 = vmatprep.subr.bf16.mxu0 0
        %2980 = vmatpush1.bf16.msra.mxu0 0
        %2981 = vmatprep.subr.bf16.mxu0 0
        %2982 = vmatpush1.bf16.msra.mxu0 0
        %2983 = vmatprep.subr.bf16.mxu0 0
        %2984 = vmatpush1.bf16.msra.mxu0 0
        %2985 = vmatprep.mubr.bf16.mxu0 0
        %2986 = vmatmul.mubr.bf16.gmra.mrb[0].mxu0 %v1856
        %v2987 = vpop.f32.mrb[0].mxu0
        %v2988 = vadd.f32 %v2904, %v2987
        %v2989 = vpop.f32.mrb[0].mxu0
        %v2990 = vpop.f32.mrb[0].mxu0
        %v2991 = vadd.f32 %v2904, %v2990
        %v2992 = vpop.f32.mrb[0].mxu0
        %2993 = vmatprep.mubr.bf16.mxu0 0
        %2994 = vmatmul.mubr.bf16.gmra.mrb[0].mxu0 %v1857
        %v2995 = vpop.f32.mrb[0].mxu0
        %v2996 = vadd.f32 %v2904, %v2995
        %v2997 = vpop.f32.mrb[0].mxu0
        %v2998 = vpop.f32.mrb[0].mxu0
        %v2999 = vadd.f32 %v2904, %v2998
        %v3000 = vpop.f32.mrb[0].mxu0
        %3001 = vmatprep.mubr.bf16.mxu0 0
        %3002 = vmatmul.mubr.bf16.gmra.mrb[0].mxu0 %v1858
        %v3003 = vpop.f32.mrb[0].mxu0
        %v3004 = vadd.f32 %v2904, %v3003
        %v3005 = vpop.f32.mrb[0].mxu0
        %v3006 = vpop.f32.mrb[0].mxu0
        %v3007 = vadd.f32 %v2904, %v3006
        %v3008 = vpop.f32.mrb[0].mxu0
        %3009 = vmatprep.mubr.bf16.mxu0 0
        %3010 = vmatmul.mubr.bf16.gmra.mrb[0].mxu0 %v1859
        %v3011 = vpop.f32.mrb[0].mxu0
        %v3012 = vadd.f32 %v2904, %v3011
        %v3013 = vpop.f32.mrb[0].mxu0
        %v3014 = vpop.f32.mrb[0].mxu0
        %v3015 = vadd.f32 %v2904, %v3014
        %v3016 = vpop.f32.mrb[0].mxu0
        %3017 = vmatprep.mubr.bf16.mxu0 0
        %3018 = vmatmul.mubr.bf16.gmra.mrb[0].mxu0 %v1860
        %v3019 = vpop.f32.mrb[0].mxu0
        %v3020 = vadd.f32 %v2904, %v3019
        %v3021 = vpop.f32.mrb[0].mxu0
        %v3022 = vpop.f32.mrb[0].mxu0
        %v3023 = vadd.f32 %v2904, %v3022
        %v3024 = vpop.f32.mrb[0].mxu0
        %3025 = vdwg.mxu0
        %v3026 = vpack.c.bf16 %v2707, %v2704
        %v3027 = vpack.c.bf16 %v2715, %v2712
        %v3028 = vpack.c.bf16 %v2723, %v2720
        %v3029 = vpack.c.bf16 %v2731, %v2728
        %v3030 = vpack.c.bf16 %v2739, %v2736
        %v3031 = vpack.c.bf16 %v2849, %v2846
        %v3032 = vpack.c.bf16 %v2857, %v2854
        %v3033 = vpack.c.bf16 %v2865, %v2862
        %v3034 = vpack.c.bf16 %v2873, %v2870
        %v3035 = vpack.c.bf16 %v2881, %v2878
        %3036 = vmatprep.subr.bf16.mxu0 0
        %3037 = vmatpush1.bf16.xpose.msra.mxu0 %v3031
        %3038 = vmatprep.subr.bf16.mxu0 0
        %3039 = vmatpush1.bf16.xpose.msra.mxu0 %v3032
        %3040 = vmatprep.subr.bf16.mxu0 0
        %3041 = vmatpush1.bf16.xpose.msra.mxu0 %v3033
        %3042 = vmatprep.subr.bf16.mxu0 0
        %3043 = vmatpush1.bf16.xpose.msra.mxu0 %v3034
        %3044 = vmatprep.subr.bf16.mxu0 0
        %3045 = vmatpush1.bf16.xpose.msra.mxu0 %v3035
        %3046 = vmatprep.subr.bf16.mxu0 0
        %3047 = vmatpush1.bf16.xpose.msra.mxu0 0
        %3048 = vmatprep.subr.bf16.mxu0 0
        %3049 = vmatpush1.bf16.xpose.msra.mxu0 0
        %3050 = vmatprep.subr.bf16.mxu0 0
        %3051 = vmatpush1.bf16.xpose.msra.mxu0 0
        %3052 = vmatprep.subr.bf16.mxu0 0
        %3053 = vmatpush1.bf16.xpose.msra.mxu0 0
        %3054 = vmatprep.subr.bf16.mxu0 0
        %3055 = vmatpush1.bf16.xpose.msra.mxu0 0
        %3056 = vmatprep.subr.bf16.mxu0 0
        %3057 = vmatpush1.bf16.xpose.msra.mxu0 0
        %3058 = vmatprep.subr.bf16.mxu0 0
        %3059 = vmatpush1.bf16.xpose.msra.mxu0 0
        %3060 = vmatprep.subr.bf16.mxu0 0
        %3061 = vmatpush1.bf16.xpose.msra.mxu0 0
        %3062 = vmatprep.subr.bf16.mxu0 0
        %3063 = vmatpush1.bf16.xpose.msra.mxu0 0
        %3064 = vmatprep.subr.bf16.mxu0 0
        %3065 = vmatpush1.bf16.xpose.msra.mxu0 0
        %3066 = vmatprep.subr.bf16.mxu0 0
        %3067 = vmatpush1.bf16.xpose.msra.mxu0 0
        %3068 = vmatprep.mubr.bf16.mxu0 0
        %3069 = vmatmul.mubr.bf16.gmra.mrb[0].mxu0 %v3026
        %v3070 = vpop.f32.mrb[0].mxu0
        %v3071 = vadd.f32 %v1558, %v3070
        %v3072 = vpop.f32.mrb[0].mxu0
        %v3073 = vpop.f32.mrb[0].mxu0
        %v3074 = vadd.f32 %v1558, %v3073
        %v3075 = vpop.f32.mrb[0].mxu0
        %3076 = vmatprep.mubr.bf16.mxu0 0
        %3077 = vmatmul.mubr.bf16.gmra.mrb[0].mxu0 %v3027
        %v3078 = vpop.f32.mrb[0].mxu0
        %v3079 = vadd.f32 %v1558, %v3078
        %v3080 = vpop.f32.mrb[0].mxu0
        %v3081 = vpop.f32.mrb[0].mxu0
        %v3082 = vadd.f32 %v1558, %v3081
        %v3083 = vpop.f32.mrb[0].mxu0
        %3084 = vmatprep.mubr.bf16.mxu0 0
        %3085 = vmatmul.mubr.bf16.gmra.mrb[0].mxu0 %v3028
        %v3086 = vpop.f32.mrb[0].mxu0
        %v3087 = vadd.f32 %v1558, %v3086
        %v3088 = vpop.f32.mrb[0].mxu0
        %v3089 = vpop.f32.mrb[0].mxu0
        %v3090 = vadd.f32 %v1558, %v3089
        %v3091 = vpop.f32.mrb[0].mxu0
        %3092 = vmatprep.mubr.bf16.mxu0 0
        %3093 = vmatmul.mubr.bf16.gmra.mrb[0].mxu0 %v3029
        %v3094 = vpop.f32.mrb[0].mxu0
        %v3095 = vadd.f32 %v1558, %v3094
        %v3096 = vpop.f32.mrb[0].mxu0
        %v3097 = vpop.f32.mrb[0].mxu0
        %v3098 = vadd.f32 %v1558, %v3097
        %v3099 = vpop.f32.mrb[0].mxu0
        %3100 = vmatprep.mubr.bf16.mxu0 0
        %3101 = vmatmul.mubr.bf16.gmra.mrb[0].mxu0 %v3030
        %v3102 = vpop.f32.mrb[0].mxu0
        %v3103 = vadd.f32 %v1558, %v3102
        %v3104 = vpop.f32.mrb[0].mxu0
        %v3105 = vpop.f32.mrb[0].mxu0
        %v3106 = vadd.f32 %v1558, %v3105
        %v3107 = vpop.f32.mrb[0].mxu0
        %3108 = vdwg.mxu0
        %v3109 = vsel %vm2370, %v3071, -inf
        %3110 = vmax.xlane.f32.xlu0 %v3109
        %v3111 = vpop.xlane.xlu0 %3110
        %v3112 = vsel %vm2370, %v3074, -inf
        %3113 = vmax.xlane.f32.xlu0 %v3112
        %v3114 = vpop.xlane.xlu0 %3113
        %v3115 = vsel %vm2370, %v3079, -inf
        %3116 = vmax.xlane.f32.xlu0 %v3115
        %v3117 = vpop.xlane.xlu0 %3116
        %v3118 = vsel %vm2370, %v3082, -inf
        %3119 = vmax.xlane.f32.xlu0 %v3118
        %v3120 = vpop.xlane.xlu0 %3119
        %v3121 = vsel %vm2370, %v3087, -inf
        %3122 = vmax.xlane.f32.xlu0 %v3121
        %v3123 = vpop.xlane.xlu0 %3122
        %v3124 = vsel %vm2370, %v3090, -inf
        %3125 = vmax.xlane.f32.xlu0 %v3124
        %v3126 = vpop.xlane.xlu0 %3125
        %v3127 = vsel %vm2370, %v3095, -inf
        %3128 = vmax.xlane.f32.xlu0 %v3127
        %v3129 = vpop.xlane.xlu0 %3128
        %v3130 = vsel %vm2370, %v3098, -inf
        %3131 = vmax.xlane.f32.xlu0 %v3130
        %v3132 = vpop.xlane.xlu0 %3131
        %v3133 = vsel %vm2370, %v3103, -inf
        %3134 = vmax.xlane.f32.xlu0 %v3133
        %v3135 = vpop.xlane.xlu0 %3134
        %v3136 = vsel %vm2370, %v3106, -inf
        %3137 = vmax.xlane.f32.xlu0 %v3136
        %v3138 = vpop.xlane.xlu0 %3137
        %v3139 = vsub.f32 %v3071, %v3111
        %v3140 = vsub.f32 %v3074, %v3114
        %v3141 = vsub.f32 %v3079, %v3117
        %v3142 = vsub.f32 %v3082, %v3120
        %v3143 = vsub.f32 %v3087, %v3123
        %v3144 = vsub.f32 %v3090, %v3126
        %v3145 = vsub.f32 %v3095, %v3129
        %v3146 = vsub.f32 %v3098, %v3132
        %v3147 = vsub.f32 %v3103, %v3135
        %v3148 = vsub.f32 %v3106, %v3138
        %v3149 = vmul.f32 %v3139, 1.442695
        %v3150 = vpow.pop %v3149
        %v3151 = vmul.f32 %v3140, 1.442695
        %v3152 = vpow.pop %v3151
        %v3153 = vmul.f32 %v3141, 1.442695
        %v3154 = vpow.pop %v3153
        %v3155 = vmul.f32 %v3142, 1.442695
        %v3156 = vpow.pop %v3155
        %v3157 = vmul.f32 %v3143, 1.442695
        %v3158 = vpow.pop %v3157
        %v3159 = vmul.f32 %v3144, 1.442695
        %v3160 = vpow.pop %v3159
        %v3161 = vmul.f32 %v3145, 1.442695
        %v3162 = vpow.pop %v3161
        %v3163 = vmul.f32 %v3146, 1.442695
        %v3164 = vpow.pop %v3163
        %v3165 = vmul.f32 %v3147, 1.442695
        %v3166 = vpow.pop %v3165
        %v3167 = vmul.f32 %v3148, 1.442695
        %v3168 = vpow.pop %v3167
        %v3169 = vsel %vm2370, %v3150, 0.0
        %3170 = vadd.xlane.f32.xlu0 %v3169
        %v3171 = vpop.xlane.xlu0 %3170
        %v3172 = vsel %vm2370, %v3152, 0.0
        %3173 = vadd.xlane.f32.xlu0 %v3172
        %v3174 = vpop.xlane.xlu0 %3173
        %v3175 = vsel %vm2370, %v3154, 0.0
        %3176 = vadd.xlane.f32.xlu0 %v3175
        %v3177 = vpop.xlane.xlu0 %3176
        %v3178 = vsel %vm2370, %v3156, 0.0
        %3179 = vadd.xlane.f32.xlu0 %v3178
        %v3180 = vpop.xlane.xlu0 %3179
        %v3181 = vsel %vm2370, %v3158, 0.0
        %3182 = vadd.xlane.f32.xlu0 %v3181
        %v3183 = vpop.xlane.xlu0 %3182
        %v3184 = vsel %vm2370, %v3160, 0.0
        %3185 = vadd.xlane.f32.xlu0 %v3184
        %v3186 = vpop.xlane.xlu0 %3185
        %v3187 = vsel %vm2370, %v3162, 0.0
        %3188 = vadd.xlane.f32.xlu0 %v3187
        %v3189 = vpop.xlane.xlu0 %3188
        %v3190 = vsel %vm2370, %v3164, 0.0
        %3191 = vadd.xlane.f32.xlu0 %v3190
        %v3192 = vpop.xlane.xlu0 %3191
        %v3193 = vsel %vm2370, %v3166, 0.0
        %3194 = vadd.xlane.f32.xlu0 %v3193
        %v3195 = vpop.xlane.xlu0 %3194
        %v3196 = vsel %vm2370, %v3168, 0.0
        %3197 = vadd.xlane.f32.xlu0 %v3196
        %v3198 = vpop.xlane.xlu0 %3197
        %v3199 = vrcp.pop %v3171
        %v3200 = vrcp.pop %v3174
        %v3201 = vrcp.pop %v3177
        %v3202 = vrcp.pop %v3180
        %v3203 = vrcp.pop %v3183
        %v3204 = vrcp.pop %v3186
        %v3205 = vrcp.pop %v3189
        %v3206 = vrcp.pop %v3192
        %v3207 = vrcp.pop %v3195
        %v3208 = vrcp.pop %v3198
        %v3209 = vmul.f32 %v3150, %v3199
        %v3210 = vmul.f32 %v3152, %v3200
        %v3211 = vmul.f32 %v3154, %v3201
        %v3212 = vmul.f32 %v3156, %v3202
        %v3213 = vmul.f32 %v3158, %v3203
        %v3214 = vmul.f32 %v3160, %v3204
        %v3215 = vmul.f32 %v3162, %v3205
        %v3216 = vmul.f32 %v3164, %v3206
        %v3217 = vmul.f32 %v3166, %v3207
        %v3218 = vmul.f32 %v3168, %v3208
        %v3219 = vpack.c.bf16 %v3210, %v3209
        %v3220 = vpack.c.bf16 %v3212, %v3211
        %v3221 = vpack.c.bf16 %v3214, %v3213
        %v3222 = vpack.c.bf16 %v3216, %v3215
        %v3223 = vpack.c.bf16 %v3218, %v3217
        %v3224 = vpack.c.bf16 %v2991, %v2988
        %v3225 = vpack.c.bf16 %v2999, %v2996
        %v3226 = vpack.c.bf16 %v3007, %v3004
        %v3227 = vpack.c.bf16 %v3015, %v3012
        %v3228 = vpack.c.bf16 %v3023, %v3020
        %v3230 = vsel %vm2370, %v3219, 0
        %v3233 = vsel %vm2370, %v3220, 0
        %v3236 = vsel %vm2370, %v3221, 0
        %v3239 = vsel %vm2370, %v3222, 0
        %v3242 = vsel %vm2370, %v3223, 0
        %3244 = vmatprep.subr.bf16.mxu0 0
        %3245 = vmatpush1.bf16.msra.mxu0 %v3224
        %3246 = vmatprep.subr.bf16.mxu0 0
        %3247 = vmatpush1.bf16.msra.mxu0 %v3225
        %3248 = vmatprep.subr.bf16.mxu0 0
        %3249 = vmatpush1.bf16.msra.mxu0 %v3226
        %3250 = vmatprep.subr.bf16.mxu0 0
        %3251 = vmatpush1.bf16.msra.mxu0 %v3227
        %3252 = vmatprep.subr.bf16.mxu0 0
        %3253 = vmatpush1.bf16.msra.mxu0 %v3228
        %3254 = vmatprep.subr.bf16.mxu0 0
        %3255 = vmatpush1.bf16.msra.mxu0 0
        %3256 = vmatprep.subr.bf16.mxu0 0
        %3257 = vmatpush1.bf16.msra.mxu0 0
        %3258 = vmatprep.subr.bf16.mxu0 0
        %3259 = vmatpush1.bf16.msra.mxu0 0
        %3260 = vmatprep.subr.bf16.mxu0 0
        %3261 = vmatpush1.bf16.msra.mxu0 0
        %3262 = vmatprep.subr.bf16.mxu0 0
        %3263 = vmatpush1.bf16.msra.mxu0 0
        %3264 = vmatprep.subr.bf16.mxu0 0
        %3265 = vmatpush1.bf16.msra.mxu0 0
        %3266 = vmatprep.subr.bf16.mxu0 0
        %3267 = vmatpush1.bf16.msra.mxu0 0
        %3268 = vmatprep.subr.bf16.mxu0 0
        %3269 = vmatpush1.bf16.msra.mxu0 0
        %3270 = vmatprep.subr.bf16.mxu0 0
        %3271 = vmatpush1.bf16.msra.mxu0 0
        %3272 = vmatprep.subr.bf16.mxu0 0
        %3273 = vmatpush1.bf16.msra.mxu0 0
        %3274 = vmatprep.subr.bf16.mxu0 0
        %3275 = vmatpush1.bf16.msra.mxu0 0
        %3276 = vmatprep.mubr.bf16.mxu0 0
        %3277 = vmatmul.mubr.bf16.gmra.mrb[0].mxu0 %v3230
        %v3278 = vpop.f32.mrb[0].mxu0
        %v3279 = vadd.f32 0.0, %v3278
        %v3280 = vpop.f32.mrb[0].mxu0
        %v3281 = vpop.f32.mrb[0].mxu0
        %v3282 = vadd.f32 0.0, %v3281
        %v3283 = vpop.f32.mrb[0].mxu0
        %3284 = vmatprep.mubr.bf16.mxu0 0
        %3285 = vmatmul.mubr.bf16.gmra.mrb[0].mxu0 %v3233
        %v3286 = vpop.f32.mrb[0].mxu0
        %v3287 = vadd.f32 0.0, %v3286
        %v3288 = vpop.f32.mrb[0].mxu0
        %v3289 = vpop.f32.mrb[0].mxu0
        %v3290 = vadd.f32 0.0, %v3289
        %v3291 = vpop.f32.mrb[0].mxu0
        %3292 = vmatprep.mubr.bf16.mxu0 0
        %3293 = vmatmul.mubr.bf16.gmra.mrb[0].mxu0 %v3236
        %v3294 = vpop.f32.mrb[0].mxu0
        %v3295 = vadd.f32 0.0, %v3294
        %v3296 = vpop.f32.mrb[0].mxu0
        %v3297 = vpop.f32.mrb[0].mxu0
        %v3298 = vadd.f32 0.0, %v3297
        %v3299 = vpop.f32.mrb[0].mxu0
        %3300 = vmatprep.mubr.bf16.mxu0 0
        %3301 = vmatmul.mubr.bf16.gmra.mrb[0].mxu0 %v3239
        %v3302 = vpop.f32.mrb[0].mxu0
        %v3303 = vadd.f32 0.0, %v3302
        %v3304 = vpop.f32.mrb[0].mxu0
        %v3305 = vpop.f32.mrb[0].mxu0
        %v3306 = vadd.f32 0.0, %v3305
        %v3307 = vpop.f32.mrb[0].mxu0
        %3308 = vmatprep.mubr.bf16.mxu0 0
        %3309 = vmatmul.mubr.bf16.gmra.mrb[0].mxu0 %v3242
        %v3310 = vpop.f32.mrb[0].mxu0
        %v3311 = vadd.f32 0.0, %v3310
        %v3312 = vpop.f32.mrb[0].mxu0
        %v3313 = vpop.f32.mrb[0].mxu0
        %v3314 = vadd.f32 0.0, %v3313
        %v3315 = vpop.f32.mrb[0].mxu0
        %3316 = vdwg.mxu0
        %v3317 = vpack.c.bf16 %v3282, %v3279
        %v3318 = vpack.c.bf16 %v3290, %v3287
        %v3319 = vpack.c.bf16 %v3298, %v3295
        %v3320 = vpack.c.bf16 %v3306, %v3303
        %v3321 = vpack.c.bf16 %v3314, %v3311
        %v3322 = vld [vmem:[#allocation2 + $0x498] sm:$0xf]
        %v3323 = vld [vmem:[#allocation2 + $0x49c] sm:$0xf]
        %v3324 = vld [vmem:[#allocation2 + $0x4a0] sm:$0xf]
        %v3325 = vld [vmem:[#allocation2 + $0x4a4] sm:$0xf]
        %v3326 = vld [vmem:[#allocation2 + $0x4a8] sm:$0xf]
        %v3327 = vld [vmem:[#allocation2 + $0x4ac] sm:$0xf]
        %v3328 = vld [vmem:[#allocation2 + $0x4b0] sm:$0xf]
        %v3329 = vld [vmem:[#allocation2 + $0x4b4] sm:$0xf]
        %v3330 = vld [vmem:[#allocation2 + $0x4b8] sm:$0xf]
        %v3331 = vld [vmem:[#allocation2 + $0x4bc] sm:$0xf]
        %v3332 = vld [vmem:[#allocation2 + $0x4c0] sm:$0xf]
        %v3333 = vld [vmem:[#allocation2 + $0x4c4] sm:$0xf]
        %v3334 = vld [vmem:[#allocation2 + $0x4c8] sm:$0xf]
        %v3335 = vld [vmem:[#allocation2 + $0x4cc] sm:$0xf]
        %v3336 = vld [vmem:[#allocation2 + $0x4d0] sm:$0xf]
        %v3337 = vld [vmem:[#allocation2 + $0x4d4] sm:$0xf]
        %v3354 = vunpack.c.l.b16 %v3322
        %v3355 = vunpack.c.l.b16 %v3323
        %v3356 = vunpack.c.l.b16 %v3324
        %v3357 = vunpack.c.l.b16 %v3325
        %v3358 = vunpack.c.l.b16 %v3326
        %v3359 = vunpack.c.l.b16 %v3327
        %v3360 = vunpack.c.l.b16 %v3328
        %v3361 = vunpack.c.l.b16 %v3329
        %v3362 = vunpack.c.l.b16 %v3330
        %v3363 = vunpack.c.l.b16 %v3331
        %v3364 = vunpack.c.l.b16 %v3332
        %v3365 = vunpack.c.l.b16 %v3333
        %v3366 = vunpack.c.l.b16 %v3334
        %v3367 = vunpack.c.l.b16 %v3335
        %v3368 = vunpack.c.l.b16 %v3336
        %v3369 = vunpack.c.l.b16 %v3337
        %v3370 = vpack.c.b16 %v3355, %v3354
        %v3371 = vpack.c.b16 %v3357, %v3356
        %v3372 = vpack.c.b16 %v3359, %v3358
        %v3373 = vpack.c.b16 %v3361, %v3360
        %v3374 = vpack.c.b16 %v3363, %v3362
        %v3375 = vpack.c.b16 %v3365, %v3364
        %v3376 = vpack.c.b16 %v3367, %v3366
        %v3377 = vpack.c.b16 %v3369, %v3368
        %3386 = vmatprep.subr.bf16.mxu0 0
        %3387 = vmatpush1.bf16.msra.mxu0 %v3370
        %3388 = vmatprep.subr.bf16.mxu0 0
        %3389 = vmatpush1.bf16.msra.mxu0 %v3371
        %3390 = vmatprep.subr.bf16.mxu0 0
        %3391 = vmatpush1.bf16.msra.mxu0 %v3372
        %3392 = vmatprep.subr.bf16.mxu0 0
        %3393 = vmatpush1.bf16.msra.mxu0 %v3373
        %3394 = vmatprep.subr.bf16.mxu0 0
        %3395 = vmatpush1.bf16.msra.mxu0 %v3374
        %3396 = vmatprep.subr.bf16.mxu0 0
        %3397 = vmatpush1.bf16.msra.mxu0 %v3375
        %3398 = vmatprep.subr.bf16.mxu0 0
        %3399 = vmatpush1.bf16.msra.mxu0 %v3376
        %3400 = vmatprep.subr.bf16.mxu0 0
        %3401 = vmatpush1.bf16.msra.mxu0 %v3377
        %3402 = vmatprep.subr.bf16.mxu0 0
        %3403 = vmatpush1.bf16.msra.mxu0 0
        %3404 = vmatprep.subr.bf16.mxu0 0
        %3405 = vmatpush1.bf16.msra.mxu0 0
        %3406 = vmatprep.subr.bf16.mxu0 0
        %3407 = vmatpush1.bf16.msra.mxu0 0
        %3408 = vmatprep.subr.bf16.mxu0 0
        %3409 = vmatpush1.bf16.msra.mxu0 0
        %3410 = vmatprep.subr.bf16.mxu0 0
        %3411 = vmatpush1.bf16.msra.mxu0 0
        %3412 = vmatprep.subr.bf16.mxu0 0
        %3413 = vmatpush1.bf16.msra.mxu0 0
        %3414 = vmatprep.subr.bf16.mxu0 0
        %3415 = vmatpush1.bf16.msra.mxu0 0
        %3416 = vmatprep.subr.bf16.mxu0 0
        %3417 = vmatpush1.bf16.msra.mxu0 0
        %3418 = vmatprep.mubr.bf16.mxu0 0
        %3419 = vmatmul.mubr.bf16.gmra.mrb[0].mxu0 %v3317
        %v3420 = vpop.f32.mrb[0].mxu0
        %v3421 = vadd.f32 0.0, %v3420
        %v3422 = vpop.f32.mrb[0].mxu0
        %v3423 = vpop.f32.mrb[0].mxu0
        %v3424 = vadd.f32 0.0, %v3423
        %v3425 = vpop.f32.mrb[0].mxu0
        %3426 = vmatprep.mubr.bf16.mxu0 0
        %3427 = vmatmul.mubr.bf16.gmra.mrb[0].mxu0 %v3318
        %v3428 = vpop.f32.mrb[0].mxu0
        %v3429 = vadd.f32 0.0, %v3428
        %v3430 = vpop.f32.mrb[0].mxu0
        %v3431 = vpop.f32.mrb[0].mxu0
        %v3432 = vadd.f32 0.0, %v3431
        %v3433 = vpop.f32.mrb[0].mxu0
        %3434 = vmatprep.mubr.bf16.mxu0 0
        %3435 = vmatmul.mubr.bf16.gmra.mrb[0].mxu0 %v3319
        %v3436 = vpop.f32.mrb[0].mxu0
        %v3437 = vadd.f32 0.0, %v3436
        %v3438 = vpop.f32.mrb[0].mxu0
        %v3439 = vpop.f32.mrb[0].mxu0
        %v3440 = vadd.f32 0.0, %v3439
        %v3441 = vpop.f32.mrb[0].mxu0
        %3442 = vmatprep.mubr.bf16.mxu0 0
        %3443 = vmatmul.mubr.bf16.gmra.mrb[0].mxu0 %v3320
        %v3444 = vpop.f32.mrb[0].mxu0
        %v3445 = vadd.f32 0.0, %v3444
        %v3446 = vpop.f32.mrb[0].mxu0
        %v3447 = vpop.f32.mrb[0].mxu0
        %v3448 = vadd.f32 0.0, %v3447
        %v3449 = vpop.f32.mrb[0].mxu0
        %3450 = vmatprep.mubr.bf16.mxu0 0
        %3451 = vmatmul.mubr.bf16.gmra.mrb[0].mxu0 %v3321
        %v3452 = vpop.f32.mrb[0].mxu0
        %v3453 = vadd.f32 0.0, %v3452
        %v3454 = vpop.f32.mrb[0].mxu0
        %v3455 = vpop.f32.mrb[0].mxu0
        %v3456 = vadd.f32 0.0, %v3455
        %v3457 = vpop.f32.mrb[0].mxu0
        %3458 = vdwg.mxu0
        %v3475 = vunpack.c.l.b16 %v2584
        %v3476 = vunpack.c.l.b16 %v2585
        %v3477 = vunpack.c.l.b16 %v2586
        %v3478 = vunpack.c.l.b16 %v2587
        %v3479 = vunpack.c.l.b16 %v2588
        %v3480 = vunpack.c.l.b16 %v2589
        %v3481 = vunpack.c.l.b16 %v2590
        %v3482 = vunpack.c.l.b16 %v2591
        %v3483 = vunpack.c.l.b16 %v2592
        %v3484 = vunpack.c.l.b16 %v2593
        %v3485 = vunpack.c.l.b16 %v2594
        %v3486 = vunpack.c.l.b16 %v2595
        %v3487 = vunpack.c.l.b16 %v2596
        %v3488 = vunpack.c.l.b16 %v2597
        %v3489 = vunpack.c.l.b16 %v2598
        %v3490 = vunpack.c.l.b16 %v2599
        %v3491 = vpack.c.b16 %v3476, %v3475
        %v3492 = vpack.c.b16 %v3478, %v3477
        %v3493 = vpack.c.b16 %v3480, %v3479
        %v3494 = vpack.c.b16 %v3482, %v3481
        %v3495 = vpack.c.b16 %v3484, %v3483
        %v3496 = vpack.c.b16 %v3486, %v3485
        %v3497 = vpack.c.b16 %v3488, %v3487
        %v3498 = vpack.c.b16 %v3490, %v3489
        %3507 = vmatprep.subr.bf16.mxu0 0
        %3508 = vmatpush1.bf16.msra.mxu0 %v3491
        %3509 = vmatprep.subr.bf16.mxu0 0
        %3510 = vmatpush1.bf16.msra.mxu0 %v3492
        %3511 = vmatprep.subr.bf16.mxu0 0
        %3512 = vmatpush1.bf16.msra.mxu0 %v3493
        %3513 = vmatprep.subr.bf16.mxu0 0
        %3514 = vmatpush1.bf16.msra.mxu0 %v3494
        %3515 = vmatprep.subr.bf16.mxu0 0
        %3516 = vmatpush1.bf16.msra.mxu0 %v3495
        %3517 = vmatprep.subr.bf16.mxu0 0
        %3518 = vmatpush1.bf16.msra.mxu0 %v3496
        %3519 = vmatprep.subr.bf16.mxu0 0
        %3520 = vmatpush1.bf16.msra.mxu0 %v3497
        %3521 = vmatprep.subr.bf16.mxu0 0
        %3522 = vmatpush1.bf16.msra.mxu0 %v3498
        %3523 = vmatprep.subr.bf16.mxu0 0
        %3524 = vmatpush1.bf16.msra.mxu0 0
        %3525 = vmatprep.subr.bf16.mxu0 0
        %3526 = vmatpush1.bf16.msra.mxu0 0
        %3527 = vmatprep.subr.bf16.mxu0 0
        %3528 = vmatpush1.bf16.msra.mxu0 0
        %3529 = vmatprep.subr.bf16.mxu0 0
        %3530 = vmatpush1.bf16.msra.mxu0 0
        %3531 = vmatprep.subr.bf16.mxu0 0
        %3532 = vmatpush1.bf16.msra.mxu0 0
        %3533 = vmatprep.subr.bf16.mxu0 0
        %3534 = vmatpush1.bf16.msra.mxu0 0
        %3535 = vmatprep.subr.bf16.mxu0 0
        %3536 = vmatpush1.bf16.msra.mxu0 0
        %3537 = vmatprep.subr.bf16.mxu0 0
        %3538 = vmatpush1.bf16.msra.mxu0 0
        %3539 = vmatprep.mubr.bf16.mxu0 0
        %3540 = vmatmul.mubr.bf16.gmra.mrb[0].mxu0 %v2579
        %v3541 = vpop.f32.mrb[0].mxu0
        %v3542 = vadd.f32 %v3421, %v3541
        %v3543 = vpop.f32.mrb[0].mxu0
        %v3544 = vpop.f32.mrb[0].mxu0
        %v3545 = vadd.f32 %v3424, %v3544
        %v3546 = vpop.f32.mrb[0].mxu0
        %3547 = vmatprep.mubr.bf16.mxu0 0
        %3548 = vmatmul.mubr.bf16.gmra.mrb[0].mxu0 %v2580
        %v3549 = vpop.f32.mrb[0].mxu0
        %v3550 = vadd.f32 %v3429, %v3549
        %v3551 = vpop.f32.mrb[0].mxu0
        %v3552 = vpop.f32.mrb[0].mxu0
        %v3553 = vadd.f32 %v3432, %v3552
        %v3554 = vpop.f32.mrb[0].mxu0
        %3555 = vmatprep.mubr.bf16.mxu0 0
        %3556 = vmatmul.mubr.bf16.gmra.mrb[0].mxu0 %v2581
        %v3557 = vpop.f32.mrb[0].mxu0
        %v3558 = vadd.f32 %v3437, %v3557
        %v3559 = vpop.f32.mrb[0].mxu0
        %v3560 = vpop.f32.mrb[0].mxu0
        %v3561 = vadd.f32 %v3440, %v3560
        %v3562 = vpop.f32.mrb[0].mxu0
        %3563 = vmatprep.mubr.bf16.mxu0 0
        %3564 = vmatmul.mubr.bf16.gmra.mrb[0].mxu0 %v2582
        %v3565 = vpop.f32.mrb[0].mxu0
        %v3566 = vadd.f32 %v3445, %v3565
        %v3567 = vpop.f32.mrb[0].mxu0
        %v3568 = vpop.f32.mrb[0].mxu0
        %v3569 = vadd.f32 %v3448, %v3568
        %v3570 = vpop.f32.mrb[0].mxu0
        %3571 = vmatprep.mubr.bf16.mxu0 0
        %3572 = vmatmul.mubr.bf16.gmra.mrb[0].mxu0 %v2583
        %v3573 = vpop.f32.mrb[0].mxu0
        %v3574 = vadd.f32 %v3453, %v3573
        %v3575 = vpop.f32.mrb[0].mxu0
        %v3576 = vpop.f32.mrb[0].mxu0
        %v3577 = vadd.f32 %v3456, %v3576
        %v3578 = vpop.f32.mrb[0].mxu0
        %3579 = vdwg.mxu0
        %v3580 = vld [vmem:[#allocation2 + $0x1d8] sm:$0xf]
        %v3581 = vld [vmem:[#allocation2 + $0x1dc] sm:$0xf]
        %v3582 = vld [vmem:[#allocation2 + $0x1e0] sm:$0xf]
        %v3583 = vld [vmem:[#allocation2 + $0x1e4] sm:$0xf]
        %v3584 = vld [vmem:[#allocation2 + $0x1e8] sm:$0xf]
        %v3585 = vld [vmem:[#allocation2 + $0x1ec] sm:$0xf]
        %v3586 = vld [vmem:[#allocation2 + $0x1f0] sm:$0xf]
        %v3587 = vld [vmem:[#allocation2 + $0x1f4] sm:$0xf]
        %v3588 = vld [vmem:[#allocation2 + $0x1f8] sm:$0xf]
        %v3589 = vld [vmem:[#allocation2 + $0x1fc] sm:$0xf]
        %v3590 = vld [vmem:[#allocation2 + $0x200] sm:$0xf]
        %v3591 = vld [vmem:[#allocation2 + $0x204] sm:$0xf]
        %v3592 = vld [vmem:[#allocation2 + $0x208] sm:$0xf]
        %v3593 = vld [vmem:[#allocation2 + $0x20c] sm:$0xf]
        %v3594 = vld [vmem:[#allocation2 + $0x210] sm:$0xf]
        %v3595 = vld [vmem:[#allocation2 + $0x214] sm:$0xf]
        %v3596 = vld [vmem:[%s2 + $0x7] sm:$0x1]
        %v3597 = vlaneseq
        %v3598 = vshrl.u32 %v3597, 7
        %v3599 = vsub.s32 0, %v3598
        %v3600 = vrot.slane %v3596, %v3599
        %v3617 = vunpack.c.l.b16 %v3580
        %v3618 = vunpack.c.l.b16 %v3581
        %v3619 = vunpack.c.l.b16 %v3582
        %v3620 = vunpack.c.l.b16 %v3583
        %v3621 = vunpack.c.l.b16 %v3584
        %v3622 = vunpack.c.l.b16 %v3585
        %v3623 = vunpack.c.l.b16 %v3586
        %v3624 = vunpack.c.l.b16 %v3587
        %v3625 = vunpack.c.l.b16 %v3588
        %v3626 = vunpack.c.l.b16 %v3589
        %v3627 = vunpack.c.l.b16 %v3590
        %v3628 = vunpack.c.l.b16 %v3591
        %v3629 = vunpack.c.l.b16 %v3592
        %v3630 = vunpack.c.l.b16 %v3593
        %v3631 = vunpack.c.l.b16 %v3594
        %v3632 = vunpack.c.l.b16 %v3595
        %v3633 = vpack.c.b16 %v3618, %v3617
        %v3634 = vpack.c.b16 %v3620, %v3619
        %v3635 = vpack.c.b16 %v3622, %v3621
        %v3636 = vpack.c.b16 %v3624, %v3623
        %v3637 = vpack.c.b16 %v3626, %v3625
        %v3638 = vpack.c.b16 %v3628, %v3627
        %v3639 = vpack.c.b16 %v3630, %v3629
        %v3640 = vpack.c.b16 %v3632, %v3631
        %3649 = vmatprep.subr.bf16.mxu0 0
        %3650 = vmatpush1.bf16.msra.mxu0 %v3633
        %3651 = vmatprep.subr.bf16.mxu0 0
        %3652 = vmatpush1.bf16.msra.mxu0 %v3634
        %3653 = vmatprep.subr.bf16.mxu0 0
        %3654 = vmatpush1.bf16.msra.mxu0 %v3635
        %3655 = vmatprep.subr.bf16.mxu0 0
        %3656 = vmatpush1.bf16.msra.mxu0 %v3636
        %3657 = vmatprep.subr.bf16.mxu0 0
        %3658 = vmatpush1.bf16.msra.mxu0 %v3637
        %3659 = vmatprep.subr.bf16.mxu0 0
        %3660 = vmatpush1.bf16.msra.mxu0 %v3638
        %3661 = vmatprep.subr.bf16.mxu0 0
        %3662 = vmatpush1.bf16.msra.mxu0 %v3639
        %3663 = vmatprep.subr.bf16.mxu0 0
        %3664 = vmatpush1.bf16.msra.mxu0 %v3640
        %3665 = vmatprep.subr.bf16.mxu0 0
        %3666 = vmatpush1.bf16.msra.mxu0 0
        %3667 = vmatprep.subr.bf16.mxu0 0
        %3668 = vmatpush1.bf16.msra.mxu0 0
        %3669 = vmatprep.subr.bf16.mxu0 0
        %3670 = vmatpush1.bf16.msra.mxu0 0
        %3671 = vmatprep.subr.bf16.mxu0 0
        %3672 = vmatpush1.bf16.msra.mxu0 0
        %3673 = vmatprep.subr.bf16.mxu0 0
        %3674 = vmatpush1.bf16.msra.mxu0 0
        %3675 = vmatprep.subr.bf16.mxu0 0
        %3676 = vmatpush1.bf16.msra.mxu0 0
        %3677 = vmatprep.subr.bf16.mxu0 0
        %3678 = vmatpush1.bf16.msra.mxu0 0
        %3679 = vmatprep.subr.bf16.mxu0 0
        %3680 = vmatpush1.bf16.msra.mxu0 0
        %3681 = vmatprep.mubr.bf16.mxu0 0
        %3682 = vmatmul.mubr.bf16.gmra.mrb[0].mxu0 %v1856
        %v3683 = vpop.f32.mrb[0].mxu0
        %v3684 = vadd.f32 %v3600, %v3683
        %v3685 = vpop.f32.mrb[0].mxu0
        %v3686 = vpop.f32.mrb[0].mxu0
        %v3687 = vadd.f32 %v3600, %v3686
        %v3688 = vpop.f32.mrb[0].mxu0
        %3689 = vmatprep.mubr.bf16.mxu0 0
        %3690 = vmatmul.mubr.bf16.gmra.mrb[0].mxu0 %v1857
        %v3691 = vpop.f32.mrb[0].mxu0
        %v3692 = vadd.f32 %v3600, %v3691
        %v3693 = vpop.f32.mrb[0].mxu0
        %v3694 = vpop.f32.mrb[0].mxu0
        %v3695 = vadd.f32 %v3600, %v3694
        %v3696 = vpop.f32.mrb[0].mxu0
        %3697 = vmatprep.mubr.bf16.mxu0 0
        %3698 = vmatmul.mubr.bf16.gmra.mrb[0].mxu0 %v1858
        %v3699 = vpop.f32.mrb[0].mxu0
        %v3700 = vadd.f32 %v3600, %v3699
        %v3701 = vpop.f32.mrb[0].mxu0
        %v3702 = vpop.f32.mrb[0].mxu0
        %v3703 = vadd.f32 %v3600, %v3702
        %v3704 = vpop.f32.mrb[0].mxu0
        %3705 = vmatprep.mubr.bf16.mxu0 0
        %3706 = vmatmul.mubr.bf16.gmra.mrb[0].mxu0 %v1859
        %v3707 = vpop.f32.mrb[0].mxu0
        %v3708 = vadd.f32 %v3600, %v3707
        %v3709 = vpop.f32.mrb[0].mxu0
        %v3710 = vpop.f32.mrb[0].mxu0
        %v3711 = vadd.f32 %v3600, %v3710
        %v3712 = vpop.f32.mrb[0].mxu0
        %3713 = vmatprep.mubr.bf16.mxu0 0
        %3714 = vmatmul.mubr.bf16.gmra.mrb[0].mxu0 %v1860
        %v3715 = vpop.f32.mrb[0].mxu0
        %v3716 = vadd.f32 %v3600, %v3715
        %v3717 = vpop.f32.mrb[0].mxu0
        %v3718 = vpop.f32.mrb[0].mxu0
        %v3719 = vadd.f32 %v3600, %v3718
        %v3720 = vpop.f32.mrb[0].mxu0
        %3721 = vdwg.mxu0
        %v3722 = vld [vmem:[#allocation2 + $0x2d8] sm:$0xf]
        %v3723 = vld [vmem:[#allocation2 + $0x2dc] sm:$0xf]
        %v3724 = vld [vmem:[#allocation2 + $0x2e0] sm:$0xf]
        %v3725 = vld [vmem:[#allocation2 + $0x2e4] sm:$0xf]
        %v3726 = vld [vmem:[#allocation2 + $0x2e8] sm:$0xf]
        %v3727 = vld [vmem:[#allocation2 + $0x2ec] sm:$0xf]
        %v3728 = vld [vmem:[#allocation2 + $0x2f0] sm:$0xf]
        %v3729 = vld [vmem:[#allocation2 + $0x2f4] sm:$0xf]
        %v3730 = vld [vmem:[#allocation2 + $0x2f8] sm:$0xf]
        %v3731 = vld [vmem:[#allocation2 + $0x2fc] sm:$0xf]
        %v3732 = vld [vmem:[#allocation2 + $0x300] sm:$0xf]
        %v3733 = vld [vmem:[#allocation2 + $0x304] sm:$0xf]
        %v3734 = vld [vmem:[#allocation2 + $0x308] sm:$0xf]
        %v3735 = vld [vmem:[#allocation2 + $0x30c] sm:$0xf]
        %v3736 = vld [vmem:[#allocation2 + $0x310] sm:$0xf]
        %v3737 = vld [vmem:[#allocation2 + $0x314] sm:$0xf]
        %v3738 = vld [vmem:[%s2 + $0xb] sm:$0x1]
        %v3739 = vlaneseq
        %v3740 = vshrl.u32 %v3739, 7
        %v3741 = vsub.s32 0, %v3740
        %v3742 = vrot.slane %v3738, %v3741
        %v3759 = vunpack.c.l.b16 %v3722
        %v3760 = vunpack.c.l.b16 %v3723
        %v3761 = vunpack.c.l.b16 %v3724
        %v3762 = vunpack.c.l.b16 %v3725
        %v3763 = vunpack.c.l.b16 %v3726
        %v3764 = vunpack.c.l.b16 %v3727
        %v3765 = vunpack.c.l.b16 %v3728
        %v3766 = vunpack.c.l.b16 %v3729
        %v3767 = vunpack.c.l.b16 %v3730
        %v3768 = vunpack.c.l.b16 %v3731
        %v3769 = vunpack.c.l.b16 %v3732
        %v3770 = vunpack.c.l.b16 %v3733
        %v3771 = vunpack.c.l.b16 %v3734
        %v3772 = vunpack.c.l.b16 %v3735
        %v3773 = vunpack.c.l.b16 %v3736
        %v3774 = vunpack.c.l.b16 %v3737
        %v3775 = vpack.c.b16 %v3760, %v3759
        %v3776 = vpack.c.b16 %v3762, %v3761
        %v3777 = vpack.c.b16 %v3764, %v3763
        %v3778 = vpack.c.b16 %v3766, %v3765
        %v3779 = vpack.c.b16 %v3768, %v3767
        %v3780 = vpack.c.b16 %v3770, %v3769
        %v3781 = vpack.c.b16 %v3772, %v3771
        %v3782 = vpack.c.b16 %v3774, %v3773
        %3791 = vmatprep.subr.bf16.mxu0 0
        %3792 = vmatpush1.bf16.msra.mxu0 %v3775
        %3793 = vmatprep.subr.bf16.mxu0 0
        %3794 = vmatpush1.bf16.msra.mxu0 %v3776
        %3795 = vmatprep.subr.bf16.mxu0 0
        %3796 = vmatpush1.bf16.msra.mxu0 %v3777
        %3797 = vmatprep.subr.bf16.mxu0 0
        %3798 = vmatpush1.bf16.msra.mxu0 %v3778
        %3799 = vmatprep.subr.bf16.mxu0 0
        %3800 = vmatpush1.bf16.msra.mxu0 %v3779
        %3801 = vmatprep.subr.bf16.mxu0 0
        %3802 = vmatpush1.bf16.msra.mxu0 %v3780
        %3803 = vmatprep.subr.bf16.mxu0 0
        %3804 = vmatpush1.bf16.msra.mxu0 %v3781
        %3805 = vmatprep.subr.bf16.mxu0 0
        %3806 = vmatpush1.bf16.msra.mxu0 %v3782
        %3807 = vmatprep.subr.bf16.mxu0 0
        %3808 = vmatpush1.bf16.msra.mxu0 0
        %3809 = vmatprep.subr.bf16.mxu0 0
        %3810 = vmatpush1.bf16.msra.mxu0 0
        %3811 = vmatprep.subr.bf16.mxu0 0
        %3812 = vmatpush1.bf16.msra.mxu0 0
        %3813 = vmatprep.subr.bf16.mxu0 0
        %3814 = vmatpush1.bf16.msra.mxu0 0
        %3815 = vmatprep.subr.bf16.mxu0 0
        %3816 = vmatpush1.bf16.msra.mxu0 0
        %3817 = vmatprep.subr.bf16.mxu0 0
        %3818 = vmatpush1.bf16.msra.mxu0 0
        %3819 = vmatprep.subr.bf16.mxu0 0
        %3820 = vmatpush1.bf16.msra.mxu0 0
        %3821 = vmatprep.subr.bf16.mxu0 0
        %3822 = vmatpush1.bf16.msra.mxu0 0
        %3823 = vmatprep.mubr.bf16.mxu0 0
        %3824 = vmatmul.mubr.bf16.gmra.mrb[0].mxu0 %v1856
        %v3825 = vpop.f32.mrb[0].mxu0
        %v3826 = vadd.f32 %v3742, %v3825
        %v3827 = vpop.f32.mrb[0].mxu0
        %v3828 = vpop.f32.mrb[0].mxu0
        %v3829 = vadd.f32 %v3742, %v3828
        %v3830 = vpop.f32.mrb[0].mxu0
        %3831 = vmatprep.mubr.bf16.mxu0 0
        %3832 = vmatmul.mubr.bf16.gmra.mrb[0].mxu0 %v1857
        %v3833 = vpop.f32.mrb[0].mxu0
        %v3834 = vadd.f32 %v3742, %v3833
        %v3835 = vpop.f32.mrb[0].mxu0
        %v3836 = vpop.f32.mrb[0].mxu0
        %v3837 = vadd.f32 %v3742, %v3836
        %v3838 = vpop.f32.mrb[0].mxu0
        %3839 = vmatprep.mubr.bf16.mxu0 0
        %3840 = vmatmul.mubr.bf16.gmra.mrb[0].mxu0 %v1858
        %v3841 = vpop.f32.mrb[0].mxu0
        %v3842 = vadd.f32 %v3742, %v3841
        %v3843 = vpop.f32.mrb[0].mxu0
        %v3844 = vpop.f32.mrb[0].mxu0
        %v3845 = vadd.f32 %v3742, %v3844
        %v3846 = vpop.f32.mrb[0].mxu0
        %3847 = vmatprep.mubr.bf16.mxu0 0
        %3848 = vmatmul.mubr.bf16.gmra.mrb[0].mxu0 %v1859
        %v3849 = vpop.f32.mrb[0].mxu0
        %v3850 = vadd.f32 %v3742, %v3849
        %v3851 = vpop.f32.mrb[0].mxu0
        %v3852 = vpop.f32.mrb[0].mxu0
        %v3853 = vadd.f32 %v3742, %v3852
        %v3854 = vpop.f32.mrb[0].mxu0
        %3855 = vmatprep.mubr.bf16.mxu0 0
        %3856 = vmatmul.mubr.bf16.gmra.mrb[0].mxu0 %v1860
        %v3857 = vpop.f32.mrb[0].mxu0
        %v3858 = vadd.f32 %v3742, %v3857
        %v3859 = vpop.f32.mrb[0].mxu0
        %v3860 = vpop.f32.mrb[0].mxu0
        %v3861 = vadd.f32 %v3742, %v3860
        %v3862 = vpop.f32.mrb[0].mxu0
        %3863 = vdwg.mxu0
        %v3864 = vld [vmem:[#allocation2 + $0x3d8] sm:$0xf]
        %v3865 = vld [vmem:[#allocation2 + $0x3dc] sm:$0xf]
        %v3866 = vld [vmem:[#allocation2 + $0x3e0] sm:$0xf]
        %v3867 = vld [vmem:[#allocation2 + $0x3e4] sm:$0xf]
        %v3868 = vld [vmem:[#allocation2 + $0x3e8] sm:$0xf]
        %v3869 = vld [vmem:[#allocation2 + $0x3ec] sm:$0xf]
        %v3870 = vld [vmem:[#allocation2 + $0x3f0] sm:$0xf]
        %v3871 = vld [vmem:[#allocation2 + $0x3f4] sm:$0xf]
        %v3872 = vld [vmem:[#allocation2 + $0x3f8] sm:$0xf]
        %v3873 = vld [vmem:[#allocation2 + $0x3fc] sm:$0xf]
        %v3874 = vld [vmem:[#allocation2 + $0x400] sm:$0xf]
        %v3875 = vld [vmem:[#allocation2 + $0x404] sm:$0xf]
        %v3876 = vld [vmem:[#allocation2 + $0x408] sm:$0xf]
        %v3877 = vld [vmem:[#allocation2 + $0x40c] sm:$0xf]
        %v3878 = vld [vmem:[#allocation2 + $0x410] sm:$0xf]
        %v3879 = vld [vmem:[#allocation2 + $0x414] sm:$0xf]
        %v3880 = vld [vmem:[%s2 + $0xf] sm:$0x1]
        %v3881 = vlaneseq
        %v3882 = vshrl.u32 %v3881, 7
        %v3883 = vsub.s32 0, %v3882
        %v3884 = vrot.slane %v3880, %v3883
        %v3901 = vunpack.c.l.b16 %v3864
        %v3902 = vunpack.c.l.b16 %v3865
        %v3903 = vunpack.c.l.b16 %v3866
        %v3904 = vunpack.c.l.b16 %v3867
        %v3905 = vunpack.c.l.b16 %v3868
        %v3906 = vunpack.c.l.b16 %v3869
        %v3907 = vunpack.c.l.b16 %v3870
        %v3908 = vunpack.c.l.b16 %v3871
        %v3909 = vunpack.c.l.b16 %v3872
        %v3910 = vunpack.c.l.b16 %v3873
        %v3911 = vunpack.c.l.b16 %v3874
        %v3912 = vunpack.c.l.b16 %v3875
        %v3913 = vunpack.c.l.b16 %v3876
        %v3914 = vunpack.c.l.b16 %v3877
        %v3915 = vunpack.c.l.b16 %v3878
        %v3916 = vunpack.c.l.b16 %v3879
        %v3917 = vpack.c.b16 %v3902, %v3901
        %v3918 = vpack.c.b16 %v3904, %v3903
        %v3919 = vpack.c.b16 %v3906, %v3905
        %v3920 = vpack.c.b16 %v3908, %v3907
        %v3921 = vpack.c.b16 %v3910, %v3909
        %v3922 = vpack.c.b16 %v3912, %v3911
        %v3923 = vpack.c.b16 %v3914, %v3913
        %v3924 = vpack.c.b16 %v3916, %v3915
        %3933 = vmatprep.subr.bf16.mxu0 0
        %3934 = vmatpush1.bf16.msra.mxu0 %v3917
        %3935 = vmatprep.subr.bf16.mxu0 0
        %3936 = vmatpush1.bf16.msra.mxu0 %v3918
        %3937 = vmatprep.subr.bf16.mxu0 0
        %3938 = vmatpush1.bf16.msra.mxu0 %v3919
        %3939 = vmatprep.subr.bf16.mxu0 0
        %3940 = vmatpush1.bf16.msra.mxu0 %v3920
        %3941 = vmatprep.subr.bf16.mxu0 0
        %3942 = vmatpush1.bf16.msra.mxu0 %v3921
        %3943 = vmatprep.subr.bf16.mxu0 0
        %3944 = vmatpush1.bf16.msra.mxu0 %v3922
        %3945 = vmatprep.subr.bf16.mxu0 0
        %3946 = vmatpush1.bf16.msra.mxu0 %v3923
        %3947 = vmatprep.subr.bf16.mxu0 0
        %3948 = vmatpush1.bf16.msra.mxu0 %v3924
        %3949 = vmatprep.subr.bf16.mxu0 0
        %3950 = vmatpush1.bf16.msra.mxu0 0
        %3951 = vmatprep.subr.bf16.mxu0 0
        %3952 = vmatpush1.bf16.msra.mxu0 0
        %3953 = vmatprep.subr.bf16.mxu0 0
        %3954 = vmatpush1.bf16.msra.mxu0 0
        %3955 = vmatprep.subr.bf16.mxu0 0
        %3956 = vmatpush1.bf16.msra.mxu0 0
        %3957 = vmatprep.subr.bf16.mxu0 0
        %3958 = vmatpush1.bf16.msra.mxu0 0
        %3959 = vmatprep.subr.bf16.mxu0 0
        %3960 = vmatpush1.bf16.msra.mxu0 0
        %3961 = vmatprep.subr.bf16.mxu0 0
        %3962 = vmatpush1.bf16.msra.mxu0 0
        %3963 = vmatprep.subr.bf16.mxu0 0
        %3964 = vmatpush1.bf16.msra.mxu0 0
        %3965 = vmatprep.mubr.bf16.mxu0 0
        %3966 = vmatmul.mubr.bf16.gmra.mrb[0].mxu0 %v1856
        %v3967 = vpop.f32.mrb[0].mxu0
        %v3968 = vadd.f32 %v3884, %v3967
        %v3969 = vpop.f32.mrb[0].mxu0
        %v3970 = vpop.f32.mrb[0].mxu0
        %v3971 = vadd.f32 %v3884, %v3970
        %v3972 = vpop.f32.mrb[0].mxu0
        %3973 = vmatprep.mubr.bf16.mxu0 0
        %3974 = vmatmul.mubr.bf16.gmra.mrb[0].mxu0 %v1857
        %v3975 = vpop.f32.mrb[0].mxu0
        %v3976 = vadd.f32 %v3884, %v3975
        %v3977 = vpop.f32.mrb[0].mxu0
        %v3978 = vpop.f32.mrb[0].mxu0
        %v3979 = vadd.f32 %v3884, %v3978
        %v3980 = vpop.f32.mrb[0].mxu0
        %3981 = vmatprep.mubr.bf16.mxu0 0
        %3982 = vmatmul.mubr.bf16.gmra.mrb[0].mxu0 %v1858
        %v3983 = vpop.f32.mrb[0].mxu0
        %v3984 = vadd.f32 %v3884, %v3983
        %v3985 = vpop.f32.mrb[0].mxu0
        %v3986 = vpop.f32.mrb[0].mxu0
        %v3987 = vadd.f32 %v3884, %v3986
        %v3988 = vpop.f32.mrb[0].mxu0
        %3989 = vmatprep.mubr.bf16.mxu0 0
        %3990 = vmatmul.mubr.bf16.gmra.mrb[0].mxu0 %v1859
        %v3991 = vpop.f32.mrb[0].mxu0
        %v3992 = vadd.f32 %v3884, %v3991
        %v3993 = vpop.f32.mrb[0].mxu0
        %v3994 = vpop.f32.mrb[0].mxu0
        %v3995 = vadd.f32 %v3884, %v3994
        %v3996 = vpop.f32.mrb[0].mxu0
        %3997 = vmatprep.mubr.bf16.mxu0 0
        %3998 = vmatmul.mubr.bf16.gmra.mrb[0].mxu0 %v1860
        %v3999 = vpop.f32.mrb[0].mxu0
        %v4000 = vadd.f32 %v3884, %v3999
        %v4001 = vpop.f32.mrb[0].mxu0
        %v4002 = vpop.f32.mrb[0].mxu0
        %v4003 = vadd.f32 %v3884, %v4002
        %v4004 = vpop.f32.mrb[0].mxu0
        %4005 = vdwg.mxu0
        %v4006 = vpack.c.bf16 %v3687, %v3684
        %v4007 = vpack.c.bf16 %v3695, %v3692
        %v4008 = vpack.c.bf16 %v3703, %v3700
        %v4009 = vpack.c.bf16 %v3711, %v3708
        %v4010 = vpack.c.bf16 %v3719, %v3716
        %v4011 = vpack.c.bf16 %v3829, %v3826
        %v4012 = vpack.c.bf16 %v3837, %v3834
        %v4013 = vpack.c.bf16 %v3845, %v3842
        %v4014 = vpack.c.bf16 %v3853, %v3850
        %v4015 = vpack.c.bf16 %v3861, %v3858
        %4016 = vmatprep.subr.bf16.mxu0 0
        %4017 = vmatpush1.bf16.xpose.msra.mxu0 %v4011
        %4018 = vmatprep.subr.bf16.mxu0 0
        %4019 = vmatpush1.bf16.xpose.msra.mxu0 %v4012
        %4020 = vmatprep.subr.bf16.mxu0 0
        %4021 = vmatpush1.bf16.xpose.msra.mxu0 %v4013
        %4022 = vmatprep.subr.bf16.mxu0 0
        %4023 = vmatpush1.bf16.xpose.msra.mxu0 %v4014
        %4024 = vmatprep.subr.bf16.mxu0 0
        %4025 = vmatpush1.bf16.xpose.msra.mxu0 %v4015
        %4026 = vmatprep.subr.bf16.mxu0 0
        %4027 = vmatpush1.bf16.xpose.msra.mxu0 0
        %4028 = vmatprep.subr.bf16.mxu0 0
        %4029 = vmatpush1.bf16.xpose.msra.mxu0 0
        %4030 = vmatprep.subr.bf16.mxu0 0
        %4031 = vmatpush1.bf16.xpose.msra.mxu0 0
        %4032 = vmatprep.subr.bf16.mxu0 0
        %4033 = vmatpush1.bf16.xpose.msra.mxu0 0
        %4034 = vmatprep.subr.bf16.mxu0 0
        %4035 = vmatpush1.bf16.xpose.msra.mxu0 0
        %4036 = vmatprep.subr.bf16.mxu0 0
        %4037 = vmatpush1.bf16.xpose.msra.mxu0 0
        %4038 = vmatprep.subr.bf16.mxu0 0
        %4039 = vmatpush1.bf16.xpose.msra.mxu0 0
        %4040 = vmatprep.subr.bf16.mxu0 0
        %4041 = vmatpush1.bf16.xpose.msra.mxu0 0
        %4042 = vmatprep.subr.bf16.mxu0 0
        %4043 = vmatpush1.bf16.xpose.msra.mxu0 0
        %4044 = vmatprep.subr.bf16.mxu0 0
        %4045 = vmatpush1.bf16.xpose.msra.mxu0 0
        %4046 = vmatprep.subr.bf16.mxu0 0
        %4047 = vmatpush1.bf16.xpose.msra.mxu0 0
        %4048 = vmatprep.mubr.bf16.mxu0 0
        %4049 = vmatmul.mubr.bf16.gmra.mrb[0].mxu0 %v4006
        %v4050 = vpop.f32.mrb[0].mxu0
        %v4051 = vadd.f32 %v1558, %v4050
        %v4052 = vpop.f32.mrb[0].mxu0
        %v4053 = vpop.f32.mrb[0].mxu0
        %v4054 = vadd.f32 %v1558, %v4053
        %v4055 = vpop.f32.mrb[0].mxu0
        %4056 = vmatprep.mubr.bf16.mxu0 0
        %4057 = vmatmul.mubr.bf16.gmra.mrb[0].mxu0 %v4007
        %v4058 = vpop.f32.mrb[0].mxu0
        %v4059 = vadd.f32 %v1558, %v4058
        %v4060 = vpop.f32.mrb[0].mxu0
        %v4061 = vpop.f32.mrb[0].mxu0
        %v4062 = vadd.f32 %v1558, %v4061
        %v4063 = vpop.f32.mrb[0].mxu0
        %4064 = vmatprep.mubr.bf16.mxu0 0
        %4065 = vmatmul.mubr.bf16.gmra.mrb[0].mxu0 %v4008
        %v4066 = vpop.f32.mrb[0].mxu0
        %v4067 = vadd.f32 %v1558, %v4066
        %v4068 = vpop.f32.mrb[0].mxu0
        %v4069 = vpop.f32.mrb[0].mxu0
        %v4070 = vadd.f32 %v1558, %v4069
        %v4071 = vpop.f32.mrb[0].mxu0
        %4072 = vmatprep.mubr.bf16.mxu0 0
        %4073 = vmatmul.mubr.bf16.gmra.mrb[0].mxu0 %v4009
        %v4074 = vpop.f32.mrb[0].mxu0
        %v4075 = vadd.f32 %v1558, %v4074
        %v4076 = vpop.f32.mrb[0].mxu0
        %v4077 = vpop.f32.mrb[0].mxu0
        %v4078 = vadd.f32 %v1558, %v4077
        %v4079 = vpop.f32.mrb[0].mxu0
        %4080 = vmatprep.mubr.bf16.mxu0 0
        %4081 = vmatmul.mubr.bf16.gmra.mrb[0].mxu0 %v4010
        %v4082 = vpop.f32.mrb[0].mxu0
        %v4083 = vadd.f32 %v1558, %v4082
        %v4084 = vpop.f32.mrb[0].mxu0
        %v4085 = vpop.f32.mrb[0].mxu0
        %v4086 = vadd.f32 %v1558, %v4085
        %v4087 = vpop.f32.mrb[0].mxu0
        %4088 = vdwg.mxu0
        %v4089 = vsel %vm2370, %v4051, -inf
        %4090 = vmax.xlane.f32.xlu0 %v4089
        %v4091 = vpop.xlane.xlu0 %4090
        %v4092 = vsel %vm2370, %v4054, -inf
        %4093 = vmax.xlane.f32.xlu0 %v4092
        %v4094 = vpop.xlane.xlu0 %4093
        %v4095 = vsel %vm2370, %v4059, -inf
        %4096 = vmax.xlane.f32.xlu0 %v4095
        %v4097 = vpop.xlane.xlu0 %4096
        %v4098 = vsel %vm2370, %v4062, -inf
        %4099 = vmax.xlane.f32.xlu0 %v4098
        %v4100 = vpop.xlane.xlu0 %4099
        %v4101 = vsel %vm2370, %v4067, -inf
        %4102 = vmax.xlane.f32.xlu0 %v4101
        %v4103 = vpop.xlane.xlu0 %4102
        %v4104 = vsel %vm2370, %v4070, -inf
        %4105 = vmax.xlane.f32.xlu0 %v4104
        %v4106 = vpop.xlane.xlu0 %4105
        %v4107 = vsel %vm2370, %v4075, -inf
        %4108 = vmax.xlane.f32.xlu0 %v4107
        %v4109 = vpop.xlane.xlu0 %4108
        %v4110 = vsel %vm2370, %v4078, -inf
        %4111 = vmax.xlane.f32.xlu0 %v4110
        %v4112 = vpop.xlane.xlu0 %4111
        %v4113 = vsel %vm2370, %v4083, -inf
        %4114 = vmax.xlane.f32.xlu0 %v4113
        %v4115 = vpop.xlane.xlu0 %4114
        %v4116 = vsel %vm2370, %v4086, -inf
        %4117 = vmax.xlane.f32.xlu0 %v4116
        %v4118 = vpop.xlane.xlu0 %4117
        %v4119 = vsub.f32 %v4051, %v4091
        %v4120 = vsub.f32 %v4054, %v4094
        %v4121 = vsub.f32 %v4059, %v4097
        %v4122 = vsub.f32 %v4062, %v4100
        %v4123 = vsub.f32 %v4067, %v4103
        %v4124 = vsub.f32 %v4070, %v4106
        %v4125 = vsub.f32 %v4075, %v4109
        %v4126 = vsub.f32 %v4078, %v4112
        %v4127 = vsub.f32 %v4083, %v4115
        %v4128 = vsub.f32 %v4086, %v4118
        %v4129 = vmul.f32 %v4119, 1.442695
        %v4130 = vpow.pop %v4129
        %v4131 = vmul.f32 %v4120, 1.442695
        %v4132 = vpow.pop %v4131
        %v4133 = vmul.f32 %v4121, 1.442695
        %v4134 = vpow.pop %v4133
        %v4135 = vmul.f32 %v4122, 1.442695
        %v4136 = vpow.pop %v4135
        %v4137 = vmul.f32 %v4123, 1.442695
        %v4138 = vpow.pop %v4137
        %v4139 = vmul.f32 %v4124, 1.442695
        %v4140 = vpow.pop %v4139
        %v4141 = vmul.f32 %v4125, 1.442695
        %v4142 = vpow.pop %v4141
        %v4143 = vmul.f32 %v4126, 1.442695
        %v4144 = vpow.pop %v4143
        %v4145 = vmul.f32 %v4127, 1.442695
        %v4146 = vpow.pop %v4145
        %v4147 = vmul.f32 %v4128, 1.442695
        %v4148 = vpow.pop %v4147
        %v4149 = vsel %vm2370, %v4130, 0.0
        %4150 = vadd.xlane.f32.xlu0 %v4149
        %v4151 = vpop.xlane.xlu0 %4150
        %v4152 = vsel %vm2370, %v4132, 0.0
        %4153 = vadd.xlane.f32.xlu0 %v4152
        %v4154 = vpop.xlane.xlu0 %4153
        %v4155 = vsel %vm2370, %v4134, 0.0
        %4156 = vadd.xlane.f32.xlu0 %v4155
        %v4157 = vpop.xlane.xlu0 %4156
        %v4158 = vsel %vm2370, %v4136, 0.0
        %4159 = vadd.xlane.f32.xlu0 %v4158
        %v4160 = vpop.xlane.xlu0 %4159
        %v4161 = vsel %vm2370, %v4138, 0.0
        %4162 = vadd.xlane.f32.xlu0 %v4161
        %v4163 = vpop.xlane.xlu0 %4162
        %v4164 = vsel %vm2370, %v4140, 0.0
        %4165 = vadd.xlane.f32.xlu0 %v4164
        %v4166 = vpop.xlane.xlu0 %4165
        %v4167 = vsel %vm2370, %v4142, 0.0
        %4168 = vadd.xlane.f32.xlu0 %v4167
        %v4169 = vpop.xlane.xlu0 %4168
        %v4170 = vsel %vm2370, %v4144, 0.0
        %4171 = vadd.xlane.f32.xlu0 %v4170
        %v4172 = vpop.xlane.xlu0 %4171
        %v4173 = vsel %vm2370, %v4146, 0.0
        %4174 = vadd.xlane.f32.xlu0 %v4173
        %v4175 = vpop.xlane.xlu0 %4174
        %v4176 = vsel %vm2370, %v4148, 0.0
        %4177 = vadd.xlane.f32.xlu0 %v4176
        %v4178 = vpop.xlane.xlu0 %4177
        %v4179 = vrcp.pop %v4151
        %v4180 = vrcp.pop %v4154
        %v4181 = vrcp.pop %v4157
        %v4182 = vrcp.pop %v4160
        %v4183 = vrcp.pop %v4163
        %v4184 = vrcp.pop %v4166
        %v4185 = vrcp.pop %v4169
        %v4186 = vrcp.pop %v4172
        %v4187 = vrcp.pop %v4175
        %v4188 = vrcp.pop %v4178
        %v4189 = vmul.f32 %v4130, %v4179
        %v4190 = vmul.f32 %v4132, %v4180
        %v4191 = vmul.f32 %v4134, %v4181
        %v4192 = vmul.f32 %v4136, %v4182
        %v4193 = vmul.f32 %v4138, %v4183
        %v4194 = vmul.f32 %v4140, %v4184
        %v4195 = vmul.f32 %v4142, %v4185
        %v4196 = vmul.f32 %v4144, %v4186
        %v4197 = vmul.f32 %v4146, %v4187
        %v4198 = vmul.f32 %v4148, %v4188
        %v4199 = vpack.c.bf16 %v4190, %v4189
        %v4200 = vpack.c.bf16 %v4192, %v4191
        %v4201 = vpack.c.bf16 %v4194, %v4193
        %v4202 = vpack.c.bf16 %v4196, %v4195
        %v4203 = vpack.c.bf16 %v4198, %v4197
        %v4204 = vpack.c.bf16 %v3971, %v3968
        %v4205 = vpack.c.bf16 %v3979, %v3976
        %v4206 = vpack.c.bf16 %v3987, %v3984
        %v4207 = vpack.c.bf16 %v3995, %v3992
        %v4208 = vpack.c.bf16 %v4003, %v4000
        %v4210 = vsel %vm2370, %v4199, 0
        %v4213 = vsel %vm2370, %v4200, 0
        %v4216 = vsel %vm2370, %v4201, 0
        %v4219 = vsel %vm2370, %v4202, 0
        %v4222 = vsel %vm2370, %v4203, 0
        %4224 = vmatprep.subr.bf16.mxu0 0
        %4225 = vmatpush1.bf16.msra.mxu0 %v4204
        %4226 = vmatprep.subr.bf16.mxu0 0
        %4227 = vmatpush1.bf16.msra.mxu0 %v4205
        %4228 = vmatprep.subr.bf16.mxu0 0
        %4229 = vmatpush1.bf16.msra.mxu0 %v4206
        %4230 = vmatprep.subr.bf16.mxu0 0
        %4231 = vmatpush1.bf16.msra.mxu0 %v4207
        %4232 = vmatprep.subr.bf16.mxu0 0
        %4233 = vmatpush1.bf16.msra.mxu0 %v4208
        %4234 = vmatprep.subr.bf16.mxu0 0
        %4235 = vmatpush1.bf16.msra.mxu0 0
        %4236 = vmatprep.subr.bf16.mxu0 0
        %4237 = vmatpush1.bf16.msra.mxu0 0
        %4238 = vmatprep.subr.bf16.mxu0 0
        %4239 = vmatpush1.bf16.msra.mxu0 0
        %4240 = vmatprep.subr.bf16.mxu0 0
        %4241 = vmatpush1.bf16.msra.mxu0 0
        %4242 = vmatprep.subr.bf16.mxu0 0
        %4243 = vmatpush1.bf16.msra.mxu0 0
        %4244 = vmatprep.subr.bf16.mxu0 0
        %4245 = vmatpush1.bf16.msra.mxu0 0
        %4246 = vmatprep.subr.bf16.mxu0 0
        %4247 = vmatpush1.bf16.msra.mxu0 0
        %4248 = vmatprep.subr.bf16.mxu0 0
        %4249 = vmatpush1.bf16.msra.mxu0 0
        %4250 = vmatprep.subr.bf16.mxu0 0
        %4251 = vmatpush1.bf16.msra.mxu0 0
        %4252 = vmatprep.subr.bf16.mxu0 0
        %4253 = vmatpush1.bf16.msra.mxu0 0
        %4254 = vmatprep.subr.bf16.mxu0 0
        %4255 = vmatpush1.bf16.msra.mxu0 0
        %4256 = vmatprep.mubr.bf16.mxu0 0
        %4257 = vmatmul.mubr.bf16.gmra.mrb[0].mxu0 %v4210
        %v4258 = vpop.f32.mrb[0].mxu0
        %v4259 = vadd.f32 0.0, %v4258
        %v4260 = vpop.f32.mrb[0].mxu0
        %v4261 = vpop.f32.mrb[0].mxu0
        %v4262 = vadd.f32 0.0, %v4261
        %v4263 = vpop.f32.mrb[0].mxu0
        %4264 = vmatprep.mubr.bf16.mxu0 0
        %4265 = vmatmul.mubr.bf16.gmra.mrb[0].mxu0 %v4213
        %v4266 = vpop.f32.mrb[0].mxu0
        %v4267 = vadd.f32 0.0, %v4266
        %v4268 = vpop.f32.mrb[0].mxu0
        %v4269 = vpop.f32.mrb[0].mxu0
        %v4270 = vadd.f32 0.0, %v4269
        %v4271 = vpop.f32.mrb[0].mxu0
        %4272 = vmatprep.mubr.bf16.mxu0 0
        %4273 = vmatmul.mubr.bf16.gmra.mrb[0].mxu0 %v4216
        %v4274 = vpop.f32.mrb[0].mxu0
        %v4275 = vadd.f32 0.0, %v4274
        %v4276 = vpop.f32.mrb[0].mxu0
        %v4277 = vpop.f32.mrb[0].mxu0
        %v4278 = vadd.f32 0.0, %v4277
        %v4279 = vpop.f32.mrb[0].mxu0
        %4280 = vmatprep.mubr.bf16.mxu0 0
        %4281 = vmatmul.mubr.bf16.gmra.mrb[0].mxu0 %v4219
        %v4282 = vpop.f32.mrb[0].mxu0
        %v4283 = vadd.f32 0.0, %v4282
        %v4284 = vpop.f32.mrb[0].mxu0
        %v4285 = vpop.f32.mrb[0].mxu0
        %v4286 = vadd.f32 0.0, %v4285
        %v4287 = vpop.f32.mrb[0].mxu0
        %4288 = vmatprep.mubr.bf16.mxu0 0
        %4289 = vmatmul.mubr.bf16.gmra.mrb[0].mxu0 %v4222
        %v4290 = vpop.f32.mrb[0].mxu0
        %v4291 = vadd.f32 0.0, %v4290
        %v4292 = vpop.f32.mrb[0].mxu0
        %v4293 = vpop.f32.mrb[0].mxu0
        %v4294 = vadd.f32 0.0, %v4293
        %v4295 = vpop.f32.mrb[0].mxu0
        %4296 = vdwg.mxu0
        %v4297 = vpack.c.bf16 %v4262, %v4259
        %v4298 = vpack.c.bf16 %v4270, %v4267
        %v4299 = vpack.c.bf16 %v4278, %v4275
        %v4300 = vpack.c.bf16 %v4286, %v4283
        %v4301 = vpack.c.bf16 %v4294, %v4291
        %v4302 = vld [vmem:[#allocation2 + $0x4d8] sm:$0xf]
        %v4303 = vld [vmem:[#allocation2 + $0x4dc] sm:$0xf]
        %v4304 = vld [vmem:[#allocation2 + $0x4e0] sm:$0xf]
        %v4305 = vld [vmem:[#allocation2 + $0x4e4] sm:$0xf]
        %v4306 = vld [vmem:[#allocation2 + $0x4e8] sm:$0xf]
        %v4307 = vld [vmem:[#allocation2 + $0x4ec] sm:$0xf]
        %v4308 = vld [vmem:[#allocation2 + $0x4f0] sm:$0xf]
        %v4309 = vld [vmem:[#allocation2 + $0x4f4] sm:$0xf]
        %v4310 = vld [vmem:[#allocation2 + $0x4f8] sm:$0xf]
        %v4311 = vld [vmem:[#allocation2 + $0x4fc] sm:$0xf]
        %v4312 = vld [vmem:[#allocation2 + $0x500] sm:$0xf]
        %v4313 = vld [vmem:[#allocation2 + $0x504] sm:$0xf]
        %v4314 = vld [vmem:[#allocation2 + $0x508] sm:$0xf]
        %v4315 = vld [vmem:[#allocation2 + $0x50c] sm:$0xf]
        %v4316 = vld [vmem:[#allocation2 + $0x510] sm:$0xf]
        %v4317 = vld [vmem:[#allocation2 + $0x514] sm:$0xf]
        %v4334 = vunpack.c.l.b16 %v4302
        %v4335 = vunpack.c.l.b16 %v4303
        %v4336 = vunpack.c.l.b16 %v4304
        %v4337 = vunpack.c.l.b16 %v4305
        %v4338 = vunpack.c.l.b16 %v4306
        %v4339 = vunpack.c.l.b16 %v4307
        %v4340 = vunpack.c.l.b16 %v4308
        %v4341 = vunpack.c.l.b16 %v4309
        %v4342 = vunpack.c.l.b16 %v4310
        %v4343 = vunpack.c.l.b16 %v4311
        %v4344 = vunpack.c.l.b16 %v4312
        %v4345 = vunpack.c.l.b16 %v4313
        %v4346 = vunpack.c.l.b16 %v4314
        %v4347 = vunpack.c.l.b16 %v4315
        %v4348 = vunpack.c.l.b16 %v4316
        %v4349 = vunpack.c.l.b16 %v4317
        %v4350 = vpack.c.b16 %v4335, %v4334
        %v4351 = vpack.c.b16 %v4337, %v4336
        %v4352 = vpack.c.b16 %v4339, %v4338
        %v4353 = vpack.c.b16 %v4341, %v4340
        %v4354 = vpack.c.b16 %v4343, %v4342
        %v4355 = vpack.c.b16 %v4345, %v4344
        %v4356 = vpack.c.b16 %v4347, %v4346
        %v4357 = vpack.c.b16 %v4349, %v4348
        %4366 = vmatprep.subr.bf16.mxu0 0
        %4367 = vmatpush1.bf16.msra.mxu0 %v4350
        %4368 = vmatprep.subr.bf16.mxu0 0
        %4369 = vmatpush1.bf16.msra.mxu0 %v4351
        %4370 = vmatprep.subr.bf16.mxu0 0
        %4371 = vmatpush1.bf16.msra.mxu0 %v4352
        %4372 = vmatprep.subr.bf16.mxu0 0
        %4373 = vmatpush1.bf16.msra.mxu0 %v4353
        %4374 = vmatprep.subr.bf16.mxu0 0
        %4375 = vmatpush1.bf16.msra.mxu0 %v4354
        %4376 = vmatprep.subr.bf16.mxu0 0
        %4377 = vmatpush1.bf16.msra.mxu0 %v4355
        %4378 = vmatprep.subr.bf16.mxu0 0
        %4379 = vmatpush1.bf16.msra.mxu0 %v4356
        %4380 = vmatprep.subr.bf16.mxu0 0
        %4381 = vmatpush1.bf16.msra.mxu0 %v4357
        %4382 = vmatprep.subr.bf16.mxu0 0
        %4383 = vmatpush1.bf16.msra.mxu0 0
        %4384 = vmatprep.subr.bf16.mxu0 0
        %4385 = vmatpush1.bf16.msra.mxu0 0
        %4386 = vmatprep.subr.bf16.mxu0 0
        %4387 = vmatpush1.bf16.msra.mxu0 0
        %4388 = vmatprep.subr.bf16.mxu0 0
        %4389 = vmatpush1.bf16.msra.mxu0 0
        %4390 = vmatprep.subr.bf16.mxu0 0
        %4391 = vmatpush1.bf16.msra.mxu0 0
        %4392 = vmatprep.subr.bf16.mxu0 0
        %4393 = vmatpush1.bf16.msra.mxu0 0
        %4394 = vmatprep.subr.bf16.mxu0 0
        %4395 = vmatpush1.bf16.msra.mxu0 0
        %4396 = vmatprep.subr.bf16.mxu0 0
        %4397 = vmatpush1.bf16.msra.mxu0 0
        %4398 = vmatprep.mubr.bf16.mxu0 0
        %4399 = vmatmul.mubr.bf16.gmra.mrb[0].mxu0 %v4297
        %v4400 = vpop.f32.mrb[0].mxu0
        %v4401 = vadd.f32 0.0, %v4400
        %v4402 = vpop.f32.mrb[0].mxu0
        %v4403 = vpop.f32.mrb[0].mxu0
        %v4404 = vadd.f32 0.0, %v4403
        %v4405 = vpop.f32.mrb[0].mxu0
        %4406 = vmatprep.mubr.bf16.mxu0 0
        %4407 = vmatmul.mubr.bf16.gmra.mrb[0].mxu0 %v4298
        %v4408 = vpop.f32.mrb[0].mxu0
        %v4409 = vadd.f32 0.0, %v4408
        %v4410 = vpop.f32.mrb[0].mxu0
        %v4411 = vpop.f32.mrb[0].mxu0
        %v4412 = vadd.f32 0.0, %v4411
        %v4413 = vpop.f32.mrb[0].mxu0
        %4414 = vmatprep.mubr.bf16.mxu0 0
        %4415 = vmatmul.mubr.bf16.gmra.mrb[0].mxu0 %v4299
        %v4416 = vpop.f32.mrb[0].mxu0
        %v4417 = vadd.f32 0.0, %v4416
        %v4418 = vpop.f32.mrb[0].mxu0
        %v4419 = vpop.f32.mrb[0].mxu0
        %v4420 = vadd.f32 0.0, %v4419
        %v4421 = vpop.f32.mrb[0].mxu0
        %4422 = vmatprep.mubr.bf16.mxu0 0
        %4423 = vmatmul.mubr.bf16.gmra.mrb[0].mxu0 %v4300
        %v4424 = vpop.f32.mrb[0].mxu0
        %v4425 = vadd.f32 0.0, %v4424
        %v4426 = vpop.f32.mrb[0].mxu0
        %v4427 = vpop.f32.mrb[0].mxu0
        %v4428 = vadd.f32 0.0, %v4427
        %v4429 = vpop.f32.mrb[0].mxu0
        %4430 = vmatprep.mubr.bf16.mxu0 0
        %4431 = vmatmul.mubr.bf16.gmra.mrb[0].mxu0 %v4301
        %v4432 = vpop.f32.mrb[0].mxu0
        %v4433 = vadd.f32 0.0, %v4432
        %v4434 = vpop.f32.mrb[0].mxu0
        %v4435 = vpop.f32.mrb[0].mxu0
        %v4436 = vadd.f32 0.0, %v4435
        %v4437 = vpop.f32.mrb[0].mxu0
        %4438 = vdwg.mxu0
        %v4439 = vadd.f32 %v3542, %v4401
        %v4440 = vadd.f32 %v3545, %v4404
        %v4441 = vadd.f32 %v3550, %v4409
        %v4442 = vadd.f32 %v3553, %v4412
        %v4443 = vadd.f32 %v3558, %v4417
        %v4444 = vadd.f32 %v3561, %v4420
        %v4445 = vadd.f32 %v3566, %v4425
        %v4446 = vadd.f32 %v3569, %v4428
        %v4447 = vadd.f32 %v3574, %v4433
        %v4448 = vadd.f32 %v3577, %v4436
        %v4449 = vld [vmem:[#allocation2 + $0x218] sm:$0xf]
        %v4450 = vld [vmem:[#allocation2 + $0x21c] sm:$0xf]
        %v4451 = vld [vmem:[#allocation2 + $0x220] sm:$0xf]
        %v4452 = vld [vmem:[#allocation2 + $0x224] sm:$0xf]
        %v4453 = vld [vmem:[#allocation2 + $0x228] sm:$0xf]
        %v4454 = vld [vmem:[#allocation2 + $0x22c] sm:$0xf]
        %v4455 = vld [vmem:[#allocation2 + $0x230] sm:$0xf]
        %v4456 = vld [vmem:[#allocation2 + $0x234] sm:$0xf]
        %v4457 = vld [vmem:[#allocation2 + $0x238] sm:$0xf]
        %v4458 = vld [vmem:[#allocation2 + $0x23c] sm:$0xf]
        %v4459 = vld [vmem:[#allocation2 + $0x240] sm:$0xf]
        %v4460 = vld [vmem:[#allocation2 + $0x244] sm:$0xf]
        %v4461 = vld [vmem:[#allocation2 + $0x248] sm:$0xf]
        %v4462 = vld [vmem:[#allocation2 + $0x24c] sm:$0xf]
        %v4463 = vld [vmem:[#allocation2 + $0x250] sm:$0xf]
        %v4464 = vld [vmem:[#allocation2 + $0x254] sm:$0xf]
        %v4465 = vld [vmem:[%s2 + $0x8] sm:$0x1]
        %v4466 = vlaneseq
        %v4467 = vshrl.u32 %v4466, 7
        %v4468 = vsub.s32 0, %v4467
        %v4469 = vrot.slane %v4465, %v4468
        %v4486 = vunpack.c.l.b16 %v4449
        %v4487 = vunpack.c.l.b16 %v4450
        %v4488 = vunpack.c.l.b16 %v4451
        %v4489 = vunpack.c.l.b16 %v4452
        %v4490 = vunpack.c.l.b16 %v4453
        %v4491 = vunpack.c.l.b16 %v4454
        %v4492 = vunpack.c.l.b16 %v4455
        %v4493 = vunpack.c.l.b16 %v4456
        %v4494 = vunpack.c.l.b16 %v4457
        %v4495 = vunpack.c.l.b16 %v4458
        %v4496 = vunpack.c.l.b16 %v4459
        %v4497 = vunpack.c.l.b16 %v4460
        %v4498 = vunpack.c.l.b16 %v4461
        %v4499 = vunpack.c.l.b16 %v4462
        %v4500 = vunpack.c.l.b16 %v4463
        %v4501 = vunpack.c.l.b16 %v4464
        %v4502 = vpack.c.b16 %v4487, %v4486
        %v4503 = vpack.c.b16 %v4489, %v4488
        %v4504 = vpack.c.b16 %v4491, %v4490
        %v4505 = vpack.c.b16 %v4493, %v4492
        %v4506 = vpack.c.b16 %v4495, %v4494
        %v4507 = vpack.c.b16 %v4497, %v4496
        %v4508 = vpack.c.b16 %v4499, %v4498
        %v4509 = vpack.c.b16 %v4501, %v4500
        %4518 = vmatprep.subr.bf16.mxu0 0
        %4519 = vmatpush1.bf16.msra.mxu0 %v4502
        %4520 = vmatprep.subr.bf16.mxu0 0
        %4521 = vmatpush1.bf16.msra.mxu0 %v4503
        %4522 = vmatprep.subr.bf16.mxu0 0
        %4523 = vmatpush1.bf16.msra.mxu0 %v4504
        %4524 = vmatprep.subr.bf16.mxu0 0
        %4525 = vmatpush1.bf16.msra.mxu0 %v4505
        %4526 = vmatprep.subr.bf16.mxu0 0
        %4527 = vmatpush1.bf16.msra.mxu0 %v4506
        %4528 = vmatprep.subr.bf16.mxu0 0
        %4529 = vmatpush1.bf16.msra.mxu0 %v4507
        %4530 = vmatprep.subr.bf16.mxu0 0
        %4531 = vmatpush1.bf16.msra.mxu0 %v4508
        %4532 = vmatprep.subr.bf16.mxu0 0
        %4533 = vmatpush1.bf16.msra.mxu0 %v4509
        %4534 = vmatprep.subr.bf16.mxu0 0
        %4535 = vmatpush1.bf16.msra.mxu0 0
        %4536 = vmatprep.subr.bf16.mxu0 0
        %4537 = vmatpush1.bf16.msra.mxu0 0
        %4538 = vmatprep.subr.bf16.mxu0 0
        %4539 = vmatpush1.bf16.msra.mxu0 0
        %4540 = vmatprep.subr.bf16.mxu0 0
        %4541 = vmatpush1.bf16.msra.mxu0 0
        %4542 = vmatprep.subr.bf16.mxu0 0
        %4543 = vmatpush1.bf16.msra.mxu0 0
        %4544 = vmatprep.subr.bf16.mxu0 0
        %4545 = vmatpush1.bf16.msra.mxu0 0
        %4546 = vmatprep.subr.bf16.mxu0 0
        %4547 = vmatpush1.bf16.msra.mxu0 0
        %4548 = vmatprep.subr.bf16.mxu0 0
        %4549 = vmatpush1.bf16.msra.mxu0 0
        %4550 = vmatprep.mubr.bf16.mxu0 0
        %4551 = vmatmul.mubr.bf16.gmra.mrb[0].mxu0 %v1856
        %v4552 = vpop.f32.mrb[0].mxu0
        %v4553 = vadd.f32 %v4469, %v4552
        %v4554 = vpop.f32.mrb[0].mxu0
        %v4555 = vpop.f32.mrb[0].mxu0
        %v4556 = vadd.f32 %v4469, %v4555
        %v4557 = vpop.f32.mrb[0].mxu0
        %4558 = vmatprep.mubr.bf16.mxu0 0
        %4559 = vmatmul.mubr.bf16.gmra.mrb[0].mxu0 %v1857
        %v4560 = vpop.f32.mrb[0].mxu0
        %v4561 = vadd.f32 %v4469, %v4560
        %v4562 = vpop.f32.mrb[0].mxu0
        %v4563 = vpop.f32.mrb[0].mxu0
        %v4564 = vadd.f32 %v4469, %v4563
        %v4565 = vpop.f32.mrb[0].mxu0
        %4566 = vmatprep.mubr.bf16.mxu0 0
        %4567 = vmatmul.mubr.bf16.gmra.mrb[0].mxu0 %v1858
        %v4568 = vpop.f32.mrb[0].mxu0
        %v4569 = vadd.f32 %v4469, %v4568
        %v4570 = vpop.f32.mrb[0].mxu0
        %v4571 = vpop.f32.mrb[0].mxu0
        %v4572 = vadd.f32 %v4469, %v4571
        %v4573 = vpop.f32.mrb[0].mxu0
        %4574 = vmatprep.mubr.bf16.mxu0 0
        %4575 = vmatmul.mubr.bf16.gmra.mrb[0].mxu0 %v1859
        %v4576 = vpop.f32.mrb[0].mxu0
        %v4577 = vadd.f32 %v4469, %v4576
        %v4578 = vpop.f32.mrb[0].mxu0
        %v4579 = vpop.f32.mrb[0].mxu0
        %v4580 = vadd.f32 %v4469, %v4579
        %v4581 = vpop.f32.mrb[0].mxu0
        %4582 = vmatprep.mubr.bf16.mxu0 0
        %4583 = vmatmul.mubr.bf16.gmra.mrb[0].mxu0 %v1860
        %v4584 = vpop.f32.mrb[0].mxu0
        %v4585 = vadd.f32 %v4469, %v4584
        %v4586 = vpop.f32.mrb[0].mxu0
        %v4587 = vpop.f32.mrb[0].mxu0
        %v4588 = vadd.f32 %v4469, %v4587
        %v4589 = vpop.f32.mrb[0].mxu0
        %4590 = vdwg.mxu0
        %v4591 = vld [vmem:[#allocation2 + $0x318] sm:$0xf]
        %v4592 = vld [vmem:[#allocation2 + $0x31c] sm:$0xf]
        %v4593 = vld [vmem:[#allocation2 + $0x320] sm:$0xf]
        %v4594 = vld [vmem:[#allocation2 + $0x324] sm:$0xf]
        %v4595 = vld [vmem:[#allocation2 + $0x328] sm:$0xf]
        %v4596 = vld [vmem:[#allocation2 + $0x32c] sm:$0xf]
        %v4597 = vld [vmem:[#allocation2 + $0x330] sm:$0xf]
        %v4598 = vld [vmem:[#allocation2 + $0x334] sm:$0xf]
        %v4599 = vld [vmem:[#allocation2 + $0x338] sm:$0xf]
        %v4600 = vld [vmem:[#allocation2 + $0x33c] sm:$0xf]
        %v4601 = vld [vmem:[#allocation2 + $0x340] sm:$0xf]
        %v4602 = vld [vmem:[#allocation2 + $0x344] sm:$0xf]
        %v4603 = vld [vmem:[#allocation2 + $0x348] sm:$0xf]
        %v4604 = vld [vmem:[#allocation2 + $0x34c] sm:$0xf]
        %v4605 = vld [vmem:[#allocation2 + $0x350] sm:$0xf]
        %v4606 = vld [vmem:[#allocation2 + $0x354] sm:$0xf]
        %v4607 = vld [vmem:[%s2 + $0xc] sm:$0x1]
        %v4608 = vlaneseq
        %v4609 = vshrl.u32 %v4608, 7
        %v4610 = vsub.s32 0, %v4609
        %v4611 = vrot.slane %v4607, %v4610
        %v4628 = vunpack.c.l.b16 %v4591
        %v4629 = vunpack.c.l.b16 %v4592
        %v4630 = vunpack.c.l.b16 %v4593
        %v4631 = vunpack.c.l.b16 %v4594
        %v4632 = vunpack.c.l.b16 %v4595
        %v4633 = vunpack.c.l.b16 %v4596
        %v4634 = vunpack.c.l.b16 %v4597
        %v4635 = vunpack.c.l.b16 %v4598
        %v4636 = vunpack.c.l.b16 %v4599
        %v4637 = vunpack.c.l.b16 %v4600
        %v4638 = vunpack.c.l.b16 %v4601
        %v4639 = vunpack.c.l.b16 %v4602
        %v4640 = vunpack.c.l.b16 %v4603
        %v4641 = vunpack.c.l.b16 %v4604
        %v4642 = vunpack.c.l.b16 %v4605
        %v4643 = vunpack.c.l.b16 %v4606
        %v4644 = vpack.c.b16 %v4629, %v4628
        %v4645 = vpack.c.b16 %v4631, %v4630
        %v4646 = vpack.c.b16 %v4633, %v4632
        %v4647 = vpack.c.b16 %v4635, %v4634
        %v4648 = vpack.c.b16 %v4637, %v4636
        %v4649 = vpack.c.b16 %v4639, %v4638
        %v4650 = vpack.c.b16 %v4641, %v4640
        %v4651 = vpack.c.b16 %v4643, %v4642
        %4660 = vmatprep.subr.bf16.mxu0 0
        %4661 = vmatpush1.bf16.msra.mxu0 %v4644
        %4662 = vmatprep.subr.bf16.mxu0 0
        %4663 = vmatpush1.bf16.msra.mxu0 %v4645
        %4664 = vmatprep.subr.bf16.mxu0 0
        %4665 = vmatpush1.bf16.msra.mxu0 %v4646
        %4666 = vmatprep.subr.bf16.mxu0 0
        %4667 = vmatpush1.bf16.msra.mxu0 %v4647
        %4668 = vmatprep.subr.bf16.mxu0 0
        %4669 = vmatpush1.bf16.msra.mxu0 %v4648
        %4670 = vmatprep.subr.bf16.mxu0 0
        %4671 = vmatpush1.bf16.msra.mxu0 %v4649
        %4672 = vmatprep.subr.bf16.mxu0 0
        %4673 = vmatpush1.bf16.msra.mxu0 %v4650
        %4674 = vmatprep.subr.bf16.mxu0 0
        %4675 = vmatpush1.bf16.msra.mxu0 %v4651
        %4676 = vmatprep.subr.bf16.mxu0 0
        %4677 = vmatpush1.bf16.msra.mxu0 0
        %4678 = vmatprep.subr.bf16.mxu0 0
        %4679 = vmatpush1.bf16.msra.mxu0 0
        %4680 = vmatprep.subr.bf16.mxu0 0
        %4681 = vmatpush1.bf16.msra.mxu0 0
        %4682 = vmatprep.subr.bf16.mxu0 0
        %4683 = vmatpush1.bf16.msra.mxu0 0
        %4684 = vmatprep.subr.bf16.mxu0 0
        %4685 = vmatpush1.bf16.msra.mxu0 0
        %4686 = vmatprep.subr.bf16.mxu0 0
        %4687 = vmatpush1.bf16.msra.mxu0 0
        %4688 = vmatprep.subr.bf16.mxu0 0
        %4689 = vmatpush1.bf16.msra.mxu0 0
        %4690 = vmatprep.subr.bf16.mxu0 0
        %4691 = vmatpush1.bf16.msra.mxu0 0
        %4692 = vmatprep.mubr.bf16.mxu0 0
        %4693 = vmatmul.mubr.bf16.gmra.mrb[0].mxu0 %v1856
        %v4694 = vpop.f32.mrb[0].mxu0
        %v4695 = vadd.f32 %v4611, %v4694
        %v4696 = vpop.f32.mrb[0].mxu0
        %v4697 = vpop.f32.mrb[0].mxu0
        %v4698 = vadd.f32 %v4611, %v4697
        %v4699 = vpop.f32.mrb[0].mxu0
        %4700 = vmatprep.mubr.bf16.mxu0 0
        %4701 = vmatmul.mubr.bf16.gmra.mrb[0].mxu0 %v1857
        %v4702 = vpop.f32.mrb[0].mxu0
        %v4703 = vadd.f32 %v4611, %v4702
        %v4704 = vpop.f32.mrb[0].mxu0
        %v4705 = vpop.f32.mrb[0].mxu0
        %v4706 = vadd.f32 %v4611, %v4705
        %v4707 = vpop.f32.mrb[0].mxu0
        %4708 = vmatprep.mubr.bf16.mxu0 0
        %4709 = vmatmul.mubr.bf16.gmra.mrb[0].mxu0 %v1858
        %v4710 = vpop.f32.mrb[0].mxu0
        %v4711 = vadd.f32 %v4611, %v4710
        %v4712 = vpop.f32.mrb[0].mxu0
        %v4713 = vpop.f32.mrb[0].mxu0
        %v4714 = vadd.f32 %v4611, %v4713
        %v4715 = vpop.f32.mrb[0].mxu0
        %4716 = vmatprep.mubr.bf16.mxu0 0
        %4717 = vmatmul.mubr.bf16.gmra.mrb[0].mxu0 %v1859
        %v4718 = vpop.f32.mrb[0].mxu0
        %v4719 = vadd.f32 %v4611, %v4718
        %v4720 = vpop.f32.mrb[0].mxu0
        %v4721 = vpop.f32.mrb[0].mxu0
        %v4722 = vadd.f32 %v4611, %v4721
        %v4723 = vpop.f32.mrb[0].mxu0
        %4724 = vmatprep.mubr.bf16.mxu0 0
        %4725 = vmatmul.mubr.bf16.gmra.mrb[0].mxu0 %v1860
        %v4726 = vpop.f32.mrb[0].mxu0
        %v4727 = vadd.f32 %v4611, %v4726
        %v4728 = vpop.f32.mrb[0].mxu0
        %v4729 = vpop.f32.mrb[0].mxu0
        %v4730 = vadd.f32 %v4611, %v4729
        %v4731 = vpop.f32.mrb[0].mxu0
        %4732 = vdwg.mxu0
        %v4733 = vld [vmem:[#allocation2 + $0x418] sm:$0xf]
        %v4734 = vld [vmem:[#allocation2 + $0x41c] sm:$0xf]
        %v4735 = vld [vmem:[#allocation2 + $0x420] sm:$0xf]
        %v4736 = vld [vmem:[#allocation2 + $0x424] sm:$0xf]
        %v4737 = vld [vmem:[#allocation2 + $0x428] sm:$0xf]
        %v4738 = vld [vmem:[#allocation2 + $0x42c] sm:$0xf]
        %v4739 = vld [vmem:[#allocation2 + $0x430] sm:$0xf]
        %v4740 = vld [vmem:[#allocation2 + $0x434] sm:$0xf]
        %v4741 = vld [vmem:[#allocation2 + $0x438] sm:$0xf]
        %v4742 = vld [vmem:[#allocation2 + $0x43c] sm:$0xf]
        %v4743 = vld [vmem:[#allocation2 + $0x440] sm:$0xf]
        %v4744 = vld [vmem:[#allocation2 + $0x444] sm:$0xf]
        %v4745 = vld [vmem:[#allocation2 + $0x448] sm:$0xf]
        %v4746 = vld [vmem:[#allocation2 + $0x44c] sm:$0xf]
        %v4747 = vld [vmem:[#allocation2 + $0x450] sm:$0xf]
        %v4748 = vld [vmem:[#allocation2 + $0x454] sm:$0xf]
        %v4749 = vld [vmem:[%s2 + $0x10] sm:$0x1]
        %v4750 = vlaneseq
        %v4751 = vshrl.u32 %v4750, 7
        %v4752 = vsub.s32 0, %v4751
        %v4753 = vrot.slane %v4749, %v4752
        %v4770 = vunpack.c.l.b16 %v4733
        %v4771 = vunpack.c.l.b16 %v4734
        %v4772 = vunpack.c.l.b16 %v4735
        %v4773 = vunpack.c.l.b16 %v4736
        %v4774 = vunpack.c.l.b16 %v4737
        %v4775 = vunpack.c.l.b16 %v4738
        %v4776 = vunpack.c.l.b16 %v4739
        %v4777 = vunpack.c.l.b16 %v4740
        %v4778 = vunpack.c.l.b16 %v4741
        %v4779 = vunpack.c.l.b16 %v4742
        %v4780 = vunpack.c.l.b16 %v4743
        %v4781 = vunpack.c.l.b16 %v4744
        %v4782 = vunpack.c.l.b16 %v4745
        %v4783 = vunpack.c.l.b16 %v4746
        %v4784 = vunpack.c.l.b16 %v4747
        %v4785 = vunpack.c.l.b16 %v4748
        %v4786 = vpack.c.b16 %v4771, %v4770
        %v4787 = vpack.c.b16 %v4773, %v4772
        %v4788 = vpack.c.b16 %v4775, %v4774
        %v4789 = vpack.c.b16 %v4777, %v4776
        %v4790 = vpack.c.b16 %v4779, %v4778
        %v4791 = vpack.c.b16 %v4781, %v4780
        %v4792 = vpack.c.b16 %v4783, %v4782
        %v4793 = vpack.c.b16 %v4785, %v4784
        %4802 = vmatprep.subr.bf16.mxu0 0
        %4803 = vmatpush1.bf16.msra.mxu0 %v4786
        %4804 = vmatprep.subr.bf16.mxu0 0
        %4805 = vmatpush1.bf16.msra.mxu0 %v4787
        %4806 = vmatprep.subr.bf16.mxu0 0
        %4807 = vmatpush1.bf16.msra.mxu0 %v4788
        %4808 = vmatprep.subr.bf16.mxu0 0
        %4809 = vmatpush1.bf16.msra.mxu0 %v4789
        %4810 = vmatprep.subr.bf16.mxu0 0
        %4811 = vmatpush1.bf16.msra.mxu0 %v4790
        %4812 = vmatprep.subr.bf16.mxu0 0
        %4813 = vmatpush1.bf16.msra.mxu0 %v4791
        %4814 = vmatprep.subr.bf16.mxu0 0
        %4815 = vmatpush1.bf16.msra.mxu0 %v4792
        %4816 = vmatprep.subr.bf16.mxu0 0
        %4817 = vmatpush1.bf16.msra.mxu0 %v4793
        %4818 = vmatprep.subr.bf16.mxu0 0
        %4819 = vmatpush1.bf16.msra.mxu0 0
        %4820 = vmatprep.subr.bf16.mxu0 0
        %4821 = vmatpush1.bf16.msra.mxu0 0
        %4822 = vmatprep.subr.bf16.mxu0 0
        %4823 = vmatpush1.bf16.msra.mxu0 0
        %4824 = vmatprep.subr.bf16.mxu0 0
        %4825 = vmatpush1.bf16.msra.mxu0 0
        %4826 = vmatprep.subr.bf16.mxu0 0
        %4827 = vmatpush1.bf16.msra.mxu0 0
        %4828 = vmatprep.subr.bf16.mxu0 0
        %4829 = vmatpush1.bf16.msra.mxu0 0
        %4830 = vmatprep.subr.bf16.mxu0 0
        %4831 = vmatpush1.bf16.msra.mxu0 0
        %4832 = vmatprep.subr.bf16.mxu0 0
        %4833 = vmatpush1.bf16.msra.mxu0 0
        %4834 = vmatprep.mubr.bf16.mxu0 0
        %4835 = vmatmul.mubr.bf16.gmra.mrb[0].mxu0 %v1856
        %v4836 = vpop.f32.mrb[0].mxu0
        %v4837 = vadd.f32 %v4753, %v4836
        %v4838 = vpop.f32.mrb[0].mxu0
        %v4839 = vpop.f32.mrb[0].mxu0
        %v4840 = vadd.f32 %v4753, %v4839
        %v4841 = vpop.f32.mrb[0].mxu0
        %4842 = vmatprep.mubr.bf16.mxu0 0
        %4843 = vmatmul.mubr.bf16.gmra.mrb[0].mxu0 %v1857
        %v4844 = vpop.f32.mrb[0].mxu0
        %v4845 = vadd.f32 %v4753, %v4844
        %v4846 = vpop.f32.mrb[0].mxu0
        %v4847 = vpop.f32.mrb[0].mxu0
        %v4848 = vadd.f32 %v4753, %v4847
        %v4849 = vpop.f32.mrb[0].mxu0
        %4850 = vmatprep.mubr.bf16.mxu0 0
        %4851 = vmatmul.mubr.bf16.gmra.mrb[0].mxu0 %v1858
        %v4852 = vpop.f32.mrb[0].mxu0
        %v4853 = vadd.f32 %v4753, %v4852
        %v4854 = vpop.f32.mrb[0].mxu0
        %v4855 = vpop.f32.mrb[0].mxu0
        %v4856 = vadd.f32 %v4753, %v4855
        %v4857 = vpop.f32.mrb[0].mxu0
        %4858 = vmatprep.mubr.bf16.mxu0 0
        %4859 = vmatmul.mubr.bf16.gmra.mrb[0].mxu0 %v1859
        %v4860 = vpop.f32.mrb[0].mxu0
        %v4861 = vadd.f32 %v4753, %v4860
        %v4862 = vpop.f32.mrb[0].mxu0
        %v4863 = vpop.f32.mrb[0].mxu0
        %v4864 = vadd.f32 %v4753, %v4863
        %v4865 = vpop.f32.mrb[0].mxu0
        %4866 = vmatprep.mubr.bf16.mxu0 0
        %4867 = vmatmul.mubr.bf16.gmra.mrb[0].mxu0 %v1860
        %v4868 = vpop.f32.mrb[0].mxu0
        %v4869 = vadd.f32 %v4753, %v4868
        %v4870 = vpop.f32.mrb[0].mxu0
        %v4871 = vpop.f32.mrb[0].mxu0
        %v4872 = vadd.f32 %v4753, %v4871
        %v4873 = vpop.f32.mrb[0].mxu0
        %4874 = vdwg.mxu0
        %v4875 = vpack.c.bf16 %v4556, %v4553
        %v4876 = vpack.c.bf16 %v4564, %v4561
        %v4877 = vpack.c.bf16 %v4572, %v4569
        %v4878 = vpack.c.bf16 %v4580, %v4577
        %v4879 = vpack.c.bf16 %v4588, %v4585
        %v4880 = vpack.c.bf16 %v4698, %v4695
        %v4881 = vpack.c.bf16 %v4706, %v4703
        %v4882 = vpack.c.bf16 %v4714, %v4711
        %v4883 = vpack.c.bf16 %v4722, %v4719
        %v4884 = vpack.c.bf16 %v4730, %v4727
        %4885 = vmatprep.subr.bf16.mxu0 0
        %4886 = vmatpush1.bf16.xpose.msra.mxu0 %v4880
        %4887 = vmatprep.subr.bf16.mxu0 0
        %4888 = vmatpush1.bf16.xpose.msra.mxu0 %v4881
        %4889 = vmatprep.subr.bf16.mxu0 0
        %4890 = vmatpush1.bf16.xpose.msra.mxu0 %v4882
        %4891 = vmatprep.subr.bf16.mxu0 0
        %4892 = vmatpush1.bf16.xpose.msra.mxu0 %v4883
        %4893 = vmatprep.subr.bf16.mxu0 0
        %4894 = vmatpush1.bf16.xpose.msra.mxu0 %v4884
        %4895 = vmatprep.subr.bf16.mxu0 0
        %4896 = vmatpush1.bf16.xpose.msra.mxu0 0
        %4897 = vmatprep.subr.bf16.mxu0 0
        %4898 = vmatpush1.bf16.xpose.msra.mxu0 0
        %4899 = vmatprep.subr.bf16.mxu0 0
        %4900 = vmatpush1.bf16.xpose.msra.mxu0 0
        %4901 = vmatprep.subr.bf16.mxu0 0
        %4902 = vmatpush1.bf16.xpose.msra.mxu0 0
        %4903 = vmatprep.subr.bf16.mxu0 0
        %4904 = vmatpush1.bf16.xpose.msra.mxu0 0
        %4905 = vmatprep.subr.bf16.mxu0 0
        %4906 = vmatpush1.bf16.xpose.msra.mxu0 0
        %4907 = vmatprep.subr.bf16.mxu0 0
        %4908 = vmatpush1.bf16.xpose.msra.mxu0 0
        %4909 = vmatprep.subr.bf16.mxu0 0
        %4910 = vmatpush1.bf16.xpose.msra.mxu0 0
        %4911 = vmatprep.subr.bf16.mxu0 0
        %4912 = vmatpush1.bf16.xpose.msra.mxu0 0
        %4913 = vmatprep.subr.bf16.mxu0 0
        %4914 = vmatpush1.bf16.xpose.msra.mxu0 0
        %4915 = vmatprep.subr.bf16.mxu0 0
        %4916 = vmatpush1.bf16.xpose.msra.mxu0 0
        %4917 = vmatprep.mubr.bf16.mxu0 0
        %4918 = vmatmul.mubr.bf16.gmra.mrb[0].mxu0 %v4875
        %v4919 = vpop.f32.mrb[0].mxu0
        %v4920 = vadd.f32 %v1558, %v4919
        %v4921 = vpop.f32.mrb[0].mxu0
        %v4922 = vpop.f32.mrb[0].mxu0
        %v4923 = vadd.f32 %v1558, %v4922
        %v4924 = vpop.f32.mrb[0].mxu0
        %4925 = vmatprep.mubr.bf16.mxu0 0
        %4926 = vmatmul.mubr.bf16.gmra.mrb[0].mxu0 %v4876
        %v4927 = vpop.f32.mrb[0].mxu0
        %v4928 = vadd.f32 %v1558, %v4927
        %v4929 = vpop.f32.mrb[0].mxu0
        %v4930 = vpop.f32.mrb[0].mxu0
        %v4931 = vadd.f32 %v1558, %v4930
        %v4932 = vpop.f32.mrb[0].mxu0
        %4933 = vmatprep.mubr.bf16.mxu0 0
        %4934 = vmatmul.mubr.bf16.gmra.mrb[0].mxu0 %v4877
        %v4935 = vpop.f32.mrb[0].mxu0
        %v4936 = vadd.f32 %v1558, %v4935
        %v4937 = vpop.f32.mrb[0].mxu0
        %v4938 = vpop.f32.mrb[0].mxu0
        %v4939 = vadd.f32 %v1558, %v4938
        %v4940 = vpop.f32.mrb[0].mxu0
        %4941 = vmatprep.mubr.bf16.mxu0 0
        %4942 = vmatmul.mubr.bf16.gmra.mrb[0].mxu0 %v4878
        %v4943 = vpop.f32.mrb[0].mxu0
        %v4944 = vadd.f32 %v1558, %v4943
        %v4945 = vpop.f32.mrb[0].mxu0
        %v4946 = vpop.f32.mrb[0].mxu0
        %v4947 = vadd.f32 %v1558, %v4946
        %v4948 = vpop.f32.mrb[0].mxu0
        %4949 = vmatprep.mubr.bf16.mxu0 0
        %4950 = vmatmul.mubr.bf16.gmra.mrb[0].mxu0 %v4879
        %v4951 = vpop.f32.mrb[0].mxu0
        %v4952 = vadd.f32 %v1558, %v4951
        %v4953 = vpop.f32.mrb[0].mxu0
        %v4954 = vpop.f32.mrb[0].mxu0
        %v4955 = vadd.f32 %v1558, %v4954
        %v4956 = vpop.f32.mrb[0].mxu0
        %4957 = vdwg.mxu0
        %v4958 = vsel %vm2370, %v4920, -inf
        %4959 = vmax.xlane.f32.xlu0 %v4958
        %v4960 = vpop.xlane.xlu0 %4959
        %v4961 = vsel %vm2370, %v4923, -inf
        %4962 = vmax.xlane.f32.xlu0 %v4961
        %v4963 = vpop.xlane.xlu0 %4962
        %v4964 = vsel %vm2370, %v4928, -inf
        %4965 = vmax.xlane.f32.xlu0 %v4964
        %v4966 = vpop.xlane.xlu0 %4965
        %v4967 = vsel %vm2370, %v4931, -inf
        %4968 = vmax.xlane.f32.xlu0 %v4967
        %v4969 = vpop.xlane.xlu0 %4968
        %v4970 = vsel %vm2370, %v4936, -inf
        %4971 = vmax.xlane.f32.xlu0 %v4970
        %v4972 = vpop.xlane.xlu0 %4971
        %v4973 = vsel %vm2370, %v4939, -inf
        %4974 = vmax.xlane.f32.xlu0 %v4973
        %v4975 = vpop.xlane.xlu0 %4974
        %v4976 = vsel %vm2370, %v4944, -inf
        %4977 = vmax.xlane.f32.xlu0 %v4976
        %v4978 = vpop.xlane.xlu0 %4977
        %v4979 = vsel %vm2370, %v4947, -inf
        %4980 = vmax.xlane.f32.xlu0 %v4979
        %v4981 = vpop.xlane.xlu0 %4980
        %v4982 = vsel %vm2370, %v4952, -inf
        %4983 = vmax.xlane.f32.xlu0 %v4982
        %v4984 = vpop.xlane.xlu0 %4983
        %v4985 = vsel %vm2370, %v4955, -inf
        %4986 = vmax.xlane.f32.xlu0 %v4985
        %v4987 = vpop.xlane.xlu0 %4986
        %v4988 = vsub.f32 %v4920, %v4960
        %v4989 = vsub.f32 %v4923, %v4963
        %v4990 = vsub.f32 %v4928, %v4966
        %v4991 = vsub.f32 %v4931, %v4969
        %v4992 = vsub.f32 %v4936, %v4972
        %v4993 = vsub.f32 %v4939, %v4975
        %v4994 = vsub.f32 %v4944, %v4978
        %v4995 = vsub.f32 %v4947, %v4981
        %v4996 = vsub.f32 %v4952, %v4984
        %v4997 = vsub.f32 %v4955, %v4987
        %v4998 = vmul.f32 %v4988, 1.442695
        %v4999 = vpow.pop %v4998
        %v5000 = vmul.f32 %v4989, 1.442695
        %v5001 = vpow.pop %v5000
        %v5002 = vmul.f32 %v4990, 1.442695
        %v5003 = vpow.pop %v5002
        %v5004 = vmul.f32 %v4991, 1.442695
        %v5005 = vpow.pop %v5004
        %v5006 = vmul.f32 %v4992, 1.442695
        %v5007 = vpow.pop %v5006
        %v5008 = vmul.f32 %v4993, 1.442695
        %v5009 = vpow.pop %v5008
        %v5010 = vmul.f32 %v4994, 1.442695
        %v5011 = vpow.pop %v5010
        %v5012 = vmul.f32 %v4995, 1.442695
        %v5013 = vpow.pop %v5012
        %v5014 = vmul.f32 %v4996, 1.442695
        %v5015 = vpow.pop %v5014
        %v5016 = vmul.f32 %v4997, 1.442695
        %v5017 = vpow.pop %v5016
        %v5018 = vsel %vm2370, %v4999, 0.0
        %5019 = vadd.xlane.f32.xlu0 %v5018
        %v5020 = vpop.xlane.xlu0 %5019
        %v5021 = vsel %vm2370, %v5001, 0.0
        %5022 = vadd.xlane.f32.xlu0 %v5021
        %v5023 = vpop.xlane.xlu0 %5022
        %v5024 = vsel %vm2370, %v5003, 0.0
        %5025 = vadd.xlane.f32.xlu0 %v5024
        %v5026 = vpop.xlane.xlu0 %5025
        %v5027 = vsel %vm2370, %v5005, 0.0
        %5028 = vadd.xlane.f32.xlu0 %v5027
        %v5029 = vpop.xlane.xlu0 %5028
        %v5030 = vsel %vm2370, %v5007, 0.0
        %5031 = vadd.xlane.f32.xlu0 %v5030
        %v5032 = vpop.xlane.xlu0 %5031
        %v5033 = vsel %vm2370, %v5009, 0.0
        %5034 = vadd.xlane.f32.xlu0 %v5033
        %v5035 = vpop.xlane.xlu0 %5034
        %v5036 = vsel %vm2370, %v5011, 0.0
        %5037 = vadd.xlane.f32.xlu0 %v5036
        %v5038 = vpop.xlane.xlu0 %5037
        %v5039 = vsel %vm2370, %v5013, 0.0
        %5040 = vadd.xlane.f32.xlu0 %v5039
        %v5041 = vpop.xlane.xlu0 %5040
        %v5042 = vsel %vm2370, %v5015, 0.0
        %5043 = vadd.xlane.f32.xlu0 %v5042
        %v5044 = vpop.xlane.xlu0 %5043
        %v5045 = vsel %vm2370, %v5017, 0.0
        %5046 = vadd.xlane.f32.xlu0 %v5045
        %v5047 = vpop.xlane.xlu0 %5046
        %v5048 = vrcp.pop %v5020
        %v5049 = vrcp.pop %v5023
        %v5050 = vrcp.pop %v5026
        %v5051 = vrcp.pop %v5029
        %v5052 = vrcp.pop %v5032
        %v5053 = vrcp.pop %v5035
        %v5054 = vrcp.pop %v5038
        %v5055 = vrcp.pop %v5041
        %v5056 = vrcp.pop %v5044
        %v5057 = vrcp.pop %v5047
        %v5058 = vmul.f32 %v4999, %v5048
        %v5059 = vmul.f32 %v5001, %v5049
        %v5060 = vmul.f32 %v5003, %v5050
        %v5061 = vmul.f32 %v5005, %v5051
        %v5062 = vmul.f32 %v5007, %v5052
        %v5063 = vmul.f32 %v5009, %v5053
        %v5064 = vmul.f32 %v5011, %v5054
        %v5065 = vmul.f32 %v5013, %v5055
        %v5066 = vmul.f32 %v5015, %v5056
        %v5067 = vmul.f32 %v5017, %v5057
        %v5068 = vpack.c.bf16 %v5059, %v5058
        %v5069 = vpack.c.bf16 %v5061, %v5060
        %v5070 = vpack.c.bf16 %v5063, %v5062
        %v5071 = vpack.c.bf16 %v5065, %v5064
        %v5072 = vpack.c.bf16 %v5067, %v5066
        %v5073 = vpack.c.bf16 %v4840, %v4837
        %v5074 = vpack.c.bf16 %v4848, %v4845
        %v5075 = vpack.c.bf16 %v4856, %v4853
        %v5076 = vpack.c.bf16 %v4864, %v4861
        %v5077 = vpack.c.bf16 %v4872, %v4869
        %v5079 = vsel %vm2370, %v5068, 0
        %v5082 = vsel %vm2370, %v5069, 0
        %v5085 = vsel %vm2370, %v5070, 0
        %v5088 = vsel %vm2370, %v5071, 0
        %v5091 = vsel %vm2370, %v5072, 0
        %5093 = vmatprep.subr.bf16.mxu0 0
        %5094 = vmatpush1.bf16.msra.mxu0 %v5073
        %5095 = vmatprep.subr.bf16.mxu0 0
        %5096 = vmatpush1.bf16.msra.mxu0 %v5074
        %5097 = vmatprep.subr.bf16.mxu0 0
        %5098 = vmatpush1.bf16.msra.mxu0 %v5075
        %5099 = vmatprep.subr.bf16.mxu0 0
        %5100 = vmatpush1.bf16.msra.mxu0 %v5076
        %5101 = vmatprep.subr.bf16.mxu0 0
        %5102 = vmatpush1.bf16.msra.mxu0 %v5077
        %5103 = vmatprep.subr.bf16.mxu0 0
        %5104 = vmatpush1.bf16.msra.mxu0 0
        %5105 = vmatprep.subr.bf16.mxu0 0
        %5106 = vmatpush1.bf16.msra.mxu0 0
        %5107 = vmatprep.subr.bf16.mxu0 0
        %5108 = vmatpush1.bf16.msra.mxu0 0
        %5109 = vmatprep.subr.bf16.mxu0 0
        %5110 = vmatpush1.bf16.msra.mxu0 0
        %5111 = vmatprep.subr.bf16.mxu0 0
        %5112 = vmatpush1.bf16.msra.mxu0 0
        %5113 = vmatprep.subr.bf16.mxu0 0
        %5114 = vmatpush1.bf16.msra.mxu0 0
        %5115 = vmatprep.subr.bf16.mxu0 0
        %5116 = vmatpush1.bf16.msra.mxu0 0
        %5117 = vmatprep.subr.bf16.mxu0 0
        %5118 = vmatpush1.bf16.msra.mxu0 0
        %5119 = vmatprep.subr.bf16.mxu0 0
        %5120 = vmatpush1.bf16.msra.mxu0 0
        %5121 = vmatprep.subr.bf16.mxu0 0
        %5122 = vmatpush1.bf16.msra.mxu0 0
        %5123 = vmatprep.subr.bf16.mxu0 0
        %5124 = vmatpush1.bf16.msra.mxu0 0
        %5125 = vmatprep.mubr.bf16.mxu0 0
        %5126 = vmatmul.mubr.bf16.gmra.mrb[0].mxu0 %v5079
        %v5127 = vpop.f32.mrb[0].mxu0
        %v5128 = vadd.f32 0.0, %v5127
        %v5129 = vpop.f32.mrb[0].mxu0
        %v5130 = vpop.f32.mrb[0].mxu0
        %v5131 = vadd.f32 0.0, %v5130
        %v5132 = vpop.f32.mrb[0].mxu0
        %5133 = vmatprep.mubr.bf16.mxu0 0
        %5134 = vmatmul.mubr.bf16.gmra.mrb[0].mxu0 %v5082
        %v5135 = vpop.f32.mrb[0].mxu0
        %v5136 = vadd.f32 0.0, %v5135
        %v5137 = vpop.f32.mrb[0].mxu0
        %v5138 = vpop.f32.mrb[0].mxu0
        %v5139 = vadd.f32 0.0, %v5138
        %v5140 = vpop.f32.mrb[0].mxu0
        %5141 = vmatprep.mubr.bf16.mxu0 0
        %5142 = vmatmul.mubr.bf16.gmra.mrb[0].mxu0 %v5085
        %v5143 = vpop.f32.mrb[0].mxu0
        %v5144 = vadd.f32 0.0, %v5143
        %v5145 = vpop.f32.mrb[0].mxu0
        %v5146 = vpop.f32.mrb[0].mxu0
        %v5147 = vadd.f32 0.0, %v5146
        %v5148 = vpop.f32.mrb[0].mxu0
        %5149 = vmatprep.mubr.bf16.mxu0 0
        %5150 = vmatmul.mubr.bf16.gmra.mrb[0].mxu0 %v5088
        %v5151 = vpop.f32.mrb[0].mxu0
        %v5152 = vadd.f32 0.0, %v5151
        %v5153 = vpop.f32.mrb[0].mxu0
        %v5154 = vpop.f32.mrb[0].mxu0
        %v5155 = vadd.f32 0.0, %v5154
        %v5156 = vpop.f32.mrb[0].mxu0
        %5157 = vmatprep.mubr.bf16.mxu0 0
        %5158 = vmatmul.mubr.bf16.gmra.mrb[0].mxu0 %v5091
        %v5159 = vpop.f32.mrb[0].mxu0
        %v5160 = vadd.f32 0.0, %v5159
        %v5161 = vpop.f32.mrb[0].mxu0
        %v5162 = vpop.f32.mrb[0].mxu0
        %v5163 = vadd.f32 0.0, %v5162
        %v5164 = vpop.f32.mrb[0].mxu0
        %5165 = vdwg.mxu0
        %v5166 = vpack.c.bf16 %v5131, %v5128
        %v5167 = vpack.c.bf16 %v5139, %v5136
        %v5168 = vpack.c.bf16 %v5147, %v5144
        %v5169 = vpack.c.bf16 %v5155, %v5152
        %v5170 = vpack.c.bf16 %v5163, %v5160
        %v5171 = vld [vmem:[#allocation2 + $0x518] sm:$0xf]
        %v5172 = vld [vmem:[#allocation2 + $0x51c] sm:$0xf]
        %v5173 = vld [vmem:[#allocation2 + $0x520] sm:$0xf]
        %v5174 = vld [vmem:[#allocation2 + $0x524] sm:$0xf]
        %v5175 = vld [vmem:[#allocation2 + $0x528] sm:$0xf]
        %v5176 = vld [vmem:[#allocation2 + $0x52c] sm:$0xf]
        %v5177 = vld [vmem:[#allocation2 + $0x530] sm:$0xf]
        %v5178 = vld [vmem:[#allocation2 + $0x534] sm:$0xf]
        %v5179 = vld [vmem:[#allocation2 + $0x538] sm:$0xf]
        %v5180 = vld [vmem:[#allocation2 + $0x53c] sm:$0xf]
        %v5181 = vld [vmem:[#allocation2 + $0x540] sm:$0xf]
        %v5182 = vld [vmem:[#allocation2 + $0x544] sm:$0xf]
        %v5183 = vld [vmem:[#allocation2 + $0x548] sm:$0xf]
        %v5184 = vld [vmem:[#allocation2 + $0x54c] sm:$0xf]
        %v5185 = vld [vmem:[#allocation2 + $0x550] sm:$0xf]
        %v5186 = vld [vmem:[#allocation2 + $0x554] sm:$0xf]
        %v5203 = vunpack.c.l.b16 %v5171
        %v5204 = vunpack.c.l.b16 %v5172
        %v5205 = vunpack.c.l.b16 %v5173
        %v5206 = vunpack.c.l.b16 %v5174
        %v5207 = vunpack.c.l.b16 %v5175
        %v5208 = vunpack.c.l.b16 %v5176
        %v5209 = vunpack.c.l.b16 %v5177
        %v5210 = vunpack.c.l.b16 %v5178
        %v5211 = vunpack.c.l.b16 %v5179
        %v5212 = vunpack.c.l.b16 %v5180
        %v5213 = vunpack.c.l.b16 %v5181
        %v5214 = vunpack.c.l.b16 %v5182
        %v5215 = vunpack.c.l.b16 %v5183
        %v5216 = vunpack.c.l.b16 %v5184
        %v5217 = vunpack.c.l.b16 %v5185
        %v5218 = vunpack.c.l.b16 %v5186
        %v5219 = vpack.c.b16 %v5204, %v5203
        %v5220 = vpack.c.b16 %v5206, %v5205
        %v5221 = vpack.c.b16 %v5208, %v5207
        %v5222 = vpack.c.b16 %v5210, %v5209
        %v5223 = vpack.c.b16 %v5212, %v5211
        %v5224 = vpack.c.b16 %v5214, %v5213
        %v5225 = vpack.c.b16 %v5216, %v5215
        %v5226 = vpack.c.b16 %v5218, %v5217
        %5235 = vmatprep.subr.bf16.mxu0 0
        %5236 = vmatpush1.bf16.msra.mxu0 %v5219
        %5237 = vmatprep.subr.bf16.mxu0 0
        %5238 = vmatpush1.bf16.msra.mxu0 %v5220
        %5239 = vmatprep.subr.bf16.mxu0 0
        %5240 = vmatpush1.bf16.msra.mxu0 %v5221
        %5241 = vmatprep.subr.bf16.mxu0 0
        %5242 = vmatpush1.bf16.msra.mxu0 %v5222
        %5243 = vmatprep.subr.bf16.mxu0 0
        %5244 = vmatpush1.bf16.msra.mxu0 %v5223
        %5245 = vmatprep.subr.bf16.mxu0 0
        %5246 = vmatpush1.bf16.msra.mxu0 %v5224
        %5247 = vmatprep.subr.bf16.mxu0 0
        %5248 = vmatpush1.bf16.msra.mxu0 %v5225
        %5249 = vmatprep.subr.bf16.mxu0 0
        %5250 = vmatpush1.bf16.msra.mxu0 %v5226
        %5251 = vmatprep.subr.bf16.mxu0 0
        %5252 = vmatpush1.bf16.msra.mxu0 0
        %5253 = vmatprep.subr.bf16.mxu0 0
        %5254 = vmatpush1.bf16.msra.mxu0 0
        %5255 = vmatprep.subr.bf16.mxu0 0
        %5256 = vmatpush1.bf16.msra.mxu0 0
        %5257 = vmatprep.subr.bf16.mxu0 0
        %5258 = vmatpush1.bf16.msra.mxu0 0
        %5259 = vmatprep.subr.bf16.mxu0 0
        %5260 = vmatpush1.bf16.msra.mxu0 0
        %5261 = vmatprep.subr.bf16.mxu0 0
        %5262 = vmatpush1.bf16.msra.mxu0 0
        %5263 = vmatprep.subr.bf16.mxu0 0
        %5264 = vmatpush1.bf16.msra.mxu0 0
        %5265 = vmatprep.subr.bf16.mxu0 0
        %5266 = vmatpush1.bf16.msra.mxu0 0
        %5267 = vmatprep.mubr.bf16.mxu0 0
        %5268 = vmatmul.mubr.bf16.gmra.mrb[0].mxu0 %v5166
        %v5269 = vpop.f32.mrb[0].mxu0
        %v5270 = vadd.f32 0.0, %v5269
        %v5271 = vpop.f32.mrb[0].mxu0
        %v5272 = vpop.f32.mrb[0].mxu0
        %v5273 = vadd.f32 0.0, %v5272
        %v5274 = vpop.f32.mrb[0].mxu0
        %5275 = vmatprep.mubr.bf16.mxu0 0
        %5276 = vmatmul.mubr.bf16.gmra.mrb[0].mxu0 %v5167
        %v5277 = vpop.f32.mrb[0].mxu0
        %v5278 = vadd.f32 0.0, %v5277
        %v5279 = vpop.f32.mrb[0].mxu0
        %v5280 = vpop.f32.mrb[0].mxu0
        %v5281 = vadd.f32 0.0, %v5280
        %v5282 = vpop.f32.mrb[0].mxu0
        %5283 = vmatprep.mubr.bf16.mxu0 0
        %5284 = vmatmul.mubr.bf16.gmra.mrb[0].mxu0 %v5168
        %v5285 = vpop.f32.mrb[0].mxu0
        %v5286 = vadd.f32 0.0, %v5285
        %v5287 = vpop.f32.mrb[0].mxu0
        %v5288 = vpop.f32.mrb[0].mxu0
        %v5289 = vadd.f32 0.0, %v5288
        %v5290 = vpop.f32.mrb[0].mxu0
        %5291 = vmatprep.mubr.bf16.mxu0 0
        %5292 = vmatmul.mubr.bf16.gmra.mrb[0].mxu0 %v5169
        %v5293 = vpop.f32.mrb[0].mxu0
        %v5294 = vadd.f32 0.0, %v5293
        %v5295 = vpop.f32.mrb[0].mxu0
        %v5296 = vpop.f32.mrb[0].mxu0
        %v5297 = vadd.f32 0.0, %v5296
        %v5298 = vpop.f32.mrb[0].mxu0
        %5299 = vmatprep.mubr.bf16.mxu0 0
        %5300 = vmatmul.mubr.bf16.gmra.mrb[0].mxu0 %v5170
        %v5301 = vpop.f32.mrb[0].mxu0
        %v5302 = vadd.f32 0.0, %v5301
        %v5303 = vpop.f32.mrb[0].mxu0
        %v5304 = vpop.f32.mrb[0].mxu0
        %v5305 = vadd.f32 0.0, %v5304
        %v5306 = vpop.f32.mrb[0].mxu0
        %5307 = vdwg.mxu0
        %v5308 = vadd.f32 %v4439, %v5270
        %v5309 = vadd.f32 %v4440, %v5273
        %v5310 = vadd.f32 %v4441, %v5278
        %v5311 = vadd.f32 %v4442, %v5281
        %v5312 = vadd.f32 %v4443, %v5286
        %v5313 = vadd.f32 %v4444, %v5289
        %v5314 = vadd.f32 %v4445, %v5294
        %v5315 = vadd.f32 %v4446, %v5297
        %v5316 = vadd.f32 %v4447, %v5302
        %v5317 = vadd.f32 %v4448, %v5305
        %v5318 = vld [vmem:[%s2 + $0x11] sm:$0x1]
        %v5319 = vlaneseq
        %v5320 = vshrl.u32 %v5319, 7
        %v5321 = vsub.s32 0, %v5320
        %v5322 = vrot.slane %v5318, %v5321
        %v5323 = vadd.f32 %v5308, %v5322
        %v5324 = vadd.f32 %v5309, %v5322
        %v5325 = vadd.f32 %v5310, %v5322
        %v5326 = vadd.f32 %v5311, %v5322
        %v5327 = vadd.f32 %v5312, %v5322
        %v5328 = vadd.f32 %v5313, %v5322
        %v5329 = vadd.f32 %v5314, %v5322
        %v5330 = vadd.f32 %v5315, %v5322
        %v5331 = vadd.f32 %v5316, %v5322
        %v5332 = vadd.f32 %v5317, %v5322
        %v5333 = vadd.f32 %v1818, %v5323
        %v5334 = vadd.f32 %v1821, %v5324
        %v5335 = vadd.f32 %v1826, %v5325
        %v5336 = vadd.f32 %v1829, %v5326
        %v5337 = vadd.f32 %v1834, %v5327
        %v5338 = vadd.f32 %v1837, %v5328
        %v5339 = vadd.f32 %v1842, %v5329
        %v5340 = vadd.f32 %v1845, %v5330
        %v5341 = vadd.f32 %v1850, %v5331
        %v5342 = vadd.f32 %v1853, %v5332
        %v5343 = vld [vmem:[%s2 + $0x12] sm:$0x1]
        %v5344 = vld [vmem:[%s2 + $0x13] sm:$0x1]
        %5345 = vadd.xlane.f32.xlu0 %v5333
        %v5346 = vpop.xlane.xlu0 %5345
        %5347 = vadd.xlane.f32.xlu0 %v5334
        %v5348 = vpop.xlane.xlu0 %5347
        %5349 = vadd.xlane.f32.xlu0 %v5335
        %v5350 = vpop.xlane.xlu0 %5349
        %5351 = vadd.xlane.f32.xlu0 %v5336
        %v5352 = vpop.xlane.xlu0 %5351
        %5353 = vadd.xlane.f32.xlu0 %v5337
        %v5354 = vpop.xlane.xlu0 %5353
        %5355 = vadd.xlane.f32.xlu0 %v5338
        %v5356 = vpop.xlane.xlu0 %5355
        %5357 = vadd.xlane.f32.xlu0 %v5339
        %v5358 = vpop.xlane.xlu0 %5357
        %5359 = vadd.xlane.f32.xlu0 %v5340
        %v5360 = vpop.xlane.xlu0 %5359
        %5361 = vadd.xlane.f32.xlu0 %v5341
        %v5362 = vpop.xlane.xlu0 %5361
        %5363 = vadd.xlane.f32.xlu0 %v5342
        %v5364 = vpop.xlane.xlu0 %5363
        %v5365 = vmul.f32 %v5346, 0.03125
        %v5366 = vmul.f32 %v5348, 0.03125
        %v5367 = vmul.f32 %v5350, 0.03125
        %v5368 = vmul.f32 %v5352, 0.03125
        %v5369 = vmul.f32 %v5354, 0.03125
        %v5370 = vmul.f32 %v5356, 0.03125
        %v5371 = vmul.f32 %v5358, 0.03125
        %v5372 = vmul.f32 %v5360, 0.03125
        %v5373 = vmul.f32 %v5362, 0.03125
        %v5374 = vmul.f32 %v5364, 0.03125
        %v5375 = vsub.f32 %v5333, %v5365
        %v5376 = vsub.f32 %v5334, %v5366
        %v5377 = vsub.f32 %v5335, %v5367
        %v5378 = vsub.f32 %v5336, %v5368
        %v5379 = vsub.f32 %v5337, %v5369
        %v5380 = vsub.f32 %v5338, %v5370
        %v5381 = vsub.f32 %v5339, %v5371
        %v5382 = vsub.f32 %v5340, %v5372
        %v5383 = vsub.f32 %v5341, %v5373
        %v5384 = vsub.f32 %v5342, %v5374
        %v5385 = vmul.f32 %v5375, %v5375
        %v5386 = vmul.f32 %v5376, %v5376
        %v5387 = vmul.f32 %v5377, %v5377
        %v5388 = vmul.f32 %v5378, %v5378
        %v5389 = vmul.f32 %v5379, %v5379
        %v5390 = vmul.f32 %v5380, %v5380
        %v5391 = vmul.f32 %v5381, %v5381
        %v5392 = vmul.f32 %v5382, %v5382
        %v5393 = vmul.f32 %v5383, %v5383
        %v5394 = vmul.f32 %v5384, %v5384
        %v5395 = vsel %vm1556, %v5385, 0.0
        %v5396 = vsel %vm1556, %v5386, 0.0
        %v5397 = vsel %vm1556, %v5387, 0.0
        %v5398 = vsel %vm1556, %v5388, 0.0
        %v5399 = vsel %vm1556, %v5389, 0.0
        %v5400 = vsel %vm1556, %v5390, 0.0
        %v5401 = vsel %vm1556, %v5391, 0.0
        %v5402 = vsel %vm1556, %v5392, 0.0
        %v5403 = vsel %vm1556, %v5393, 0.0
        %v5404 = vsel %vm1556, %v5394, 0.0
        %5405 = vadd.xlane.f32.xlu0 %v5395
        %v5406 = vpop.xlane.xlu0 %5405
        %5407 = vadd.xlane.f32.xlu0 %v5396
        %v5408 = vpop.xlane.xlu0 %5407
        %5409 = vadd.xlane.f32.xlu0 %v5397
        %v5410 = vpop.xlane.xlu0 %5409
        %5411 = vadd.xlane.f32.xlu0 %v5398
        %v5412 = vpop.xlane.xlu0 %5411
        %5413 = vadd.xlane.f32.xlu0 %v5399
        %v5414 = vpop.xlane.xlu0 %5413
        %5415 = vadd.xlane.f32.xlu0 %v5400
        %v5416 = vpop.xlane.xlu0 %5415
        %5417 = vadd.xlane.f32.xlu0 %v5401
        %v5418 = vpop.xlane.xlu0 %5417
        %5419 = vadd.xlane.f32.xlu0 %v5402
        %v5420 = vpop.xlane.xlu0 %5419
        %5421 = vadd.xlane.f32.xlu0 %v5403
        %v5422 = vpop.xlane.xlu0 %5421
        %5423 = vadd.xlane.f32.xlu0 %v5404
        %v5424 = vpop.xlane.xlu0 %5423
        %v5425 = vmul.f32 %v5406, 0.03125
        %v5426 = vmul.f32 %v5408, 0.03125
        %v5427 = vmul.f32 %v5410, 0.03125
        %v5428 = vmul.f32 %v5412, 0.03125
        %v5429 = vmul.f32 %v5414, 0.03125
        %v5430 = vmul.f32 %v5416, 0.03125
        %v5431 = vmul.f32 %v5418, 0.03125
        %v5432 = vmul.f32 %v5420, 0.03125
        %v5433 = vmul.f32 %v5422, 0.03125
        %v5434 = vmul.f32 %v5424, 0.03125
        %v5435 = vadd.f32 %v5425, 1e-05
        %v5436 = vadd.f32 %v5426, 1e-05
        %v5437 = vadd.f32 %v5427, 1e-05
        %v5438 = vadd.f32 %v5428, 1e-05
        %v5439 = vadd.f32 %v5429, 1e-05
        %v5440 = vadd.f32 %v5430, 1e-05
        %v5441 = vadd.f32 %v5431, 1e-05
        %v5442 = vadd.f32 %v5432, 1e-05
        %v5443 = vadd.f32 %v5433, 1e-05
        %v5444 = vadd.f32 %v5434, 1e-05
        %v5445 = vrsqrt.pop %v5435
        %v5446 = vrsqrt.pop %v5436
        %v5447 = vrsqrt.pop %v5437
        %v5448 = vrsqrt.pop %v5438
        %v5449 = vrsqrt.pop %v5439
        %v5450 = vrsqrt.pop %v5440
        %v5451 = vrsqrt.pop %v5441
        %v5452 = vrsqrt.pop %v5442
        %v5453 = vrsqrt.pop %v5443
        %v5454 = vrsqrt.pop %v5444
        %v5455 = vmul.f32 %v5375, %v5445
        %v5456 = vmul.f32 %v5376, %v5446
        %v5457 = vmul.f32 %v5377, %v5447
        %v5458 = vmul.f32 %v5378, %v5448
        %v5459 = vmul.f32 %v5379, %v5449
        %v5460 = vmul.f32 %v5380, %v5450
        %v5461 = vmul.f32 %v5381, %v5451
        %v5462 = vmul.f32 %v5382, %v5452
        %v5463 = vmul.f32 %v5383, %v5453
        %v5464 = vmul.f32 %v5384, %v5454
        %v5465 = vlaneseq
        %v5466 = vshrl.u32 %v5465, 7
        %v5467 = vsub.s32 0, %v5466
        %v5468 = vrot.slane %v5343, %v5467
        %v5469 = vmul.f32 %v5455, %v5468
        %v5470 = vmul.f32 %v5456, %v5468
        %v5471 = vmul.f32 %v5457, %v5468
        %v5472 = vmul.f32 %v5458, %v5468
        %v5473 = vmul.f32 %v5459, %v5468
        %v5474 = vmul.f32 %v5460, %v5468
        %v5475 = vmul.f32 %v5461, %v5468
        %v5476 = vmul.f32 %v5462, %v5468
        %v5477 = vmul.f32 %v5463, %v5468
        %v5478 = vmul.f32 %v5464, %v5468
        %v5479 = vlaneseq
        %v5480 = vshrl.u32 %v5479, 7
        %v5481 = vsub.s32 0, %v5480
        %v5482 = vrot.slane %v5344, %v5481
        %v5483 = vadd.f32 %v5469, %v5482
        %v5484 = vadd.f32 %v5470, %v5482
        %v5485 = vadd.f32 %v5471, %v5482
        %v5486 = vadd.f32 %v5472, %v5482
        %v5487 = vadd.f32 %v5473, %v5482
        %v5488 = vadd.f32 %v5474, %v5482
        %v5489 = vadd.f32 %v5475, %v5482
        %v5490 = vadd.f32 %v5476, %v5482
        %v5491 = vadd.f32 %v5477, %v5482
        %v5492 = vadd.f32 %v5478, %v5482
        %v5493 = vpack.c.bf16 %v5484, %v5483
        %v5494 = vpack.c.bf16 %v5486, %v5485
        %v5495 = vpack.c.bf16 %v5488, %v5487
        %v5496 = vpack.c.bf16 %v5490, %v5489
        %v5497 = vpack.c.bf16 %v5492, %v5491
        %v5498 = vld [vmem:[#allocation2 + $0x558] sm:$0xf]
        %v5499 = vld [vmem:[#allocation2 + $0x55c] sm:$0xf]
        %v5500 = vld [vmem:[#allocation2 + $0x560] sm:$0xf]
        %v5501 = vld [vmem:[#allocation2 + $0x564] sm:$0xf]
        %v5502 = vld [vmem:[#allocation2 + $0x568] sm:$0xf]
        %v5503 = vld [vmem:[#allocation2 + $0x56c] sm:$0xf]
        %v5504 = vld [vmem:[#allocation2 + $0x570] sm:$0xf]
        %v5505 = vld [vmem:[#allocation2 + $0x574] sm:$0xf]
        %v5506 = vld [vmem:[#allocation2 + $0x578] sm:$0xf]
        %v5507 = vld [vmem:[#allocation2 + $0x57c] sm:$0xf]
        %v5508 = vld [vmem:[#allocation2 + $0x580] sm:$0xf]
        %v5509 = vld [vmem:[#allocation2 + $0x584] sm:$0xf]
        %v5510 = vld [vmem:[#allocation2 + $0x588] sm:$0xf]
        %v5511 = vld [vmem:[#allocation2 + $0x58c] sm:$0xf]
        %v5512 = vld [vmem:[#allocation2 + $0x590] sm:$0xf]
        %v5513 = vld [vmem:[#allocation2 + $0x594] sm:$0xf]
        %v5514 = vld [vmem:[%s2 + $0x14] sm:$0x1]
        %v5515 = vlaneseq
        %v5516 = vshrl.u32 %v5515, 7
        %v5517 = vsub.s32 0, %v5516
        %v5518 = vrot.slane %v5514, %v5517
        %v5535 = vunpack.c.l.b16 %v5498
        %v5536 = vunpack.c.l.b16 %v5499
        %v5537 = vunpack.c.l.b16 %v5500
        %v5538 = vunpack.c.l.b16 %v5501
        %v5539 = vunpack.c.l.b16 %v5502
        %v5540 = vunpack.c.l.b16 %v5503
        %v5541 = vunpack.c.l.b16 %v5504
        %v5542 = vunpack.c.l.b16 %v5505
        %v5543 = vunpack.c.l.b16 %v5506
        %v5544 = vunpack.c.l.b16 %v5507
        %v5545 = vunpack.c.l.b16 %v5508
        %v5546 = vunpack.c.l.b16 %v5509
        %v5547 = vunpack.c.l.b16 %v5510
        %v5548 = vunpack.c.l.b16 %v5511
        %v5549 = vunpack.c.l.b16 %v5512
        %v5550 = vunpack.c.l.b16 %v5513
        %v5551 = vpack.c.b16 %v5536, %v5535
        %v5552 = vpack.c.b16 %v5538, %v5537
        %v5553 = vpack.c.b16 %v5540, %v5539
        %v5554 = vpack.c.b16 %v5542, %v5541
        %v5555 = vpack.c.b16 %v5544, %v5543
        %v5556 = vpack.c.b16 %v5546, %v5545
        %v5557 = vpack.c.b16 %v5548, %v5547
        %v5558 = vpack.c.b16 %v5550, %v5549
        %5567 = vmatprep.subr.bf16.mxu0 0
        %5568 = vmatpush1.bf16.msra.mxu0 %v5551
        %5569 = vmatprep.subr.bf16.mxu0 0
        %5570 = vmatpush1.bf16.msra.mxu0 %v5552
        %5571 = vmatprep.subr.bf16.mxu0 0
        %5572 = vmatpush1.bf16.msra.mxu0 %v5553
        %5573 = vmatprep.subr.bf16.mxu0 0
        %5574 = vmatpush1.bf16.msra.mxu0 %v5554
        %5575 = vmatprep.subr.bf16.mxu0 0
        %5576 = vmatpush1.bf16.msra.mxu0 %v5555
        %5577 = vmatprep.subr.bf16.mxu0 0
        %5578 = vmatpush1.bf16.msra.mxu0 %v5556
        %5579 = vmatprep.subr.bf16.mxu0 0
        %5580 = vmatpush1.bf16.msra.mxu0 %v5557
        %5581 = vmatprep.subr.bf16.mxu0 0
        %5582 = vmatpush1.bf16.msra.mxu0 %v5558
        %5583 = vmatprep.subr.bf16.mxu0 0
        %5584 = vmatpush1.bf16.msra.mxu0 0
        %5585 = vmatprep.subr.bf16.mxu0 0
        %5586 = vmatpush1.bf16.msra.mxu0 0
        %5587 = vmatprep.subr.bf16.mxu0 0
        %5588 = vmatpush1.bf16.msra.mxu0 0
        %5589 = vmatprep.subr.bf16.mxu0 0
        %5590 = vmatpush1.bf16.msra.mxu0 0
        %5591 = vmatprep.subr.bf16.mxu0 0
        %5592 = vmatpush1.bf16.msra.mxu0 0
        %5593 = vmatprep.subr.bf16.mxu0 0
        %5594 = vmatpush1.bf16.msra.mxu0 0
        %5595 = vmatprep.subr.bf16.mxu0 0
        %5596 = vmatpush1.bf16.msra.mxu0 0
        %5597 = vmatprep.subr.bf16.mxu0 0
        %5598 = vmatpush1.bf16.msra.mxu0 0
        %5599 = vmatprep.mubr.bf16.mxu0 0
        %5600 = vmatmul.mubr.bf16.gmra.mrb[0].mxu0 %v5493
        %v5601 = vpop.f32.mrb[0].mxu0
        %v5602 = vadd.f32 %v5518, %v5601
        %v5603 = vpop.f32.mrb[0].mxu0
        %v5604 = vpop.f32.mrb[0].mxu0
        %v5605 = vadd.f32 %v5518, %v5604
        %v5606 = vpop.f32.mrb[0].mxu0
        %5607 = vmatprep.mubr.bf16.mxu0 0
        %5608 = vmatmul.mubr.bf16.gmra.mrb[0].mxu0 %v5494
        %v5609 = vpop.f32.mrb[0].mxu0
        %v5610 = vadd.f32 %v5518, %v5609
        %v5611 = vpop.f32.mrb[0].mxu0
        %v5612 = vpop.f32.mrb[0].mxu0
        %v5613 = vadd.f32 %v5518, %v5612
        %v5614 = vpop.f32.mrb[0].mxu0
        %5615 = vmatprep.mubr.bf16.mxu0 0
        %5616 = vmatmul.mubr.bf16.gmra.mrb[0].mxu0 %v5495
        %v5617 = vpop.f32.mrb[0].mxu0
        %v5618 = vadd.f32 %v5518, %v5617
        %v5619 = vpop.f32.mrb[0].mxu0
        %v5620 = vpop.f32.mrb[0].mxu0
        %v5621 = vadd.f32 %v5518, %v5620
        %v5622 = vpop.f32.mrb[0].mxu0
        %5623 = vmatprep.mubr.bf16.mxu0 0
        %5624 = vmatmul.mubr.bf16.gmra.mrb[0].mxu0 %v5496
        %v5625 = vpop.f32.mrb[0].mxu0
        %v5626 = vadd.f32 %v5518, %v5625
        %v5627 = vpop.f32.mrb[0].mxu0
        %v5628 = vpop.f32.mrb[0].mxu0
        %v5629 = vadd.f32 %v5518, %v5628
        %v5630 = vpop.f32.mrb[0].mxu0
        %5631 = vmatprep.mubr.bf16.mxu0 0
        %5632 = vmatmul.mubr.bf16.gmra.mrb[0].mxu0 %v5497
        %v5633 = vpop.f32.mrb[0].mxu0
        %v5634 = vadd.f32 %v5518, %v5633
        %v5635 = vpop.f32.mrb[0].mxu0
        %v5636 = vpop.f32.mrb[0].mxu0
        %v5637 = vadd.f32 %v5518, %v5636
        %v5638 = vpop.f32.mrb[0].mxu0
        %5639 = vdwg.mxu0
        %v5640 = vmul.f32 %v5602, 0.5
        %v5641 = vmul.f32 %v5605, 0.5
        %v5642 = vmul.f32 %v5610, 0.5
        %v5643 = vmul.f32 %v5613, 0.5
        %v5644 = vmul.f32 %v5618, 0.5
        %v5645 = vmul.f32 %v5621, 0.5
        %v5646 = vmul.f32 %v5626, 0.5
        %v5647 = vmul.f32 %v5629, 0.5
        %v5648 = vmul.f32 %v5634, 0.5
        %v5649 = vmul.f32 %v5637, 0.5
        %v5650 = vmul.f32 %v5602, 0.044715
        %v5651 = vmul.f32 %v5605, 0.044715
        %v5652 = vmul.f32 %v5610, 0.044715
        %v5653 = vmul.f32 %v5613, 0.044715
        %v5654 = vmul.f32 %v5618, 0.044715
        %v5655 = vmul.f32 %v5621, 0.044715
        %v5656 = vmul.f32 %v5626, 0.044715
        %v5657 = vmul.f32 %v5629, 0.044715
        %v5658 = vmul.f32 %v5634, 0.044715
        %v5659 = vmul.f32 %v5637, 0.044715
        %v5660 = vmul.f32 %v5650, %v5602
        %v5661 = vmul.f32 %v5651, %v5605
        %v5662 = vmul.f32 %v5652, %v5610
        %v5663 = vmul.f32 %v5653, %v5613
        %v5664 = vmul.f32 %v5654, %v5618
        %v5665 = vmul.f32 %v5655, %v5621
        %v5666 = vmul.f32 %v5656, %v5626
        %v5667 = vmul.f32 %v5657, %v5629
        %v5668 = vmul.f32 %v5658, %v5634
        %v5669 = vmul.f32 %v5659, %v5637
        %v5670 = vmul.f32 %v5660, %v5602
        %v5671 = vmul.f32 %v5661, %v5605
        %v5672 = vmul.f32 %v5662, %v5610
        %v5673 = vmul.f32 %v5663, %v5613
        %v5674 = vmul.f32 %v5664, %v5618
        %v5675 = vmul.f32 %v5665, %v5621
        %v5676 = vmul.f32 %v5666, %v5626
        %v5677 = vmul.f32 %v5667, %v5629
        %v5678 = vmul.f32 %v5668, %v5634
        %v5679 = vmul.f32 %v5669, %v5637
        %v5680 = vadd.f32 %v5602, %v5670
        %v5681 = vadd.f32 %v5605, %v5671
        %v5682 = vadd.f32 %v5610, %v5672
        %v5683 = vadd.f32 %v5613, %v5673
        %v5684 = vadd.f32 %v5618, %v5674
        %v5685 = vadd.f32 %v5621, %v5675
        %v5686 = vadd.f32 %v5626, %v5676
        %v5687 = vadd.f32 %v5629, %v5677
        %v5688 = vadd.f32 %v5634, %v5678
        %v5689 = vadd.f32 %v5637, %v5679
        %v5690 = vmul.f32 %v5680, 0.7978846
        %v5691 = vmul.f32 %v5681, 0.7978846
        %v5692 = vmul.f32 %v5682, 0.7978846
        %v5693 = vmul.f32 %v5683, 0.7978846
        %v5694 = vmul.f32 %v5684, 0.7978846
        %v5695 = vmul.f32 %v5685, 0.7978846
        %v5696 = vmul.f32 %v5686, 0.7978846
        %v5697 = vmul.f32 %v5687, 0.7978846
        %v5698 = vmul.f32 %v5688, 0.7978846
        %v5699 = vmul.f32 %v5689, 0.7978846
        %v5700 = vtanh.pop %v5690
        %v5701 = vtanh.pop %v5691
        %v5702 = vtanh.pop %v5692
        %v5703 = vtanh.pop %v5693
        %v5704 = vtanh.pop %v5694
        %v5705 = vtanh.pop %v5695
        %v5706 = vtanh.pop %v5696
        %v5707 = vtanh.pop %v5697
        %v5708 = vtanh.pop %v5698
        %v5709 = vtanh.pop %v5699
        %v5710 = vadd.f32 %v5700, 1.0
        %v5711 = vadd.f32 %v5701, 1.0
        %v5712 = vadd.f32 %v5702, 1.0
        %v5713 = vadd.f32 %v5703, 1.0
        %v5714 = vadd.f32 %v5704, 1.0
        %v5715 = vadd.f32 %v5705, 1.0
        %v5716 = vadd.f32 %v5706, 1.0
        %v5717 = vadd.f32 %v5707, 1.0
        %v5718 = vadd.f32 %v5708, 1.0
        %v5719 = vadd.f32 %v5709, 1.0
        %v5720 = vmul.f32 %v5640, %v5710
        %v5721 = vmul.f32 %v5641, %v5711
        %v5722 = vmul.f32 %v5642, %v5712
        %v5723 = vmul.f32 %v5643, %v5713
        %v5724 = vmul.f32 %v5644, %v5714
        %v5725 = vmul.f32 %v5645, %v5715
        %v5726 = vmul.f32 %v5646, %v5716
        %v5727 = vmul.f32 %v5647, %v5717
        %v5728 = vmul.f32 %v5648, %v5718
        %v5729 = vmul.f32 %v5649, %v5719
        %v5730 = vpack.c.bf16 %v5721, %v5720
        %v5731 = vpack.c.bf16 %v5723, %v5722
        %v5732 = vpack.c.bf16 %v5725, %v5724
        %v5733 = vpack.c.bf16 %v5727, %v5726
        %v5734 = vpack.c.bf16 %v5729, %v5728
        %v5735 = vld [vmem:[#allocation2 + $0x598] sm:$0xf]
        %v5736 = vld [vmem:[#allocation2 + $0x59c] sm:$0xf]
        %v5737 = vld [vmem:[#allocation2 + $0x5a0] sm:$0xf]
        %v5738 = vld [vmem:[#allocation2 + $0x5a4] sm:$0xf]
        %v5739 = vld [vmem:[#allocation2 + $0x5a8] sm:$0xf]
        %v5740 = vld [vmem:[#allocation2 + $0x5ac] sm:$0xf]
        %v5741 = vld [vmem:[#allocation2 + $0x5b0] sm:$0xf]
        %v5742 = vld [vmem:[#allocation2 + $0x5b4] sm:$0xf]
        %v5743 = vld [vmem:[#allocation2 + $0x5b8] sm:$0xf]
        %v5744 = vld [vmem:[#allocation2 + $0x5bc] sm:$0xf]
        %v5745 = vld [vmem:[#allocation2 + $0x5c0] sm:$0xf]
        %v5746 = vld [vmem:[#allocation2 + $0x5c4] sm:$0xf]
        %v5747 = vld [vmem:[#allocation2 + $0x5c8] sm:$0xf]
        %v5748 = vld [vmem:[#allocation2 + $0x5cc] sm:$0xf]
        %v5749 = vld [vmem:[#allocation2 + $0x5d0] sm:$0xf]
        %v5750 = vld [vmem:[#allocation2 + $0x5d4] sm:$0xf]
        %v5751 = vld [vmem:[%s2 + $0x15] sm:$0x1]
        %v5752 = vlaneseq
        %v5753 = vshrl.u32 %v5752, 7
        %v5754 = vsub.s32 0, %v5753
        %v5755 = vrot.slane %v5751, %v5754
        %v5772 = vunpack.c.l.b16 %v5735
        %v5773 = vunpack.c.l.b16 %v5736
        %v5774 = vunpack.c.l.b16 %v5737
        %v5775 = vunpack.c.l.b16 %v5738
        %v5776 = vunpack.c.l.b16 %v5739
        %v5777 = vunpack.c.l.b16 %v5740
        %v5778 = vunpack.c.l.b16 %v5741
        %v5779 = vunpack.c.l.b16 %v5742
        %v5780 = vunpack.c.l.b16 %v5743
        %v5781 = vunpack.c.l.b16 %v5744
        %v5782 = vunpack.c.l.b16 %v5745
        %v5783 = vunpack.c.l.b16 %v5746
        %v5784 = vunpack.c.l.b16 %v5747
        %v5785 = vunpack.c.l.b16 %v5748
        %v5786 = vunpack.c.l.b16 %v5749
        %v5787 = vunpack.c.l.b16 %v5750
        %v5788 = vpack.c.b16 %v5773, %v5772
        %v5789 = vpack.c.b16 %v5775, %v5774
        %v5790 = vpack.c.b16 %v5777, %v5776
        %v5791 = vpack.c.b16 %v5779, %v5778
        %v5792 = vpack.c.b16 %v5781, %v5780
        %v5793 = vpack.c.b16 %v5783, %v5782
        %v5794 = vpack.c.b16 %v5785, %v5784
        %v5795 = vpack.c.b16 %v5787, %v5786
        %5804 = vmatprep.subr.bf16.mxu0 0
        %5805 = vmatpush1.bf16.msra.mxu0 %v5788
        %5806 = vmatprep.subr.bf16.mxu0 0
        %5807 = vmatpush1.bf16.msra.mxu0 %v5789
        %5808 = vmatprep.subr.bf16.mxu0 0
        %5809 = vmatpush1.bf16.msra.mxu0 %v5790
        %5810 = vmatprep.subr.bf16.mxu0 0
        %5811 = vmatpush1.bf16.msra.mxu0 %v5791
        %5812 = vmatprep.subr.bf16.mxu0 0
        %5813 = vmatpush1.bf16.msra.mxu0 %v5792
        %5814 = vmatprep.subr.bf16.mxu0 0
        %5815 = vmatpush1.bf16.msra.mxu0 %v5793
        %5816 = vmatprep.subr.bf16.mxu0 0
        %5817 = vmatpush1.bf16.msra.mxu0 %v5794
        %5818 = vmatprep.subr.bf16.mxu0 0
        %5819 = vmatpush1.bf16.msra.mxu0 %v5795
        %5820 = vmatprep.subr.bf16.mxu0 0
        %5821 = vmatpush1.bf16.msra.mxu0 0
        %5822 = vmatprep.subr.bf16.mxu0 0
        %5823 = vmatpush1.bf16.msra.mxu0 0
        %5824 = vmatprep.subr.bf16.mxu0 0
        %5825 = vmatpush1.bf16.msra.mxu0 0
        %5826 = vmatprep.subr.bf16.mxu0 0
        %5827 = vmatpush1.bf16.msra.mxu0 0
        %5828 = vmatprep.subr.bf16.mxu0 0
        %5829 = vmatpush1.bf16.msra.mxu0 0
        %5830 = vmatprep.subr.bf16.mxu0 0
        %5831 = vmatpush1.bf16.msra.mxu0 0
        %5832 = vmatprep.subr.bf16.mxu0 0
        %5833 = vmatpush1.bf16.msra.mxu0 0
        %5834 = vmatprep.subr.bf16.mxu0 0
        %5835 = vmatpush1.bf16.msra.mxu0 0
        %5836 = vmatprep.mubr.bf16.mxu0 0
        %5837 = vmatmul.mubr.bf16.gmra.mrb[0].mxu0 %v5730
        %v5838 = vpop.f32.mrb[0].mxu0
        %v5839 = vadd.f32 %v5755, %v5838
        %v5840 = vpop.f32.mrb[0].mxu0
        %v5841 = vpop.f32.mrb[0].mxu0
        %v5842 = vadd.f32 %v5755, %v5841
        %v5843 = vpop.f32.mrb[0].mxu0
        %5844 = vmatprep.mubr.bf16.mxu0 0
        %5845 = vmatmul.mubr.bf16.gmra.mrb[0].mxu0 %v5731
        %v5846 = vpop.f32.mrb[0].mxu0
        %v5847 = vadd.f32 %v5755, %v5846
        %v5848 = vpop.f32.mrb[0].mxu0
        %v5849 = vpop.f32.mrb[0].mxu0
        %v5850 = vadd.f32 %v5755, %v5849
        %v5851 = vpop.f32.mrb[0].mxu0
        %5852 = vmatprep.mubr.bf16.mxu0 0
        %5853 = vmatmul.mubr.bf16.gmra.mrb[0].mxu0 %v5732
        %v5854 = vpop.f32.mrb[0].mxu0
        %v5855 = vadd.f32 %v5755, %v5854
        %v5856 = vpop.f32.mrb[0].mxu0
        %v5857 = vpop.f32.mrb[0].mxu0
        %v5858 = vadd.f32 %v5755, %v5857
        %v5859 = vpop.f32.mrb[0].mxu0
        %5860 = vmatprep.mubr.bf16.mxu0 0
        %5861 = vmatmul.mubr.bf16.gmra.mrb[0].mxu0 %v5733
        %v5862 = vpop.f32.mrb[0].mxu0
        %v5863 = vadd.f32 %v5755, %v5862
        %v5864 = vpop.f32.mrb[0].mxu0
        %v5865 = vpop.f32.mrb[0].mxu0
        %v5866 = vadd.f32 %v5755, %v5865
        %v5867 = vpop.f32.mrb[0].mxu0
        %5868 = vmatprep.mubr.bf16.mxu0 0
        %5869 = vmatmul.mubr.bf16.gmra.mrb[0].mxu0 %v5734
        %v5870 = vpop.f32.mrb[0].mxu0
        %v5871 = vadd.f32 %v5755, %v5870
        %v5872 = vpop.f32.mrb[0].mxu0
        %v5873 = vpop.f32.mrb[0].mxu0
        %v5874 = vadd.f32 %v5755, %v5873
        %v5875 = vpop.f32.mrb[0].mxu0
        %5876 = vdwg.mxu0
        %v5877 = vadd.f32 %v5483, %v5839
        %v5878 = vadd.f32 %v5484, %v5842
        %v5879 = vadd.f32 %v5485, %v5847
        %v5880 = vadd.f32 %v5486, %v5850
        %v5881 = vadd.f32 %v5487, %v5855
        %v5882 = vadd.f32 %v5488, %v5858
        %v5883 = vadd.f32 %v5489, %v5863
        %v5884 = vadd.f32 %v5490, %v5866
        %v5885 = vadd.f32 %v5491, %v5871
        %v5886 = vadd.f32 %v5492, %v5874
        %v5887 = vld [vmem:[%s2 + $0x16] sm:$0x1]
        %v5888 = vld [vmem:[%s2 + $0x17] sm:$0x1]
        %5889 = vadd.xlane.f32.xlu0 %v5877
        %v5890 = vpop.xlane.xlu0 %5889
        %5891 = vadd.xlane.f32.xlu0 %v5878
        %v5892 = vpop.xlane.xlu0 %5891
        %5893 = vadd.xlane.f32.xlu0 %v5879
        %v5894 = vpop.xlane.xlu0 %5893
        %5895 = vadd.xlane.f32.xlu0 %v5880
        %v5896 = vpop.xlane.xlu0 %5895
        %5897 = vadd.xlane.f32.xlu0 %v5881
        %v5898 = vpop.xlane.xlu0 %5897
        %5899 = vadd.xlane.f32.xlu0 %v5882
        %v5900 = vpop.xlane.xlu0 %5899
        %5901 = vadd.xlane.f32.xlu0 %v5883
        %v5902 = vpop.xlane.xlu0 %5901
        %5903 = vadd.xlane.f32.xlu0 %v5884
        %v5904 = vpop.xlane.xlu0 %5903
        %5905 = vadd.xlane.f32.xlu0 %v5885
        %v5906 = vpop.xlane.xlu0 %5905
        %5907 = vadd.xlane.f32.xlu0 %v5886
        %v5908 = vpop.xlane.xlu0 %5907
        %v5909 = vmul.f32 %v5890, 0.03125
        %v5910 = vmul.f32 %v5892, 0.03125
        %v5911 = vmul.f32 %v5894, 0.03125
        %v5912 = vmul.f32 %v5896, 0.03125
        %v5913 = vmul.f32 %v5898, 0.03125
        %v5914 = vmul.f32 %v5900, 0.03125
        %v5915 = vmul.f32 %v5902, 0.03125
        %v5916 = vmul.f32 %v5904, 0.03125
        %v5917 = vmul.f32 %v5906, 0.03125
        %v5918 = vmul.f32 %v5908, 0.03125
        %v5919 = vsub.f32 %v5877, %v5909
        %v5920 = vsub.f32 %v5878, %v5910
        %v5921 = vsub.f32 %v5879, %v5911
        %v5922 = vsub.f32 %v5880, %v5912
        %v5923 = vsub.f32 %v5881, %v5913
        %v5924 = vsub.f32 %v5882, %v5914
        %v5925 = vsub.f32 %v5883, %v5915
        %v5926 = vsub.f32 %v5884, %v5916
        %v5927 = vsub.f32 %v5885, %v5917
        %v5928 = vsub.f32 %v5886, %v5918
        %v5929 = vmul.f32 %v5919, %v5919
        %v5930 = vmul.f32 %v5920, %v5920
        %v5931 = vmul.f32 %v5921, %v5921
        %v5932 = vmul.f32 %v5922, %v5922
        %v5933 = vmul.f32 %v5923, %v5923
        %v5934 = vmul.f32 %v5924, %v5924
        %v5935 = vmul.f32 %v5925, %v5925
        %v5936 = vmul.f32 %v5926, %v5926
        %v5937 = vmul.f32 %v5927, %v5927
        %v5938 = vmul.f32 %v5928, %v5928
        %v5939 = vsel %vm1556, %v5929, 0.0
        %v5940 = vsel %vm1556, %v5930, 0.0
        %v5941 = vsel %vm1556, %v5931, 0.0
        %v5942 = vsel %vm1556, %v5932, 0.0
        %v5943 = vsel %vm1556, %v5933, 0.0
        %v5944 = vsel %vm1556, %v5934, 0.0
        %v5945 = vsel %vm1556, %v5935, 0.0
        %v5946 = vsel %vm1556, %v5936, 0.0
        %v5947 = vsel %vm1556, %v5937, 0.0
        %v5948 = vsel %vm1556, %v5938, 0.0
        %5949 = vadd.xlane.f32.xlu0 %v5939
        %v5950 = vpop.xlane.xlu0 %5949
        %5951 = vadd.xlane.f32.xlu0 %v5940
        %v5952 = vpop.xlane.xlu0 %5951
        %5953 = vadd.xlane.f32.xlu0 %v5941
        %v5954 = vpop.xlane.xlu0 %5953
        %5955 = vadd.xlane.f32.xlu0 %v5942
        %v5956 = vpop.xlane.xlu0 %5955
        %5957 = vadd.xlane.f32.xlu0 %v5943
        %v5958 = vpop.xlane.xlu0 %5957
        %5959 = vadd.xlane.f32.xlu0 %v5944
        %v5960 = vpop.xlane.xlu0 %5959
        %5961 = vadd.xlane.f32.xlu0 %v5945
        %v5962 = vpop.xlane.xlu0 %5961
        %5963 = vadd.xlane.f32.xlu0 %v5946
        %v5964 = vpop.xlane.xlu0 %5963
        %5965 = vadd.xlane.f32.xlu0 %v5947
        %v5966 = vpop.xlane.xlu0 %5965
        %5967 = vadd.xlane.f32.xlu0 %v5948
        %v5968 = vpop.xlane.xlu0 %5967
        %v5969 = vmul.f32 %v5950, 0.03125
        %v5970 = vmul.f32 %v5952, 0.03125
        %v5971 = vmul.f32 %v5954, 0.03125
        %v5972 = vmul.f32 %v5956, 0.03125
        %v5973 = vmul.f32 %v5958, 0.03125
        %v5974 = vmul.f32 %v5960, 0.03125
        %v5975 = vmul.f32 %v5962, 0.03125
        %v5976 = vmul.f32 %v5964, 0.03125
        %v5977 = vmul.f32 %v5966, 0.03125
        %v5978 = vmul.f32 %v5968, 0.03125
        %v5979 = vadd.f32 %v5969, 1e-05
        %v5980 = vadd.f32 %v5970, 1e-05
        %v5981 = vadd.f32 %v5971, 1e-05
        %v5982 = vadd.f32 %v5972, 1e-05
        %v5983 = vadd.f32 %v5973, 1e-05
        %v5984 = vadd.f32 %v5974, 1e-05
        %v5985 = vadd.f32 %v5975, 1e-05
        %v5986 = vadd.f32 %v5976, 1e-05
        %v5987 = vadd.f32 %v5977, 1e-05
        %v5988 = vadd.f32 %v5978, 1e-05
        %v5989 = vrsqrt.pop %v5979
        %v5990 = vrsqrt.pop %v5980
        %v5991 = vrsqrt.pop %v5981
        %v5992 = vrsqrt.pop %v5982
        %v5993 = vrsqrt.pop %v5983
        %v5994 = vrsqrt.pop %v5984
        %v5995 = vrsqrt.pop %v5985
        %v5996 = vrsqrt.pop %v5986
        %v5997 = vrsqrt.pop %v5987
        %v5998 = vrsqrt.pop %v5988
        %v5999 = vmul.f32 %v5919, %v5989
        %v6000 = vmul.f32 %v5920, %v5990
        %v6001 = vmul.f32 %v5921, %v5991
        %v6002 = vmul.f32 %v5922, %v5992
        %v6003 = vmul.f32 %v5923, %v5993
        %v6004 = vmul.f32 %v5924, %v5994
        %v6005 = vmul.f32 %v5925, %v5995
        %v6006 = vmul.f32 %v5926, %v5996
        %v6007 = vmul.f32 %v5927, %v5997
        %v6008 = vmul.f32 %v5928, %v5998
        %v6009 = vlaneseq
        %v6010 = vshrl.u32 %v6009, 7
        %v6011 = vsub.s32 0, %v6010
        %v6012 = vrot.slane %v5887, %v6011
        %v6013 = vmul.f32 %v5999, %v6012
        %v6014 = vmul.f32 %v6000, %v6012
        %v6015 = vmul.f32 %v6001, %v6012
        %v6016 = vmul.f32 %v6002, %v6012
        %v6017 = vmul.f32 %v6003, %v6012
        %v6018 = vmul.f32 %v6004, %v6012
        %v6019 = vmul.f32 %v6005, %v6012
        %v6020 = vmul.f32 %v6006, %v6012
        %v6021 = vmul.f32 %v6007, %v6012
        %v6022 = vmul.f32 %v6008, %v6012
        %v6023 = vlaneseq
        %v6024 = vshrl.u32 %v6023, 7
        %v6025 = vsub.s32 0, %v6024
        %v6026 = vrot.slane %v5888, %v6025
        %v6027 = vadd.f32 %v6013, %v6026
        %v6028 = vadd.f32 %v6014, %v6026
        %v6029 = vadd.f32 %v6015, %v6026
        %v6030 = vadd.f32 %v6016, %v6026
        %v6031 = vadd.f32 %v6017, %v6026
        %v6032 = vadd.f32 %v6018, %v6026
        %v6033 = vadd.f32 %v6019, %v6026
        %v6034 = vadd.f32 %v6020, %v6026
        %v6035 = vadd.f32 %v6021, %v6026
        %v6036 = vadd.f32 %v6022, %v6026
        %6037 = vst [vmem:[%s185] sm:$0xff] %v6027
        %6038 = vst [vmem:[%s185 + $0x8] sm:$0xff] %v6028
        %6039 = vst [vmem:[%s185 + $0x10] sm:$0xff] %v6029
        %6040 = vst [vmem:[%s185 + $0x18] sm:$0xff] %v6030
        %6041 = vst [vmem:[%s185 + $0x20] sm:$0xff] %v6031
        %6042 = vst [vmem:[%s185 + $0x28] sm:$0xff] %v6032
        %6043 = vst [vmem:[%s185 + $0x30] sm:$0xff] %v6033
        %6044 = vst [vmem:[%s185 + $0x38] sm:$0xff] %v6034
        %6045 = vst [vmem:[%s185 + $0x40] sm:$0xff] %v6035
        %6046 = vst [vmem:[%s185 + $0x48] sm:$0xff] %v6036
        %p6047 = scmp.lt.s32.totalorder %s15, 1
        %s6048 = scalar_select %p6047, %s15, 1
        %s6049 = smul.addr %s6048, 10
        %s6050 = smul.addr %s6049, 8
        %s6051 = scalar_lea.vmem %s3, %s6050
        // Predicated region
        $region37: #{encoder_forward.1} parent=31 // pred_check
          %p6052 = pneg %p101
        $region38: #{encoder_forward.1} parent=31 // pred_check_branch
          %6054 = sbr.rel (%p6052) target = $region40
        $region39: #{encoder_forward.1} parent=31 // pred_region
          _
        $region40: #{encoder_forward.1} parent=31 // pred_fallthru
          _
      $region32: #{encoder_forward.1} parent=5 // pred_fallthru
        _
      %p6055 = scmp.le.s32.totalorder 2, %s10
      // Predicated region
      $region41: #{encoder_forward.1} parent=5 // pred_check
        %p6056 = pneg %p6055
      $region42: #{encoder_forward.1} parent=5 // pred_check_branch
        %6058 = sbr.rel (%p6056) target = $region44
      $region43: #{encoder_forward.1} parent=5 // pred_region
        %s6059 = ssub.s32 %s10, 2
        // Predicated region
        $region45: #{encoder_forward.1} parent=43 // pred_check
          %p6060 = pneg %p107
        $region46: #{encoder_forward.1} parent=43 // pred_check_branch
          %6062 = sbr.rel (%p6060) target = $region48
        $region47: #{encoder_forward.1} parent=43 // pred_region
          %p6063 = scmp.lt.s32.totalorder %s16, 1
          %s6064 = scalar_select %p6063, %s16, 1
          %s6065 = smul.addr %s6064, 10
          %s6066 = smul.addr %s6065, 8
          %s6067 = scalar_lea.vmem %s3, %s6066
        $region48: #{encoder_forward.1} parent=43 // pred_fallthru
          _
      $region44: #{encoder_forward.1} parent=5 // pred_fallthru
        _
    $region6: #{encoder_forward.1} parent=1 // loop_footer
      %s14 = sadd.s32 1, %s10
    $region7: #{encoder_forward.1} parent=1 // loop_footer_branch
      %9 = sbr.rel target = $region3
    $region8: #{encoder_forward.1} parent=1 // loop_exit
      _
    %6068 = vsyncpa [#allocation3], 1
    %s6069 = scalar_lea.sflag [#allocation3], 1
    %6070 = vsyncpa %s6069, 1

</llo_original>
